<compile_context>
chip_gen: v6e
topology: v6e:2x2x1
jax: 0.10.0
libtpu: 0.0.40
codegen_flags: <defaults>
</compile_context>

<pallas_src>
import functools
import math

import jax
import jax.numpy as jnp
from jax.experimental import pallas as pl
from jax.experimental.pallas import tpu as pltpu


# ----------------------------------------------------------------------------
# Shared in-kernel conv helper: 3x3, stride 1, padded flat layout.
#   src_ref : (Cin, L) ref, L = (H+3)*Wp, valid image at padded coords (1,1).
#   get_w(k): (Cout, Cin) f32 weight for tap k = dy*3 + dx.
#   Returns (Cout, H*Wp) f32 (columns j in [W, Wp) are wrap-around garbage).
# ----------------------------------------------------------------------------
def _conv_taps(src_ref, get_w, bias, Wp, HWp, relu=False):
    acc = None
    for dy in range(3):
        for dx in range(3):
            k = dy * 3 + dx
            v = src_ref[:, pl.ds(dy * Wp + dx, HWp)]        # lane-offset view
            t = jnp.dot(get_w(k), v, preferred_element_type=jnp.float32)
            acc = t if acc is None else acc + t
    acc = acc + bias
    if relu:
        acc = jnp.maximum(acc, 0.0)
    return acc


# ----------------------------------------------------------------------------
# Fused trunk kernel: head -> (ResBlock per inner grid step) -> body_end(+skip)
# -> post conv.  grid = (batch, n_blocks); activations stay in VMEM scratch.
# ----------------------------------------------------------------------------
def _make_trunk_kernel(Wp, HWp, n_blocks):
    def kernel(*refs):
        it = iter(refs)
        x_ref = next(it)
        mask_ref = next(it)
        head_w, head_b = next(it), next(it)
        if n_blocks > 0:
            blk_w, blk_b = next(it), next(it)
        be_w, be_b = next(it), next(it)
        post_w, post_b = next(it), next(it)
        o_ref = next(it)
        pad_a, pad_b, skip = next(it), next(it), next(it)

        j = pl.program_id(1)
        interior = pl.ds(Wp + 1, HWp)
        mask = mask_ref[...]                                  # (1, HWp)

        # Scratch borders must be zero; interiors are always overwritten with
        # mask-zeroed garbage columns, so a one-time zero fill suffices.
        # (Batch axis is "arbitrary" so this runs on the single executing core.)
        @pl.when((pl.program_id(0) == 0) & (j == 0))
        def _zero_once():
            pad_a[...] = jnp.zeros_like(pad_a)
            pad_b[...] = jnp.zeros_like(pad_b)

        # head conv (Cimg -> F): only on the first inner step of each batch elem
        @pl.when(j == 0)
        def _head():
            h = _conv_taps(x_ref, lambda k: head_w[k], head_b[...], Wp, HWp)
            h = h * mask
            skip[...] = h                                     # long skip
            pad_a[:, interior] = h                            # residual chain

        # one ResBlock per inner grid step: res = conv2(relu(conv1(res))) + res
        if n_blocks > 0:
            t = _conv_taps(pad_a, lambda k: blk_w[k], blk_b[0], Wp, HWp,
                           relu=True) * mask
            pad_b[:, interior] = t
            r = _conv_taps(pad_b, lambda k: blk_w[9 + k], blk_b[1], Wp, HWp)
            pad_a[:, interior] = (r + pad_a[:, interior]) * mask

        # body_end conv + long skip, then post conv (upsampler-1 or tail)
        @pl.when(j == pl.num_programs(1) - 1)
        def _finish():
            y = _conv_taps(pad_a, lambda k: be_w[k], be_b[...], Wp, HWp)
            y = (y + skip[...]) * mask
            pad_b[:, interior] = y
            out = _conv_taps(pad_b, lambda k: post_w[k], post_b[...], Wp, HWp)
            o_ref[...] = out.astype(o_ref.dtype)              # lane-dense store

    return kernel


# ----------------------------------------------------------------------------
# Standalone fused single 3x3 conv (2nd upsample stage, hi-res tail).
# ----------------------------------------------------------------------------
def _single_conv_kernel(x_ref, w_ref, b_ref, o_ref, *, Wp, HWp):
    out = _conv_taps(x_ref, lambda k: w_ref[k], b_ref[...], Wp, HWp)
    o_ref[...] = out.astype(o_ref.dtype)


# ----------------------------------------------------------------------------
# Wrappers.
# ----------------------------------------------------------------------------
def _prep_conv(layer):
    """(3,3,Cin,Cout) weights -> (9, Cout, Cin) f32, bias -> (Cout, 1) f32."""
    w = layer["w"].astype(jnp.float32)
    cin, cout = w.shape[2], w.shape[3]
    w9 = jnp.transpose(w, (0, 1, 3, 2)).reshape(9, cout, cin)
    b = layer["b"].reshape(cout, 1).astype(jnp.float32)
    return w9, b


def _cspec(shape):
    """Full-array block with a constant index map (weights stay VMEM-resident)."""
    nd = len(shape)

    def imap(*_):
        return (0,) * nd

    return pl.BlockSpec(shape, imap)


def _flat_pad(x_nchw):
    """NCHW -> flat padded (N, C, (H+3)*(W+2)); valid pixel (i,j) at (i+1)*Wp+j+1."""
    N, C, H, W = x_nchw.shape
    Wp = W + 2
    xp = jnp.pad(x_nchw, ((0, 0), (0, 0), (1, 2), (1, 1)))
    return xp.reshape(N, C, (H + 3) * Wp)


def fused_trunk(x_nchw, head, blocks, body_end, post):
    """head + idx ResBlocks + body_end(+skip) + post conv, NCHW in/out (flat)."""
    N, Cimg, H, W = x_nchw.shape
    Wp, HWp, L = W + 2, H * (W + 2), (H + 3) * (W + 2)
    xpad = _flat_pad(x_nchw)

    # Column mask: zero the two wrap-around garbage columns (j in [W, Wp)) so
    # they land as zeros on the border columns of the next padded buffer.
    col = jnp.arange(HWp, dtype=jnp.int32) % Wp
    mask = (col < W).astype(jnp.float32).reshape(1, HWp)

    head_w, head_b = _prep_conv(head)
    F = head_w.shape[1]
    be_w, be_b = _prep_conv(body_end)
    post_w, post_b = _prep_conv(post)
    Cpost = post_w.shape[1]
    nb = len(blocks)

    args = [xpad, mask, head_w, head_b]
    in_specs = [pl.BlockSpec((None, Cimg, L), lambda n, j: (n, 0, 0)),
                _cspec(mask.shape), _cspec(head_w.shape), _cspec(head_b.shape)]
    if nb:
        ws, bs = [], []
        for blk in blocks:
            w1, b1 = _prep_conv(blk["c1"])
            w2, b2 = _prep_conv(blk["c2"])
            ws.append(jnp.concatenate([w1, w2], axis=0))      # (18, F, F)
            bs.append(jnp.stack([b1, b2], axis=0))            # (2, F, 1)
        blk_w = jnp.stack(ws)                                 # (nb, 18, F, F)
        blk_b = jnp.stack(bs)                                 # (nb, 2, F, 1)
        args += [blk_w, blk_b]
        # per-block weights streamed along the inner grid axis (double-buffered)
        in_specs += [pl.BlockSpec((None, 18, F, F), lambda n, j: (j, 0, 0, 0)),
                     pl.BlockSpec((None, 2, F, 1), lambda n, j: (j, 0, 0, 0))]
    args += [be_w, be_b, post_w, post_b]
    in_specs += [_cspec(be_w.shape), _cspec(be_b.shape),
                 _cspec(post_w.shape), _cspec(post_b.shape)]

    y = pl.pallas_call(
        _make_trunk_kernel(Wp, HWp, nb),
        out_shape=jax.ShapeDtypeStruct((N, Cpost, HWp), jnp.float32),
        grid=(N, max(nb, 1)),
        in_specs=in_specs,
        out_specs=pl.BlockSpec((None, Cpost, HWp), lambda n, j: (n, 0, 0)),
        scratch_shapes=[
            pltpu.VMEM((F, L), jnp.float32),    # residual chain (padded)
            pltpu.VMEM((F, L), jnp.float32),    # temp (padded)
            pltpu.VMEM((F, HWp), jnp.float32),  # long skip (interior only)
        ],
        # Both axes sequential: scratch (residual / skip / zeroed borders)
        # carries state across the whole grid.  TODO(synk): regain megacore
        # parallelism with a halo'd row-tiled spatial axis instead.
        compiler_params=pltpu.CompilerParams(
            dimension_semantics=("arbitrary", "arbitrary")),
    )(*args)
    return y.reshape(N, Cpost, H, Wp)[:, :, :, :W]


def conv3x3(x_nchw, layer):
    """Standalone fused 3x3 conv (lane-dense output, no scratch)."""
    N, Cin, H, W = x_nchw.shape
    Wp, HWp, L = W + 2, H * (W + 2), (H + 3) * (W + 2)
    xpad = _flat_pad(x_nchw)
    w9, b = _prep_conv(layer)
    Cout = w9.shape[1]
    y = pl.pallas_call(
        functools.partial(_single_conv_kernel, Wp=Wp, HWp=HWp),
        out_shape=jax.ShapeDtypeStruct((N, Cout, HWp), jnp.float32),
        grid=(N,),
        in_specs=[pl.BlockSpec((None, Cin, L), lambda n: (n, 0, 0)),
                  _cspec(w9.shape), _cspec(b.shape)],
        out_specs=pl.BlockSpec((None, Cout, HWp), lambda n: (n, 0, 0)),
        compiler_params=pltpu.CompilerParams(
            dimension_semantics=("parallel",)),
    )(xpad, w9, b)
    return y.reshape(N, Cout, H, Wp)[:, :, :, :W]


# ----------------------------------------------------------------------------
# PixelShuffle (NCHW, matches torch.nn.PixelShuffle).  Pure layout movement,
# kept as XLA glue between fused kernels.
# ----------------------------------------------------------------------------
def pixel_shuffle(x, r):
    N, C, H, W = x.shape
    c = C // (r * r)
    x = x.reshape(N, c, r, r, H, W)
    x = jnp.transpose(x, (0, 1, 4, 2, 5, 3))
    return x.reshape(N, c, H * r, W * r)


# ----------------------------------------------------------------------------
# Parameter construction (deterministic, synthetic).
# ----------------------------------------------------------------------------
def get_config(quality):
    cfgs = {
        "low":    {4: (18, 9),  3: (18, 8),  2: (18, 4),  1: (4, 2)},
        "medium": {4: (18, 21), 3: (18, 18), 2: (18, 9),  1: (4, 7)},
        "high":   {4: (18, 32), 3: (18, 29), 2: (18, 18), 1: (4, 16)},
        "ultra":  {4: (18, 48), 3: (18, 42), 2: (18, 26), 1: (4, 26)},
    }
    return cfgs[quality]


def _init_conv(key, cin, cout):
    kw, kb = jax.random.split(key)
    w = jax.random.normal(kw, (3, 3, cin, cout), jnp.float32) / math.sqrt(cin * 9)
    b = jax.random.normal(kb, (cout,), jnp.float32) * 0.01
    return {"w": w, "b": b}


def init_single_network(key, n_layer, n_feat, n_channel, scale):
    n_resblock = (n_layer - 2) // 2
    keys = jax.random.split(key, 2 * n_resblock + 8)
    ki = iter(range(len(keys)))
    params = {
        "nResblock": n_resblock,
        "scale": scale,
        "head": _init_conv(keys[next(ki)], n_channel, n_feat),
        "body": [],
        "body_end": _init_conv(keys[next(ki)], n_feat, n_feat),
        "upscale": [],
    }
    for _ in range(n_resblock):
        params["body"].append({
            "c1": _init_conv(keys[next(ki)], n_feat, n_feat),
            "c2": _init_conv(keys[next(ki)], n_feat, n_feat),
        })
    if scale > 1:
        if scale in (2, 4):
            for _ in range(int(math.log2(scale))):
                up = _init_conv(keys[next(ki)], n_feat, 4 * n_feat)
                up["r"] = 2
                params["upscale"].append(up)
        elif scale == 3:
            up = _init_conv(keys[next(ki)], n_feat, 9 * n_feat)
            up["r"] = 3
            params["upscale"].append(up)
    params["tail"] = _init_conv(keys[next(ki)], n_feat, n_channel)
    return params


def init_multi_network(key, quality):
    cfg = get_config(quality)
    keys = jax.random.split(key, 4)
    nets = []
    for i, scale in enumerate([4, 3, 2, 1]):
        n_layer, n_feat = cfg[scale]
        nets.append(init_single_network(keys[i], n_layer, n_feat, 3, scale))
    return {"networks": nets, "scale_dict": {1: 3, 2: 2, 3: 1, 4: 0}}


# ----------------------------------------------------------------------------
# Forward passes (Pallas).
# ----------------------------------------------------------------------------
def single_network_forward(p, x_nchw, idx=None):
    n_resblock = p["nResblock"]
    if idx is None:
        # TODO(synk): PyTorch picks idx randomly from common.random_gradual_03;
        # we deterministically default to full depth (idx = nResblock).
        idx = n_resblock
    assert 0 <= idx <= n_resblock
    blocks = p["body"][:idx]
    x = x_nchw.astype(jnp.float32)

    if p["scale"] == 1:
        # fully fused: head + blocks + body_end(+skip) + tail in one kernel
        return fused_trunk(x, p["head"], blocks, p["body_end"], p["tail"])

    up0 = p["upscale"][0]
    y = fused_trunk(x, p["head"], blocks, p["body_end"], up0)
    y = pixel_shuffle(y, up0["r"])
    for up in p["upscale"][1:]:                 # only for scale == 4
        y = conv3x3(y, up)
        y = pixel_shuffle(y, up["r"])
    return conv3x3(y, p["tail"])


def multi_network_forward(params, x_nchw, target_scale, idx=None):
    assert target_scale is not None
    net = params["networks"][params["scale_dict"][target_scale]]
    return single_network_forward(net, x_nchw, idx)


# ----------------------------------------------------------------------------
# Pure-JAX reference (for correctness check in __main__).
# ----------------------------------------------------------------------------
def _conv_ref(x, layer):
    w = jnp.transpose(layer["w"], (3, 2, 0, 1))          # HWIO -> OIHW
    y = jax.lax.conv_general_dilated(
        x, w, (1, 1), "SAME",
        dimension_numbers=("NCHW", "OIHW", "NCHW"),
        precision=jax.lax.Precision.HIGHEST)
    return y + layer["b"].reshape(1, -1, 1, 1)


def single_network_ref(p, x, idx=None):
    if idx is None:
        idx = p["nResblock"]
    h = _conv_ref(x, p["head"])
    res = h
    for i in range(idx):
        blk = p["body"][i]
        t = jnp.maximum(_conv_ref(res, blk["c1"]), 0.0)
        res = _conv_ref(t, blk["c2"]) + res
    res = _conv_ref(res, p["body_end"]) + h
    y = res
    if p["scale"] > 1:
        for up in p["upscale"]:
            y = pixel_shuffle(_conv_ref(y, up), up["r"])
    return _conv_ref(y, p["tail"])


def multi_network_ref(params, x, target_scale, idx=None):
    net = params["networks"][params["scale_dict"][target_scale]]
    return single_network_ref(net, x, idx)


# ----------------------------------------------------------------------------
if __name__ == "__main__":
    params = init_multi_network(jax.random.PRNGKey(0), quality="low")
    x = jax.random.normal(jax.random.PRNGKey(0), (2, 3, 16, 16), jnp.float32)

    # target_scale=2 net: nFeat=4, 8 ResBlocks, conv -> PixelShuffle(2) -> tail.
    y = jax.block_until_ready(multi_network_forward(params, x, target_scale=2,
                                                    idx=None))
    assert y.shape == (2, 3, 32, 32), y.shape
    assert jnp.all(jnp.isfinite(y))
    y_ref = multi_network_ref(params, x, target_scale=2, idx=None)
    err = float(jnp.max(jnp.abs(y - y_ref)))
    ref = float(jnp.max(jnp.abs(y_ref)))
    assert err <= 2e-2 * ref + 1e-2, ("scale=2 mismatch", err, ref)

    # target_scale=1 net: nFeat=2, 1 ResBlock, fully fused trunk, no upsampler.
    y1 = jax.block_until_ready(multi_network_forward(params, x, target_scale=1,
                                                     idx=1))
    assert y1.shape == (2, 3, 16, 16), y1.shape
    assert jnp.all(jnp.isfinite(y1))
    y1_ref = multi_network_ref(params, x, target_scale=1, idx=1)
    err1 = float(jnp.max(jnp.abs(y1 - y1_ref)))
    ref1 = float(jnp.max(jnp.abs(y1_ref)))
    assert err1 <= 2e-2 * ref1 + 1e-2, ("scale=1 mismatch", err1, ref1)

    print("KERNEL_OK")
</pallas_src>

<mosaic_0001>
module attributes {stable_mosaic.version = 11 : i64} {
  func.func @kernel(%arg0: i32, %arg1: i32, %arg2: memref<1x3x342xf32, #tpu.memory_space<vmem>>, %arg3: memref<1x288xf32, #tpu.memory_space<vmem>>, %arg4: memref<9x4x3xf32, #tpu.memory_space<vmem>>, %arg5: memref<4x1xf32, #tpu.memory_space<vmem>>, %arg6: memref<1x18x4x4xf32, #tpu.memory_space<vmem>>, %arg7: memref<1x2x4x1xf32, #tpu.memory_space<vmem>>, %arg8: memref<9x4x4xf32, #tpu.memory_space<vmem>>, %arg9: memref<4x1xf32, #tpu.memory_space<vmem>>, %arg10: memref<9x16x4xf32, #tpu.memory_space<vmem>>, %arg11: memref<16x1xf32, #tpu.memory_space<vmem>>, %arg12: memref<1x16x288xf32, #tpu.memory_space<vmem>>, %arg13: memref<4x342xf32, #tpu.memory_space<vmem>>, %arg14: memref<4x342xf32, #tpu.memory_space<vmem>>, %arg15: memref<4x288xf32, #tpu.memory_space<vmem>>) attributes {dimension_semantics = [#tpu.dimension_semantics<arbitrary>, #tpu.dimension_semantics<arbitrary>], iteration_bounds = array<i64: 2, 8>, scalar_prefetch = 0 : i64, scratch_operands = 3 : i64, tpu.core_type = #tpu.core_type<tc>, window_params = [{transform_indices = @transform_0, window_bounds = array<i64: 1, 3, 342>}, {pipeline_mode = #tpu.pipeline_mode<synchronous>, transform_indices = @transform_1, window_bounds = array<i64: 1, 288>}, {pipeline_mode = #tpu.pipeline_mode<synchronous>, transform_indices = @transform_2, window_bounds = array<i64: 9, 4, 3>}, {pipeline_mode = #tpu.pipeline_mode<synchronous>, transform_indices = @transform_3, window_bounds = array<i64: 4, 1>}, {transform_indices = @transform_4, window_bounds = array<i64: 1, 18, 4, 4>}, {transform_indices = @transform_5, window_bounds = array<i64: 1, 2, 4, 1>}, {pipeline_mode = #tpu.pipeline_mode<synchronous>, transform_indices = @transform_6, window_bounds = array<i64: 9, 4, 4>}, {pipeline_mode = #tpu.pipeline_mode<synchronous>, transform_indices = @transform_7, window_bounds = array<i64: 4, 1>}, {pipeline_mode = #tpu.pipeline_mode<synchronous>, transform_indices = @transform_8, window_bounds = array<i64: 9, 16, 4>}, {pipeline_mode = #tpu.pipeline_mode<synchronous>, transform_indices = @transform_9, window_bounds = array<i64: 16, 1>}, {transform_indices = @transform_10, window_bounds = array<i64: 1, 16, 288>}]} {
    %c0 = arith.constant 0 : index
    %c0_0 = arith.constant 0 : index
    %0 = vector.load %arg3[%c0, %c0_0] : memref<1x288xf32, #tpu.memory_space<vmem>>, vector<1x288xf32>
    %c0_i32 = arith.constant 0 : i32
    %1 = arith.cmpi eq, %arg0, %c0_i32 : i32
    %c0_i32_1 = arith.constant 0 : i32
    %2 = arith.cmpi eq, %arg1, %c0_i32_1 : i32
    %3 = arith.andi %1, %2 : i1
    %4 = arith.extui %3 : i1 to i32
    %c0_i32_2 = arith.constant 0 : i32
    %5 = arith.cmpi ne, %4, %c0_i32_2 : i32
    scf.if %5 {
      %cst_123 = arith.constant 0.000000e+00 : f32
      %118 = vector.broadcast %cst_123 : f32 to vector<4x342xf32>
      %c0_124 = arith.constant 0 : index
      %c0_125 = arith.constant 0 : index
      %119 = vector.load %arg13[%c0_124, %c0_125] : memref<4x342xf32, #tpu.memory_space<vmem>>, vector<4x342xf32>
      tpu.vector_store %arg13[%c0_124, %c0_125], %118 {strides = array<i32>} : memref<4x342xf32, #tpu.memory_space<vmem>>, vector<4x342xf32>,
      %cst_126 = arith.constant 0.000000e+00 : f32
      %120 = vector.broadcast %cst_126 : f32 to vector<4x342xf32>
      %c0_127 = arith.constant 0 : index
      %c0_128 = arith.constant 0 : index
      %121 = vector.load %arg14[%c0_127, %c0_128] : memref<4x342xf32, #tpu.memory_space<vmem>>, vector<4x342xf32>
      tpu.vector_store %arg14[%c0_127, %c0_128], %120 {strides = array<i32>} : memref<4x342xf32, #tpu.memory_space<vmem>>, vector<4x342xf32>,
    } else {
    }
    %c0_i32_3 = arith.constant 0 : i32
    %6 = arith.cmpi eq, %arg1, %c0_i32_3 : i32
    %7 = arith.extui %6 : i1 to i32
    %c0_i32_4 = arith.constant 0 : i32
    %8 = arith.cmpi ne, %7, %c0_i32_4 : i32
    scf.if %8 {
      %c0_123 = arith.constant 0 : index
      %c0_124 = arith.constant 0 : index
      %118 = vector.load %arg5[%c0_123, %c0_124] : memref<4x1xf32, #tpu.memory_space<vmem>>, vector<4x1xf32>
      %c0_125 = arith.constant 0 : index
      %c0_126 = arith.constant 0 : index
      %c0_127 = arith.constant 0 : index
      %119 = vector.load %arg2[%c0_125, %c0_126, %c0_127] : memref<1x3x342xf32, #tpu.memory_space<vmem>>, vector<1x3x288xf32>
      %120 = vector.shape_cast %119 : vector<1x3x288xf32> to vector<3x288xf32>
      %c0_128 = arith.constant 0 : index
      %c0_129 = arith.constant 0 : index
      %c0_130 = arith.constant 0 : index
      %121 = vector.load %arg4[%c0_128, %c0_129, %c0_130] : memref<9x4x3xf32, #tpu.memory_space<vmem>>, vector<1x4x3xf32>
      %122 = vector.shape_cast %121 : vector<1x4x3xf32> to vector<4x3xf32>
      %cst_131 = arith.constant dense<0.000000e+00> : vector<4x288xf32>
      %123 = tpu.matmul %122, %120, %cst_131 {dimension_numbers = #tpu.dot_dimension_numbers<[1], [0], [0], [1], [0, 0, 1, 1], [], []>} : vector<4x3xf32>, vector<3x288xf32>, vector<4x288xf32> -> vector<4x288xf32>
      %c0_132 = arith.constant 0 : index
      %c0_133 = arith.constant 0 : index
      %c1_134 = arith.constant 1 : index
      %124 = vector.load %arg2[%c0_132, %c0_133, %c1_134] : memref<1x3x342xf32, #tpu.memory_space<vmem>>, vector<1x3x288xf32>
      %125 = vector.shape_cast %124 : vector<1x3x288xf32> to vector<3x288xf32>
      %c1_135 = arith.constant 1 : index
      %c0_136 = arith.constant 0 : index
      %c0_137 = arith.constant 0 : index
      %126 = vector.load %arg4[%c1_135, %c0_136, %c0_137] : memref<9x4x3xf32, #tpu.memory_space<vmem>>, vector<1x4x3xf32>
      %127 = vector.shape_cast %126 : vector<1x4x3xf32> to vector<4x3xf32>
      %cst_138 = arith.constant dense<0.000000e+00> : vector<4x288xf32>
      %128 = tpu.matmul %127, %125, %cst_138 {dimension_numbers = #tpu.dot_dimension_numbers<[1], [0], [0], [1], [0, 0, 1, 1], [], []>} : vector<4x3xf32>, vector<3x288xf32>, vector<4x288xf32> -> vector<4x288xf32>
      %129 = arith.addf %123, %128 : vector<4x288xf32>
      %c0_139 = arith.constant 0 : index
      %c0_140 = arith.constant 0 : index
      %c2_141 = arith.constant 2 : index
      %130 = vector.load %arg2[%c0_139, %c0_140, %c2_141] : memref<1x3x342xf32, #tpu.memory_space<vmem>>, vector<1x3x288xf32>
      %131 = vector.shape_cast %130 : vector<1x3x288xf32> to vector<3x288xf32>
      %c2_142 = arith.constant 2 : index
      %c0_143 = arith.constant 0 : index
      %c0_144 = arith.constant 0 : index
      %132 = vector.load %arg4[%c2_142, %c0_143, %c0_144] : memref<9x4x3xf32, #tpu.memory_space<vmem>>, vector<1x4x3xf32>
      %133 = vector.shape_cast %132 : vector<1x4x3xf32> to vector<4x3xf32>
      %cst_145 = arith.constant dense<0.000000e+00> : vector<4x288xf32>
      %134 = tpu.matmul %133, %131, %cst_145 {dimension_numbers = #tpu.dot_dimension_numbers<[1], [0], [0], [1], [0, 0, 1, 1], [], []>} : vector<4x3xf32>, vector<3x288xf32>, vector<4x288xf32> -> vector<4x288xf32>
      %135 = arith.addf %129, %134 : vector<4x288xf32>
      %c0_146 = arith.constant 0 : index
      %c0_147 = arith.constant 0 : index
      %c18_148 = arith.constant 18 : index
      %136 = vector.load %arg2[%c0_146, %c0_147, %c18_148] : memref<1x3x342xf32, #tpu.memory_space<vmem>>, vector<1x3x288xf32>
      %137 = vector.shape_cast %136 : vector<1x3x288xf32> to vector<3x288xf32>
      %c3_149 = arith.constant 3 : index
      %c0_150 = arith.constant 0 : index
      %c0_151 = arith.constant 0 : index
      %138 = vector.load %arg4[%c3_149, %c0_150, %c0_151] : memref<9x4x3xf32, #tpu.memory_space<vmem>>, vector<1x4x3xf32>
      %139 = vector.shape_cast %138 : vector<1x4x3xf32> to vector<4x3xf32>
      %cst_152 = arith.constant dense<0.000000e+00> : vector<4x288xf32>
      %140 = tpu.matmul %139, %137, %cst_152 {dimension_numbers = #tpu.dot_dimension_numbers<[1], [0], [0], [1], [0, 0, 1, 1], [], []>} : vector<4x3xf32>, vector<3x288xf32>, vector<4x288xf32> -> vector<4x288xf32>
      %141 = arith.addf %135, %140 : vector<4x288xf32>
      %c0_153 = arith.constant 0 : index
      %c0_154 = arith.constant 0 : index
      %c19_155 = arith.constant 19 : index
      %142 = vector.load %arg2[%c0_153, %c0_154, %c19_155] : memref<1x3x342xf32, #tpu.memory_space<vmem>>, vector<1x3x288xf32>
      %143 = vector.shape_cast %142 : vector<1x3x288xf32> to vector<3x288xf32>
      %c4_156 = arith.constant 4 : index
      %c0_157 = arith.constant 0 : index
      %c0_158 = arith.constant 0 : index
      %144 = vector.load %arg4[%c4_156, %c0_157, %c0_158] : memref<9x4x3xf32, #tpu.memory_space<vmem>>, vector<1x4x3xf32>
      %145 = vector.shape_cast %144 : vector<1x4x3xf32> to vector<4x3xf32>
      %cst_159 = arith.constant dense<0.000000e+00> : vector<4x288xf32>
      %146 = tpu.matmul %145, %143, %cst_159 {dimension_numbers = #tpu.dot_dimension_numbers<[1], [0], [0], [1], [0, 0, 1, 1], [], []>} : vector<4x3xf32>, vector<3x288xf32>, vector<4x288xf32> -> vector<4x288xf32>
      %147 = arith.addf %141, %146 : vector<4x288xf32>
      %c0_160 = arith.constant 0 : index
      %c0_161 = arith.constant 0 : index
      %c20_162 = arith.constant 20 : index
      %148 = vector.load %arg2[%c0_160, %c0_161, %c20_162] : memref<1x3x342xf32, #tpu.memory_space<vmem>>, vector<1x3x288xf32>
      %149 = vector.shape_cast %148 : vector<1x3x288xf32> to vector<3x288xf32>
      %c5_163 = arith.constant 5 : index
      %c0_164 = arith.constant 0 : index
      %c0_165 = arith.constant 0 : index
      %150 = vector.load %arg4[%c5_163, %c0_164, %c0_165] : memref<9x4x3xf32, #tpu.memory_space<vmem>>, vector<1x4x3xf32>
      %151 = vector.shape_cast %150 : vector<1x4x3xf32> to vector<4x3xf32>
      %cst_166 = arith.constant dense<0.000000e+00> : vector<4x288xf32>
      %152 = tpu.matmul %151, %149, %cst_166 {dimension_numbers = #tpu.dot_dimension_numbers<[1], [0], [0], [1], [0, 0, 1, 1], [], []>} : vector<4x3xf32>, vector<3x288xf32>, vector<4x288xf32> -> vector<4x288xf32>
      %153 = arith.addf %147, %152 : vector<4x288xf32>
      %c0_167 = arith.constant 0 : index
      %c0_168 = arith.constant 0 : index
      %c36_169 = arith.constant 36 : index
      %154 = vector.load %arg2[%c0_167, %c0_168, %c36_169] : memref<1x3x342xf32, #tpu.memory_space<vmem>>, vector<1x3x288xf32>
      %155 = vector.shape_cast %154 : vector<1x3x288xf32> to vector<3x288xf32>
      %c6_170 = arith.constant 6 : index
      %c0_171 = arith.constant 0 : index
      %c0_172 = arith.constant 0 : index
      %156 = vector.load %arg4[%c6_170, %c0_171, %c0_172] : memref<9x4x3xf32, #tpu.memory_space<vmem>>, vector<1x4x3xf32>
      %157 = vector.shape_cast %156 : vector<1x4x3xf32> to vector<4x3xf32>
      %cst_173 = arith.constant dense<0.000000e+00> : vector<4x288xf32>
      %158 = tpu.matmul %157, %155, %cst_173 {dimension_numbers = #tpu.dot_dimension_numbers<[1], [0], [0], [1], [0, 0, 1, 1], [], []>} : vector<4x3xf32>, vector<3x288xf32>, vector<4x288xf32> -> vector<4x288xf32>
      %159 = arith.addf %153, %158 : vector<4x288xf32>
      %c0_174 = arith.constant 0 : index
      %c0_175 = arith.constant 0 : index
      %c37_176 = arith.constant 37 : index
      %160 = vector.load %arg2[%c0_174, %c0_175, %c37_176] : memref<1x3x342xf32, #tpu.memory_space<vmem>>, vector<1x3x288xf32>
      %161 = vector.shape_cast %160 : vector<1x3x288xf32> to vector<3x288xf32>
      %c7_177 = arith.constant 7 : index
      %c0_178 = arith.constant 0 : index
      %c0_179 = arith.constant 0 : index
      %162 = vector.load %arg4[%c7_177, %c0_178, %c0_179] : memref<9x4x3xf32, #tpu.memory_space<vmem>>, vector<1x4x3xf32>
      %163 = vector.shape_cast %162 : vector<1x4x3xf32> to vector<4x3xf32>
      %cst_180 = arith.constant dense<0.000000e+00> : vector<4x288xf32>
      %164 = tpu.matmul %163, %161, %cst_180 {dimension_numbers = #tpu.dot_dimension_numbers<[1], [0], [0], [1], [0, 0, 1, 1], [], []>} : vector<4x3xf32>, vector<3x288xf32>, vector<4x288xf32> -> vector<4x288xf32>
      %165 = arith.addf %159, %164 : vector<4x288xf32>
      %c0_181 = arith.constant 0 : index
      %c0_182 = arith.constant 0 : index
      %c38_183 = arith.constant 38 : index
      %166 = vector.load %arg2[%c0_181, %c0_182, %c38_183] : memref<1x3x342xf32, #tpu.memory_space<vmem>>, vector<1x3x288xf32>
      %167 = vector.shape_cast %166 : vector<1x3x288xf32> to vector<3x288xf32>
      %c8_184 = arith.constant 8 : index
      %c0_185 = arith.constant 0 : index
      %c0_186 = arith.constant 0 : index
      %168 = vector.load %arg4[%c8_184, %c0_185, %c0_186] : memref<9x4x3xf32, #tpu.memory_space<vmem>>, vector<1x4x3xf32>
      %169 = vector.shape_cast %168 : vector<1x4x3xf32> to vector<4x3xf32>
      %cst_187 = arith.constant dense<0.000000e+00> : vector<4x288xf32>
      %170 = tpu.matmul %169, %167, %cst_187 {dimension_numbers = #tpu.dot_dimension_numbers<[1], [0], [0], [1], [0, 0, 1, 1], [], []>} : vector<4x3xf32>, vector<3x288xf32>, vector<4x288xf32> -> vector<4x288xf32>
      %171 = arith.addf %165, %170 : vector<4x288xf32>
      %172 = vector.broadcast %118 : vector<4x1xf32> to vector<4x288xf32>
      %173 = arith.addf %171, %172 : vector<4x288xf32>
      %174 = vector.broadcast %0 : vector<1x288xf32> to vector<4x288xf32>
      %175 = arith.mulf %173, %174 : vector<4x288xf32>
      %c0_188 = arith.constant 0 : index
      %c0_189 = arith.constant 0 : index
      %176 = vector.load %arg15[%c0_188, %c0_189] : memref<4x288xf32, #tpu.memory_space<vmem>>, vector<4x288xf32>
      tpu.vector_store %arg15[%c0_188, %c0_189], %175 {strides = array<i32>} : memref<4x288xf32, #tpu.memory_space<vmem>>, vector<4x288xf32>,
      %c0_190 = arith.constant 0 : index
      %c19_191 = arith.constant 19 : index
      %177 = vector.load %arg13[%c0_190, %c19_191] : memref<4x342xf32, #tpu.memory_space<vmem>>, vector<4x288xf32>
      tpu.vector_store %arg13[%c0_190, %c19_191], %175 {strides = array<i32>} : memref<4x342xf32, #tpu.memory_space<vmem>>, vector<4x288xf32>,
    } else {
    }
    %c0_5 = arith.constant 0 : index
    %c0_6 = arith.constant 0 : index
    %c0_7 = arith.constant 0 : index
    %c0_8 = arith.constant 0 : index
    %9 = vector.load %arg7[%c0_5, %c0_6, %c0_7, %c0_8] : memref<1x2x4x1xf32, #tpu.memory_space<vmem>>, vector<1x1x4x1xf32>
    %10 = vector.shape_cast %9 : vector<1x1x4x1xf32> to vector<4x1xf32>
    %c0_9 = arith.constant 0 : index
    %c0_10 = arith.constant 0 : index
    %11 = vector.load %arg13[%c0_9, %c0_10] : memref<4x342xf32, #tpu.memory_space<vmem>>, vector<4x288xf32>
    %c0_11 = arith.constant 0 : index
    %c0_12 = arith.constant 0 : index
    %c0_13 = arith.constant 0 : index
    %c0_14 = arith.constant 0 : index
    %12 = vector.load %arg6[%c0_11, %c0_12, %c0_13, %c0_14] : memref<1x18x4x4xf32, #tpu.memory_space<vmem>>, vector<1x1x4x4xf32>
    %13 = vector.shape_cast %12 : vector<1x1x4x4xf32> to vector<4x4xf32>
    %cst = arith.constant dense<0.000000e+00> : vector<4x288xf32>
    %14 = tpu.matmul %13, %11, %cst {dimension_numbers = #tpu.dot_dimension_numbers<[1], [0], [0], [1], [0, 0, 1, 1], [], []>} : vector<4x4xf32>, vector<4x288xf32>, vector<4x288xf32> -> vector<4x288xf32>
    %c0_15 = arith.constant 0 : index
    %c1 = arith.constant 1 : index
    %15 = vector.load %arg13[%c0_15, %c1] : memref<4x342xf32, #tpu.memory_space<vmem>>, vector<4x288xf32>
    %c0_16 = arith.constant 0 : index
    %c1_17 = arith.constant 1 : index
    %c0_18 = arith.constant 0 : index
    %c0_19 = arith.constant 0 : index
    %16 = vector.load %arg6[%c0_16, %c1_17, %c0_18, %c0_19] : memref<1x18x4x4xf32, #tpu.memory_space<vmem>>, vector<1x1x4x4xf32>
    %17 = vector.shape_cast %16 : vector<1x1x4x4xf32> to vector<4x4xf32>
    %cst_20 = arith.constant dense<0.000000e+00> : vector<4x288xf32>
    %18 = tpu.matmul %17, %15, %cst_20 {dimension_numbers = #tpu.dot_dimension_numbers<[1], [0], [0], [1], [0, 0, 1, 1], [], []>} : vector<4x4xf32>, vector<4x288xf32>, vector<4x288xf32> -> vector<4x288xf32>
    %19 = arith.addf %14, %18 : vector<4x288xf32>
    %c0_21 = arith.constant 0 : index
    %c2 = arith.constant 2 : index
    %20 = vector.load %arg13[%c0_21, %c2] : memref<4x342xf32, #tpu.memory_space<vmem>>, vector<4x288xf32>
    %c0_22 = arith.constant 0 : index
    %c2_23 = arith.constant 2 : index
    %c0_24 = arith.constant 0 : index
    %c0_25 = arith.constant 0 : index
    %21 = vector.load %arg6[%c0_22, %c2_23, %c0_24, %c0_25] : memref<1x18x4x4xf32, #tpu.memory_space<vmem>>, vector<1x1x4x4xf32>
    %22 = vector.shape_cast %21 : vector<1x1x4x4xf32> to vector<4x4xf32>
    %cst_26 = arith.constant dense<0.000000e+00> : vector<4x288xf32>
    %23 = tpu.matmul %22, %20, %cst_26 {dimension_numbers = #tpu.dot_dimension_numbers<[1], [0], [0], [1], [0, 0, 1, 1], [], []>} : vector<4x4xf32>, vector<4x288xf32>, vector<4x288xf32> -> vector<4x288xf32>
    %24 = arith.addf %19, %23 : vector<4x288xf32>
    %c0_27 = arith.constant 0 : index
    %c18 = arith.constant 18 : index
    %25 = vector.load %arg13[%c0_27, %c18] : memref<4x342xf32, #tpu.memory_space<vmem>>, vector<4x288xf32>
    %c0_28 = arith.constant 0 : index
    %c3 = arith.constant 3 : index
    %c0_29 = arith.constant 0 : index
    %c0_30 = arith.constant 0 : index
    %26 = vector.load %arg6[%c0_28, %c3, %c0_29, %c0_30] : memref<1x18x4x4xf32, #tpu.memory_space<vmem>>, vector<1x1x4x4xf32>
    %27 = vector.shape_cast %26 : vector<1x1x4x4xf32> to vector<4x4xf32>
    %cst_31 = arith.constant dense<0.000000e+00> : vector<4x288xf32>
    %28 = tpu.matmul %27, %25, %cst_31 {dimension_numbers = #tpu.dot_dimension_numbers<[1], [0], [0], [1], [0, 0, 1, 1], [], []>} : vector<4x4xf32>, vector<4x288xf32>, vector<4x288xf32> -> vector<4x288xf32>
    %29 = arith.addf %24, %28 : vector<4x288xf32>
    %c0_32 = arith.constant 0 : index
    %c19 = arith.constant 19 : index
    %30 = vector.load %arg13[%c0_32, %c19] : memref<4x342xf32, #tpu.memory_space<vmem>>, vector<4x288xf32>
    %c0_33 = arith.constant 0 : index
    %c4 = arith.constant 4 : index
    %c0_34 = arith.constant 0 : index
    %c0_35 = arith.constant 0 : index
    %31 = vector.load %arg6[%c0_33, %c4, %c0_34, %c0_35] : memref<1x18x4x4xf32, #tpu.memory_space<vmem>>, vector<1x1x4x4xf32>
    %32 = vector.shape_cast %31 : vector<1x1x4x4xf32> to vector<4x4xf32>
    %cst_36 = arith.constant dense<0.000000e+00> : vector<4x288xf32>
    %33 = tpu.matmul %32, %30, %cst_36 {dimension_numbers = #tpu.dot_dimension_numbers<[1], [0], [0], [1], [0, 0, 1, 1], [], []>} : vector<4x4xf32>, vector<4x288xf32>, vector<4x288xf32> -> vector<4x288xf32>
    %34 = arith.addf %29, %33 : vector<4x288xf32>
    %c0_37 = arith.constant 0 : index
    %c20 = arith.constant 20 : index
    %35 = vector.load %arg13[%c0_37, %c20] : memref<4x342xf32, #tpu.memory_space<vmem>>, vector<4x288xf32>
    %c0_38 = arith.constant 0 : index
    %c5 = arith.constant 5 : index
    %c0_39 = arith.constant 0 : index
    %c0_40 = arith.constant 0 : index
    %36 = vector.load %arg6[%c0_38, %c5, %c0_39, %c0_40] : memref<1x18x4x4xf32, #tpu.memory_space<vmem>>, vector<1x1x4x4xf32>
    %37 = vector.shape_cast %36 : vector<1x1x4x4xf32> to vector<4x4xf32>
    %cst_41 = arith.constant dense<0.000000e+00> : vector<4x288xf32>
    %38 = tpu.matmul %37, %35, %cst_41 {dimension_numbers = #tpu.dot_dimension_numbers<[1], [0], [0], [1], [0, 0, 1, 1], [], []>} : vector<4x4xf32>, vector<4x288xf32>, vector<4x288xf32> -> vector<4x288xf32>
    %39 = arith.addf %34, %38 : vector<4x288xf32>
    %c0_42 = arith.constant 0 : index
    %c36 = arith.constant 36 : index
    %40 = vector.load %arg13[%c0_42, %c36] : memref<4x342xf32, #tpu.memory_space<vmem>>, vector<4x288xf32>
    %c0_43 = arith.constant 0 : index
    %c6 = arith.constant 6 : index
    %c0_44 = arith.constant 0 : index
    %c0_45 = arith.constant 0 : index
    %41 = vector.load %arg6[%c0_43, %c6, %c0_44, %c0_45] : memref<1x18x4x4xf32, #tpu.memory_space<vmem>>, vector<1x1x4x4xf32>
    %42 = vector.shape_cast %41 : vector<1x1x4x4xf32> to vector<4x4xf32>
    %cst_46 = arith.constant dense<0.000000e+00> : vector<4x288xf32>
    %43 = tpu.matmul %42, %40, %cst_46 {dimension_numbers = #tpu.dot_dimension_numbers<[1], [0], [0], [1], [0, 0, 1, 1], [], []>} : vector<4x4xf32>, vector<4x288xf32>, vector<4x288xf32> -> vector<4x288xf32>
    %44 = arith.addf %39, %43 : vector<4x288xf32>
    %c0_47 = arith.constant 0 : index
    %c37 = arith.constant 37 : index
    %45 = vector.load %arg13[%c0_47, %c37] : memref<4x342xf32, #tpu.memory_space<vmem>>, vector<4x288xf32>
    %c0_48 = arith.constant 0 : index
    %c7 = arith.constant 7 : index
    %c0_49 = arith.constant 0 : index
    %c0_50 = arith.constant 0 : index
    %46 = vector.load %arg6[%c0_48, %c7, %c0_49, %c0_50] : memref<1x18x4x4xf32, #tpu.memory_space<vmem>>, vector<1x1x4x4xf32>
    %47 = vector.shape_cast %46 : vector<1x1x4x4xf32> to vector<4x4xf32>
    %cst_51 = arith.constant dense<0.000000e+00> : vector<4x288xf32>
    %48 = tpu.matmul %47, %45, %cst_51 {dimension_numbers = #tpu.dot_dimension_numbers<[1], [0], [0], [1], [0, 0, 1, 1], [], []>} : vector<4x4xf32>, vector<4x288xf32>, vector<4x288xf32> -> vector<4x288xf32>
    %49 = arith.addf %44, %48 : vector<4x288xf32>
    %c0_52 = arith.constant 0 : index
    %c38 = arith.constant 38 : index
    %50 = vector.load %arg13[%c0_52, %c38] : memref<4x342xf32, #tpu.memory_space<vmem>>, vector<4x288xf32>
    %c0_53 = arith.constant 0 : index
    %c8 = arith.constant 8 : index
    %c0_54 = arith.constant 0 : index
    %c0_55 = arith.constant 0 : index
    %51 = vector.load %arg6[%c0_53, %c8, %c0_54, %c0_55] : memref<1x18x4x4xf32, #tpu.memory_space<vmem>>, vector<1x1x4x4xf32>
    %52 = vector.shape_cast %51 : vector<1x1x4x4xf32> to vector<4x4xf32>
    %cst_56 = arith.constant dense<0.000000e+00> : vector<4x288xf32>
    %53 = tpu.matmul %52, %50, %cst_56 {dimension_numbers = #tpu.dot_dimension_numbers<[1], [0], [0], [1], [0, 0, 1, 1], [], []>} : vector<4x4xf32>, vector<4x288xf32>, vector<4x288xf32> -> vector<4x288xf32>
    %54 = arith.addf %49, %53 : vector<4x288xf32>
    %55 = vector.broadcast %10 : vector<4x1xf32> to vector<4x288xf32>
    %56 = arith.addf %54, %55 : vector<4x288xf32>
    %cst_57 = arith.constant 0.000000e+00 : f32
    %57 = vector.broadcast %cst_57 : f32 to vector<4x288xf32>
    %58 = arith.maximumf %56, %57 : vector<4x288xf32>
    %59 = vector.broadcast %0 : vector<1x288xf32> to vector<4x288xf32>
    %60 = arith.mulf %58, %59 : vector<4x288xf32>
    %c0_58 = arith.constant 0 : index
    %c19_59 = arith.constant 19 : index
    %61 = vector.load %arg14[%c0_58, %c19_59] : memref<4x342xf32, #tpu.memory_space<vmem>>, vector<4x288xf32>
    tpu.vector_store %arg14[%c0_58, %c19_59], %60 {strides = array<i32>} : memref<4x342xf32, #tpu.memory_space<vmem>>, vector<4x288xf32>,
    %c0_60 = arith.constant 0 : index
    %c1_61 = arith.constant 1 : index
    %c0_62 = arith.constant 0 : index
    %c0_63 = arith.constant 0 : index
    %62 = vector.load %arg7[%c0_60, %c1_61, %c0_62, %c0_63] : memref<1x2x4x1xf32, #tpu.memory_space<vmem>>, vector<1x1x4x1xf32>
    %63 = vector.shape_cast %62 : vector<1x1x4x1xf32> to vector<4x1xf32>
    %c0_64 = arith.constant 0 : index
    %c0_65 = arith.constant 0 : index
    %64 = vector.load %arg14[%c0_64, %c0_65] : memref<4x342xf32, #tpu.memory_space<vmem>>, vector<4x288xf32>
    %c0_66 = arith.constant 0 : index
    %c9 = arith.constant 9 : index
    %c0_67 = arith.constant 0 : index
    %c0_68 = arith.constant 0 : index
    %65 = vector.load %arg6[%c0_66, %c9, %c0_67, %c0_68] : memref<1x18x4x4xf32, #tpu.memory_space<vmem>>, vector<1x1x4x4xf32>
    %66 = vector.shape_cast %65 : vector<1x1x4x4xf32> to vector<4x4xf32>
    %cst_69 = arith.constant dense<0.000000e+00> : vector<4x288xf32>
    %67 = tpu.matmul %66, %64, %cst_69 {dimension_numbers = #tpu.dot_dimension_numbers<[1], [0], [0], [1], [0, 0, 1, 1], [], []>} : vector<4x4xf32>, vector<4x288xf32>, vector<4x288xf32> -> vector<4x288xf32>
    %c0_70 = arith.constant 0 : index
    %c1_71 = arith.constant 1 : index
    %68 = vector.load %arg14[%c0_70, %c1_71] : memref<4x342xf32, #tpu.memory_space<vmem>>, vector<4x288xf32>
    %c0_72 = arith.constant 0 : index
    %c10 = arith.constant 10 : index
    %c0_73 = arith.constant 0 : index
    %c0_74 = arith.constant 0 : index
    %69 = vector.load %arg6[%c0_72, %c10, %c0_73, %c0_74] : memref<1x18x4x4xf32, #tpu.memory_space<vmem>>, vector<1x1x4x4xf32>
    %70 = vector.shape_cast %69 : vector<1x1x4x4xf32> to vector<4x4xf32>
    %cst_75 = arith.constant dense<0.000000e+00> : vector<4x288xf32>
    %71 = tpu.matmul %70, %68, %cst_75 {dimension_numbers = #tpu.dot_dimension_numbers<[1], [0], [0], [1], [0, 0, 1, 1], [], []>} : vector<4x4xf32>, vector<4x288xf32>, vector<4x288xf32> -> vector<4x288xf32>
    %72 = arith.addf %67, %71 : vector<4x288xf32>
    %c0_76 = arith.constant 0 : index
    %c2_77 = arith.constant 2 : index
    %73 = vector.load %arg14[%c0_76, %c2_77] : memref<4x342xf32, #tpu.memory_space<vmem>>, vector<4x288xf32>
    %c0_78 = arith.constant 0 : index
    %c11 = arith.constant 11 : index
    %c0_79 = arith.constant 0 : index
    %c0_80 = arith.constant 0 : index
    %74 = vector.load %arg6[%c0_78, %c11, %c0_79, %c0_80] : memref<1x18x4x4xf32, #tpu.memory_space<vmem>>, vector<1x1x4x4xf32>
    %75 = vector.shape_cast %74 : vector<1x1x4x4xf32> to vector<4x4xf32>
    %cst_81 = arith.constant dense<0.000000e+00> : vector<4x288xf32>
    %76 = tpu.matmul %75, %73, %cst_81 {dimension_numbers = #tpu.dot_dimension_numbers<[1], [0], [0], [1], [0, 0, 1, 1], [], []>} : vector<4x4xf32>, vector<4x288xf32>, vector<4x288xf32> -> vector<4x288xf32>
    %77 = arith.addf %72, %76 : vector<4x288xf32>
    %c0_82 = arith.constant 0 : index
    %c18_83 = arith.constant 18 : index
    %78 = vector.load %arg14[%c0_82, %c18_83] : memref<4x342xf32, #tpu.memory_space<vmem>>, vector<4x288xf32>
    %c0_84 = arith.constant 0 : index
    %c12 = arith.constant 12 : index
    %c0_85 = arith.constant 0 : index
    %c0_86 = arith.constant 0 : index
    %79 = vector.load %arg6[%c0_84, %c12, %c0_85, %c0_86] : memref<1x18x4x4xf32, #tpu.memory_space<vmem>>, vector<1x1x4x4xf32>
    %80 = vector.shape_cast %79 : vector<1x1x4x4xf32> to vector<4x4xf32>
    %cst_87 = arith.constant dense<0.000000e+00> : vector<4x288xf32>
    %81 = tpu.matmul %80, %78, %cst_87 {dimension_numbers = #tpu.dot_dimension_numbers<[1], [0], [0], [1], [0, 0, 1, 1], [], []>} : vector<4x4xf32>, vector<4x288xf32>, vector<4x288xf32> -> vector<4x288xf32>
    %82 = arith.addf %77, %81 : vector<4x288xf32>
    %c0_88 = arith.constant 0 : index
    %c19_89 = arith.constant 19 : index
    %83 = vector.load %arg14[%c0_88, %c19_89] : memref<4x342xf32, #tpu.memory_space<vmem>>, vector<4x288xf32>
    %c0_90 = arith.constant 0 : index
    %c13 = arith.constant 13 : index
    %c0_91 = arith.constant 0 : index
    %c0_92 = arith.constant 0 : index
    %84 = vector.load %arg6[%c0_90, %c13, %c0_91, %c0_92] : memref<1x18x4x4xf32, #tpu.memory_space<vmem>>, vector<1x1x4x4xf32>
    %85 = vector.shape_cast %84 : vector<1x1x4x4xf32> to vector<4x4xf32>
    %cst_93 = arith.constant dense<0.000000e+00> : vector<4x288xf32>
    %86 = tpu.matmul %85, %83, %cst_93 {dimension_numbers = #tpu.dot_dimension_numbers<[1], [0], [0], [1], [0, 0, 1, 1], [], []>} : vector<4x4xf32>, vector<4x288xf32>, vector<4x288xf32> -> vector<4x288xf32>
    %87 = arith.addf %82, %86 : vector<4x288xf32>
    %c0_94 = arith.constant 0 : index
    %c20_95 = arith.constant 20 : index
    %88 = vector.load %arg14[%c0_94, %c20_95] : memref<4x342xf32, #tpu.memory_space<vmem>>, vector<4x288xf32>
    %c0_96 = arith.constant 0 : index
    %c14 = arith.constant 14 : index
    %c0_97 = arith.constant 0 : index
    %c0_98 = arith.constant 0 : index
    %89 = vector.load %arg6[%c0_96, %c14, %c0_97, %c0_98] : memref<1x18x4x4xf32, #tpu.memory_space<vmem>>, vector<1x1x4x4xf32>
    %90 = vector.shape_cast %89 : vector<1x1x4x4xf32> to vector<4x4xf32>
    %cst_99 = arith.constant dense<0.000000e+00> : vector<4x288xf32>
    %91 = tpu.matmul %90, %88, %cst_99 {dimension_numbers = #tpu.dot_dimension_numbers<[1], [0], [0], [1], [0, 0, 1, 1], [], []>} : vector<4x4xf32>, vector<4x288xf32>, vector<4x288xf32> -> vector<4x288xf32>
    %92 = arith.addf %87, %91 : vector<4x288xf32>
    %c0_100 = arith.constant 0 : index
    %c36_101 = arith.constant 36 : index
    %93 = vector.load %arg14[%c0_100, %c36_101] : memref<4x342xf32, #tpu.memory_space<vmem>>, vector<4x288xf32>
    %c0_102 = arith.constant 0 : index
    %c15 = arith.constant 15 : index
    %c0_103 = arith.constant 0 : index
    %c0_104 = arith.constant 0 : index
    %94 = vector.load %arg6[%c0_102, %c15, %c0_103, %c0_104] : memref<1x18x4x4xf32, #tpu.memory_space<vmem>>, vector<1x1x4x4xf32>
    %95 = vector.shape_cast %94 : vector<1x1x4x4xf32> to vector<4x4xf32>
    %cst_105 = arith.constant dense<0.000000e+00> : vector<4x288xf32>
    %96 = tpu.matmul %95, %93, %cst_105 {dimension_numbers = #tpu.dot_dimension_numbers<[1], [0], [0], [1], [0, 0, 1, 1], [], []>} : vector<4x4xf32>, vector<4x288xf32>, vector<4x288xf32> -> vector<4x288xf32>
    %97 = arith.addf %92, %96 : vector<4x288xf32>
    %c0_106 = arith.constant 0 : index
    %c37_107 = arith.constant 37 : index
    %98 = vector.load %arg14[%c0_106, %c37_107] : memref<4x342xf32, #tpu.memory_space<vmem>>, vector<4x288xf32>
    %c0_108 = arith.constant 0 : index
    %c16 = arith.constant 16 : index
    %c0_109 = arith.constant 0 : index
    %c0_110 = arith.constant 0 : index
    %99 = vector.load %arg6[%c0_108, %c16, %c0_109, %c0_110] : memref<1x18x4x4xf32, #tpu.memory_space<vmem>>, vector<1x1x4x4xf32>
    %100 = vector.shape_cast %99 : vector<1x1x4x4xf32> to vector<4x4xf32>
    %cst_111 = arith.constant dense<0.000000e+00> : vector<4x288xf32>
    %101 = tpu.matmul %100, %98, %cst_111 {dimension_numbers = #tpu.dot_dimension_numbers<[1], [0], [0], [1], [0, 0, 1, 1], [], []>} : vector<4x4xf32>, vector<4x288xf32>, vector<4x288xf32> -> vector<4x288xf32>
    %102 = arith.addf %97, %101 : vector<4x288xf32>
    %c0_112 = arith.constant 0 : index
    %c38_113 = arith.constant 38 : index
    %103 = vector.load %arg14[%c0_112, %c38_113] : memref<4x342xf32, #tpu.memory_space<vmem>>, vector<4x288xf32>
    %c0_114 = arith.constant 0 : index
    %c17 = arith.constant 17 : index
    %c0_115 = arith.constant 0 : index
    %c0_116 = arith.constant 0 : index
    %104 = vector.load %arg6[%c0_114, %c17, %c0_115, %c0_116] : memref<1x18x4x4xf32, #tpu.memory_space<vmem>>, vector<1x1x4x4xf32>
    %105 = vector.shape_cast %104 : vector<1x1x4x4xf32> to vector<4x4xf32>
    %cst_117 = arith.constant dense<0.000000e+00> : vector<4x288xf32>
    %106 = tpu.matmul %105, %103, %cst_117 {dimension_numbers = #tpu.dot_dimension_numbers<[1], [0], [0], [1], [0, 0, 1, 1], [], []>} : vector<4x4xf32>, vector<4x288xf32>, vector<4x288xf32> -> vector<4x288xf32>
    %107 = arith.addf %102, %106 : vector<4x288xf32>
    %108 = vector.broadcast %63 : vector<4x1xf32> to vector<4x288xf32>
    %109 = arith.addf %107, %108 : vector<4x288xf32>
    %c0_118 = arith.constant 0 : index
    %c19_119 = arith.constant 19 : index
    %110 = vector.load %arg13[%c0_118, %c19_119] : memref<4x342xf32, #tpu.memory_space<vmem>>, vector<4x288xf32>
    %111 = arith.addf %109, %110 : vector<4x288xf32>
    %112 = vector.broadcast %0 : vector<1x288xf32> to vector<4x288xf32>
    %113 = arith.mulf %111, %112 : vector<4x288xf32>
    %c0_120 = arith.constant 0 : index
    %c19_121 = arith.constant 19 : index
    %114 = vector.load %arg13[%c0_120, %c19_121] : memref<4x342xf32, #tpu.memory_space<vmem>>, vector<4x288xf32>
    tpu.vector_store %arg13[%c0_120, %c19_121], %113 {strides = array<i32>} : memref<4x342xf32, #tpu.memory_space<vmem>>, vector<4x288xf32>,
    %c7_i32 = arith.constant 7 : i32
    %115 = arith.cmpi eq, %arg1, %c7_i32 : i32
    %116 = arith.extui %115 : i1 to i32
    %c0_i32_122 = arith.constant 0 : i32
    %117 = arith.cmpi ne, %116, %c0_i32_122 : i32
    scf.if %117 {
      %c0_123 = arith.constant 0 : index
      %c0_124 = arith.constant 0 : index
      %118 = vector.load %arg9[%c0_123, %c0_124] : memref<4x1xf32, #tpu.memory_space<vmem>>, vector<4x1xf32>
      %c0_125 = arith.constant 0 : index
      %c0_126 = arith.constant 0 : index
      %119 = vector.load %arg13[%c0_125, %c0_126] : memref<4x342xf32, #tpu.memory_space<vmem>>, vector<4x288xf32>
      %c0_127 = arith.constant 0 : index
      %c0_128 = arith.constant 0 : index
      %c0_129 = arith.constant 0 : index
      %120 = vector.load %arg8[%c0_127, %c0_128, %c0_129] : memref<9x4x4xf32, #tpu.memory_space<vmem>>, vector<1x4x4xf32>
      %121 = vector.shape_cast %120 : vector<1x4x4xf32> to vector<4x4xf32>
      %cst_130 = arith.constant dense<0.000000e+00> : vector<4x288xf32>
      %122 = tpu.matmul %121, %119, %cst_130 {dimension_numbers = #tpu.dot_dimension_numbers<[1], [0], [0], [1], [0, 0, 1, 1], [], []>} : vector<4x4xf32>, vector<4x288xf32>, vector<4x288xf32> -> vector<4x288xf32>
      %c0_131 = arith.constant 0 : index
      %c1_132 = arith.constant 1 : index
      %123 = vector.load %arg13[%c0_131, %c1_132] : memref<4x342xf32, #tpu.memory_space<vmem>>, vector<4x288xf32>
      %c1_133 = arith.constant 1 : index
      %c0_134 = arith.constant 0 : index
      %c0_135 = arith.constant 0 : index
      %124 = vector.load %arg8[%c1_133, %c0_134, %c0_135] : memref<9x4x4xf32, #tpu.memory_space<vmem>>, vector<1x4x4xf32>
      %125 = vector.shape_cast %124 : vector<1x4x4xf32> to vector<4x4xf32>
      %cst_136 = arith.constant dense<0.000000e+00> : vector<4x288xf32>
      %126 = tpu.matmul %125, %123, %cst_136 {dimension_numbers = #tpu.dot_dimension_numbers<[1], [0], [0], [1], [0, 0, 1, 1], [], []>} : vector<4x4xf32>, vector<4x288xf32>, vector<4x288xf32> -> vector<4x288xf32>
      %127 = arith.addf %122, %126 : vector<4x288xf32>
      %c0_137 = arith.constant 0 : index
      %c2_138 = arith.constant 2 : index
      %128 = vector.load %arg13[%c0_137, %c2_138] : memref<4x342xf32, #tpu.memory_space<vmem>>, vector<4x288xf32>
      %c2_139 = arith.constant 2 : index
      %c0_140 = arith.constant 0 : index
      %c0_141 = arith.constant 0 : index
      %129 = vector.load %arg8[%c2_139, %c0_140, %c0_141] : memref<9x4x4xf32, #tpu.memory_space<vmem>>, vector<1x4x4xf32>
      %130 = vector.shape_cast %129 : vector<1x4x4xf32> to vector<4x4xf32>
      %cst_142 = arith.constant dense<0.000000e+00> : vector<4x288xf32>
      %131 = tpu.matmul %130, %128, %cst_142 {dimension_numbers = #tpu.dot_dimension_numbers<[1], [0], [0], [1], [0, 0, 1, 1], [], []>} : vector<4x4xf32>, vector<4x288xf32>, vector<4x288xf32> -> vector<4x288xf32>
      %132 = arith.addf %127, %131 : vector<4x288xf32>
      %c0_143 = arith.constant 0 : index
      %c18_144 = arith.constant 18 : index
      %133 = vector.load %arg13[%c0_143, %c18_144] : memref<4x342xf32, #tpu.memory_space<vmem>>, vector<4x288xf32>
      %c3_145 = arith.constant 3 : index
      %c0_146 = arith.constant 0 : index
      %c0_147 = arith.constant 0 : index
      %134 = vector.load %arg8[%c3_145, %c0_146, %c0_147] : memref<9x4x4xf32, #tpu.memory_space<vmem>>, vector<1x4x4xf32>
      %135 = vector.shape_cast %134 : vector<1x4x4xf32> to vector<4x4xf32>
      %cst_148 = arith.constant dense<0.000000e+00> : vector<4x288xf32>
      %136 = tpu.matmul %135, %133, %cst_148 {dimension_numbers = #tpu.dot_dimension_numbers<[1], [0], [0], [1], [0, 0, 1, 1], [], []>} : vector<4x4xf32>, vector<4x288xf32>, vector<4x288xf32> -> vector<4x288xf32>
      %137 = arith.addf %132, %136 : vector<4x288xf32>
      %c0_149 = arith.constant 0 : index
      %c19_150 = arith.constant 19 : index
      %138 = vector.load %arg13[%c0_149, %c19_150] : memref<4x342xf32, #tpu.memory_space<vmem>>, vector<4x288xf32>
      %c4_151 = arith.constant 4 : index
      %c0_152 = arith.constant 0 : index
      %c0_153 = arith.constant 0 : index
      %139 = vector.load %arg8[%c4_151, %c0_152, %c0_153] : memref<9x4x4xf32, #tpu.memory_space<vmem>>, vector<1x4x4xf32>
      %140 = vector.shape_cast %139 : vector<1x4x4xf32> to vector<4x4xf32>
      %cst_154 = arith.constant dense<0.000000e+00> : vector<4x288xf32>
      %141 = tpu.matmul %140, %138, %cst_154 {dimension_numbers = #tpu.dot_dimension_numbers<[1], [0], [0], [1], [0, 0, 1, 1], [], []>} : vector<4x4xf32>, vector<4x288xf32>, vector<4x288xf32> -> vector<4x288xf32>
      %142 = arith.addf %137, %141 : vector<4x288xf32>
      %c0_155 = arith.constant 0 : index
      %c20_156 = arith.constant 20 : index
      %143 = vector.load %arg13[%c0_155, %c20_156] : memref<4x342xf32, #tpu.memory_space<vmem>>, vector<4x288xf32>
      %c5_157 = arith.constant 5 : index
      %c0_158 = arith.constant 0 : index
      %c0_159 = arith.constant 0 : index
      %144 = vector.load %arg8[%c5_157, %c0_158, %c0_159] : memref<9x4x4xf32, #tpu.memory_space<vmem>>, vector<1x4x4xf32>
      %145 = vector.shape_cast %144 : vector<1x4x4xf32> to vector<4x4xf32>
      %cst_160 = arith.constant dense<0.000000e+00> : vector<4x288xf32>
      %146 = tpu.matmul %145, %143, %cst_160 {dimension_numbers = #tpu.dot_dimension_numbers<[1], [0], [0], [1], [0, 0, 1, 1], [], []>} : vector<4x4xf32>, vector<4x288xf32>, vector<4x288xf32> -> vector<4x288xf32>
      %147 = arith.addf %142, %146 : vector<4x288xf32>
      %c0_161 = arith.constant 0 : index
      %c36_162 = arith.constant 36 : index
      %148 = vector.load %arg13[%c0_161, %c36_162] : memref<4x342xf32, #tpu.memory_space<vmem>>, vector<4x288xf32>
      %c6_163 = arith.constant 6 : index
      %c0_164 = arith.constant 0 : index
      %c0_165 = arith.constant 0 : index
      %149 = vector.load %arg8[%c6_163, %c0_164, %c0_165] : memref<9x4x4xf32, #tpu.memory_space<vmem>>, vector<1x4x4xf32>
      %150 = vector.shape_cast %149 : vector<1x4x4xf32> to vector<4x4xf32>
      %cst_166 = arith.constant dense<0.000000e+00> : vector<4x288xf32>
      %151 = tpu.matmul %150, %148, %cst_166 {dimension_numbers = #tpu.dot_dimension_numbers<[1], [0], [0], [1], [0, 0, 1, 1], [], []>} : vector<4x4xf32>, vector<4x288xf32>, vector<4x288xf32> -> vector<4x288xf32>
      %152 = arith.addf %147, %151 : vector<4x288xf32>
      %c0_167 = arith.constant 0 : index
      %c37_168 = arith.constant 37 : index
      %153 = vector.load %arg13[%c0_167, %c37_168] : memref<4x342xf32, #tpu.memory_space<vmem>>, vector<4x288xf32>
      %c7_169 = arith.constant 7 : index
      %c0_170 = arith.constant 0 : index
      %c0_171 = arith.constant 0 : index
      %154 = vector.load %arg8[%c7_169, %c0_170, %c0_171] : memref<9x4x4xf32, #tpu.memory_space<vmem>>, vector<1x4x4xf32>
      %155 = vector.shape_cast %154 : vector<1x4x4xf32> to vector<4x4xf32>
      %cst_172 = arith.constant dense<0.000000e+00> : vector<4x288xf32>
      %156 = tpu.matmul %155, %153, %cst_172 {dimension_numbers = #tpu.dot_dimension_numbers<[1], [0], [0], [1], [0, 0, 1, 1], [], []>} : vector<4x4xf32>, vector<4x288xf32>, vector<4x288xf32> -> vector<4x288xf32>
      %157 = arith.addf %152, %156 : vector<4x288xf32>
      %c0_173 = arith.constant 0 : index
      %c38_174 = arith.constant 38 : index
      %158 = vector.load %arg13[%c0_173, %c38_174] : memref<4x342xf32, #tpu.memory_space<vmem>>, vector<4x288xf32>
      %c8_175 = arith.constant 8 : index
      %c0_176 = arith.constant 0 : index
      %c0_177 = arith.constant 0 : index
      %159 = vector.load %arg8[%c8_175, %c0_176, %c0_177] : memref<9x4x4xf32, #tpu.memory_space<vmem>>, vector<1x4x4xf32>
      %160 = vector.shape_cast %159 : vector<1x4x4xf32> to vector<4x4xf32>
      %cst_178 = arith.constant dense<0.000000e+00> : vector<4x288xf32>
      %161 = tpu.matmul %160, %158, %cst_178 {dimension_numbers = #tpu.dot_dimension_numbers<[1], [0], [0], [1], [0, 0, 1, 1], [], []>} : vector<4x4xf32>, vector<4x288xf32>, vector<4x288xf32> -> vector<4x288xf32>
      %162 = arith.addf %157, %161 : vector<4x288xf32>
      %163 = vector.broadcast %118 : vector<4x1xf32> to vector<4x288xf32>
      %164 = arith.addf %162, %163 : vector<4x288xf32>
      %c0_179 = arith.constant 0 : index
      %c0_180 = arith.constant 0 : index
      %165 = vector.load %arg15[%c0_179, %c0_180] : memref<4x288xf32, #tpu.memory_space<vmem>>, vector<4x288xf32>
      %166 = arith.addf %164, %165 : vector<4x288xf32>
      %167 = vector.broadcast %0 : vector<1x288xf32> to vector<4x288xf32>
      %168 = arith.mulf %166, %167 : vector<4x288xf32>
      %c0_181 = arith.constant 0 : index
      %c19_182 = arith.constant 19 : index
      %169 = vector.load %arg14[%c0_181, %c19_182] : memref<4x342xf32, #tpu.memory_space<vmem>>, vector<4x288xf32>
      tpu.vector_store %arg14[%c0_181, %c19_182], %168 {strides = array<i32>} : memref<4x342xf32, #tpu.memory_space<vmem>>, vector<4x288xf32>,
      %c0_183 = arith.constant 0 : index
      %c0_184 = arith.constant 0 : index
      %170 = vector.load %arg11[%c0_183, %c0_184] : memref<16x1xf32, #tpu.memory_space<vmem>>, vector<16x1xf32>
      %c0_185 = arith.constant 0 : index
      %c0_186 = arith.constant 0 : index
      %171 = vector.load %arg14[%c0_185, %c0_186] : memref<4x342xf32, #tpu.memory_space<vmem>>, vector<4x288xf32>
      %c0_187 = arith.constant 0 : index
      %c0_188 = arith.constant 0 : index
      %c0_189 = arith.constant 0 : index
      %172 = vector.load %arg10[%c0_187, %c0_188, %c0_189] : memref<9x16x4xf32, #tpu.memory_space<vmem>>, vector<1x16x4xf32>
      %173 = vector.shape_cast %172 : vector<1x16x4xf32> to vector<16x4xf32>
      %cst_190 = arith.constant dense<0.000000e+00> : vector<16x288xf32>
      %174 = tpu.matmul %173, %171, %cst_190 {dimension_numbers = #tpu.dot_dimension_numbers<[1], [0], [0], [1], [0, 0, 1, 1], [], []>} : vector<16x4xf32>, vector<4x288xf32>, vector<16x288xf32> -> vector<16x288xf32>
      %c0_191 = arith.constant 0 : index
      %c1_192 = arith.constant 1 : index
      %175 = vector.load %arg14[%c0_191, %c1_192] : memref<4x342xf32, #tpu.memory_space<vmem>>, vector<4x288xf32>
      %c1_193 = arith.constant 1 : index
      %c0_194 = arith.constant 0 : index
      %c0_195 = arith.constant 0 : index
      %176 = vector.load %arg10[%c1_193, %c0_194, %c0_195] : memref<9x16x4xf32, #tpu.memory_space<vmem>>, vector<1x16x4xf32>
      %177 = vector.shape_cast %176 : vector<1x16x4xf32> to vector<16x4xf32>
      %cst_196 = arith.constant dense<0.000000e+00> : vector<16x288xf32>
      %178 = tpu.matmul %177, %175, %cst_196 {dimension_numbers = #tpu.dot_dimension_numbers<[1], [0], [0], [1], [0, 0, 1, 1], [], []>} : vector<16x4xf32>, vector<4x288xf32>, vector<16x288xf32> -> vector<16x288xf32>
      %179 = arith.addf %174, %178 : vector<16x288xf32>
      %c0_197 = arith.constant 0 : index
      %c2_198 = arith.constant 2 : index
      %180 = vector.load %arg14[%c0_197, %c2_198] : memref<4x342xf32, #tpu.memory_space<vmem>>, vector<4x288xf32>
      %c2_199 = arith.constant 2 : index
      %c0_200 = arith.constant 0 : index
      %c0_201 = arith.constant 0 : index
      %181 = vector.load %arg10[%c2_199, %c0_200, %c0_201] : memref<9x16x4xf32, #tpu.memory_space<vmem>>, vector<1x16x4xf32>
      %182 = vector.shape_cast %181 : vector<1x16x4xf32> to vector<16x4xf32>
      %cst_202 = arith.constant dense<0.000000e+00> : vector<16x288xf32>
      %183 = tpu.matmul %182, %180, %cst_202 {dimension_numbers = #tpu.dot_dimension_numbers<[1], [0], [0], [1], [0, 0, 1, 1], [], []>} : vector<16x4xf32>, vector<4x288xf32>, vector<16x288xf32> -> vector<16x288xf32>
      %184 = arith.addf %179, %183 : vector<16x288xf32>
      %c0_203 = arith.constant 0 : index
      %c18_204 = arith.constant 18 : index
      %185 = vector.load %arg14[%c0_203, %c18_204] : memref<4x342xf32, #tpu.memory_space<vmem>>, vector<4x288xf32>
      %c3_205 = arith.constant 3 : index
      %c0_206 = arith.constant 0 : index
      %c0_207 = arith.constant 0 : index
      %186 = vector.load %arg10[%c3_205, %c0_206, %c0_207] : memref<9x16x4xf32, #tpu.memory_space<vmem>>, vector<1x16x4xf32>
      %187 = vector.shape_cast %186 : vector<1x16x4xf32> to vector<16x4xf32>
      %cst_208 = arith.constant dense<0.000000e+00> : vector<16x288xf32>
      %188 = tpu.matmul %187, %185, %cst_208 {dimension_numbers = #tpu.dot_dimension_numbers<[1], [0], [0], [1], [0, 0, 1, 1], [], []>} : vector<16x4xf32>, vector<4x288xf32>, vector<16x288xf32> -> vector<16x288xf32>
      %189 = arith.addf %184, %188 : vector<16x288xf32>
      %c0_209 = arith.constant 0 : index
      %c19_210 = arith.constant 19 : index
      %190 = vector.load %arg14[%c0_209, %c19_210] : memref<4x342xf32, #tpu.memory_space<vmem>>, vector<4x288xf32>
      %c4_211 = arith.constant 4 : index
      %c0_212 = arith.constant 0 : index
      %c0_213 = arith.constant 0 : index
      %191 = vector.load %arg10[%c4_211, %c0_212, %c0_213] : memref<9x16x4xf32, #tpu.memory_space<vmem>>, vector<1x16x4xf32>
      %192 = vector.shape_cast %191 : vector<1x16x4xf32> to vector<16x4xf32>
      %cst_214 = arith.constant dense<0.000000e+00> : vector<16x288xf32>
      %193 = tpu.matmul %192, %190, %cst_214 {dimension_numbers = #tpu.dot_dimension_numbers<[1], [0], [0], [1], [0, 0, 1, 1], [], []>} : vector<16x4xf32>, vector<4x288xf32>, vector<16x288xf32> -> vector<16x288xf32>
      %194 = arith.addf %189, %193 : vector<16x288xf32>
      %c0_215 = arith.constant 0 : index
      %c20_216 = arith.constant 20 : index
      %195 = vector.load %arg14[%c0_215, %c20_216] : memref<4x342xf32, #tpu.memory_space<vmem>>, vector<4x288xf32>
      %c5_217 = arith.constant 5 : index
      %c0_218 = arith.constant 0 : index
      %c0_219 = arith.constant 0 : index
      %196 = vector.load %arg10[%c5_217, %c0_218, %c0_219] : memref<9x16x4xf32, #tpu.memory_space<vmem>>, vector<1x16x4xf32>
      %197 = vector.shape_cast %196 : vector<1x16x4xf32> to vector<16x4xf32>
      %cst_220 = arith.constant dense<0.000000e+00> : vector<16x288xf32>
      %198 = tpu.matmul %197, %195, %cst_220 {dimension_numbers = #tpu.dot_dimension_numbers<[1], [0], [0], [1], [0, 0, 1, 1], [], []>} : vector<16x4xf32>, vector<4x288xf32>, vector<16x288xf32> -> vector<16x288xf32>
      %199 = arith.addf %194, %198 : vector<16x288xf32>
      %c0_221 = arith.constant 0 : index
      %c36_222 = arith.constant 36 : index
      %200 = vector.load %arg14[%c0_221, %c36_222] : memref<4x342xf32, #tpu.memory_space<vmem>>, vector<4x288xf32>
      %c6_223 = arith.constant 6 : index
      %c0_224 = arith.constant 0 : index
      %c0_225 = arith.constant 0 : index
      %201 = vector.load %arg10[%c6_223, %c0_224, %c0_225] : memref<9x16x4xf32, #tpu.memory_space<vmem>>, vector<1x16x4xf32>
      %202 = vector.shape_cast %201 : vector<1x16x4xf32> to vector<16x4xf32>
      %cst_226 = arith.constant dense<0.000000e+00> : vector<16x288xf32>
      %203 = tpu.matmul %202, %200, %cst_226 {dimension_numbers = #tpu.dot_dimension_numbers<[1], [0], [0], [1], [0, 0, 1, 1], [], []>} : vector<16x4xf32>, vector<4x288xf32>, vector<16x288xf32> -> vector<16x288xf32>
      %204 = arith.addf %199, %203 : vector<16x288xf32>
      %c0_227 = arith.constant 0 : index
      %c37_228 = arith.constant 37 : index
      %205 = vector.load %arg14[%c0_227, %c37_228] : memref<4x342xf32, #tpu.memory_space<vmem>>, vector<4x288xf32>
      %c7_229 = arith.constant 7 : index
      %c0_230 = arith.constant 0 : index
      %c0_231 = arith.constant 0 : index
      %206 = vector.load %arg10[%c7_229, %c0_230, %c0_231] : memref<9x16x4xf32, #tpu.memory_space<vmem>>, vector<1x16x4xf32>
      %207 = vector.shape_cast %206 : vector<1x16x4xf32> to vector<16x4xf32>
      %cst_232 = arith.constant dense<0.000000e+00> : vector<16x288xf32>
      %208 = tpu.matmul %207, %205, %cst_232 {dimension_numbers = #tpu.dot_dimension_numbers<[1], [0], [0], [1], [0, 0, 1, 1], [], []>} : vector<16x4xf32>, vector<4x288xf32>, vector<16x288xf32> -> vector<16x288xf32>
      %209 = arith.addf %204, %208 : vector<16x288xf32>
      %c0_233 = arith.constant 0 : index
      %c38_234 = arith.constant 38 : index
      %210 = vector.load %arg14[%c0_233, %c38_234] : memref<4x342xf32, #tpu.memory_space<vmem>>, vector<4x288xf32>
      %c8_235 = arith.constant 8 : index
      %c0_236 = arith.constant 0 : index
      %c0_237 = arith.constant 0 : index
      %211 = vector.load %arg10[%c8_235, %c0_236, %c0_237] : memref<9x16x4xf32, #tpu.memory_space<vmem>>, vector<1x16x4xf32>
      %212 = vector.shape_cast %211 : vector<1x16x4xf32> to vector<16x4xf32>
      %cst_238 = arith.constant dense<0.000000e+00> : vector<16x288xf32>
      %213 = tpu.matmul %212, %210, %cst_238 {dimension_numbers = #tpu.dot_dimension_numbers<[1], [0], [0], [1], [0, 0, 1, 1], [], []>} : vector<16x4xf32>, vector<4x288xf32>, vector<16x288xf32> -> vector<16x288xf32>
      %214 = arith.addf %209, %213 : vector<16x288xf32>
      %215 = vector.broadcast %170 : vector<16x1xf32> to vector<16x288xf32>
      %216 = arith.addf %214, %215 : vector<16x288xf32>
      %c0_239 = arith.constant 0 : index
      %c0_240 = arith.constant 0 : index
      %c0_241 = arith.constant 0 : index
      %217 = vector.load %arg12[%c0_239, %c0_240, %c0_241] : memref<1x16x288xf32, #tpu.memory_space<vmem>>, vector<1x16x288xf32>
      %218 = vector.shape_cast %217 : vector<1x16x288xf32> to vector<16x288xf32>
      %219 = vector.shape_cast %216 : vector<16x288xf32> to vector<1x16x288xf32>
      tpu.vector_store %arg12[%c0_239, %c0_240, %c0_241], %219 {strides = array<i32>} : memref<1x16x288xf32, #tpu.memory_space<vmem>>, vector<1x16x288xf32>,
    } else {
    }
    return
  }
  func.func @transform_0(%arg0: i32, %arg1: i32) -> (i32, i32, i32) {
    %c0_i32 = arith.constant 0 : i32
    %c0_i32_0 = arith.constant 0 : i32
    %c0_i32_1 = arith.constant 0 : i32
    return %arg0, %c0_i32, %c0_i32_0 : i32, i32, i32
  }
  func.func @transform_1(%arg0: i32, %arg1: i32) -> (i32, i32) {
    %c0_i32 = arith.constant 0 : i32
    %c0_i32_0 = arith.constant 0 : i32
    %c0_i32_1 = arith.constant 0 : i32
    return %c0_i32, %c0_i32_0 : i32, i32
  }
  func.func @transform_2(%arg0: i32, %arg1: i32) -> (i32, i32, i32) {
    %c0_i32 = arith.constant 0 : i32
    %c0_i32_0 = arith.constant 0 : i32
    %c0_i32_1 = arith.constant 0 : i32
    %c0_i32_2 = arith.constant 0 : i32
    return %c0_i32, %c0_i32_0, %c0_i32_1 : i32, i32, i32
  }
  func.func @transform_3(%arg0: i32, %arg1: i32) -> (i32, i32) {
    %c0_i32 = arith.constant 0 : i32
    %c0_i32_0 = arith.constant 0 : i32
    %c0_i32_1 = arith.constant 0 : i32
    return %c0_i32, %c0_i32_0 : i32, i32
  }
  func.func @transform_4(%arg0: i32, %arg1: i32) -> (i32, i32, i32, i32) {
    %c0_i32 = arith.constant 0 : i32
    %c0_i32_0 = arith.constant 0 : i32
    %c0_i32_1 = arith.constant 0 : i32
    %c0_i32_2 = arith.constant 0 : i32
    return %arg1, %c0_i32, %c0_i32_0, %c0_i32_1 : i32, i32, i32, i32
  }
  func.func @transform_5(%arg0: i32, %arg1: i32) -> (i32, i32, i32, i32) {
    %c0_i32 = arith.constant 0 : i32
    %c0_i32_0 = arith.constant 0 : i32
    %c0_i32_1 = arith.constant 0 : i32
    %c0_i32_2 = arith.constant 0 : i32
    return %arg1, %c0_i32, %c0_i32_0, %c0_i32_1 : i32, i32, i32, i32
  }
  func.func @transform_6(%arg0: i32, %arg1: i32) -> (i32, i32, i32) {
    %c0_i32 = arith.constant 0 : i32
    %c0_i32_0 = arith.constant 0 : i32
    %c0_i32_1 = arith.constant 0 : i32
    %c0_i32_2 = arith.constant 0 : i32
    return %c0_i32, %c0_i32_0, %c0_i32_1 : i32, i32, i32
  }
  func.func @transform_7(%arg0: i32, %arg1: i32) -> (i32, i32) {
    %c0_i32 = arith.constant 0 : i32
    %c0_i32_0 = arith.constant 0 : i32
    %c0_i32_1 = arith.constant 0 : i32
    return %c0_i32, %c0_i32_0 : i32, i32
  }
  func.func @transform_8(%arg0: i32, %arg1: i32) -> (i32, i32, i32) {
    %c0_i32 = arith.constant 0 : i32
    %c0_i32_0 = arith.constant 0 : i32
    %c0_i32_1 = arith.constant 0 : i32
    %c0_i32_2 = arith.constant 0 : i32
    return %c0_i32, %c0_i32_0, %c0_i32_1 : i32, i32, i32
  }
  func.func @transform_9(%arg0: i32, %arg1: i32) -> (i32, i32) {
    %c0_i32 = arith.constant 0 : i32
    %c0_i32_0 = arith.constant 0 : i32
    %c0_i32_1 = arith.constant 0 : i32
    return %c0_i32, %c0_i32_0 : i32, i32
  }
  func.func @transform_10(%arg0: i32, %arg1: i32) -> (i32, i32, i32) {
    %c0_i32 = arith.constant 0 : i32
    %c0_i32_0 = arith.constant 0 : i32
    %c0_i32_1 = arith.constant 0 : i32
    return %arg0, %c0_i32, %c0_i32_0 : i32, i32, i32
  }
}

</mosaic_0001>

<llo_original>
// kernel: tpu_custom_call.1
$region0: #{tpu_custom_call.1}
  #allocation0 [shape = 'u32[]', space=smem, size = 0x4, offset = 0x4, fixed_abs, tag = 'smem constant byte address 0x4 - core index']
  #allocation1 [shape = 'u32[144,128]{1,0:T(1,128)}', space=vmem, size = 0x12000, scoped, tag = 'internal scratch']
  #allocation2 [shape = 'f32[4,342]{1,0:T(4,128)}', space=vmem, size = 0x1800, scoped, tag = 'scratch operand']
  #allocation3 [shape = 'f32[4,342]{1,0:T(4,128)}', space=vmem, size = 0x1800, scoped, tag = 'scratch operand']
  #allocation4 [shape = 'f32[4,288]{1,0:T(4,128)}', space=vmem, size = 0x1800, scoped, tag = 'scratch operand']
  %s0 = inlined_call_operand.vmem [shape: f32[2,3,342], index: 0, kind: input, shape index: {}]
  %s1 = inlined_call_operand.vmem [shape: f32[1,288], index: 1, kind: input, shape index: {}]
  %s2 = inlined_call_operand.vmem [shape: f32[9,4,3], index: 2, kind: input, shape index: {}]
  %s3 = inlined_call_operand.vmem [shape: f32[4,1], index: 3, kind: input, shape index: {}]
  %s4 = inlined_call_operand.vmem [shape: f32[8,18,4,4], index: 4, kind: input, shape index: {}]
  %s5 = inlined_call_operand.vmem [shape: f32[8,2,4,1], index: 5, kind: input, shape index: {}]
  %s6 = inlined_call_operand.vmem [shape: f32[9,4,4], index: 6, kind: input, shape index: {}]
  %s7 = inlined_call_operand.vmem [shape: f32[4,1], index: 7, kind: input, shape index: {}]
  %s8 = inlined_call_operand.vmem [shape: f32[9,16,4], index: 8, kind: input, shape index: {}]
  %s9 = inlined_call_operand.vmem [shape: f32[16,1], index: 9, kind: input, shape index: {}]
  %s10 = inlined_call_operand.hbm [shape: f32[2,16,288], index: 10, kind: output, shape index: {}]
  %s11 = sld [smem:[#allocation0]]
  $region85: #{tpu_custom_call.1} parent=0
    _
  %s13 = ssub.s32 1, %s11
  %s14 = scalar_select 0, %s13, %s11
  $region1: #{tpu_custom_call.1} parent=0
    #allocation5 [shape = 'u8[49152]{0}', space=vmem, size = 0xc000, scoped, tag = 'output window, operand 0']
    #allocation6 [shape = 's32[2]{0}', space=sflag, size = 0x8, scoped, tag = 'scoped memory for tpu_custom_call.1']
    %15 = vsyncpa [#allocation6], 0
    %s16 = scalar_lea.sflag [#allocation6], 1
    %17 = vsyncpa %s16, 0
    loop: start=0, step=1, limit=18
    $region2: #{tpu_custom_call.1} parent=1 // loop_pre_header
      _
    $region3: #{tpu_custom_call.1} parent=1 // loop_header
      %s19 = sphi 0, %s23
      %p20 = scmp.ge.s32.totalorder %s19, 18
      %s26 = sphi 0, %s38
      %s27 = sphi 0, %s34
      %s28 = sphi 0, %s26
      %s29 = sphi 0, %s27
      %s30 = sphi 0, %s28
      %s31 = sphi 0, %s29
      %s41 = sphi 0, %s43
      %s44 = sphi 0, %s41
      %s45 = sphi 0, %s44
      %s61 = sphi 0, %s45
      %s65 = sphi 0, %s65
      %s67 = sphi 0, %s65
      %s68 = sphi 0, %s67
      %s82 = sphi 0, %s68
      %s86 = sphi 0, %s86
      %s88 = sphi 0, %s86
      %s89 = sphi 0, %s88
      %s103 = sphi 0, %s89
      %s107 = sphi 0, %s107
      %s109 = sphi 0, %s107
      %s110 = sphi 0, %s109
      %s124 = sphi 0, %s110
      %s130 = sphi 0, %s132
      %s133 = sphi 0, %s130
      %s134 = sphi 0, %s133
      %s150 = sphi 0, %s134
      %s156 = sphi 0, %s158
      %s159 = sphi 0, %s156
      %s160 = sphi 0, %s159
      %s176 = sphi 0, %s160
      %s180 = sphi 0, %s180
      %s182 = sphi 0, %s180
      %s183 = sphi 0, %s182
      %s197 = sphi 0, %s183
      %s201 = sphi 0, %s201
      %s203 = sphi 0, %s201
      %s204 = sphi 0, %s203
      %s218 = sphi 0, %s204
      %s222 = sphi 0, %s222
      %s224 = sphi 0, %s222
      %s225 = sphi 0, %s224
      %s239 = sphi 0, %s225
      %s243 = sphi 0, %s243
      %s245 = sphi 0, %s243
      %s246 = sphi 0, %s245
      %s260 = sphi 0, %s246
      %s266 = sphi 0, %s268
      %s269 = sphi 0, %s266
      %s270 = sphi 0, %s269
      %s286 = sphi 0, %s270
    $region4: #{tpu_custom_call.1} parent=1 // loop_header_branch
      %22 = sbr.rel (%p20) target = $region8
    $region5: #{tpu_custom_call.1} parent=1 // loop_body
      %s24 = ssub.s32 %s19, 1
      %s25 = ssub.s32 %s19, 2
      %s32 = sadd.s32 1, %s27
      %p33 = scmp.ge.s32.totalorder %s32, 8
      %s34 = scalar_select %p33, 0, %s32
      %s35 = sadd.s32 1, %s26
      %s36 = scalar_select %p33, %s35, %s26
      %p37 = scmp.ge.s32.totalorder %s36, 2
      %s38 = scalar_select %p37, 0, %s36
      %s39 = ssub.s32 %s26, %s38
      %p40 = scmp.eq.s32.totalorder %s39, 0
      %s42 = sadd.s32 %s41, 1
      %s43 = scalar_select %p40, %s41, %s42
      %p46 = pneg %p40
      %p47 = scmp.eq.s32.totalorder %s19, 15
      %p48 = por %p46, %p47
      %p49 = scmp.ne.s32.totalorder %s41, %s44
      %p50 = scmp.eq.s32.totalorder %s19, 0
      %p51 = por %p49, %p50
      %p52 = scmp.ne.s32.totalorder %s41, %s44
      %p53 = scmp.eq.s32.totalorder %s24, 15
      %p54 = por %p52, %p53
      %p55 = scmp.ne.s32.totalorder %s44, %s45
      %p56 = scmp.eq.s32.totalorder %s24, 0
      %p57 = por %p55, %p56
      %p58 = scmp.ne.s32.totalorder %s44, %s45
      %p59 = scmp.eq.s32.totalorder %s25, 15
      %p60 = por %p58, %p59
      %p62 = scmp.ne.s32.totalorder %s45, %s61
      %p63 = scmp.eq.s32.totalorder %s25, 0
      %p64 = por %p62, %p63
      %s66 = sadd.s32 %s65, 1
      %p69 = scmp.eq.s32.totalorder %s19, 15
      %p70 = scmp.ne.s32.totalorder %s65, %s67
      %p71 = scmp.eq.s32.totalorder %s19, 0
      %p72 = por %p70, %p71
      %p73 = scmp.ne.s32.totalorder %s65, %s67
      %p74 = scmp.eq.s32.totalorder %s24, 15
      %p75 = por %p73, %p74
      %p76 = scmp.ne.s32.totalorder %s67, %s68
      %p77 = scmp.eq.s32.totalorder %s24, 0
      %p78 = por %p76, %p77
      %p79 = scmp.ne.s32.totalorder %s67, %s68
      %p80 = scmp.eq.s32.totalorder %s25, 15
      %p81 = por %p79, %p80
      %p83 = scmp.ne.s32.totalorder %s68, %s82
      %p84 = scmp.eq.s32.totalorder %s25, 0
      %p85 = por %p83, %p84
      %s87 = sadd.s32 %s86, 1
      %p90 = scmp.eq.s32.totalorder %s19, 15
      %p91 = scmp.ne.s32.totalorder %s86, %s88
      %p92 = scmp.eq.s32.totalorder %s19, 0
      %p93 = por %p91, %p92
      %p94 = scmp.ne.s32.totalorder %s86, %s88
      %p95 = scmp.eq.s32.totalorder %s24, 15
      %p96 = por %p94, %p95
      %p97 = scmp.ne.s32.totalorder %s88, %s89
      %p98 = scmp.eq.s32.totalorder %s24, 0
      %p99 = por %p97, %p98
      %p100 = scmp.ne.s32.totalorder %s88, %s89
      %p101 = scmp.eq.s32.totalorder %s25, 15
      %p102 = por %p100, %p101
      %p104 = scmp.ne.s32.totalorder %s89, %s103
      %p105 = scmp.eq.s32.totalorder %s25, 0
      %p106 = por %p104, %p105
      %s108 = sadd.s32 %s107, 1
      %p111 = scmp.eq.s32.totalorder %s19, 15
      %p112 = scmp.ne.s32.totalorder %s107, %s109
      %p113 = scmp.eq.s32.totalorder %s19, 0
      %p114 = por %p112, %p113
      %p115 = scmp.ne.s32.totalorder %s107, %s109
      %p116 = scmp.eq.s32.totalorder %s24, 15
      %p117 = por %p115, %p116
      %p118 = scmp.ne.s32.totalorder %s109, %s110
      %p119 = scmp.eq.s32.totalorder %s24, 0
      %p120 = por %p118, %p119
      %p121 = scmp.ne.s32.totalorder %s109, %s110
      %p122 = scmp.eq.s32.totalorder %s25, 15
      %p123 = por %p121, %p122
      %p125 = scmp.ne.s32.totalorder %s110, %s124
      %p126 = scmp.eq.s32.totalorder %s25, 0
      %p127 = por %p125, %p126
      %s128 = ssub.s32 %s27, %s34
      %p129 = scmp.eq.s32.totalorder %s128, 0
      %s131 = sadd.s32 %s130, 1
      %s132 = scalar_select %p129, %s130, %s131
      %p135 = pneg %p129
      %p136 = scmp.eq.s32.totalorder %s19, 15
      %p137 = por %p135, %p136
      %p138 = scmp.ne.s32.totalorder %s130, %s133
      %p139 = scmp.eq.s32.totalorder %s19, 0
      %p140 = por %p138, %p139
      %p141 = scmp.ne.s32.totalorder %s130, %s133
      %p142 = scmp.eq.s32.totalorder %s24, 15
      %p143 = por %p141, %p142
      %p144 = scmp.ne.s32.totalorder %s133, %s134
      %p145 = scmp.eq.s32.totalorder %s24, 0
      %p146 = por %p144, %p145
      %p147 = scmp.ne.s32.totalorder %s133, %s134
      %p148 = scmp.eq.s32.totalorder %s25, 15
      %p149 = por %p147, %p148
      %p151 = scmp.ne.s32.totalorder %s134, %s150
      %p152 = scmp.eq.s32.totalorder %s25, 0
      %p153 = por %p151, %p152
      %s154 = ssub.s32 %s27, %s34
      %p155 = scmp.eq.s32.totalorder %s154, 0
      %s157 = sadd.s32 %s156, 1
      %s158 = scalar_select %p155, %s156, %s157
      %p161 = pneg %p155
      %p162 = scmp.eq.s32.totalorder %s19, 15
      %p163 = por %p161, %p162
      %p164 = scmp.ne.s32.totalorder %s156, %s159
      %p165 = scmp.eq.s32.totalorder %s19, 0
      %p166 = por %p164, %p165
      %p167 = scmp.ne.s32.totalorder %s156, %s159
      %p168 = scmp.eq.s32.totalorder %s24, 15
      %p169 = por %p167, %p168
      %p170 = scmp.ne.s32.totalorder %s159, %s160
      %p171 = scmp.eq.s32.totalorder %s24, 0
      %p172 = por %p170, %p171
      %p173 = scmp.ne.s32.totalorder %s159, %s160
      %p174 = scmp.eq.s32.totalorder %s25, 15
      %p175 = por %p173, %p174
      %p177 = scmp.ne.s32.totalorder %s160, %s176
      %p178 = scmp.eq.s32.totalorder %s25, 0
      %p179 = por %p177, %p178
      %s181 = sadd.s32 %s180, 1
      %p184 = scmp.eq.s32.totalorder %s19, 15
      %p185 = scmp.ne.s32.totalorder %s180, %s182
      %p186 = scmp.eq.s32.totalorder %s19, 0
      %p187 = por %p185, %p186
      %p188 = scmp.ne.s32.totalorder %s180, %s182
      %p189 = scmp.eq.s32.totalorder %s24, 15
      %p190 = por %p188, %p189
      %p191 = scmp.ne.s32.totalorder %s182, %s183
      %p192 = scmp.eq.s32.totalorder %s24, 0
      %p193 = por %p191, %p192
      %p194 = scmp.ne.s32.totalorder %s182, %s183
      %p195 = scmp.eq.s32.totalorder %s25, 15
      %p196 = por %p194, %p195
      %p198 = scmp.ne.s32.totalorder %s183, %s197
      %p199 = scmp.eq.s32.totalorder %s25, 0
      %p200 = por %p198, %p199
      %s202 = sadd.s32 %s201, 1
      %p205 = scmp.eq.s32.totalorder %s19, 15
      %p206 = scmp.ne.s32.totalorder %s201, %s203
      %p207 = scmp.eq.s32.totalorder %s19, 0
      %p208 = por %p206, %p207
      %p209 = scmp.ne.s32.totalorder %s201, %s203
      %p210 = scmp.eq.s32.totalorder %s24, 15
      %p211 = por %p209, %p210
      %p212 = scmp.ne.s32.totalorder %s203, %s204
      %p213 = scmp.eq.s32.totalorder %s24, 0
      %p214 = por %p212, %p213
      %p215 = scmp.ne.s32.totalorder %s203, %s204
      %p216 = scmp.eq.s32.totalorder %s25, 15
      %p217 = por %p215, %p216
      %p219 = scmp.ne.s32.totalorder %s204, %s218
      %p220 = scmp.eq.s32.totalorder %s25, 0
      %p221 = por %p219, %p220
      %s223 = sadd.s32 %s222, 1
      %p226 = scmp.eq.s32.totalorder %s19, 15
      %p227 = scmp.ne.s32.totalorder %s222, %s224
      %p228 = scmp.eq.s32.totalorder %s19, 0
      %p229 = por %p227, %p228
      %p230 = scmp.ne.s32.totalorder %s222, %s224
      %p231 = scmp.eq.s32.totalorder %s24, 15
      %p232 = por %p230, %p231
      %p233 = scmp.ne.s32.totalorder %s224, %s225
      %p234 = scmp.eq.s32.totalorder %s24, 0
      %p235 = por %p233, %p234
      %p236 = scmp.ne.s32.totalorder %s224, %s225
      %p237 = scmp.eq.s32.totalorder %s25, 15
      %p238 = por %p236, %p237
      %p240 = scmp.ne.s32.totalorder %s225, %s239
      %p241 = scmp.eq.s32.totalorder %s25, 0
      %p242 = por %p240, %p241
      %s244 = sadd.s32 %s243, 1
      %p247 = scmp.eq.s32.totalorder %s19, 15
      %p248 = scmp.ne.s32.totalorder %s243, %s245
      %p249 = scmp.eq.s32.totalorder %s19, 0
      %p250 = por %p248, %p249
      %p251 = scmp.ne.s32.totalorder %s243, %s245
      %p252 = scmp.eq.s32.totalorder %s24, 15
      %p253 = por %p251, %p252
      %p254 = scmp.ne.s32.totalorder %s245, %s246
      %p255 = scmp.eq.s32.totalorder %s24, 0
      %p256 = por %p254, %p255
      %p257 = scmp.ne.s32.totalorder %s245, %s246
      %p258 = scmp.eq.s32.totalorder %s25, 15
      %p259 = por %p257, %p258
      %p261 = scmp.ne.s32.totalorder %s246, %s260
      %p262 = scmp.eq.s32.totalorder %s25, 0
      %p263 = por %p261, %p262
      %s264 = ssub.s32 %s26, %s38
      %p265 = scmp.eq.s32.totalorder %s264, 0
      %s267 = sadd.s32 %s266, 1
      %s268 = scalar_select %p265, %s266, %s267
      %p271 = pneg %p265
      %p272 = scmp.eq.s32.totalorder %s19, 15
      %p273 = por %p271, %p272
      %p274 = scmp.ne.s32.totalorder %s266, %s269
      %p275 = scmp.eq.s32.totalorder %s19, 0
      %p276 = por %p274, %p275
      %p277 = scmp.ne.s32.totalorder %s266, %s269
      %p278 = scmp.eq.s32.totalorder %s24, 15
      %p279 = por %p277, %p278
      %p280 = scmp.ne.s32.totalorder %s269, %s270
      %p281 = scmp.eq.s32.totalorder %s24, 0
      %p282 = por %p280, %p281
      %p283 = scmp.ne.s32.totalorder %s269, %s270
      %p284 = scmp.eq.s32.totalorder %s25, 15
      %p285 = por %p283, %p284
      %p287 = scmp.ne.s32.totalorder %s270, %s286
      %p288 = scmp.eq.s32.totalorder %s25, 0
      %p289 = por %p287, %p288
      %p290 = scmp.le.s32.totalorder 1, %s19
      %p291 = scmp.lt.s32.totalorder %s19, 17
      %p292 = pnand %p290, %p291
      %p293 = pneg %p292
      // Predicated region
      $region9: #{tpu_custom_call.1} parent=5 // pred_check
        _
      $region10: #{tpu_custom_call.1} parent=5 // pred_check_branch
        %295 = sbr.rel (%p292) target = $region12
      $region11: #{tpu_custom_call.1} parent=5 // pred_region
        %s296 = ssub.s32 %s19, 1
        // Predicated region
        $region13: #{tpu_custom_call.1} parent=11 // pred_check
          %p297 = pneg %p78
        $region14: #{tpu_custom_call.1} parent=11 // pred_check_branch
          %299 = sbr.rel (%p297) target = $region16
        $region15: #{tpu_custom_call.1} parent=11 // pred_region
          _
        $region16: #{tpu_custom_call.1} parent=11 // pred_fallthru
          _
        // Predicated region
        $region17: #{tpu_custom_call.1} parent=11 // pred_check
          %p300 = pneg %p99
        $region18: #{tpu_custom_call.1} parent=11 // pred_check_branch
          %302 = sbr.rel (%p300) target = $region20
        $region19: #{tpu_custom_call.1} parent=11 // pred_region
          _
        $region20: #{tpu_custom_call.1} parent=11 // pred_fallthru
          _
        // Predicated region
        $region21: #{tpu_custom_call.1} parent=11 // pred_check
          %p303 = pneg %p120
        $region22: #{tpu_custom_call.1} parent=11 // pred_check_branch
          %305 = sbr.rel (%p303) target = $region24
        $region23: #{tpu_custom_call.1} parent=11 // pred_region
          _
        $region24: #{tpu_custom_call.1} parent=11 // pred_fallthru
          _
        // Predicated region
        $region25: #{tpu_custom_call.1} parent=11 // pred_check
          %p306 = pneg %p193
        $region26: #{tpu_custom_call.1} parent=11 // pred_check_branch
          %308 = sbr.rel (%p306) target = $region28
        $region27: #{tpu_custom_call.1} parent=11 // pred_region
          _
        $region28: #{tpu_custom_call.1} parent=11 // pred_fallthru
          _
        // Predicated region
        $region29: #{tpu_custom_call.1} parent=11 // pred_check
          %p309 = pneg %p214
        $region30: #{tpu_custom_call.1} parent=11 // pred_check_branch
          %311 = sbr.rel (%p309) target = $region32
        $region31: #{tpu_custom_call.1} parent=11 // pred_region
          _
        $region32: #{tpu_custom_call.1} parent=11 // pred_fallthru
          _
        // Predicated region
        $region33: #{tpu_custom_call.1} parent=11 // pred_check
          %p312 = pneg %p235
        $region34: #{tpu_custom_call.1} parent=11 // pred_check_branch
          %314 = sbr.rel (%p312) target = $region36
        $region35: #{tpu_custom_call.1} parent=11 // pred_region
          _
        $region36: #{tpu_custom_call.1} parent=11 // pred_fallthru
          _
        // Predicated region
        $region37: #{tpu_custom_call.1} parent=11 // pred_check
          %p315 = pneg %p256
        $region38: #{tpu_custom_call.1} parent=11 // pred_check_branch
          %317 = sbr.rel (%p315) target = $region40
        $region39: #{tpu_custom_call.1} parent=11 // pred_region
          _
        $region40: #{tpu_custom_call.1} parent=11 // pred_fallthru
          _
      $region12: #{tpu_custom_call.1} parent=5 // pred_fallthru
        _
      %p318 = scmp.lt.s32.totalorder %s19, 16
      // Predicated region
      $region41: #{tpu_custom_call.1} parent=5 // pred_check
        %p319 = pneg %p318
      $region42: #{tpu_custom_call.1} parent=5 // pred_check_branch
        %321 = sbr.rel (%p319) target = $region44
      $region43: #{tpu_custom_call.1} parent=5 // pred_region
        // Predicated region
        $region45: #{tpu_custom_call.1} parent=43 // pred_check
          %p322 = pneg %p51
        $region46: #{tpu_custom_call.1} parent=43 // pred_check_branch
          %324 = sbr.rel (%p322) target = $region48
        $region47: #{tpu_custom_call.1} parent=43 // pred_region
          %p325 = scmp.lt.s32.totalorder %s26, 1
          %s326 = scalar_select %p325, %s26, 1
          %s327 = smul.addr %s326, 3
          %s328 = smul.addr %s327, 4
          %s329 = scalar_lea.vmem %s0, %s328
        $region48: #{tpu_custom_call.1} parent=43 // pred_fallthru
          _
        // Predicated region
        $region49: #{tpu_custom_call.1} parent=43 // pred_check
          %p330 = pneg %p140
        $region50: #{tpu_custom_call.1} parent=43 // pred_check_branch
          %332 = sbr.rel (%p330) target = $region52
        $region51: #{tpu_custom_call.1} parent=43 // pred_region
          %p333 = scmp.lt.s32.totalorder %s27, 7
          %s334 = scalar_select %p333, %s27, 7
          %s335 = smul.addr %s334, 18
          %s336 = smul.addr %s335, 4
          %s337 = scalar_lea.vmem %s4, %s336
        $region52: #{tpu_custom_call.1} parent=43 // pred_fallthru
          _
        // Predicated region
        $region53: #{tpu_custom_call.1} parent=43 // pred_check
          %p338 = pneg %p166
        $region54: #{tpu_custom_call.1} parent=43 // pred_check_branch
          %340 = sbr.rel (%p338) target = $region56
        $region55: #{tpu_custom_call.1} parent=43 // pred_region
          %p341 = scmp.lt.s32.totalorder %s27, 7
          %s342 = scalar_select %p341, %s27, 7
          %s343 = smul.addr %s342, 2
          %s344 = smul.addr %s343, 4
          %s345 = scalar_lea.vmem %s5, %s344
        $region56: #{tpu_custom_call.1} parent=43 // pred_fallthru
          _
      $region44: #{tpu_custom_call.1} parent=5 // pred_fallthru
        _
      %p346 = scmp.le.s32.totalorder 1, %s19
      %p347 = scmp.lt.s32.totalorder %s19, 17
      %p348 = pnand %p346, %p347
      %p349 = pneg %p348
      // Predicated region
      $region57: #{tpu_custom_call.1} parent=5 // pred_check
        _
      $region58: #{tpu_custom_call.1} parent=5 // pred_check_branch
        %351 = sbr.rel (%p348) target = $region60
      $region59: #{tpu_custom_call.1} parent=5 // pred_region
        %s352 = ssub.s32 %s19, 1
        %p353 = scmp.lt.s32.totalorder %s28, 1
        %s354 = scalar_select %p353, %s28, 1
        %s355 = smul.addr %s354, 3
        %s356 = smul.addr %s355, 4
        %s357 = scalar_lea.vmem %s0, %s356
        %p358 = pneg %p57
        %p359 = pneg %p54
        %p360 = pneg %p78
        %p361 = pneg %p75
        %p362 = pneg %p99
        %p363 = pneg %p96
        %p364 = pneg %p120
        %p365 = pneg %p117
        %p366 = scmp.lt.s32.totalorder %s29, 7
        %s367 = scalar_select %p366, %s29, 7
        %s368 = smul.addr %s367, 18
        %s369 = smul.addr %s368, 4
        %s370 = scalar_lea.vmem %s4, %s369
        %p371 = pneg %p146
        %p372 = pneg %p143
        %p373 = scmp.lt.s32.totalorder %s29, 7
        %s374 = scalar_select %p373, %s29, 7
        %s375 = smul.addr %s374, 2
        %s376 = smul.addr %s375, 4
        %s377 = scalar_lea.vmem %s5, %s376
        %p378 = pneg %p172
        %p379 = pneg %p169
        %p380 = pneg %p193
        %p381 = pneg %p190
        %p382 = pneg %p214
        %p383 = pneg %p211
        %p384 = pneg %p235
        %p385 = pneg %p232
        %p386 = pneg %p256
        %p387 = pneg %p253
        %p388 = pneg %p282
        %p389 = pneg %p279
        %s390 = sand.u32 %s269, 1
        %s391 = scalar_lea.sflag [#allocation6], %s390
        %s392 = sand.u32 %s269, 1
        %s393 = smul.addr %s392, 48
        %s394 = scalar_lea.vmem [#allocation5], %s393
        %p395 = scmp.lt.s32.totalorder %s28, 1
        %s396 = scalar_select %p395, %s28, 1
        %s397 = smul.addr %s396, 3
        %s398 = smul.addr %s397, 4
        %s399 = scalar_lea.vmem %s0, %s398
        %p400 = scmp.lt.s32.totalorder %s29, 7
        %s401 = scalar_select %p400, %s29, 7
        %s402 = smul.addr %s401, 18
        %s403 = smul.addr %s402, 4
        %s404 = scalar_lea.vmem %s4, %s403
        %p405 = scmp.lt.s32.totalorder %s29, 7
        %s406 = scalar_select %p405, %s29, 7
        %s407 = smul.addr %s406, 2
        %s408 = smul.addr %s407, 4
        %s409 = scalar_lea.vmem %s5, %s408
        %v410 = vld [vmem:[%s1] sm:$0x7]
        %p411 = scmp.eq.s32.totalorder %s28, 0
        %p412 = scmp.eq.s32.totalorder %s29, 0
        %p413 = pnand %p411, %p412
        %p414 = pneg %p413
        // Predicated region
        $region61: #{tpu_custom_call.1} parent=59 // pred_check
          _
        $region62: #{tpu_custom_call.1} parent=59 // pred_check_branch
          %416 = sbr.rel (%p413) target = $region64
        $region63: #{tpu_custom_call.1} parent=59 // pred_region
          %417 = vst [vmem:[#allocation2] sm:$0xff] 0.0
          %vm418 = vcmask 699392
          %419 = vst.msk [vmem:[#allocation2 + $0x8] sm:$0xf] %vm418, 0.0
          %420 = vst [vmem:[#allocation3] sm:$0xff] 0.0
          %421 = vst.msk [vmem:[#allocation3 + $0x8] sm:$0xf] %vm418, 0.0
        $region64: #{tpu_custom_call.1} parent=59 // pred_fallthru
          _
        // Predicated region
        $region65: #{tpu_custom_call.1} parent=59 // pred_check
          %p422 = pneg %p412
        $region66: #{tpu_custom_call.1} parent=59 // pred_check_branch
          %424 = sbr.rel (%p422) target = $region68
        $region67: #{tpu_custom_call.1} parent=59 // pred_region
          %v425 = vld [vmem:[%s3] sm:$0xf]
          %v426 = vld [vmem:[%s399] sm:$0x77]
          %v427 = vld [vmem:[%s399 + $0x8] sm:$0x7]
          %v428 = vld [vmem:[%s2] sm:$0xf]
          %s429 = scalar_lea.vmem %s2, 4
          %v430 = vld [vmem:[%s429] sm:$0xf]
          %v433 = vcombine.high %v426, %v426
          %434 = vrot.lane.b32.xlu0 %v426, 127
          %v435 = vpop.permute.xlu0 %434
          %436 = vrot.lane.b32.xlu0 %v433, 127
          %v437 = vpop.permute.xlu0 %436
          %438 = vrot.lane.b32.xlu0 %v427, 127
          %v439 = vpop.permute.xlu0 %438
          %vm440 = vcmask 1039360
          %v441 = vsel %vm440, %v435, %v437
          %v442 = vsel %vm440, %v437, %v439
          %vm443 = vcmask 23552
          %v445 = vsel %vm443, %v430, 0
          %vm447 = vcmask 1042432
          %v448 = vsel %vm447, %v441, 0
          %v450 = vsel %vm447, %v442, 0
          %v452 = vsel %vm447, %v439, 0
          %454 = vmatprep.subr.mxu0 0.0
          %455 = vmatpush1.msra.mxu0 0.0
          %456 = vmatprep.subr.mxu0 0.0
          %457 = vmatpush1.msra.mxu0 0.0
          %458 = vmatprep.subr.mxu0 0.0
          %459 = vmatpush1.msra.mxu0 0.0
          %460 = vmatprep.subr.mxu0 0.0
          %461 = vmatpush1.msra.mxu0 0.0
          %462 = vmatprep.subr.mxu0 0.0
          %463 = vmatpush1.msra.mxu0 0.0
          %464 = vmatprep.subr.mxu0 0.0
          %465 = vmatpush1.msra.mxu0 0.0
          %466 = vmatprep.subr.mxu0 0.0
          %467 = vmatpush1.msra.mxu0 0.0
          %468 = vmatprep.subr.mxu0 0.0
          %469 = vmatpush1.msra.mxu0 0.0
          %470 = vmatprep.subr.mxu0 0.0
          %471 = vmatpush1.msra.mxu0 0.0
          %472 = vmatprep.subr.mxu0 0.0
          %473 = vmatpush1.msra.mxu0 0.0
          %474 = vmatprep.subr.mxu0 0.0
          %475 = vmatpush1.msra.mxu0 0.0
          %476 = vmatprep.subr.mxu0 0.0
          %477 = vmatpush1.msra.mxu0 0.0
          %478 = vmatprep.subr.mxu0 0.0
          %479 = vmatpush1.msra.mxu0 0.0
          %480 = vmatprep.subr.mxu0 0.0
          %481 = vmatpush1.msra.mxu0 0.0
          %482 = vmatprep.subr.mxu0 0.0
          %483 = vmatpush1.msra.mxu0 0.0
          %484 = vmatprep.subr.mxu0 %v450
          %485 = vmatpush1.msra.mxu0 %v448
          %486 = vmatprep.subr.mxu0 0.0
          %487 = vmatpush2.msra.mxu0 0.0
          %488 = vmatprep.subr.mxu0 0.0
          %489 = vmatpush2.msra.mxu0 0.0
          %490 = vmatprep.subr.mxu0 0.0
          %491 = vmatpush2.msra.mxu0 0.0
          %492 = vmatprep.subr.mxu0 0.0
          %493 = vmatpush2.msra.mxu0 0.0
          %494 = vmatprep.subr.mxu0 0.0
          %495 = vmatpush2.msra.mxu0 0.0
          %496 = vmatprep.subr.mxu0 0.0
          %497 = vmatpush2.msra.mxu0 0.0
          %498 = vmatprep.subr.mxu0 0.0
          %499 = vmatpush2.msra.mxu0 0.0
          %500 = vmatprep.subr.mxu0 0.0
          %501 = vmatpush2.msra.mxu0 0.0
          %502 = vmatprep.subr.mxu0 0.0
          %503 = vmatpush2.msra.mxu0 0.0
          %504 = vmatprep.subr.mxu0 0.0
          %505 = vmatpush2.msra.mxu0 0.0
          %506 = vmatprep.subr.mxu0 0.0
          %507 = vmatpush2.msra.mxu0 0.0
          %508 = vmatprep.subr.mxu0 0.0
          %509 = vmatpush2.msra.mxu0 0.0
          %510 = vmatprep.subr.mxu0 0.0
          %511 = vmatpush2.msra.mxu0 0.0
          %512 = vmatprep.subr.mxu0 0.0
          %513 = vmatpush2.msra.mxu0 0.0
          %514 = vmatprep.subr.mxu0 0.0
          %515 = vmatpush2.msra.mxu0 0.0
          %516 = vmatprep.subr.mxu0 0.0
          %517 = vmatpush2.msra.mxu0 0.0
          %518 = vmatprep.mubr.f32.mxu0 0.0
          %519 = vmatmul.mubr.f32.gmra.mxu0 %v445
          %v520 = vpop.f32.mrf.mxu0
          %v521 = vadd.f32 0.0, %v520
          %v522 = vpop.f32.mrf.mxu0
          %v523 = vadd.f32 0.0, %v522
          %524 = vdwg.mxu0
          %525 = vmatprep.subr.mxu0 0.0
          %526 = vmatpush1.msra.mxu0 0.0
          %527 = vmatprep.subr.mxu0 0.0
          %528 = vmatpush1.msra.mxu0 0.0
          %529 = vmatprep.subr.mxu0 0.0
          %530 = vmatpush1.msra.mxu0 0.0
          %531 = vmatprep.subr.mxu0 0.0
          %532 = vmatpush1.msra.mxu0 0.0
          %533 = vmatprep.subr.mxu0 0.0
          %534 = vmatpush1.msra.mxu0 0.0
          %535 = vmatprep.subr.mxu0 0.0
          %536 = vmatpush1.msra.mxu0 0.0
          %537 = vmatprep.subr.mxu0 0.0
          %538 = vmatpush1.msra.mxu0 0.0
          %539 = vmatprep.subr.mxu0 0.0
          %540 = vmatpush1.msra.mxu0 0.0
          %541 = vmatprep.subr.mxu0 0.0
          %542 = vmatpush1.msra.mxu0 0.0
          %543 = vmatprep.subr.mxu0 0.0
          %544 = vmatpush1.msra.mxu0 0.0
          %545 = vmatprep.subr.mxu0 0.0
          %546 = vmatpush1.msra.mxu0 0.0
          %547 = vmatprep.subr.mxu0 0.0
          %548 = vmatpush1.msra.mxu0 0.0
          %549 = vmatprep.subr.mxu0 0.0
          %550 = vmatpush1.msra.mxu0 0.0
          %551 = vmatprep.subr.mxu0 0.0
          %552 = vmatpush1.msra.mxu0 0.0
          %553 = vmatprep.subr.mxu0 0.0
          %554 = vmatpush1.msra.mxu0 0.0
          %555 = vmatprep.subr.mxu0 0.0
          %556 = vmatpush1.msra.mxu0 %v452
          %557 = vmatprep.subr.mxu0 0.0
          %558 = vmatpush2.msra.mxu0 0.0
          %559 = vmatprep.subr.mxu0 0.0
          %560 = vmatpush2.msra.mxu0 0.0
          %561 = vmatprep.subr.mxu0 0.0
          %562 = vmatpush2.msra.mxu0 0.0
          %563 = vmatprep.subr.mxu0 0.0
          %564 = vmatpush2.msra.mxu0 0.0
          %565 = vmatprep.subr.mxu0 0.0
          %566 = vmatpush2.msra.mxu0 0.0
          %567 = vmatprep.subr.mxu0 0.0
          %568 = vmatpush2.msra.mxu0 0.0
          %569 = vmatprep.subr.mxu0 0.0
          %570 = vmatpush2.msra.mxu0 0.0
          %571 = vmatprep.subr.mxu0 0.0
          %572 = vmatpush2.msra.mxu0 0.0
          %573 = vmatprep.subr.mxu0 0.0
          %574 = vmatpush2.msra.mxu0 0.0
          %575 = vmatprep.subr.mxu0 0.0
          %576 = vmatpush2.msra.mxu0 0.0
          %577 = vmatprep.subr.mxu0 0.0
          %578 = vmatpush2.msra.mxu0 0.0
          %579 = vmatprep.subr.mxu0 0.0
          %580 = vmatpush2.msra.mxu0 0.0
          %581 = vmatprep.subr.mxu0 0.0
          %582 = vmatpush2.msra.mxu0 0.0
          %583 = vmatprep.subr.mxu0 0.0
          %584 = vmatpush2.msra.mxu0 0.0
          %585 = vmatprep.subr.mxu0 0.0
          %586 = vmatpush2.msra.mxu0 0.0
          %587 = vmatprep.subr.mxu0 0.0
          %588 = vmatpush2.msra.mxu0 0.0
          %589 = vmatprep.mubr.f32.mxu0 0.0
          %590 = vmatmul.mubr.f32.gmra.mxu0 %v445
          %v591 = vpop.f32.mrf.mxu0
          %v592 = vadd.f32 0.0, %v591
          %v593 = vpop.f32.mrf.mxu0
          %594 = vdwg.mxu0
          %v596 = vsel %vm443, %v428, 0
          %v598 = vsel %vm447, %v426, 0
          %v600 = vsel %vm447, %v433, 0
          %v602 = vsel %vm447, %v427, 0
          %604 = vmatprep.subr.mxu0 0.0
          %605 = vmatpush1.msra.mxu0 0.0
          %606 = vmatprep.subr.mxu0 0.0
          %607 = vmatpush1.msra.mxu0 0.0
          %608 = vmatprep.subr.mxu0 0.0
          %609 = vmatpush1.msra.mxu0 0.0
          %610 = vmatprep.subr.mxu0 0.0
          %611 = vmatpush1.msra.mxu0 0.0
          %612 = vmatprep.subr.mxu0 0.0
          %613 = vmatpush1.msra.mxu0 0.0
          %614 = vmatprep.subr.mxu0 0.0
          %615 = vmatpush1.msra.mxu0 0.0
          %616 = vmatprep.subr.mxu0 0.0
          %617 = vmatpush1.msra.mxu0 0.0
          %618 = vmatprep.subr.mxu0 0.0
          %619 = vmatpush1.msra.mxu0 0.0
          %620 = vmatprep.subr.mxu0 0.0
          %621 = vmatpush1.msra.mxu0 0.0
          %622 = vmatprep.subr.mxu0 0.0
          %623 = vmatpush1.msra.mxu0 0.0
          %624 = vmatprep.subr.mxu0 0.0
          %625 = vmatpush1.msra.mxu0 0.0
          %626 = vmatprep.subr.mxu0 0.0
          %627 = vmatpush1.msra.mxu0 0.0
          %628 = vmatprep.subr.mxu0 0.0
          %629 = vmatpush1.msra.mxu0 0.0
          %630 = vmatprep.subr.mxu0 0.0
          %631 = vmatpush1.msra.mxu0 0.0
          %632 = vmatprep.subr.mxu0 0.0
          %633 = vmatpush1.msra.mxu0 0.0
          %634 = vmatprep.subr.mxu0 %v600
          %635 = vmatpush1.msra.mxu0 %v598
          %636 = vmatprep.subr.mxu0 0.0
          %637 = vmatpush2.msra.mxu0 0.0
          %638 = vmatprep.subr.mxu0 0.0
          %639 = vmatpush2.msra.mxu0 0.0
          %640 = vmatprep.subr.mxu0 0.0
          %641 = vmatpush2.msra.mxu0 0.0
          %642 = vmatprep.subr.mxu0 0.0
          %643 = vmatpush2.msra.mxu0 0.0
          %644 = vmatprep.subr.mxu0 0.0
          %645 = vmatpush2.msra.mxu0 0.0
          %646 = vmatprep.subr.mxu0 0.0
          %647 = vmatpush2.msra.mxu0 0.0
          %648 = vmatprep.subr.mxu0 0.0
          %649 = vmatpush2.msra.mxu0 0.0
          %650 = vmatprep.subr.mxu0 0.0
          %651 = vmatpush2.msra.mxu0 0.0
          %652 = vmatprep.subr.mxu0 0.0
          %653 = vmatpush2.msra.mxu0 0.0
          %654 = vmatprep.subr.mxu0 0.0
          %655 = vmatpush2.msra.mxu0 0.0
          %656 = vmatprep.subr.mxu0 0.0
          %657 = vmatpush2.msra.mxu0 0.0
          %658 = vmatprep.subr.mxu0 0.0
          %659 = vmatpush2.msra.mxu0 0.0
          %660 = vmatprep.subr.mxu0 0.0
          %661 = vmatpush2.msra.mxu0 0.0
          %662 = vmatprep.subr.mxu0 0.0
          %663 = vmatpush2.msra.mxu0 0.0
          %664 = vmatprep.subr.mxu0 0.0
          %665 = vmatpush2.msra.mxu0 0.0
          %666 = vmatprep.subr.mxu0 0.0
          %667 = vmatpush2.msra.mxu0 0.0
          %668 = vmatprep.mubr.f32.mxu0 0.0
          %669 = vmatmul.mubr.f32.gmra.mxu0 %v596
          %v670 = vpop.f32.mrf.mxu0
          %v671 = vadd.f32 %v521, %v670
          %v672 = vpop.f32.mrf.mxu0
          %v673 = vadd.f32 %v523, %v672
          %674 = vdwg.mxu0
          %675 = vmatprep.subr.mxu0 0.0
          %676 = vmatpush1.msra.mxu0 0.0
          %677 = vmatprep.subr.mxu0 0.0
          %678 = vmatpush1.msra.mxu0 0.0
          %679 = vmatprep.subr.mxu0 0.0
          %680 = vmatpush1.msra.mxu0 0.0
          %681 = vmatprep.subr.mxu0 0.0
          %682 = vmatpush1.msra.mxu0 0.0
          %683 = vmatprep.subr.mxu0 0.0
          %684 = vmatpush1.msra.mxu0 0.0
          %685 = vmatprep.subr.mxu0 0.0
          %686 = vmatpush1.msra.mxu0 0.0
          %687 = vmatprep.subr.mxu0 0.0
          %688 = vmatpush1.msra.mxu0 0.0
          %689 = vmatprep.subr.mxu0 0.0
          %690 = vmatpush1.msra.mxu0 0.0
          %691 = vmatprep.subr.mxu0 0.0
          %692 = vmatpush1.msra.mxu0 0.0
          %693 = vmatprep.subr.mxu0 0.0
          %694 = vmatpush1.msra.mxu0 0.0
          %695 = vmatprep.subr.mxu0 0.0
          %696 = vmatpush1.msra.mxu0 0.0
          %697 = vmatprep.subr.mxu0 0.0
          %698 = vmatpush1.msra.mxu0 0.0
          %699 = vmatprep.subr.mxu0 0.0
          %700 = vmatpush1.msra.mxu0 0.0
          %701 = vmatprep.subr.mxu0 0.0
          %702 = vmatpush1.msra.mxu0 0.0
          %703 = vmatprep.subr.mxu0 0.0
          %704 = vmatpush1.msra.mxu0 0.0
          %705 = vmatprep.subr.mxu0 0.0
          %706 = vmatpush1.msra.mxu0 %v602
          %707 = vmatprep.subr.mxu0 0.0
          %708 = vmatpush2.msra.mxu0 0.0
          %709 = vmatprep.subr.mxu0 0.0
          %710 = vmatpush2.msra.mxu0 0.0
          %711 = vmatprep.subr.mxu0 0.0
          %712 = vmatpush2.msra.mxu0 0.0
          %713 = vmatprep.subr.mxu0 0.0
          %714 = vmatpush2.msra.mxu0 0.0
          %715 = vmatprep.subr.mxu0 0.0
          %716 = vmatpush2.msra.mxu0 0.0
          %717 = vmatprep.subr.mxu0 0.0
          %718 = vmatpush2.msra.mxu0 0.0
          %719 = vmatprep.subr.mxu0 0.0
          %720 = vmatpush2.msra.mxu0 0.0
          %721 = vmatprep.subr.mxu0 0.0
          %722 = vmatpush2.msra.mxu0 0.0
          %723 = vmatprep.subr.mxu0 0.0
          %724 = vmatpush2.msra.mxu0 0.0
          %725 = vmatprep.subr.mxu0 0.0
          %726 = vmatpush2.msra.mxu0 0.0
          %727 = vmatprep.subr.mxu0 0.0
          %728 = vmatpush2.msra.mxu0 0.0
          %729 = vmatprep.subr.mxu0 0.0
          %730 = vmatpush2.msra.mxu0 0.0
          %731 = vmatprep.subr.mxu0 0.0
          %732 = vmatpush2.msra.mxu0 0.0
          %733 = vmatprep.subr.mxu0 0.0
          %734 = vmatpush2.msra.mxu0 0.0
          %735 = vmatprep.subr.mxu0 0.0
          %736 = vmatpush2.msra.mxu0 0.0
          %737 = vmatprep.subr.mxu0 0.0
          %738 = vmatpush2.msra.mxu0 0.0
          %739 = vmatprep.mubr.f32.mxu0 0.0
          %740 = vmatmul.mubr.f32.gmra.mxu0 %v596
          %v741 = vpop.f32.mrf.mxu0
          %v742 = vadd.f32 %v592, %v741
          %v743 = vpop.f32.mrf.mxu0
          %744 = vdwg.mxu0
          %v745 = vld [vmem:[%s399] sm:$0x77]
          %v746 = vld [vmem:[%s399 + $0x8] sm:$0x7]
          %s747 = scalar_lea.vmem %s2, 8
          %v748 = vld [vmem:[%s747] sm:$0xf]
          %v751 = vcombine.high %v745, %v745
          %752 = vrot.lane.b32.xlu0 %v745, 126
          %v753 = vpop.permute.xlu0 %752
          %754 = vrot.lane.b32.xlu0 %v751, 126
          %v755 = vpop.permute.xlu0 %754
          %756 = vrot.lane.b32.xlu0 %v746, 126
          %v757 = vpop.permute.xlu0 %756
          %vm758 = vcmask 1031168
          %v759 = vsel %vm758, %v753, %v755
          %v760 = vsel %vm758, %v755, %v757
          %v762 = vsel %vm443, %v748, 0
          %v764 = vsel %vm447, %v759, 0
          %v766 = vsel %vm447, %v760, 0
          %v768 = vsel %vm447, %v757, 0
          %770 = vmatprep.subr.mxu0 0.0
          %771 = vmatpush1.msra.mxu0 0.0
          %772 = vmatprep.subr.mxu0 0.0
          %773 = vmatpush1.msra.mxu0 0.0
          %774 = vmatprep.subr.mxu0 0.0
          %775 = vmatpush1.msra.mxu0 0.0
          %776 = vmatprep.subr.mxu0 0.0
          %777 = vmatpush1.msra.mxu0 0.0
          %778 = vmatprep.subr.mxu0 0.0
          %779 = vmatpush1.msra.mxu0 0.0
          %780 = vmatprep.subr.mxu0 0.0
          %781 = vmatpush1.msra.mxu0 0.0
          %782 = vmatprep.subr.mxu0 0.0
          %783 = vmatpush1.msra.mxu0 0.0
          %784 = vmatprep.subr.mxu0 0.0
          %785 = vmatpush1.msra.mxu0 0.0
          %786 = vmatprep.subr.mxu0 0.0
          %787 = vmatpush1.msra.mxu0 0.0
          %788 = vmatprep.subr.mxu0 0.0
          %789 = vmatpush1.msra.mxu0 0.0
          %790 = vmatprep.subr.mxu0 0.0
          %791 = vmatpush1.msra.mxu0 0.0
          %792 = vmatprep.subr.mxu0 0.0
          %793 = vmatpush1.msra.mxu0 0.0
          %794 = vmatprep.subr.mxu0 0.0
          %795 = vmatpush1.msra.mxu0 0.0
          %796 = vmatprep.subr.mxu0 0.0
          %797 = vmatpush1.msra.mxu0 0.0
          %798 = vmatprep.subr.mxu0 0.0
          %799 = vmatpush1.msra.mxu0 0.0
          %800 = vmatprep.subr.mxu0 %v766
          %801 = vmatpush1.msra.mxu0 %v764
          %802 = vmatprep.subr.mxu0 0.0
          %803 = vmatpush2.msra.mxu0 0.0
          %804 = vmatprep.subr.mxu0 0.0
          %805 = vmatpush2.msra.mxu0 0.0
          %806 = vmatprep.subr.mxu0 0.0
          %807 = vmatpush2.msra.mxu0 0.0
          %808 = vmatprep.subr.mxu0 0.0
          %809 = vmatpush2.msra.mxu0 0.0
          %810 = vmatprep.subr.mxu0 0.0
          %811 = vmatpush2.msra.mxu0 0.0
          %812 = vmatprep.subr.mxu0 0.0
          %813 = vmatpush2.msra.mxu0 0.0
          %814 = vmatprep.subr.mxu0 0.0
          %815 = vmatpush2.msra.mxu0 0.0
          %816 = vmatprep.subr.mxu0 0.0
          %817 = vmatpush2.msra.mxu0 0.0
          %818 = vmatprep.subr.mxu0 0.0
          %819 = vmatpush2.msra.mxu0 0.0
          %820 = vmatprep.subr.mxu0 0.0
          %821 = vmatpush2.msra.mxu0 0.0
          %822 = vmatprep.subr.mxu0 0.0
          %823 = vmatpush2.msra.mxu0 0.0
          %824 = vmatprep.subr.mxu0 0.0
          %825 = vmatpush2.msra.mxu0 0.0
          %826 = vmatprep.subr.mxu0 0.0
          %827 = vmatpush2.msra.mxu0 0.0
          %828 = vmatprep.subr.mxu0 0.0
          %829 = vmatpush2.msra.mxu0 0.0
          %830 = vmatprep.subr.mxu0 0.0
          %831 = vmatpush2.msra.mxu0 0.0
          %832 = vmatprep.subr.mxu0 0.0
          %833 = vmatpush2.msra.mxu0 0.0
          %834 = vmatprep.mubr.f32.mxu0 0.0
          %835 = vmatmul.mubr.f32.gmra.mxu0 %v762
          %v836 = vpop.f32.mrf.mxu0
          %v837 = vadd.f32 0.0, %v836
          %v838 = vpop.f32.mrf.mxu0
          %v839 = vadd.f32 0.0, %v838
          %840 = vdwg.mxu0
          %841 = vmatprep.subr.mxu0 0.0
          %842 = vmatpush1.msra.mxu0 0.0
          %843 = vmatprep.subr.mxu0 0.0
          %844 = vmatpush1.msra.mxu0 0.0
          %845 = vmatprep.subr.mxu0 0.0
          %846 = vmatpush1.msra.mxu0 0.0
          %847 = vmatprep.subr.mxu0 0.0
          %848 = vmatpush1.msra.mxu0 0.0
          %849 = vmatprep.subr.mxu0 0.0
          %850 = vmatpush1.msra.mxu0 0.0
          %851 = vmatprep.subr.mxu0 0.0
          %852 = vmatpush1.msra.mxu0 0.0
          %853 = vmatprep.subr.mxu0 0.0
          %854 = vmatpush1.msra.mxu0 0.0
          %855 = vmatprep.subr.mxu0 0.0
          %856 = vmatpush1.msra.mxu0 0.0
          %857 = vmatprep.subr.mxu0 0.0
          %858 = vmatpush1.msra.mxu0 0.0
          %859 = vmatprep.subr.mxu0 0.0
          %860 = vmatpush1.msra.mxu0 0.0
          %861 = vmatprep.subr.mxu0 0.0
          %862 = vmatpush1.msra.mxu0 0.0
          %863 = vmatprep.subr.mxu0 0.0
          %864 = vmatpush1.msra.mxu0 0.0
          %865 = vmatprep.subr.mxu0 0.0
          %866 = vmatpush1.msra.mxu0 0.0
          %867 = vmatprep.subr.mxu0 0.0
          %868 = vmatpush1.msra.mxu0 0.0
          %869 = vmatprep.subr.mxu0 0.0
          %870 = vmatpush1.msra.mxu0 0.0
          %871 = vmatprep.subr.mxu0 0.0
          %872 = vmatpush1.msra.mxu0 %v768
          %873 = vmatprep.subr.mxu0 0.0
          %874 = vmatpush2.msra.mxu0 0.0
          %875 = vmatprep.subr.mxu0 0.0
          %876 = vmatpush2.msra.mxu0 0.0
          %877 = vmatprep.subr.mxu0 0.0
          %878 = vmatpush2.msra.mxu0 0.0
          %879 = vmatprep.subr.mxu0 0.0
          %880 = vmatpush2.msra.mxu0 0.0
          %881 = vmatprep.subr.mxu0 0.0
          %882 = vmatpush2.msra.mxu0 0.0
          %883 = vmatprep.subr.mxu0 0.0
          %884 = vmatpush2.msra.mxu0 0.0
          %885 = vmatprep.subr.mxu0 0.0
          %886 = vmatpush2.msra.mxu0 0.0
          %887 = vmatprep.subr.mxu0 0.0
          %888 = vmatpush2.msra.mxu0 0.0
          %889 = vmatprep.subr.mxu0 0.0
          %890 = vmatpush2.msra.mxu0 0.0
          %891 = vmatprep.subr.mxu0 0.0
          %892 = vmatpush2.msra.mxu0 0.0
          %893 = vmatprep.subr.mxu0 0.0
          %894 = vmatpush2.msra.mxu0 0.0
          %895 = vmatprep.subr.mxu0 0.0
          %896 = vmatpush2.msra.mxu0 0.0
          %897 = vmatprep.subr.mxu0 0.0
          %898 = vmatpush2.msra.mxu0 0.0
          %899 = vmatprep.subr.mxu0 0.0
          %900 = vmatpush2.msra.mxu0 0.0
          %901 = vmatprep.subr.mxu0 0.0
          %902 = vmatpush2.msra.mxu0 0.0
          %903 = vmatprep.subr.mxu0 0.0
          %904 = vmatpush2.msra.mxu0 0.0
          %905 = vmatprep.mubr.f32.mxu0 0.0
          %906 = vmatmul.mubr.f32.gmra.mxu0 %v762
          %v907 = vpop.f32.mrf.mxu0
          %v908 = vadd.f32 0.0, %v907
          %v909 = vpop.f32.mrf.mxu0
          %910 = vdwg.mxu0
          %v911 = vadd.f32 %v671, %v837
          %v912 = vadd.f32 %v673, %v839
          %v913 = vadd.f32 %v742, %v908
          %v914 = vld [vmem:[%s399] sm:$0x77]
          %v915 = vld [vmem:[%s399 + $0x8] sm:$0x7]
          %s916 = scalar_lea.vmem %s2, 12
          %v917 = vld [vmem:[%s916] sm:$0xf]
          %v920 = vcombine.high %v914, %v914
          %921 = vrot.lane.b32.xlu0 %v914, 110
          %v922 = vpop.permute.xlu0 %921
          %923 = vrot.lane.b32.xlu0 %v920, 110
          %v924 = vpop.permute.xlu0 %923
          %925 = vrot.lane.b32.xlu0 %v915, 110
          %v926 = vpop.permute.xlu0 %925
          %vm927 = vcmask 900096
          %v928 = vsel %vm927, %v922, %v924
          %v929 = vsel %vm927, %v924, %v926
          %v931 = vsel %vm443, %v917, 0
          %v933 = vsel %vm447, %v928, 0
          %v935 = vsel %vm447, %v929, 0
          %v937 = vsel %vm447, %v926, 0
          %939 = vmatprep.subr.mxu0 0.0
          %940 = vmatpush1.msra.mxu0 0.0
          %941 = vmatprep.subr.mxu0 0.0
          %942 = vmatpush1.msra.mxu0 0.0
          %943 = vmatprep.subr.mxu0 0.0
          %944 = vmatpush1.msra.mxu0 0.0
          %945 = vmatprep.subr.mxu0 0.0
          %946 = vmatpush1.msra.mxu0 0.0
          %947 = vmatprep.subr.mxu0 0.0
          %948 = vmatpush1.msra.mxu0 0.0
          %949 = vmatprep.subr.mxu0 0.0
          %950 = vmatpush1.msra.mxu0 0.0
          %951 = vmatprep.subr.mxu0 0.0
          %952 = vmatpush1.msra.mxu0 0.0
          %953 = vmatprep.subr.mxu0 0.0
          %954 = vmatpush1.msra.mxu0 0.0
          %955 = vmatprep.subr.mxu0 0.0
          %956 = vmatpush1.msra.mxu0 0.0
          %957 = vmatprep.subr.mxu0 0.0
          %958 = vmatpush1.msra.mxu0 0.0
          %959 = vmatprep.subr.mxu0 0.0
          %960 = vmatpush1.msra.mxu0 0.0
          %961 = vmatprep.subr.mxu0 0.0
          %962 = vmatpush1.msra.mxu0 0.0
          %963 = vmatprep.subr.mxu0 0.0
          %964 = vmatpush1.msra.mxu0 0.0
          %965 = vmatprep.subr.mxu0 0.0
          %966 = vmatpush1.msra.mxu0 0.0
          %967 = vmatprep.subr.mxu0 0.0
          %968 = vmatpush1.msra.mxu0 0.0
          %969 = vmatprep.subr.mxu0 %v935
          %970 = vmatpush1.msra.mxu0 %v933
          %971 = vmatprep.subr.mxu0 0.0
          %972 = vmatpush2.msra.mxu0 0.0
          %973 = vmatprep.subr.mxu0 0.0
          %974 = vmatpush2.msra.mxu0 0.0
          %975 = vmatprep.subr.mxu0 0.0
          %976 = vmatpush2.msra.mxu0 0.0
          %977 = vmatprep.subr.mxu0 0.0
          %978 = vmatpush2.msra.mxu0 0.0
          %979 = vmatprep.subr.mxu0 0.0
          %980 = vmatpush2.msra.mxu0 0.0
          %981 = vmatprep.subr.mxu0 0.0
          %982 = vmatpush2.msra.mxu0 0.0
          %983 = vmatprep.subr.mxu0 0.0
          %984 = vmatpush2.msra.mxu0 0.0
          %985 = vmatprep.subr.mxu0 0.0
          %986 = vmatpush2.msra.mxu0 0.0
          %987 = vmatprep.subr.mxu0 0.0
          %988 = vmatpush2.msra.mxu0 0.0
          %989 = vmatprep.subr.mxu0 0.0
          %990 = vmatpush2.msra.mxu0 0.0
          %991 = vmatprep.subr.mxu0 0.0
          %992 = vmatpush2.msra.mxu0 0.0
          %993 = vmatprep.subr.mxu0 0.0
          %994 = vmatpush2.msra.mxu0 0.0
          %995 = vmatprep.subr.mxu0 0.0
          %996 = vmatpush2.msra.mxu0 0.0
          %997 = vmatprep.subr.mxu0 0.0
          %998 = vmatpush2.msra.mxu0 0.0
          %999 = vmatprep.subr.mxu0 0.0
          %1000 = vmatpush2.msra.mxu0 0.0
          %1001 = vmatprep.subr.mxu0 0.0
          %1002 = vmatpush2.msra.mxu0 0.0
          %1003 = vmatprep.mubr.f32.mxu0 0.0
          %1004 = vmatmul.mubr.f32.gmra.mxu0 %v931
          %v1005 = vpop.f32.mrf.mxu0
          %v1006 = vadd.f32 0.0, %v1005
          %v1007 = vpop.f32.mrf.mxu0
          %v1008 = vadd.f32 0.0, %v1007
          %1009 = vdwg.mxu0
          %1010 = vmatprep.subr.mxu0 0.0
          %1011 = vmatpush1.msra.mxu0 0.0
          %1012 = vmatprep.subr.mxu0 0.0
          %1013 = vmatpush1.msra.mxu0 0.0
          %1014 = vmatprep.subr.mxu0 0.0
          %1015 = vmatpush1.msra.mxu0 0.0
          %1016 = vmatprep.subr.mxu0 0.0
          %1017 = vmatpush1.msra.mxu0 0.0
          %1018 = vmatprep.subr.mxu0 0.0
          %1019 = vmatpush1.msra.mxu0 0.0
          %1020 = vmatprep.subr.mxu0 0.0
          %1021 = vmatpush1.msra.mxu0 0.0
          %1022 = vmatprep.subr.mxu0 0.0
          %1023 = vmatpush1.msra.mxu0 0.0
          %1024 = vmatprep.subr.mxu0 0.0
          %1025 = vmatpush1.msra.mxu0 0.0
          %1026 = vmatprep.subr.mxu0 0.0
          %1027 = vmatpush1.msra.mxu0 0.0
          %1028 = vmatprep.subr.mxu0 0.0
          %1029 = vmatpush1.msra.mxu0 0.0
          %1030 = vmatprep.subr.mxu0 0.0
          %1031 = vmatpush1.msra.mxu0 0.0
          %1032 = vmatprep.subr.mxu0 0.0
          %1033 = vmatpush1.msra.mxu0 0.0
          %1034 = vmatprep.subr.mxu0 0.0
          %1035 = vmatpush1.msra.mxu0 0.0
          %1036 = vmatprep.subr.mxu0 0.0
          %1037 = vmatpush1.msra.mxu0 0.0
          %1038 = vmatprep.subr.mxu0 0.0
          %1039 = vmatpush1.msra.mxu0 0.0
          %1040 = vmatprep.subr.mxu0 0.0
          %1041 = vmatpush1.msra.mxu0 %v937
          %1042 = vmatprep.subr.mxu0 0.0
          %1043 = vmatpush2.msra.mxu0 0.0
          %1044 = vmatprep.subr.mxu0 0.0
          %1045 = vmatpush2.msra.mxu0 0.0
          %1046 = vmatprep.subr.mxu0 0.0
          %1047 = vmatpush2.msra.mxu0 0.0
          %1048 = vmatprep.subr.mxu0 0.0
          %1049 = vmatpush2.msra.mxu0 0.0
          %1050 = vmatprep.subr.mxu0 0.0
          %1051 = vmatpush2.msra.mxu0 0.0
          %1052 = vmatprep.subr.mxu0 0.0
          %1053 = vmatpush2.msra.mxu0 0.0
          %1054 = vmatprep.subr.mxu0 0.0
          %1055 = vmatpush2.msra.mxu0 0.0
          %1056 = vmatprep.subr.mxu0 0.0
          %1057 = vmatpush2.msra.mxu0 0.0
          %1058 = vmatprep.subr.mxu0 0.0
          %1059 = vmatpush2.msra.mxu0 0.0
          %1060 = vmatprep.subr.mxu0 0.0
          %1061 = vmatpush2.msra.mxu0 0.0
          %1062 = vmatprep.subr.mxu0 0.0
          %1063 = vmatpush2.msra.mxu0 0.0
          %1064 = vmatprep.subr.mxu0 0.0
          %1065 = vmatpush2.msra.mxu0 0.0
          %1066 = vmatprep.subr.mxu0 0.0
          %1067 = vmatpush2.msra.mxu0 0.0
          %1068 = vmatprep.subr.mxu0 0.0
          %1069 = vmatpush2.msra.mxu0 0.0
          %1070 = vmatprep.subr.mxu0 0.0
          %1071 = vmatpush2.msra.mxu0 0.0
          %1072 = vmatprep.subr.mxu0 0.0
          %1073 = vmatpush2.msra.mxu0 0.0
          %1074 = vmatprep.mubr.f32.mxu0 0.0
          %1075 = vmatmul.mubr.f32.gmra.mxu0 %v931
          %v1076 = vpop.f32.mrf.mxu0
          %v1077 = vadd.f32 0.0, %v1076
          %v1078 = vpop.f32.mrf.mxu0
          %1079 = vdwg.mxu0
          %v1080 = vadd.f32 %v911, %v1006
          %v1081 = vadd.f32 %v912, %v1008
          %v1082 = vadd.f32 %v913, %v1077
          %v1083 = vld [vmem:[%s399] sm:$0x77]
          %v1084 = vld [vmem:[%s399 + $0x8] sm:$0x7]
          %s1085 = scalar_lea.vmem %s2, 16
          %v1086 = vld [vmem:[%s1085] sm:$0xf]
          %v1089 = vcombine.high %v1083, %v1083
          %1090 = vrot.lane.b32.xlu0 %v1083, 109
          %v1091 = vpop.permute.xlu0 %1090
          %1092 = vrot.lane.b32.xlu0 %v1089, 109
          %v1093 = vpop.permute.xlu0 %1092
          %1094 = vrot.lane.b32.xlu0 %v1084, 109
          %v1095 = vpop.permute.xlu0 %1094
          %vm1096 = vcmask 891904
          %v1097 = vsel %vm1096, %v1091, %v1093
          %v1098 = vsel %vm1096, %v1093, %v1095
          %v1100 = vsel %vm443, %v1086, 0
          %v1102 = vsel %vm447, %v1097, 0
          %v1104 = vsel %vm447, %v1098, 0
          %v1106 = vsel %vm447, %v1095, 0
          %1108 = vmatprep.subr.mxu0 0.0
          %1109 = vmatpush1.msra.mxu0 0.0
          %1110 = vmatprep.subr.mxu0 0.0
          %1111 = vmatpush1.msra.mxu0 0.0
          %1112 = vmatprep.subr.mxu0 0.0
          %1113 = vmatpush1.msra.mxu0 0.0
          %1114 = vmatprep.subr.mxu0 0.0
          %1115 = vmatpush1.msra.mxu0 0.0
          %1116 = vmatprep.subr.mxu0 0.0
          %1117 = vmatpush1.msra.mxu0 0.0
          %1118 = vmatprep.subr.mxu0 0.0
          %1119 = vmatpush1.msra.mxu0 0.0
          %1120 = vmatprep.subr.mxu0 0.0
          %1121 = vmatpush1.msra.mxu0 0.0
          %1122 = vmatprep.subr.mxu0 0.0
          %1123 = vmatpush1.msra.mxu0 0.0
          %1124 = vmatprep.subr.mxu0 0.0
          %1125 = vmatpush1.msra.mxu0 0.0
          %1126 = vmatprep.subr.mxu0 0.0
          %1127 = vmatpush1.msra.mxu0 0.0
          %1128 = vmatprep.subr.mxu0 0.0
          %1129 = vmatpush1.msra.mxu0 0.0
          %1130 = vmatprep.subr.mxu0 0.0
          %1131 = vmatpush1.msra.mxu0 0.0
          %1132 = vmatprep.subr.mxu0 0.0
          %1133 = vmatpush1.msra.mxu0 0.0
          %1134 = vmatprep.subr.mxu0 0.0
          %1135 = vmatpush1.msra.mxu0 0.0
          %1136 = vmatprep.subr.mxu0 0.0
          %1137 = vmatpush1.msra.mxu0 0.0
          %1138 = vmatprep.subr.mxu0 %v1104
          %1139 = vmatpush1.msra.mxu0 %v1102
          %1140 = vmatprep.subr.mxu0 0.0
          %1141 = vmatpush2.msra.mxu0 0.0
          %1142 = vmatprep.subr.mxu0 0.0
          %1143 = vmatpush2.msra.mxu0 0.0
          %1144 = vmatprep.subr.mxu0 0.0
          %1145 = vmatpush2.msra.mxu0 0.0
          %1146 = vmatprep.subr.mxu0 0.0
          %1147 = vmatpush2.msra.mxu0 0.0
          %1148 = vmatprep.subr.mxu0 0.0
          %1149 = vmatpush2.msra.mxu0 0.0
          %1150 = vmatprep.subr.mxu0 0.0
          %1151 = vmatpush2.msra.mxu0 0.0
          %1152 = vmatprep.subr.mxu0 0.0
          %1153 = vmatpush2.msra.mxu0 0.0
          %1154 = vmatprep.subr.mxu0 0.0
          %1155 = vmatpush2.msra.mxu0 0.0
          %1156 = vmatprep.subr.mxu0 0.0
          %1157 = vmatpush2.msra.mxu0 0.0
          %1158 = vmatprep.subr.mxu0 0.0
          %1159 = vmatpush2.msra.mxu0 0.0
          %1160 = vmatprep.subr.mxu0 0.0
          %1161 = vmatpush2.msra.mxu0 0.0
          %1162 = vmatprep.subr.mxu0 0.0
          %1163 = vmatpush2.msra.mxu0 0.0
          %1164 = vmatprep.subr.mxu0 0.0
          %1165 = vmatpush2.msra.mxu0 0.0
          %1166 = vmatprep.subr.mxu0 0.0
          %1167 = vmatpush2.msra.mxu0 0.0
          %1168 = vmatprep.subr.mxu0 0.0
          %1169 = vmatpush2.msra.mxu0 0.0
          %1170 = vmatprep.subr.mxu0 0.0
          %1171 = vmatpush2.msra.mxu0 0.0
          %1172 = vmatprep.mubr.f32.mxu0 0.0
          %1173 = vmatmul.mubr.f32.gmra.mxu0 %v1100
          %v1174 = vpop.f32.mrf.mxu0
          %v1175 = vadd.f32 0.0, %v1174
          %v1176 = vpop.f32.mrf.mxu0
          %v1177 = vadd.f32 0.0, %v1176
          %1178 = vdwg.mxu0
          %1179 = vmatprep.subr.mxu0 0.0
          %1180 = vmatpush1.msra.mxu0 0.0
          %1181 = vmatprep.subr.mxu0 0.0
          %1182 = vmatpush1.msra.mxu0 0.0
          %1183 = vmatprep.subr.mxu0 0.0
          %1184 = vmatpush1.msra.mxu0 0.0
          %1185 = vmatprep.subr.mxu0 0.0
          %1186 = vmatpush1.msra.mxu0 0.0
          %1187 = vmatprep.subr.mxu0 0.0
          %1188 = vmatpush1.msra.mxu0 0.0
          %1189 = vmatprep.subr.mxu0 0.0
          %1190 = vmatpush1.msra.mxu0 0.0
          %1191 = vmatprep.subr.mxu0 0.0
          %1192 = vmatpush1.msra.mxu0 0.0
          %1193 = vmatprep.subr.mxu0 0.0
          %1194 = vmatpush1.msra.mxu0 0.0
          %1195 = vmatprep.subr.mxu0 0.0
          %1196 = vmatpush1.msra.mxu0 0.0
          %1197 = vmatprep.subr.mxu0 0.0
          %1198 = vmatpush1.msra.mxu0 0.0
          %1199 = vmatprep.subr.mxu0 0.0
          %1200 = vmatpush1.msra.mxu0 0.0
          %1201 = vmatprep.subr.mxu0 0.0
          %1202 = vmatpush1.msra.mxu0 0.0
          %1203 = vmatprep.subr.mxu0 0.0
          %1204 = vmatpush1.msra.mxu0 0.0
          %1205 = vmatprep.subr.mxu0 0.0
          %1206 = vmatpush1.msra.mxu0 0.0
          %1207 = vmatprep.subr.mxu0 0.0
          %1208 = vmatpush1.msra.mxu0 0.0
          %1209 = vmatprep.subr.mxu0 0.0
          %1210 = vmatpush1.msra.mxu0 %v1106
          %1211 = vmatprep.subr.mxu0 0.0
          %1212 = vmatpush2.msra.mxu0 0.0
          %1213 = vmatprep.subr.mxu0 0.0
          %1214 = vmatpush2.msra.mxu0 0.0
          %1215 = vmatprep.subr.mxu0 0.0
          %1216 = vmatpush2.msra.mxu0 0.0
          %1217 = vmatprep.subr.mxu0 0.0
          %1218 = vmatpush2.msra.mxu0 0.0
          %1219 = vmatprep.subr.mxu0 0.0
          %1220 = vmatpush2.msra.mxu0 0.0
          %1221 = vmatprep.subr.mxu0 0.0
          %1222 = vmatpush2.msra.mxu0 0.0
          %1223 = vmatprep.subr.mxu0 0.0
          %1224 = vmatpush2.msra.mxu0 0.0
          %1225 = vmatprep.subr.mxu0 0.0
          %1226 = vmatpush2.msra.mxu0 0.0
          %1227 = vmatprep.subr.mxu0 0.0
          %1228 = vmatpush2.msra.mxu0 0.0
          %1229 = vmatprep.subr.mxu0 0.0
          %1230 = vmatpush2.msra.mxu0 0.0
          %1231 = vmatprep.subr.mxu0 0.0
          %1232 = vmatpush2.msra.mxu0 0.0
          %1233 = vmatprep.subr.mxu0 0.0
          %1234 = vmatpush2.msra.mxu0 0.0
          %1235 = vmatprep.subr.mxu0 0.0
          %1236 = vmatpush2.msra.mxu0 0.0
          %1237 = vmatprep.subr.mxu0 0.0
          %1238 = vmatpush2.msra.mxu0 0.0
          %1239 = vmatprep.subr.mxu0 0.0
          %1240 = vmatpush2.msra.mxu0 0.0
          %1241 = vmatprep.subr.mxu0 0.0
          %1242 = vmatpush2.msra.mxu0 0.0
          %1243 = vmatprep.mubr.f32.mxu0 0.0
          %1244 = vmatmul.mubr.f32.gmra.mxu0 %v1100
          %v1245 = vpop.f32.mrf.mxu0
          %v1246 = vadd.f32 0.0, %v1245
          %v1247 = vpop.f32.mrf.mxu0
          %1248 = vdwg.mxu0
          %v1249 = vadd.f32 %v1080, %v1175
          %v1250 = vadd.f32 %v1081, %v1177
          %v1251 = vadd.f32 %v1082, %v1246
          %v1252 = vld [vmem:[%s399] sm:$0x77]
          %v1253 = vld [vmem:[%s399 + $0x8] sm:$0x7]
          %s1254 = scalar_lea.vmem %s2, 20
          %v1255 = vld [vmem:[%s1254] sm:$0xf]
          %v1258 = vcombine.high %v1252, %v1252
          %1259 = vrot.lane.b32.xlu0 %v1252, 108
          %v1260 = vpop.permute.xlu0 %1259
          %1261 = vrot.lane.b32.xlu0 %v1258, 108
          %v1262 = vpop.permute.xlu0 %1261
          %1263 = vrot.lane.b32.xlu0 %v1253, 108
          %v1264 = vpop.permute.xlu0 %1263
          %vm1265 = vcmask 883712
          %v1266 = vsel %vm1265, %v1260, %v1262
          %v1267 = vsel %vm1265, %v1262, %v1264
          %v1269 = vsel %vm443, %v1255, 0
          %v1271 = vsel %vm447, %v1266, 0
          %v1273 = vsel %vm447, %v1267, 0
          %v1275 = vsel %vm447, %v1264, 0
          %1277 = vmatprep.subr.mxu0 0.0
          %1278 = vmatpush1.msra.mxu0 0.0
          %1279 = vmatprep.subr.mxu0 0.0
          %1280 = vmatpush1.msra.mxu0 0.0
          %1281 = vmatprep.subr.mxu0 0.0
          %1282 = vmatpush1.msra.mxu0 0.0
          %1283 = vmatprep.subr.mxu0 0.0
          %1284 = vmatpush1.msra.mxu0 0.0
          %1285 = vmatprep.subr.mxu0 0.0
          %1286 = vmatpush1.msra.mxu0 0.0
          %1287 = vmatprep.subr.mxu0 0.0
          %1288 = vmatpush1.msra.mxu0 0.0
          %1289 = vmatprep.subr.mxu0 0.0
          %1290 = vmatpush1.msra.mxu0 0.0
          %1291 = vmatprep.subr.mxu0 0.0
          %1292 = vmatpush1.msra.mxu0 0.0
          %1293 = vmatprep.subr.mxu0 0.0
          %1294 = vmatpush1.msra.mxu0 0.0
          %1295 = vmatprep.subr.mxu0 0.0
          %1296 = vmatpush1.msra.mxu0 0.0
          %1297 = vmatprep.subr.mxu0 0.0
          %1298 = vmatpush1.msra.mxu0 0.0
          %1299 = vmatprep.subr.mxu0 0.0
          %1300 = vmatpush1.msra.mxu0 0.0
          %1301 = vmatprep.subr.mxu0 0.0
          %1302 = vmatpush1.msra.mxu0 0.0
          %1303 = vmatprep.subr.mxu0 0.0
          %1304 = vmatpush1.msra.mxu0 0.0
          %1305 = vmatprep.subr.mxu0 0.0
          %1306 = vmatpush1.msra.mxu0 0.0
          %1307 = vmatprep.subr.mxu0 %v1273
          %1308 = vmatpush1.msra.mxu0 %v1271
          %1309 = vmatprep.subr.mxu0 0.0
          %1310 = vmatpush2.msra.mxu0 0.0
          %1311 = vmatprep.subr.mxu0 0.0
          %1312 = vmatpush2.msra.mxu0 0.0
          %1313 = vmatprep.subr.mxu0 0.0
          %1314 = vmatpush2.msra.mxu0 0.0
          %1315 = vmatprep.subr.mxu0 0.0
          %1316 = vmatpush2.msra.mxu0 0.0
          %1317 = vmatprep.subr.mxu0 0.0
          %1318 = vmatpush2.msra.mxu0 0.0
          %1319 = vmatprep.subr.mxu0 0.0
          %1320 = vmatpush2.msra.mxu0 0.0
          %1321 = vmatprep.subr.mxu0 0.0
          %1322 = vmatpush2.msra.mxu0 0.0
          %1323 = vmatprep.subr.mxu0 0.0
          %1324 = vmatpush2.msra.mxu0 0.0
          %1325 = vmatprep.subr.mxu0 0.0
          %1326 = vmatpush2.msra.mxu0 0.0
          %1327 = vmatprep.subr.mxu0 0.0
          %1328 = vmatpush2.msra.mxu0 0.0
          %1329 = vmatprep.subr.mxu0 0.0
          %1330 = vmatpush2.msra.mxu0 0.0
          %1331 = vmatprep.subr.mxu0 0.0
          %1332 = vmatpush2.msra.mxu0 0.0
          %1333 = vmatprep.subr.mxu0 0.0
          %1334 = vmatpush2.msra.mxu0 0.0
          %1335 = vmatprep.subr.mxu0 0.0
          %1336 = vmatpush2.msra.mxu0 0.0
          %1337 = vmatprep.subr.mxu0 0.0
          %1338 = vmatpush2.msra.mxu0 0.0
          %1339 = vmatprep.subr.mxu0 0.0
          %1340 = vmatpush2.msra.mxu0 0.0
          %1341 = vmatprep.mubr.f32.mxu0 0.0
          %1342 = vmatmul.mubr.f32.gmra.mxu0 %v1269
          %v1343 = vpop.f32.mrf.mxu0
          %v1344 = vadd.f32 0.0, %v1343
          %v1345 = vpop.f32.mrf.mxu0
          %v1346 = vadd.f32 0.0, %v1345
          %1347 = vdwg.mxu0
          %1348 = vmatprep.subr.mxu0 0.0
          %1349 = vmatpush1.msra.mxu0 0.0
          %1350 = vmatprep.subr.mxu0 0.0
          %1351 = vmatpush1.msra.mxu0 0.0
          %1352 = vmatprep.subr.mxu0 0.0
          %1353 = vmatpush1.msra.mxu0 0.0
          %1354 = vmatprep.subr.mxu0 0.0
          %1355 = vmatpush1.msra.mxu0 0.0
          %1356 = vmatprep.subr.mxu0 0.0
          %1357 = vmatpush1.msra.mxu0 0.0
          %1358 = vmatprep.subr.mxu0 0.0
          %1359 = vmatpush1.msra.mxu0 0.0
          %1360 = vmatprep.subr.mxu0 0.0
          %1361 = vmatpush1.msra.mxu0 0.0
          %1362 = vmatprep.subr.mxu0 0.0
          %1363 = vmatpush1.msra.mxu0 0.0
          %1364 = vmatprep.subr.mxu0 0.0
          %1365 = vmatpush1.msra.mxu0 0.0
          %1366 = vmatprep.subr.mxu0 0.0
          %1367 = vmatpush1.msra.mxu0 0.0
          %1368 = vmatprep.subr.mxu0 0.0
          %1369 = vmatpush1.msra.mxu0 0.0
          %1370 = vmatprep.subr.mxu0 0.0
          %1371 = vmatpush1.msra.mxu0 0.0
          %1372 = vmatprep.subr.mxu0 0.0
          %1373 = vmatpush1.msra.mxu0 0.0
          %1374 = vmatprep.subr.mxu0 0.0
          %1375 = vmatpush1.msra.mxu0 0.0
          %1376 = vmatprep.subr.mxu0 0.0
          %1377 = vmatpush1.msra.mxu0 0.0
          %1378 = vmatprep.subr.mxu0 0.0
          %1379 = vmatpush1.msra.mxu0 %v1275
          %1380 = vmatprep.subr.mxu0 0.0
          %1381 = vmatpush2.msra.mxu0 0.0
          %1382 = vmatprep.subr.mxu0 0.0
          %1383 = vmatpush2.msra.mxu0 0.0
          %1384 = vmatprep.subr.mxu0 0.0
          %1385 = vmatpush2.msra.mxu0 0.0
          %1386 = vmatprep.subr.mxu0 0.0
          %1387 = vmatpush2.msra.mxu0 0.0
          %1388 = vmatprep.subr.mxu0 0.0
          %1389 = vmatpush2.msra.mxu0 0.0
          %1390 = vmatprep.subr.mxu0 0.0
          %1391 = vmatpush2.msra.mxu0 0.0
          %1392 = vmatprep.subr.mxu0 0.0
          %1393 = vmatpush2.msra.mxu0 0.0
          %1394 = vmatprep.subr.mxu0 0.0
          %1395 = vmatpush2.msra.mxu0 0.0
          %1396 = vmatprep.subr.mxu0 0.0
          %1397 = vmatpush2.msra.mxu0 0.0
          %1398 = vmatprep.subr.mxu0 0.0
          %1399 = vmatpush2.msra.mxu0 0.0
          %1400 = vmatprep.subr.mxu0 0.0
          %1401 = vmatpush2.msra.mxu0 0.0
          %1402 = vmatprep.subr.mxu0 0.0
          %1403 = vmatpush2.msra.mxu0 0.0
          %1404 = vmatprep.subr.mxu0 0.0
          %1405 = vmatpush2.msra.mxu0 0.0
          %1406 = vmatprep.subr.mxu0 0.0
          %1407 = vmatpush2.msra.mxu0 0.0
          %1408 = vmatprep.subr.mxu0 0.0
          %1409 = vmatpush2.msra.mxu0 0.0
          %1410 = vmatprep.subr.mxu0 0.0
          %1411 = vmatpush2.msra.mxu0 0.0
          %1412 = vmatprep.mubr.f32.mxu0 0.0
          %1413 = vmatmul.mubr.f32.gmra.mxu0 %v1269
          %v1414 = vpop.f32.mrf.mxu0
          %v1415 = vadd.f32 0.0, %v1414
          %v1416 = vpop.f32.mrf.mxu0
          %1417 = vdwg.mxu0
          %v1418 = vadd.f32 %v1249, %v1344
          %v1419 = vadd.f32 %v1250, %v1346
          %v1420 = vadd.f32 %v1251, %v1415
          %v1421 = vld [vmem:[%s399] sm:$0x77]
          %v1422 = vld [vmem:[%s399 + $0x8] sm:$0x7]
          %s1423 = scalar_lea.vmem %s2, 24
          %v1424 = vld [vmem:[%s1423] sm:$0xf]
          %v1427 = vcombine.high %v1421, %v1421
          %1428 = vrot.lane.b32.xlu0 %v1421, 92
          %v1429 = vpop.permute.xlu0 %1428
          %1430 = vrot.lane.b32.xlu0 %v1427, 92
          %v1431 = vpop.permute.xlu0 %1430
          %1432 = vrot.lane.b32.xlu0 %v1422, 92
          %v1433 = vpop.permute.xlu0 %1432
          %vm1434 = vcmask 752640
          %v1435 = vsel %vm1434, %v1429, %v1431
          %v1436 = vsel %vm1434, %v1431, %v1433
          %v1438 = vsel %vm443, %v1424, 0
          %v1440 = vsel %vm447, %v1435, 0
          %v1442 = vsel %vm447, %v1436, 0
          %v1444 = vsel %vm447, %v1433, 0
          %1446 = vmatprep.subr.mxu0 0.0
          %1447 = vmatpush1.msra.mxu0 0.0
          %1448 = vmatprep.subr.mxu0 0.0
          %1449 = vmatpush1.msra.mxu0 0.0
          %1450 = vmatprep.subr.mxu0 0.0
          %1451 = vmatpush1.msra.mxu0 0.0
          %1452 = vmatprep.subr.mxu0 0.0
          %1453 = vmatpush1.msra.mxu0 0.0
          %1454 = vmatprep.subr.mxu0 0.0
          %1455 = vmatpush1.msra.mxu0 0.0
          %1456 = vmatprep.subr.mxu0 0.0
          %1457 = vmatpush1.msra.mxu0 0.0
          %1458 = vmatprep.subr.mxu0 0.0
          %1459 = vmatpush1.msra.mxu0 0.0
          %1460 = vmatprep.subr.mxu0 0.0
          %1461 = vmatpush1.msra.mxu0 0.0
          %1462 = vmatprep.subr.mxu0 0.0
          %1463 = vmatpush1.msra.mxu0 0.0
          %1464 = vmatprep.subr.mxu0 0.0
          %1465 = vmatpush1.msra.mxu0 0.0
          %1466 = vmatprep.subr.mxu0 0.0
          %1467 = vmatpush1.msra.mxu0 0.0
          %1468 = vmatprep.subr.mxu0 0.0
          %1469 = vmatpush1.msra.mxu0 0.0
          %1470 = vmatprep.subr.mxu0 0.0
          %1471 = vmatpush1.msra.mxu0 0.0
          %1472 = vmatprep.subr.mxu0 0.0
          %1473 = vmatpush1.msra.mxu0 0.0
          %1474 = vmatprep.subr.mxu0 0.0
          %1475 = vmatpush1.msra.mxu0 0.0
          %1476 = vmatprep.subr.mxu0 %v1442
          %1477 = vmatpush1.msra.mxu0 %v1440
          %1478 = vmatprep.subr.mxu0 0.0
          %1479 = vmatpush2.msra.mxu0 0.0
          %1480 = vmatprep.subr.mxu0 0.0
          %1481 = vmatpush2.msra.mxu0 0.0
          %1482 = vmatprep.subr.mxu0 0.0
          %1483 = vmatpush2.msra.mxu0 0.0
          %1484 = vmatprep.subr.mxu0 0.0
          %1485 = vmatpush2.msra.mxu0 0.0
          %1486 = vmatprep.subr.mxu0 0.0
          %1487 = vmatpush2.msra.mxu0 0.0
          %1488 = vmatprep.subr.mxu0 0.0
          %1489 = vmatpush2.msra.mxu0 0.0
          %1490 = vmatprep.subr.mxu0 0.0
          %1491 = vmatpush2.msra.mxu0 0.0
          %1492 = vmatprep.subr.mxu0 0.0
          %1493 = vmatpush2.msra.mxu0 0.0
          %1494 = vmatprep.subr.mxu0 0.0
          %1495 = vmatpush2.msra.mxu0 0.0
          %1496 = vmatprep.subr.mxu0 0.0
          %1497 = vmatpush2.msra.mxu0 0.0
          %1498 = vmatprep.subr.mxu0 0.0
          %1499 = vmatpush2.msra.mxu0 0.0
          %1500 = vmatprep.subr.mxu0 0.0
          %1501 = vmatpush2.msra.mxu0 0.0
          %1502 = vmatprep.subr.mxu0 0.0
          %1503 = vmatpush2.msra.mxu0 0.0
          %1504 = vmatprep.subr.mxu0 0.0
          %1505 = vmatpush2.msra.mxu0 0.0
          %1506 = vmatprep.subr.mxu0 0.0
          %1507 = vmatpush2.msra.mxu0 0.0
          %1508 = vmatprep.subr.mxu0 0.0
          %1509 = vmatpush2.msra.mxu0 0.0
          %1510 = vmatprep.mubr.f32.mxu0 0.0
          %1511 = vmatmul.mubr.f32.gmra.mxu0 %v1438
          %v1512 = vpop.f32.mrf.mxu0
          %v1513 = vadd.f32 0.0, %v1512
          %v1514 = vpop.f32.mrf.mxu0
          %v1515 = vadd.f32 0.0, %v1514
          %1516 = vdwg.mxu0
          %1517 = vmatprep.subr.mxu0 0.0
          %1518 = vmatpush1.msra.mxu0 0.0
          %1519 = vmatprep.subr.mxu0 0.0
          %1520 = vmatpush1.msra.mxu0 0.0
          %1521 = vmatprep.subr.mxu0 0.0
          %1522 = vmatpush1.msra.mxu0 0.0
          %1523 = vmatprep.subr.mxu0 0.0
          %1524 = vmatpush1.msra.mxu0 0.0
          %1525 = vmatprep.subr.mxu0 0.0
          %1526 = vmatpush1.msra.mxu0 0.0
          %1527 = vmatprep.subr.mxu0 0.0
          %1528 = vmatpush1.msra.mxu0 0.0
          %1529 = vmatprep.subr.mxu0 0.0
          %1530 = vmatpush1.msra.mxu0 0.0
          %1531 = vmatprep.subr.mxu0 0.0
          %1532 = vmatpush1.msra.mxu0 0.0
          %1533 = vmatprep.subr.mxu0 0.0
          %1534 = vmatpush1.msra.mxu0 0.0
          %1535 = vmatprep.subr.mxu0 0.0
          %1536 = vmatpush1.msra.mxu0 0.0
          %1537 = vmatprep.subr.mxu0 0.0
          %1538 = vmatpush1.msra.mxu0 0.0
          %1539 = vmatprep.subr.mxu0 0.0
          %1540 = vmatpush1.msra.mxu0 0.0
          %1541 = vmatprep.subr.mxu0 0.0
          %1542 = vmatpush1.msra.mxu0 0.0
          %1543 = vmatprep.subr.mxu0 0.0
          %1544 = vmatpush1.msra.mxu0 0.0
          %1545 = vmatprep.subr.mxu0 0.0
          %1546 = vmatpush1.msra.mxu0 0.0
          %1547 = vmatprep.subr.mxu0 0.0
          %1548 = vmatpush1.msra.mxu0 %v1444
          %1549 = vmatprep.subr.mxu0 0.0
          %1550 = vmatpush2.msra.mxu0 0.0
          %1551 = vmatprep.subr.mxu0 0.0
          %1552 = vmatpush2.msra.mxu0 0.0
          %1553 = vmatprep.subr.mxu0 0.0
          %1554 = vmatpush2.msra.mxu0 0.0
          %1555 = vmatprep.subr.mxu0 0.0
          %1556 = vmatpush2.msra.mxu0 0.0
          %1557 = vmatprep.subr.mxu0 0.0
          %1558 = vmatpush2.msra.mxu0 0.0
          %1559 = vmatprep.subr.mxu0 0.0
          %1560 = vmatpush2.msra.mxu0 0.0
          %1561 = vmatprep.subr.mxu0 0.0
          %1562 = vmatpush2.msra.mxu0 0.0
          %1563 = vmatprep.subr.mxu0 0.0
          %1564 = vmatpush2.msra.mxu0 0.0
          %1565 = vmatprep.subr.mxu0 0.0
          %1566 = vmatpush2.msra.mxu0 0.0
          %1567 = vmatprep.subr.mxu0 0.0
          %1568 = vmatpush2.msra.mxu0 0.0
          %1569 = vmatprep.subr.mxu0 0.0
          %1570 = vmatpush2.msra.mxu0 0.0
          %1571 = vmatprep.subr.mxu0 0.0
          %1572 = vmatpush2.msra.mxu0 0.0
          %1573 = vmatprep.subr.mxu0 0.0
          %1574 = vmatpush2.msra.mxu0 0.0
          %1575 = vmatprep.subr.mxu0 0.0
          %1576 = vmatpush2.msra.mxu0 0.0
          %1577 = vmatprep.subr.mxu0 0.0
          %1578 = vmatpush2.msra.mxu0 0.0
          %1579 = vmatprep.subr.mxu0 0.0
          %1580 = vmatpush2.msra.mxu0 0.0
          %1581 = vmatprep.mubr.f32.mxu0 0.0
          %1582 = vmatmul.mubr.f32.gmra.mxu0 %v1438
          %v1583 = vpop.f32.mrf.mxu0
          %v1584 = vadd.f32 0.0, %v1583
          %v1585 = vpop.f32.mrf.mxu0
          %1586 = vdwg.mxu0
          %v1587 = vadd.f32 %v1418, %v1513
          %v1588 = vadd.f32 %v1419, %v1515
          %v1589 = vadd.f32 %v1420, %v1584
          %v1590 = vld [vmem:[%s399] sm:$0x77]
          %v1591 = vld [vmem:[%s399 + $0x8] sm:$0x7]
          %s1592 = scalar_lea.vmem %s2, 28
          %v1593 = vld [vmem:[%s1592] sm:$0xf]
          %v1596 = vcombine.high %v1590, %v1590
          %1597 = vrot.lane.b32.xlu0 %v1590, 91
          %v1598 = vpop.permute.xlu0 %1597
          %1599 = vrot.lane.b32.xlu0 %v1596, 91
          %v1600 = vpop.permute.xlu0 %1599
          %1601 = vrot.lane.b32.xlu0 %v1591, 91
          %v1602 = vpop.permute.xlu0 %1601
          %vm1603 = vcmask 744448
          %v1604 = vsel %vm1603, %v1598, %v1600
          %v1605 = vsel %vm1603, %v1600, %v1602
          %v1607 = vsel %vm443, %v1593, 0
          %v1609 = vsel %vm447, %v1604, 0
          %v1611 = vsel %vm447, %v1605, 0
          %v1613 = vsel %vm447, %v1602, 0
          %1615 = vmatprep.subr.mxu0 0.0
          %1616 = vmatpush1.msra.mxu0 0.0
          %1617 = vmatprep.subr.mxu0 0.0
          %1618 = vmatpush1.msra.mxu0 0.0
          %1619 = vmatprep.subr.mxu0 0.0
          %1620 = vmatpush1.msra.mxu0 0.0
          %1621 = vmatprep.subr.mxu0 0.0
          %1622 = vmatpush1.msra.mxu0 0.0
          %1623 = vmatprep.subr.mxu0 0.0
          %1624 = vmatpush1.msra.mxu0 0.0
          %1625 = vmatprep.subr.mxu0 0.0
          %1626 = vmatpush1.msra.mxu0 0.0
          %1627 = vmatprep.subr.mxu0 0.0
          %1628 = vmatpush1.msra.mxu0 0.0
          %1629 = vmatprep.subr.mxu0 0.0
          %1630 = vmatpush1.msra.mxu0 0.0
          %1631 = vmatprep.subr.mxu0 0.0
          %1632 = vmatpush1.msra.mxu0 0.0
          %1633 = vmatprep.subr.mxu0 0.0
          %1634 = vmatpush1.msra.mxu0 0.0
          %1635 = vmatprep.subr.mxu0 0.0
          %1636 = vmatpush1.msra.mxu0 0.0
          %1637 = vmatprep.subr.mxu0 0.0
          %1638 = vmatpush1.msra.mxu0 0.0
          %1639 = vmatprep.subr.mxu0 0.0
          %1640 = vmatpush1.msra.mxu0 0.0
          %1641 = vmatprep.subr.mxu0 0.0
          %1642 = vmatpush1.msra.mxu0 0.0
          %1643 = vmatprep.subr.mxu0 0.0
          %1644 = vmatpush1.msra.mxu0 0.0
          %1645 = vmatprep.subr.mxu0 %v1611
          %1646 = vmatpush1.msra.mxu0 %v1609
          %1647 = vmatprep.subr.mxu0 0.0
          %1648 = vmatpush2.msra.mxu0 0.0
          %1649 = vmatprep.subr.mxu0 0.0
          %1650 = vmatpush2.msra.mxu0 0.0
          %1651 = vmatprep.subr.mxu0 0.0
          %1652 = vmatpush2.msra.mxu0 0.0
          %1653 = vmatprep.subr.mxu0 0.0
          %1654 = vmatpush2.msra.mxu0 0.0
          %1655 = vmatprep.subr.mxu0 0.0
          %1656 = vmatpush2.msra.mxu0 0.0
          %1657 = vmatprep.subr.mxu0 0.0
          %1658 = vmatpush2.msra.mxu0 0.0
          %1659 = vmatprep.subr.mxu0 0.0
          %1660 = vmatpush2.msra.mxu0 0.0
          %1661 = vmatprep.subr.mxu0 0.0
          %1662 = vmatpush2.msra.mxu0 0.0
          %1663 = vmatprep.subr.mxu0 0.0
          %1664 = vmatpush2.msra.mxu0 0.0
          %1665 = vmatprep.subr.mxu0 0.0
          %1666 = vmatpush2.msra.mxu0 0.0
          %1667 = vmatprep.subr.mxu0 0.0
          %1668 = vmatpush2.msra.mxu0 0.0
          %1669 = vmatprep.subr.mxu0 0.0
          %1670 = vmatpush2.msra.mxu0 0.0
          %1671 = vmatprep.subr.mxu0 0.0
          %1672 = vmatpush2.msra.mxu0 0.0
          %1673 = vmatprep.subr.mxu0 0.0
          %1674 = vmatpush2.msra.mxu0 0.0
          %1675 = vmatprep.subr.mxu0 0.0
          %1676 = vmatpush2.msra.mxu0 0.0
          %1677 = vmatprep.subr.mxu0 0.0
          %1678 = vmatpush2.msra.mxu0 0.0
          %1679 = vmatprep.mubr.f32.mxu0 0.0
          %1680 = vmatmul.mubr.f32.gmra.mxu0 %v1607
          %v1681 = vpop.f32.mrf.mxu0
          %v1682 = vadd.f32 0.0, %v1681
          %v1683 = vpop.f32.mrf.mxu0
          %v1684 = vadd.f32 0.0, %v1683
          %1685 = vdwg.mxu0
          %1686 = vmatprep.subr.mxu0 0.0
          %1687 = vmatpush1.msra.mxu0 0.0
          %1688 = vmatprep.subr.mxu0 0.0
          %1689 = vmatpush1.msra.mxu0 0.0
          %1690 = vmatprep.subr.mxu0 0.0
          %1691 = vmatpush1.msra.mxu0 0.0
          %1692 = vmatprep.subr.mxu0 0.0
          %1693 = vmatpush1.msra.mxu0 0.0
          %1694 = vmatprep.subr.mxu0 0.0
          %1695 = vmatpush1.msra.mxu0 0.0
          %1696 = vmatprep.subr.mxu0 0.0
          %1697 = vmatpush1.msra.mxu0 0.0
          %1698 = vmatprep.subr.mxu0 0.0
          %1699 = vmatpush1.msra.mxu0 0.0
          %1700 = vmatprep.subr.mxu0 0.0
          %1701 = vmatpush1.msra.mxu0 0.0
          %1702 = vmatprep.subr.mxu0 0.0
          %1703 = vmatpush1.msra.mxu0 0.0
          %1704 = vmatprep.subr.mxu0 0.0
          %1705 = vmatpush1.msra.mxu0 0.0
          %1706 = vmatprep.subr.mxu0 0.0
          %1707 = vmatpush1.msra.mxu0 0.0
          %1708 = vmatprep.subr.mxu0 0.0
          %1709 = vmatpush1.msra.mxu0 0.0
          %1710 = vmatprep.subr.mxu0 0.0
          %1711 = vmatpush1.msra.mxu0 0.0
          %1712 = vmatprep.subr.mxu0 0.0
          %1713 = vmatpush1.msra.mxu0 0.0
          %1714 = vmatprep.subr.mxu0 0.0
          %1715 = vmatpush1.msra.mxu0 0.0
          %1716 = vmatprep.subr.mxu0 0.0
          %1717 = vmatpush1.msra.mxu0 %v1613
          %1718 = vmatprep.subr.mxu0 0.0
          %1719 = vmatpush2.msra.mxu0 0.0
          %1720 = vmatprep.subr.mxu0 0.0
          %1721 = vmatpush2.msra.mxu0 0.0
          %1722 = vmatprep.subr.mxu0 0.0
          %1723 = vmatpush2.msra.mxu0 0.0
          %1724 = vmatprep.subr.mxu0 0.0
          %1725 = vmatpush2.msra.mxu0 0.0
          %1726 = vmatprep.subr.mxu0 0.0
          %1727 = vmatpush2.msra.mxu0 0.0
          %1728 = vmatprep.subr.mxu0 0.0
          %1729 = vmatpush2.msra.mxu0 0.0
          %1730 = vmatprep.subr.mxu0 0.0
          %1731 = vmatpush2.msra.mxu0 0.0
          %1732 = vmatprep.subr.mxu0 0.0
          %1733 = vmatpush2.msra.mxu0 0.0
          %1734 = vmatprep.subr.mxu0 0.0
          %1735 = vmatpush2.msra.mxu0 0.0
          %1736 = vmatprep.subr.mxu0 0.0
          %1737 = vmatpush2.msra.mxu0 0.0
          %1738 = vmatprep.subr.mxu0 0.0
          %1739 = vmatpush2.msra.mxu0 0.0
          %1740 = vmatprep.subr.mxu0 0.0
          %1741 = vmatpush2.msra.mxu0 0.0
          %1742 = vmatprep.subr.mxu0 0.0
          %1743 = vmatpush2.msra.mxu0 0.0
          %1744 = vmatprep.subr.mxu0 0.0
          %1745 = vmatpush2.msra.mxu0 0.0
          %1746 = vmatprep.subr.mxu0 0.0
          %1747 = vmatpush2.msra.mxu0 0.0
          %1748 = vmatprep.subr.mxu0 0.0
          %1749 = vmatpush2.msra.mxu0 0.0
          %1750 = vmatprep.mubr.f32.mxu0 0.0
          %1751 = vmatmul.mubr.f32.gmra.mxu0 %v1607
          %v1752 = vpop.f32.mrf.mxu0
          %v1753 = vadd.f32 0.0, %v1752
          %v1754 = vpop.f32.mrf.mxu0
          %1755 = vdwg.mxu0
          %v1756 = vadd.f32 %v1587, %v1682
          %v1757 = vadd.f32 %v1588, %v1684
          %v1758 = vadd.f32 %v1589, %v1753
          %v1759 = vld [vmem:[%s399] sm:$0x77]
          %v1760 = vld [vmem:[%s399 + $0x8] sm:$0x7]
          %s1761 = scalar_lea.vmem %s2, 32
          %v1762 = vld [vmem:[%s1761] sm:$0xf]
          %v1765 = vcombine.high %v1759, %v1759
          %1766 = vrot.lane.b32.xlu0 %v1759, 90
          %v1767 = vpop.permute.xlu0 %1766
          %1768 = vrot.lane.b32.xlu0 %v1765, 90
          %v1769 = vpop.permute.xlu0 %1768
          %1770 = vrot.lane.b32.xlu0 %v1760, 90
          %v1771 = vpop.permute.xlu0 %1770
          %vm1772 = vcmask 736256
          %v1773 = vsel %vm1772, %v1767, %v1769
          %v1774 = vsel %vm1772, %v1769, %v1771
          %v1776 = vsel %vm443, %v1762, 0
          %v1778 = vsel %vm447, %v1773, 0
          %v1780 = vsel %vm447, %v1774, 0
          %v1782 = vsel %vm447, %v1771, 0
          %1784 = vmatprep.subr.mxu0 0.0
          %1785 = vmatpush1.msra.mxu0 0.0
          %1786 = vmatprep.subr.mxu0 0.0
          %1787 = vmatpush1.msra.mxu0 0.0
          %1788 = vmatprep.subr.mxu0 0.0
          %1789 = vmatpush1.msra.mxu0 0.0
          %1790 = vmatprep.subr.mxu0 0.0
          %1791 = vmatpush1.msra.mxu0 0.0
          %1792 = vmatprep.subr.mxu0 0.0
          %1793 = vmatpush1.msra.mxu0 0.0
          %1794 = vmatprep.subr.mxu0 0.0
          %1795 = vmatpush1.msra.mxu0 0.0
          %1796 = vmatprep.subr.mxu0 0.0
          %1797 = vmatpush1.msra.mxu0 0.0
          %1798 = vmatprep.subr.mxu0 0.0
          %1799 = vmatpush1.msra.mxu0 0.0
          %1800 = vmatprep.subr.mxu0 0.0
          %1801 = vmatpush1.msra.mxu0 0.0
          %1802 = vmatprep.subr.mxu0 0.0
          %1803 = vmatpush1.msra.mxu0 0.0
          %1804 = vmatprep.subr.mxu0 0.0
          %1805 = vmatpush1.msra.mxu0 0.0
          %1806 = vmatprep.subr.mxu0 0.0
          %1807 = vmatpush1.msra.mxu0 0.0
          %1808 = vmatprep.subr.mxu0 0.0
          %1809 = vmatpush1.msra.mxu0 0.0
          %1810 = vmatprep.subr.mxu0 0.0
          %1811 = vmatpush1.msra.mxu0 0.0
          %1812 = vmatprep.subr.mxu0 0.0
          %1813 = vmatpush1.msra.mxu0 0.0
          %1814 = vmatprep.subr.mxu0 %v1780
          %1815 = vmatpush1.msra.mxu0 %v1778
          %1816 = vmatprep.subr.mxu0 0.0
          %1817 = vmatpush2.msra.mxu0 0.0
          %1818 = vmatprep.subr.mxu0 0.0
          %1819 = vmatpush2.msra.mxu0 0.0
          %1820 = vmatprep.subr.mxu0 0.0
          %1821 = vmatpush2.msra.mxu0 0.0
          %1822 = vmatprep.subr.mxu0 0.0
          %1823 = vmatpush2.msra.mxu0 0.0
          %1824 = vmatprep.subr.mxu0 0.0
          %1825 = vmatpush2.msra.mxu0 0.0
          %1826 = vmatprep.subr.mxu0 0.0
          %1827 = vmatpush2.msra.mxu0 0.0
          %1828 = vmatprep.subr.mxu0 0.0
          %1829 = vmatpush2.msra.mxu0 0.0
          %1830 = vmatprep.subr.mxu0 0.0
          %1831 = vmatpush2.msra.mxu0 0.0
          %1832 = vmatprep.subr.mxu0 0.0
          %1833 = vmatpush2.msra.mxu0 0.0
          %1834 = vmatprep.subr.mxu0 0.0
          %1835 = vmatpush2.msra.mxu0 0.0
          %1836 = vmatprep.subr.mxu0 0.0
          %1837 = vmatpush2.msra.mxu0 0.0
          %1838 = vmatprep.subr.mxu0 0.0
          %1839 = vmatpush2.msra.mxu0 0.0
          %1840 = vmatprep.subr.mxu0 0.0
          %1841 = vmatpush2.msra.mxu0 0.0
          %1842 = vmatprep.subr.mxu0 0.0
          %1843 = vmatpush2.msra.mxu0 0.0
          %1844 = vmatprep.subr.mxu0 0.0
          %1845 = vmatpush2.msra.mxu0 0.0
          %1846 = vmatprep.subr.mxu0 0.0
          %1847 = vmatpush2.msra.mxu0 0.0
          %1848 = vmatprep.mubr.f32.mxu0 0.0
          %1849 = vmatmul.mubr.f32.gmra.mxu0 %v1776
          %v1850 = vpop.f32.mrf.mxu0
          %v1851 = vadd.f32 0.0, %v1850
          %v1852 = vpop.f32.mrf.mxu0
          %v1853 = vadd.f32 0.0, %v1852
          %1854 = vdwg.mxu0
          %1855 = vmatprep.subr.mxu0 0.0
          %1856 = vmatpush1.msra.mxu0 0.0
          %1857 = vmatprep.subr.mxu0 0.0
          %1858 = vmatpush1.msra.mxu0 0.0
          %1859 = vmatprep.subr.mxu0 0.0
          %1860 = vmatpush1.msra.mxu0 0.0
          %1861 = vmatprep.subr.mxu0 0.0
          %1862 = vmatpush1.msra.mxu0 0.0
          %1863 = vmatprep.subr.mxu0 0.0
          %1864 = vmatpush1.msra.mxu0 0.0
          %1865 = vmatprep.subr.mxu0 0.0
          %1866 = vmatpush1.msra.mxu0 0.0
          %1867 = vmatprep.subr.mxu0 0.0
          %1868 = vmatpush1.msra.mxu0 0.0
          %1869 = vmatprep.subr.mxu0 0.0
          %1870 = vmatpush1.msra.mxu0 0.0
          %1871 = vmatprep.subr.mxu0 0.0
          %1872 = vmatpush1.msra.mxu0 0.0
          %1873 = vmatprep.subr.mxu0 0.0
          %1874 = vmatpush1.msra.mxu0 0.0
          %1875 = vmatprep.subr.mxu0 0.0
          %1876 = vmatpush1.msra.mxu0 0.0
          %1877 = vmatprep.subr.mxu0 0.0
          %1878 = vmatpush1.msra.mxu0 0.0
          %1879 = vmatprep.subr.mxu0 0.0
          %1880 = vmatpush1.msra.mxu0 0.0
          %1881 = vmatprep.subr.mxu0 0.0
          %1882 = vmatpush1.msra.mxu0 0.0
          %1883 = vmatprep.subr.mxu0 0.0
          %1884 = vmatpush1.msra.mxu0 0.0
          %1885 = vmatprep.subr.mxu0 0.0
          %1886 = vmatpush1.msra.mxu0 %v1782
          %1887 = vmatprep.subr.mxu0 0.0
          %1888 = vmatpush2.msra.mxu0 0.0
          %1889 = vmatprep.subr.mxu0 0.0
          %1890 = vmatpush2.msra.mxu0 0.0
          %1891 = vmatprep.subr.mxu0 0.0
          %1892 = vmatpush2.msra.mxu0 0.0
          %1893 = vmatprep.subr.mxu0 0.0
          %1894 = vmatpush2.msra.mxu0 0.0
          %1895 = vmatprep.subr.mxu0 0.0
          %1896 = vmatpush2.msra.mxu0 0.0
          %1897 = vmatprep.subr.mxu0 0.0
          %1898 = vmatpush2.msra.mxu0 0.0
          %1899 = vmatprep.subr.mxu0 0.0
          %1900 = vmatpush2.msra.mxu0 0.0
          %1901 = vmatprep.subr.mxu0 0.0
          %1902 = vmatpush2.msra.mxu0 0.0
          %1903 = vmatprep.subr.mxu0 0.0
          %1904 = vmatpush2.msra.mxu0 0.0
          %1905 = vmatprep.subr.mxu0 0.0
          %1906 = vmatpush2.msra.mxu0 0.0
          %1907 = vmatprep.subr.mxu0 0.0
          %1908 = vmatpush2.msra.mxu0 0.0
          %1909 = vmatprep.subr.mxu0 0.0
          %1910 = vmatpush2.msra.mxu0 0.0
          %1911 = vmatprep.subr.mxu0 0.0
          %1912 = vmatpush2.msra.mxu0 0.0
          %1913 = vmatprep.subr.mxu0 0.0
          %1914 = vmatpush2.msra.mxu0 0.0
          %1915 = vmatprep.subr.mxu0 0.0
          %1916 = vmatpush2.msra.mxu0 0.0
          %1917 = vmatprep.subr.mxu0 0.0
          %1918 = vmatpush2.msra.mxu0 0.0
          %1919 = vmatprep.mubr.f32.mxu0 0.0
          %1920 = vmatmul.mubr.f32.gmra.mxu0 %v1776
          %v1921 = vpop.f32.mrf.mxu0
          %v1922 = vadd.f32 0.0, %v1921
          %v1923 = vpop.f32.mrf.mxu0
          %1924 = vdwg.mxu0
          %v1925 = vadd.f32 %v1756, %v1851
          %v1926 = vadd.f32 %v1757, %v1853
          %v1927 = vadd.f32 %v1758, %v1922
          %1929 = vset.pattern.permute.xlu0 0
          %1930 = vperm.xlu0 %1929, %v425
          %v1931 = vpop.permute.xlu0 %1930
          %v1933 = vadd.f32 %v1925, %v1931
          %v1934 = vadd.f32 %v1926, %v1931
          %v1935 = vadd.f32 %v1927, %v1931
          %v1937 = vlaneseq
          %v1938 = vshrl.u32 %v1937, 7
          %v1939 = vsub.s32 0, %v1938
          %v1940 = vrot.slane %v410, %v1939
          %v1941 = vlaneseq
          %v1942 = vshrl.u32 %v1941, 7
          %v1943 = vsub.s32 1, %v1942
          %v1944 = vrot.slane %v410, %v1943
          %v1945 = vlaneseq
          %v1946 = vshrl.u32 %v1945, 7
          %v1947 = vsub.s32 2, %v1946
          %v1948 = vrot.slane %v410, %v1947
          %v1952 = vmul.f32 %v1933, %v1940
          %v1953 = vmul.f32 %v1934, %v1944
          %v1954 = vmul.f32 %v1935, %v1948
          %v1958 = vcombine.low %v1952, %v1953
          %1960 = vst [vmem:[#allocation4] sm:$0xff] %v1958
          %vm1961 = vcmask 257024
          %1962 = vst.msk [vmem:[#allocation4 + $0x8] sm:$0xf] %vm1961, %v1954
          %1963 = vrot.lane.b32.xlu0 %v1958, 19
          %v1964 = vpop.permute.xlu0 %1963
          %1965 = vrot.lane.b32.xlu0 %v1954, 19
          %v1966 = vpop.permute.xlu0 %1965
          %v1967 = vrot.slane %v1964, 4
          %vm1968 = vcmask 154624
          %v1969 = vsel %vm1968, %v1967, %v1964
          %v1970 = vsel %vm1968, %v1967, %v1966
          %vm1973 = vcmask 1043608
          %vm1974 = vcmask 1047556
          %vm1975 = vmor %vm1974, %vm1973
          %1976 = vst.msk [vmem:[#allocation2] sm:$0xff] %vm1975, %v1969
          %vm1977 = vcmask 412672
          %1978 = vst.msk [vmem:[#allocation2 + $0x8] sm:$0xf] %vm1977, %v1970
        $region68: #{tpu_custom_call.1} parent=59 // pred_fallthru
          _
        %v1979 = vld [vmem:[%s409] sm:$0xf]
        %v1980 = vld [vmem:[#allocation2] sm:$0xff]
        %v1981 = vld [vmem:[#allocation2 + $0x8] sm:$0xf]
        %v1982 = vld [vmem:[%s404] sm:$0xf]
        %s1983 = scalar_lea.vmem %s404, 4
        %v1984 = vld [vmem:[%s1983] sm:$0xf]
        %v1987 = vcombine.high %v1980, %v1980
        %1988 = vrot.lane.b32.xlu0 %v1980, 127
        %v1989 = vpop.permute.xlu0 %1988
        %1990 = vrot.lane.b32.xlu0 %v1987, 127
        %v1991 = vpop.permute.xlu0 %1990
        %1992 = vrot.lane.b32.xlu0 %v1981, 127
        %v1993 = vpop.permute.xlu0 %1992
        %vm1994 = vcmask 1039360
        %v1995 = vsel %vm1994, %v1989, %v1991
        %v1996 = vsel %vm1994, %v1991, %v1993
        %vm1997 = vcmask 31744
        %v1999 = vsel %vm1997, %v1984, 0
        %vm2001 = vcmask 1043456
        %v2002 = vsel %vm2001, %v1995, 0
        %v2004 = vsel %vm2001, %v1996, 0
        %v2006 = vsel %vm2001, %v1993, 0
        %2008 = vmatprep.subr.mxu0 0.0
        %2009 = vmatpush1.msra.mxu0 0.0
        %2010 = vmatprep.subr.mxu0 0.0
        %2011 = vmatpush1.msra.mxu0 0.0
        %2012 = vmatprep.subr.mxu0 0.0
        %2013 = vmatpush1.msra.mxu0 0.0
        %2014 = vmatprep.subr.mxu0 0.0
        %2015 = vmatpush1.msra.mxu0 0.0
        %2016 = vmatprep.subr.mxu0 0.0
        %2017 = vmatpush1.msra.mxu0 0.0
        %2018 = vmatprep.subr.mxu0 0.0
        %2019 = vmatpush1.msra.mxu0 0.0
        %2020 = vmatprep.subr.mxu0 0.0
        %2021 = vmatpush1.msra.mxu0 0.0
        %2022 = vmatprep.subr.mxu0 0.0
        %2023 = vmatpush1.msra.mxu0 0.0
        %2024 = vmatprep.subr.mxu0 0.0
        %2025 = vmatpush1.msra.mxu0 0.0
        %2026 = vmatprep.subr.mxu0 0.0
        %2027 = vmatpush1.msra.mxu0 0.0
        %2028 = vmatprep.subr.mxu0 0.0
        %2029 = vmatpush1.msra.mxu0 0.0
        %2030 = vmatprep.subr.mxu0 0.0
        %2031 = vmatpush1.msra.mxu0 0.0
        %2032 = vmatprep.subr.mxu0 0.0
        %2033 = vmatpush1.msra.mxu0 0.0
        %2034 = vmatprep.subr.mxu0 0.0
        %2035 = vmatpush1.msra.mxu0 0.0
        %2036 = vmatprep.subr.mxu0 0.0
        %2037 = vmatpush1.msra.mxu0 0.0
        %2038 = vmatprep.subr.mxu0 %v2004
        %2039 = vmatpush1.msra.mxu0 %v2002
        %2040 = vmatprep.subr.mxu0 0.0
        %2041 = vmatpush2.msra.mxu0 0.0
        %2042 = vmatprep.subr.mxu0 0.0
        %2043 = vmatpush2.msra.mxu0 0.0
        %2044 = vmatprep.subr.mxu0 0.0
        %2045 = vmatpush2.msra.mxu0 0.0
        %2046 = vmatprep.subr.mxu0 0.0
        %2047 = vmatpush2.msra.mxu0 0.0
        %2048 = vmatprep.subr.mxu0 0.0
        %2049 = vmatpush2.msra.mxu0 0.0
        %2050 = vmatprep.subr.mxu0 0.0
        %2051 = vmatpush2.msra.mxu0 0.0
        %2052 = vmatprep.subr.mxu0 0.0
        %2053 = vmatpush2.msra.mxu0 0.0
        %2054 = vmatprep.subr.mxu0 0.0
        %2055 = vmatpush2.msra.mxu0 0.0
        %2056 = vmatprep.subr.mxu0 0.0
        %2057 = vmatpush2.msra.mxu0 0.0
        %2058 = vmatprep.subr.mxu0 0.0
        %2059 = vmatpush2.msra.mxu0 0.0
        %2060 = vmatprep.subr.mxu0 0.0
        %2061 = vmatpush2.msra.mxu0 0.0
        %2062 = vmatprep.subr.mxu0 0.0
        %2063 = vmatpush2.msra.mxu0 0.0
        %2064 = vmatprep.subr.mxu0 0.0
        %2065 = vmatpush2.msra.mxu0 0.0
        %2066 = vmatprep.subr.mxu0 0.0
        %2067 = vmatpush2.msra.mxu0 0.0
        %2068 = vmatprep.subr.mxu0 0.0
        %2069 = vmatpush2.msra.mxu0 0.0
        %2070 = vmatprep.subr.mxu0 0.0
        %2071 = vmatpush2.msra.mxu0 0.0
        %2072 = vmatprep.mubr.f32.mxu0 0.0
        %2073 = vmatmul.mubr.f32.gmra.mxu0 %v1999
        %v2074 = vpop.f32.mrf.mxu0
        %v2075 = vadd.f32 0.0, %v2074
        %v2076 = vpop.f32.mrf.mxu0
        %v2077 = vadd.f32 0.0, %v2076
        %2078 = vdwg.mxu0
        %2079 = vmatprep.subr.mxu0 0.0
        %2080 = vmatpush1.msra.mxu0 0.0
        %2081 = vmatprep.subr.mxu0 0.0
        %2082 = vmatpush1.msra.mxu0 0.0
        %2083 = vmatprep.subr.mxu0 0.0
        %2084 = vmatpush1.msra.mxu0 0.0
        %2085 = vmatprep.subr.mxu0 0.0
        %2086 = vmatpush1.msra.mxu0 0.0
        %2087 = vmatprep.subr.mxu0 0.0
        %2088 = vmatpush1.msra.mxu0 0.0
        %2089 = vmatprep.subr.mxu0 0.0
        %2090 = vmatpush1.msra.mxu0 0.0
        %2091 = vmatprep.subr.mxu0 0.0
        %2092 = vmatpush1.msra.mxu0 0.0
        %2093 = vmatprep.subr.mxu0 0.0
        %2094 = vmatpush1.msra.mxu0 0.0
        %2095 = vmatprep.subr.mxu0 0.0
        %2096 = vmatpush1.msra.mxu0 0.0
        %2097 = vmatprep.subr.mxu0 0.0
        %2098 = vmatpush1.msra.mxu0 0.0
        %2099 = vmatprep.subr.mxu0 0.0
        %2100 = vmatpush1.msra.mxu0 0.0
        %2101 = vmatprep.subr.mxu0 0.0
        %2102 = vmatpush1.msra.mxu0 0.0
        %2103 = vmatprep.subr.mxu0 0.0
        %2104 = vmatpush1.msra.mxu0 0.0
        %2105 = vmatprep.subr.mxu0 0.0
        %2106 = vmatpush1.msra.mxu0 0.0
        %2107 = vmatprep.subr.mxu0 0.0
        %2108 = vmatpush1.msra.mxu0 0.0
        %2109 = vmatprep.subr.mxu0 0.0
        %2110 = vmatpush1.msra.mxu0 %v2006
        %2111 = vmatprep.subr.mxu0 0.0
        %2112 = vmatpush2.msra.mxu0 0.0
        %2113 = vmatprep.subr.mxu0 0.0
        %2114 = vmatpush2.msra.mxu0 0.0
        %2115 = vmatprep.subr.mxu0 0.0
        %2116 = vmatpush2.msra.mxu0 0.0
        %2117 = vmatprep.subr.mxu0 0.0
        %2118 = vmatpush2.msra.mxu0 0.0
        %2119 = vmatprep.subr.mxu0 0.0
        %2120 = vmatpush2.msra.mxu0 0.0
        %2121 = vmatprep.subr.mxu0 0.0
        %2122 = vmatpush2.msra.mxu0 0.0
        %2123 = vmatprep.subr.mxu0 0.0
        %2124 = vmatpush2.msra.mxu0 0.0
        %2125 = vmatprep.subr.mxu0 0.0
        %2126 = vmatpush2.msra.mxu0 0.0
        %2127 = vmatprep.subr.mxu0 0.0
        %2128 = vmatpush2.msra.mxu0 0.0
        %2129 = vmatprep.subr.mxu0 0.0
        %2130 = vmatpush2.msra.mxu0 0.0
        %2131 = vmatprep.subr.mxu0 0.0
        %2132 = vmatpush2.msra.mxu0 0.0
        %2133 = vmatprep.subr.mxu0 0.0
        %2134 = vmatpush2.msra.mxu0 0.0
        %2135 = vmatprep.subr.mxu0 0.0
        %2136 = vmatpush2.msra.mxu0 0.0
        %2137 = vmatprep.subr.mxu0 0.0
        %2138 = vmatpush2.msra.mxu0 0.0
        %2139 = vmatprep.subr.mxu0 0.0
        %2140 = vmatpush2.msra.mxu0 0.0
        %2141 = vmatprep.subr.mxu0 0.0
        %2142 = vmatpush2.msra.mxu0 0.0
        %2143 = vmatprep.mubr.f32.mxu0 0.0
        %2144 = vmatmul.mubr.f32.gmra.mxu0 %v1999
        %v2145 = vpop.f32.mrf.mxu0
        %v2146 = vadd.f32 0.0, %v2145
        %v2147 = vpop.f32.mrf.mxu0
        %2148 = vdwg.mxu0
        %v2150 = vsel %vm1997, %v1982, 0
        %v2152 = vsel %vm2001, %v1980, 0
        %v2154 = vsel %vm2001, %v1987, 0
        %v2156 = vsel %vm2001, %v1981, 0
        %2158 = vmatprep.subr.mxu0 0.0
        %2159 = vmatpush1.msra.mxu0 0.0
        %2160 = vmatprep.subr.mxu0 0.0
        %2161 = vmatpush1.msra.mxu0 0.0
        %2162 = vmatprep.subr.mxu0 0.0
        %2163 = vmatpush1.msra.mxu0 0.0
        %2164 = vmatprep.subr.mxu0 0.0
        %2165 = vmatpush1.msra.mxu0 0.0
        %2166 = vmatprep.subr.mxu0 0.0
        %2167 = vmatpush1.msra.mxu0 0.0
        %2168 = vmatprep.subr.mxu0 0.0
        %2169 = vmatpush1.msra.mxu0 0.0
        %2170 = vmatprep.subr.mxu0 0.0
        %2171 = vmatpush1.msra.mxu0 0.0
        %2172 = vmatprep.subr.mxu0 0.0
        %2173 = vmatpush1.msra.mxu0 0.0
        %2174 = vmatprep.subr.mxu0 0.0
        %2175 = vmatpush1.msra.mxu0 0.0
        %2176 = vmatprep.subr.mxu0 0.0
        %2177 = vmatpush1.msra.mxu0 0.0
        %2178 = vmatprep.subr.mxu0 0.0
        %2179 = vmatpush1.msra.mxu0 0.0
        %2180 = vmatprep.subr.mxu0 0.0
        %2181 = vmatpush1.msra.mxu0 0.0
        %2182 = vmatprep.subr.mxu0 0.0
        %2183 = vmatpush1.msra.mxu0 0.0
        %2184 = vmatprep.subr.mxu0 0.0
        %2185 = vmatpush1.msra.mxu0 0.0
        %2186 = vmatprep.subr.mxu0 0.0
        %2187 = vmatpush1.msra.mxu0 0.0
        %2188 = vmatprep.subr.mxu0 %v2154
        %2189 = vmatpush1.msra.mxu0 %v2152
        %2190 = vmatprep.subr.mxu0 0.0
        %2191 = vmatpush2.msra.mxu0 0.0
        %2192 = vmatprep.subr.mxu0 0.0
        %2193 = vmatpush2.msra.mxu0 0.0
        %2194 = vmatprep.subr.mxu0 0.0
        %2195 = vmatpush2.msra.mxu0 0.0
        %2196 = vmatprep.subr.mxu0 0.0
        %2197 = vmatpush2.msra.mxu0 0.0
        %2198 = vmatprep.subr.mxu0 0.0
        %2199 = vmatpush2.msra.mxu0 0.0
        %2200 = vmatprep.subr.mxu0 0.0
        %2201 = vmatpush2.msra.mxu0 0.0
        %2202 = vmatprep.subr.mxu0 0.0
        %2203 = vmatpush2.msra.mxu0 0.0
        %2204 = vmatprep.subr.mxu0 0.0
        %2205 = vmatpush2.msra.mxu0 0.0
        %2206 = vmatprep.subr.mxu0 0.0
        %2207 = vmatpush2.msra.mxu0 0.0
        %2208 = vmatprep.subr.mxu0 0.0
        %2209 = vmatpush2.msra.mxu0 0.0
        %2210 = vmatprep.subr.mxu0 0.0
        %2211 = vmatpush2.msra.mxu0 0.0
        %2212 = vmatprep.subr.mxu0 0.0
        %2213 = vmatpush2.msra.mxu0 0.0
        %2214 = vmatprep.subr.mxu0 0.0
        %2215 = vmatpush2.msra.mxu0 0.0
        %2216 = vmatprep.subr.mxu0 0.0
        %2217 = vmatpush2.msra.mxu0 0.0
        %2218 = vmatprep.subr.mxu0 0.0
        %2219 = vmatpush2.msra.mxu0 0.0
        %2220 = vmatprep.subr.mxu0 0.0
        %2221 = vmatpush2.msra.mxu0 0.0
        %2222 = vmatprep.mubr.f32.mxu0 0.0
        %2223 = vmatmul.mubr.f32.gmra.mxu0 %v2150
        %v2224 = vpop.f32.mrf.mxu0
        %v2225 = vadd.f32 %v2075, %v2224
        %v2226 = vpop.f32.mrf.mxu0
        %v2227 = vadd.f32 %v2077, %v2226
        %2228 = vdwg.mxu0
        %2229 = vmatprep.subr.mxu0 0.0
        %2230 = vmatpush1.msra.mxu0 0.0
        %2231 = vmatprep.subr.mxu0 0.0
        %2232 = vmatpush1.msra.mxu0 0.0
        %2233 = vmatprep.subr.mxu0 0.0
        %2234 = vmatpush1.msra.mxu0 0.0
        %2235 = vmatprep.subr.mxu0 0.0
        %2236 = vmatpush1.msra.mxu0 0.0
        %2237 = vmatprep.subr.mxu0 0.0
        %2238 = vmatpush1.msra.mxu0 0.0
        %2239 = vmatprep.subr.mxu0 0.0
        %2240 = vmatpush1.msra.mxu0 0.0
        %2241 = vmatprep.subr.mxu0 0.0
        %2242 = vmatpush1.msra.mxu0 0.0
        %2243 = vmatprep.subr.mxu0 0.0
        %2244 = vmatpush1.msra.mxu0 0.0
        %2245 = vmatprep.subr.mxu0 0.0
        %2246 = vmatpush1.msra.mxu0 0.0
        %2247 = vmatprep.subr.mxu0 0.0
        %2248 = vmatpush1.msra.mxu0 0.0
        %2249 = vmatprep.subr.mxu0 0.0
        %2250 = vmatpush1.msra.mxu0 0.0
        %2251 = vmatprep.subr.mxu0 0.0
        %2252 = vmatpush1.msra.mxu0 0.0
        %2253 = vmatprep.subr.mxu0 0.0
        %2254 = vmatpush1.msra.mxu0 0.0
        %2255 = vmatprep.subr.mxu0 0.0
        %2256 = vmatpush1.msra.mxu0 0.0
        %2257 = vmatprep.subr.mxu0 0.0
        %2258 = vmatpush1.msra.mxu0 0.0
        %2259 = vmatprep.subr.mxu0 0.0
        %2260 = vmatpush1.msra.mxu0 %v2156
        %2261 = vmatprep.subr.mxu0 0.0
        %2262 = vmatpush2.msra.mxu0 0.0
        %2263 = vmatprep.subr.mxu0 0.0
        %2264 = vmatpush2.msra.mxu0 0.0
        %2265 = vmatprep.subr.mxu0 0.0
        %2266 = vmatpush2.msra.mxu0 0.0
        %2267 = vmatprep.subr.mxu0 0.0
        %2268 = vmatpush2.msra.mxu0 0.0
        %2269 = vmatprep.subr.mxu0 0.0
        %2270 = vmatpush2.msra.mxu0 0.0
        %2271 = vmatprep.subr.mxu0 0.0
        %2272 = vmatpush2.msra.mxu0 0.0
        %2273 = vmatprep.subr.mxu0 0.0
        %2274 = vmatpush2.msra.mxu0 0.0
        %2275 = vmatprep.subr.mxu0 0.0
        %2276 = vmatpush2.msra.mxu0 0.0
        %2277 = vmatprep.subr.mxu0 0.0
        %2278 = vmatpush2.msra.mxu0 0.0
        %2279 = vmatprep.subr.mxu0 0.0
        %2280 = vmatpush2.msra.mxu0 0.0
        %2281 = vmatprep.subr.mxu0 0.0
        %2282 = vmatpush2.msra.mxu0 0.0
        %2283 = vmatprep.subr.mxu0 0.0
        %2284 = vmatpush2.msra.mxu0 0.0
        %2285 = vmatprep.subr.mxu0 0.0
        %2286 = vmatpush2.msra.mxu0 0.0
        %2287 = vmatprep.subr.mxu0 0.0
        %2288 = vmatpush2.msra.mxu0 0.0
        %2289 = vmatprep.subr.mxu0 0.0
        %2290 = vmatpush2.msra.mxu0 0.0
        %2291 = vmatprep.subr.mxu0 0.0
        %2292 = vmatpush2.msra.mxu0 0.0
        %2293 = vmatprep.mubr.f32.mxu0 0.0
        %2294 = vmatmul.mubr.f32.gmra.mxu0 %v2150
        %v2295 = vpop.f32.mrf.mxu0
        %v2296 = vadd.f32 %v2146, %v2295
        %v2297 = vpop.f32.mrf.mxu0
        %2298 = vdwg.mxu0
        %v2299 = vld [vmem:[#allocation2] sm:$0xff]
        %v2300 = vld [vmem:[#allocation2 + $0x8] sm:$0xf]
        %s2301 = scalar_lea.vmem %s404, 8
        %v2302 = vld [vmem:[%s2301] sm:$0xf]
        %v2305 = vcombine.high %v2299, %v2299
        %2306 = vrot.lane.b32.xlu0 %v2299, 126
        %v2307 = vpop.permute.xlu0 %2306
        %2308 = vrot.lane.b32.xlu0 %v2305, 126
        %v2309 = vpop.permute.xlu0 %2308
        %2310 = vrot.lane.b32.xlu0 %v2300, 126
        %v2311 = vpop.permute.xlu0 %2310
        %vm2312 = vcmask 1031168
        %v2313 = vsel %vm2312, %v2307, %v2309
        %v2314 = vsel %vm2312, %v2309, %v2311
        %v2316 = vsel %vm1997, %v2302, 0
        %v2318 = vsel %vm2001, %v2313, 0
        %v2320 = vsel %vm2001, %v2314, 0
        %v2322 = vsel %vm2001, %v2311, 0
        %2324 = vmatprep.subr.mxu0 0.0
        %2325 = vmatpush1.msra.mxu0 0.0
        %2326 = vmatprep.subr.mxu0 0.0
        %2327 = vmatpush1.msra.mxu0 0.0
        %2328 = vmatprep.subr.mxu0 0.0
        %2329 = vmatpush1.msra.mxu0 0.0
        %2330 = vmatprep.subr.mxu0 0.0
        %2331 = vmatpush1.msra.mxu0 0.0
        %2332 = vmatprep.subr.mxu0 0.0
        %2333 = vmatpush1.msra.mxu0 0.0
        %2334 = vmatprep.subr.mxu0 0.0
        %2335 = vmatpush1.msra.mxu0 0.0
        %2336 = vmatprep.subr.mxu0 0.0
        %2337 = vmatpush1.msra.mxu0 0.0
        %2338 = vmatprep.subr.mxu0 0.0
        %2339 = vmatpush1.msra.mxu0 0.0
        %2340 = vmatprep.subr.mxu0 0.0
        %2341 = vmatpush1.msra.mxu0 0.0
        %2342 = vmatprep.subr.mxu0 0.0
        %2343 = vmatpush1.msra.mxu0 0.0
        %2344 = vmatprep.subr.mxu0 0.0
        %2345 = vmatpush1.msra.mxu0 0.0
        %2346 = vmatprep.subr.mxu0 0.0
        %2347 = vmatpush1.msra.mxu0 0.0
        %2348 = vmatprep.subr.mxu0 0.0
        %2349 = vmatpush1.msra.mxu0 0.0
        %2350 = vmatprep.subr.mxu0 0.0
        %2351 = vmatpush1.msra.mxu0 0.0
        %2352 = vmatprep.subr.mxu0 0.0
        %2353 = vmatpush1.msra.mxu0 0.0
        %2354 = vmatprep.subr.mxu0 %v2320
        %2355 = vmatpush1.msra.mxu0 %v2318
        %2356 = vmatprep.subr.mxu0 0.0
        %2357 = vmatpush2.msra.mxu0 0.0
        %2358 = vmatprep.subr.mxu0 0.0
        %2359 = vmatpush2.msra.mxu0 0.0
        %2360 = vmatprep.subr.mxu0 0.0
        %2361 = vmatpush2.msra.mxu0 0.0
        %2362 = vmatprep.subr.mxu0 0.0
        %2363 = vmatpush2.msra.mxu0 0.0
        %2364 = vmatprep.subr.mxu0 0.0
        %2365 = vmatpush2.msra.mxu0 0.0
        %2366 = vmatprep.subr.mxu0 0.0
        %2367 = vmatpush2.msra.mxu0 0.0
        %2368 = vmatprep.subr.mxu0 0.0
        %2369 = vmatpush2.msra.mxu0 0.0
        %2370 = vmatprep.subr.mxu0 0.0
        %2371 = vmatpush2.msra.mxu0 0.0
        %2372 = vmatprep.subr.mxu0 0.0
        %2373 = vmatpush2.msra.mxu0 0.0
        %2374 = vmatprep.subr.mxu0 0.0
        %2375 = vmatpush2.msra.mxu0 0.0
        %2376 = vmatprep.subr.mxu0 0.0
        %2377 = vmatpush2.msra.mxu0 0.0
        %2378 = vmatprep.subr.mxu0 0.0
        %2379 = vmatpush2.msra.mxu0 0.0
        %2380 = vmatprep.subr.mxu0 0.0
        %2381 = vmatpush2.msra.mxu0 0.0
        %2382 = vmatprep.subr.mxu0 0.0
        %2383 = vmatpush2.msra.mxu0 0.0
        %2384 = vmatprep.subr.mxu0 0.0
        %2385 = vmatpush2.msra.mxu0 0.0
        %2386 = vmatprep.subr.mxu0 0.0
        %2387 = vmatpush2.msra.mxu0 0.0
        %2388 = vmatprep.mubr.f32.mxu0 0.0
        %2389 = vmatmul.mubr.f32.gmra.mxu0 %v2316
        %v2390 = vpop.f32.mrf.mxu0
        %v2391 = vadd.f32 0.0, %v2390
        %v2392 = vpop.f32.mrf.mxu0
        %v2393 = vadd.f32 0.0, %v2392
        %2394 = vdwg.mxu0
        %2395 = vmatprep.subr.mxu0 0.0
        %2396 = vmatpush1.msra.mxu0 0.0
        %2397 = vmatprep.subr.mxu0 0.0
        %2398 = vmatpush1.msra.mxu0 0.0
        %2399 = vmatprep.subr.mxu0 0.0
        %2400 = vmatpush1.msra.mxu0 0.0
        %2401 = vmatprep.subr.mxu0 0.0
        %2402 = vmatpush1.msra.mxu0 0.0
        %2403 = vmatprep.subr.mxu0 0.0
        %2404 = vmatpush1.msra.mxu0 0.0
        %2405 = vmatprep.subr.mxu0 0.0
        %2406 = vmatpush1.msra.mxu0 0.0
        %2407 = vmatprep.subr.mxu0 0.0
        %2408 = vmatpush1.msra.mxu0 0.0
        %2409 = vmatprep.subr.mxu0 0.0
        %2410 = vmatpush1.msra.mxu0 0.0
        %2411 = vmatprep.subr.mxu0 0.0
        %2412 = vmatpush1.msra.mxu0 0.0
        %2413 = vmatprep.subr.mxu0 0.0
        %2414 = vmatpush1.msra.mxu0 0.0
        %2415 = vmatprep.subr.mxu0 0.0
        %2416 = vmatpush1.msra.mxu0 0.0
        %2417 = vmatprep.subr.mxu0 0.0
        %2418 = vmatpush1.msra.mxu0 0.0
        %2419 = vmatprep.subr.mxu0 0.0
        %2420 = vmatpush1.msra.mxu0 0.0
        %2421 = vmatprep.subr.mxu0 0.0
        %2422 = vmatpush1.msra.mxu0 0.0
        %2423 = vmatprep.subr.mxu0 0.0
        %2424 = vmatpush1.msra.mxu0 0.0
        %2425 = vmatprep.subr.mxu0 0.0
        %2426 = vmatpush1.msra.mxu0 %v2322
        %2427 = vmatprep.subr.mxu0 0.0
        %2428 = vmatpush2.msra.mxu0 0.0
        %2429 = vmatprep.subr.mxu0 0.0
        %2430 = vmatpush2.msra.mxu0 0.0
        %2431 = vmatprep.subr.mxu0 0.0
        %2432 = vmatpush2.msra.mxu0 0.0
        %2433 = vmatprep.subr.mxu0 0.0
        %2434 = vmatpush2.msra.mxu0 0.0
        %2435 = vmatprep.subr.mxu0 0.0
        %2436 = vmatpush2.msra.mxu0 0.0
        %2437 = vmatprep.subr.mxu0 0.0
        %2438 = vmatpush2.msra.mxu0 0.0
        %2439 = vmatprep.subr.mxu0 0.0
        %2440 = vmatpush2.msra.mxu0 0.0
        %2441 = vmatprep.subr.mxu0 0.0
        %2442 = vmatpush2.msra.mxu0 0.0
        %2443 = vmatprep.subr.mxu0 0.0
        %2444 = vmatpush2.msra.mxu0 0.0
        %2445 = vmatprep.subr.mxu0 0.0
        %2446 = vmatpush2.msra.mxu0 0.0
        %2447 = vmatprep.subr.mxu0 0.0
        %2448 = vmatpush2.msra.mxu0 0.0
        %2449 = vmatprep.subr.mxu0 0.0
        %2450 = vmatpush2.msra.mxu0 0.0
        %2451 = vmatprep.subr.mxu0 0.0
        %2452 = vmatpush2.msra.mxu0 0.0
        %2453 = vmatprep.subr.mxu0 0.0
        %2454 = vmatpush2.msra.mxu0 0.0
        %2455 = vmatprep.subr.mxu0 0.0
        %2456 = vmatpush2.msra.mxu0 0.0
        %2457 = vmatprep.subr.mxu0 0.0
        %2458 = vmatpush2.msra.mxu0 0.0
        %2459 = vmatprep.mubr.f32.mxu0 0.0
        %2460 = vmatmul.mubr.f32.gmra.mxu0 %v2316
        %v2461 = vpop.f32.mrf.mxu0
        %v2462 = vadd.f32 0.0, %v2461
        %v2463 = vpop.f32.mrf.mxu0
        %2464 = vdwg.mxu0
        %v2465 = vadd.f32 %v2225, %v2391
        %v2466 = vadd.f32 %v2227, %v2393
        %v2467 = vadd.f32 %v2296, %v2462
        %v2468 = vld [vmem:[#allocation2] sm:$0xff]
        %v2469 = vld [vmem:[#allocation2 + $0x8] sm:$0xf]
        %s2470 = scalar_lea.vmem %s404, 12
        %v2471 = vld [vmem:[%s2470] sm:$0xf]
        %v2474 = vcombine.high %v2468, %v2468
        %2475 = vrot.lane.b32.xlu0 %v2468, 110
        %v2476 = vpop.permute.xlu0 %2475
        %2477 = vrot.lane.b32.xlu0 %v2474, 110
        %v2478 = vpop.permute.xlu0 %2477
        %2479 = vrot.lane.b32.xlu0 %v2469, 110
        %v2480 = vpop.permute.xlu0 %2479
        %vm2481 = vcmask 900096
        %v2482 = vsel %vm2481, %v2476, %v2478
        %v2483 = vsel %vm2481, %v2478, %v2480
        %v2485 = vsel %vm1997, %v2471, 0
        %v2487 = vsel %vm2001, %v2482, 0
        %v2489 = vsel %vm2001, %v2483, 0
        %v2491 = vsel %vm2001, %v2480, 0
        %2493 = vmatprep.subr.mxu0 0.0
        %2494 = vmatpush1.msra.mxu0 0.0
        %2495 = vmatprep.subr.mxu0 0.0
        %2496 = vmatpush1.msra.mxu0 0.0
        %2497 = vmatprep.subr.mxu0 0.0
        %2498 = vmatpush1.msra.mxu0 0.0
        %2499 = vmatprep.subr.mxu0 0.0
        %2500 = vmatpush1.msra.mxu0 0.0
        %2501 = vmatprep.subr.mxu0 0.0
        %2502 = vmatpush1.msra.mxu0 0.0
        %2503 = vmatprep.subr.mxu0 0.0
        %2504 = vmatpush1.msra.mxu0 0.0
        %2505 = vmatprep.subr.mxu0 0.0
        %2506 = vmatpush1.msra.mxu0 0.0
        %2507 = vmatprep.subr.mxu0 0.0
        %2508 = vmatpush1.msra.mxu0 0.0
        %2509 = vmatprep.subr.mxu0 0.0
        %2510 = vmatpush1.msra.mxu0 0.0
        %2511 = vmatprep.subr.mxu0 0.0
        %2512 = vmatpush1.msra.mxu0 0.0
        %2513 = vmatprep.subr.mxu0 0.0
        %2514 = vmatpush1.msra.mxu0 0.0
        %2515 = vmatprep.subr.mxu0 0.0
        %2516 = vmatpush1.msra.mxu0 0.0
        %2517 = vmatprep.subr.mxu0 0.0
        %2518 = vmatpush1.msra.mxu0 0.0
        %2519 = vmatprep.subr.mxu0 0.0
        %2520 = vmatpush1.msra.mxu0 0.0
        %2521 = vmatprep.subr.mxu0 0.0
        %2522 = vmatpush1.msra.mxu0 0.0
        %2523 = vmatprep.subr.mxu0 %v2489
        %2524 = vmatpush1.msra.mxu0 %v2487
        %2525 = vmatprep.subr.mxu0 0.0
        %2526 = vmatpush2.msra.mxu0 0.0
        %2527 = vmatprep.subr.mxu0 0.0
        %2528 = vmatpush2.msra.mxu0 0.0
        %2529 = vmatprep.subr.mxu0 0.0
        %2530 = vmatpush2.msra.mxu0 0.0
        %2531 = vmatprep.subr.mxu0 0.0
        %2532 = vmatpush2.msra.mxu0 0.0
        %2533 = vmatprep.subr.mxu0 0.0
        %2534 = vmatpush2.msra.mxu0 0.0
        %2535 = vmatprep.subr.mxu0 0.0
        %2536 = vmatpush2.msra.mxu0 0.0
        %2537 = vmatprep.subr.mxu0 0.0
        %2538 = vmatpush2.msra.mxu0 0.0
        %2539 = vmatprep.subr.mxu0 0.0
        %2540 = vmatpush2.msra.mxu0 0.0
        %2541 = vmatprep.subr.mxu0 0.0
        %2542 = vmatpush2.msra.mxu0 0.0
        %2543 = vmatprep.subr.mxu0 0.0
        %2544 = vmatpush2.msra.mxu0 0.0
        %2545 = vmatprep.subr.mxu0 0.0
        %2546 = vmatpush2.msra.mxu0 0.0
        %2547 = vmatprep.subr.mxu0 0.0
        %2548 = vmatpush2.msra.mxu0 0.0
        %2549 = vmatprep.subr.mxu0 0.0
        %2550 = vmatpush2.msra.mxu0 0.0
        %2551 = vmatprep.subr.mxu0 0.0
        %2552 = vmatpush2.msra.mxu0 0.0
        %2553 = vmatprep.subr.mxu0 0.0
        %2554 = vmatpush2.msra.mxu0 0.0
        %2555 = vmatprep.subr.mxu0 0.0
        %2556 = vmatpush2.msra.mxu0 0.0
        %2557 = vmatprep.mubr.f32.mxu0 0.0
        %2558 = vmatmul.mubr.f32.gmra.mxu0 %v2485
        %v2559 = vpop.f32.mrf.mxu0
        %v2560 = vadd.f32 0.0, %v2559
        %v2561 = vpop.f32.mrf.mxu0
        %v2562 = vadd.f32 0.0, %v2561
        %2563 = vdwg.mxu0
        %2564 = vmatprep.subr.mxu0 0.0
        %2565 = vmatpush1.msra.mxu0 0.0
        %2566 = vmatprep.subr.mxu0 0.0
        %2567 = vmatpush1.msra.mxu0 0.0
        %2568 = vmatprep.subr.mxu0 0.0
        %2569 = vmatpush1.msra.mxu0 0.0
        %2570 = vmatprep.subr.mxu0 0.0
        %2571 = vmatpush1.msra.mxu0 0.0
        %2572 = vmatprep.subr.mxu0 0.0
        %2573 = vmatpush1.msra.mxu0 0.0
        %2574 = vmatprep.subr.mxu0 0.0
        %2575 = vmatpush1.msra.mxu0 0.0
        %2576 = vmatprep.subr.mxu0 0.0
        %2577 = vmatpush1.msra.mxu0 0.0
        %2578 = vmatprep.subr.mxu0 0.0
        %2579 = vmatpush1.msra.mxu0 0.0
        %2580 = vmatprep.subr.mxu0 0.0
        %2581 = vmatpush1.msra.mxu0 0.0
        %2582 = vmatprep.subr.mxu0 0.0
        %2583 = vmatpush1.msra.mxu0 0.0
        %2584 = vmatprep.subr.mxu0 0.0
        %2585 = vmatpush1.msra.mxu0 0.0
        %2586 = vmatprep.subr.mxu0 0.0
        %2587 = vmatpush1.msra.mxu0 0.0
        %2588 = vmatprep.subr.mxu0 0.0
        %2589 = vmatpush1.msra.mxu0 0.0
        %2590 = vmatprep.subr.mxu0 0.0
        %2591 = vmatpush1.msra.mxu0 0.0
        %2592 = vmatprep.subr.mxu0 0.0
        %2593 = vmatpush1.msra.mxu0 0.0
        %2594 = vmatprep.subr.mxu0 0.0
        %2595 = vmatpush1.msra.mxu0 %v2491
        %2596 = vmatprep.subr.mxu0 0.0
        %2597 = vmatpush2.msra.mxu0 0.0
        %2598 = vmatprep.subr.mxu0 0.0
        %2599 = vmatpush2.msra.mxu0 0.0
        %2600 = vmatprep.subr.mxu0 0.0
        %2601 = vmatpush2.msra.mxu0 0.0
        %2602 = vmatprep.subr.mxu0 0.0
        %2603 = vmatpush2.msra.mxu0 0.0
        %2604 = vmatprep.subr.mxu0 0.0
        %2605 = vmatpush2.msra.mxu0 0.0
        %2606 = vmatprep.subr.mxu0 0.0
        %2607 = vmatpush2.msra.mxu0 0.0
        %2608 = vmatprep.subr.mxu0 0.0
        %2609 = vmatpush2.msra.mxu0 0.0
        %2610 = vmatprep.subr.mxu0 0.0
        %2611 = vmatpush2.msra.mxu0 0.0
        %2612 = vmatprep.subr.mxu0 0.0
        %2613 = vmatpush2.msra.mxu0 0.0
        %2614 = vmatprep.subr.mxu0 0.0
        %2615 = vmatpush2.msra.mxu0 0.0
        %2616 = vmatprep.subr.mxu0 0.0
        %2617 = vmatpush2.msra.mxu0 0.0
        %2618 = vmatprep.subr.mxu0 0.0
        %2619 = vmatpush2.msra.mxu0 0.0
        %2620 = vmatprep.subr.mxu0 0.0
        %2621 = vmatpush2.msra.mxu0 0.0
        %2622 = vmatprep.subr.mxu0 0.0
        %2623 = vmatpush2.msra.mxu0 0.0
        %2624 = vmatprep.subr.mxu0 0.0
        %2625 = vmatpush2.msra.mxu0 0.0
        %2626 = vmatprep.subr.mxu0 0.0
        %2627 = vmatpush2.msra.mxu0 0.0
        %2628 = vmatprep.mubr.f32.mxu0 0.0
        %2629 = vmatmul.mubr.f32.gmra.mxu0 %v2485
        %v2630 = vpop.f32.mrf.mxu0
        %v2631 = vadd.f32 0.0, %v2630
        %v2632 = vpop.f32.mrf.mxu0
        %2633 = vdwg.mxu0
        %v2634 = vadd.f32 %v2465, %v2560
        %v2635 = vadd.f32 %v2466, %v2562
        %v2636 = vadd.f32 %v2467, %v2631
        %v2637 = vld [vmem:[#allocation2] sm:$0xff]
        %v2638 = vld [vmem:[#allocation2 + $0x8] sm:$0xf]
        %s2639 = scalar_lea.vmem %s404, 16
        %v2640 = vld [vmem:[%s2639] sm:$0xf]
        %v2643 = vcombine.high %v2637, %v2637
        %2644 = vrot.lane.b32.xlu0 %v2637, 109
        %v2645 = vpop.permute.xlu0 %2644
        %2646 = vrot.lane.b32.xlu0 %v2643, 109
        %v2647 = vpop.permute.xlu0 %2646
        %2648 = vrot.lane.b32.xlu0 %v2638, 109
        %v2649 = vpop.permute.xlu0 %2648
        %vm2650 = vcmask 891904
        %v2651 = vsel %vm2650, %v2645, %v2647
        %v2652 = vsel %vm2650, %v2647, %v2649
        %v2654 = vsel %vm1997, %v2640, 0
        %v2656 = vsel %vm2001, %v2651, 0
        %v2658 = vsel %vm2001, %v2652, 0
        %v2660 = vsel %vm2001, %v2649, 0
        %2662 = vmatprep.subr.mxu0 0.0
        %2663 = vmatpush1.msra.mxu0 0.0
        %2664 = vmatprep.subr.mxu0 0.0
        %2665 = vmatpush1.msra.mxu0 0.0
        %2666 = vmatprep.subr.mxu0 0.0
        %2667 = vmatpush1.msra.mxu0 0.0
        %2668 = vmatprep.subr.mxu0 0.0
        %2669 = vmatpush1.msra.mxu0 0.0
        %2670 = vmatprep.subr.mxu0 0.0
        %2671 = vmatpush1.msra.mxu0 0.0
        %2672 = vmatprep.subr.mxu0 0.0
        %2673 = vmatpush1.msra.mxu0 0.0
        %2674 = vmatprep.subr.mxu0 0.0
        %2675 = vmatpush1.msra.mxu0 0.0
        %2676 = vmatprep.subr.mxu0 0.0
        %2677 = vmatpush1.msra.mxu0 0.0
        %2678 = vmatprep.subr.mxu0 0.0
        %2679 = vmatpush1.msra.mxu0 0.0
        %2680 = vmatprep.subr.mxu0 0.0
        %2681 = vmatpush1.msra.mxu0 0.0
        %2682 = vmatprep.subr.mxu0 0.0
        %2683 = vmatpush1.msra.mxu0 0.0
        %2684 = vmatprep.subr.mxu0 0.0
        %2685 = vmatpush1.msra.mxu0 0.0
        %2686 = vmatprep.subr.mxu0 0.0
        %2687 = vmatpush1.msra.mxu0 0.0
        %2688 = vmatprep.subr.mxu0 0.0
        %2689 = vmatpush1.msra.mxu0 0.0
        %2690 = vmatprep.subr.mxu0 0.0
        %2691 = vmatpush1.msra.mxu0 0.0
        %2692 = vmatprep.subr.mxu0 %v2658
        %2693 = vmatpush1.msra.mxu0 %v2656
        %2694 = vmatprep.subr.mxu0 0.0
        %2695 = vmatpush2.msra.mxu0 0.0
        %2696 = vmatprep.subr.mxu0 0.0
        %2697 = vmatpush2.msra.mxu0 0.0
        %2698 = vmatprep.subr.mxu0 0.0
        %2699 = vmatpush2.msra.mxu0 0.0
        %2700 = vmatprep.subr.mxu0 0.0
        %2701 = vmatpush2.msra.mxu0 0.0
        %2702 = vmatprep.subr.mxu0 0.0
        %2703 = vmatpush2.msra.mxu0 0.0
        %2704 = vmatprep.subr.mxu0 0.0
        %2705 = vmatpush2.msra.mxu0 0.0
        %2706 = vmatprep.subr.mxu0 0.0
        %2707 = vmatpush2.msra.mxu0 0.0
        %2708 = vmatprep.subr.mxu0 0.0
        %2709 = vmatpush2.msra.mxu0 0.0
        %2710 = vmatprep.subr.mxu0 0.0
        %2711 = vmatpush2.msra.mxu0 0.0
        %2712 = vmatprep.subr.mxu0 0.0
        %2713 = vmatpush2.msra.mxu0 0.0
        %2714 = vmatprep.subr.mxu0 0.0
        %2715 = vmatpush2.msra.mxu0 0.0
        %2716 = vmatprep.subr.mxu0 0.0
        %2717 = vmatpush2.msra.mxu0 0.0
        %2718 = vmatprep.subr.mxu0 0.0
        %2719 = vmatpush2.msra.mxu0 0.0
        %2720 = vmatprep.subr.mxu0 0.0
        %2721 = vmatpush2.msra.mxu0 0.0
        %2722 = vmatprep.subr.mxu0 0.0
        %2723 = vmatpush2.msra.mxu0 0.0
        %2724 = vmatprep.subr.mxu0 0.0
        %2725 = vmatpush2.msra.mxu0 0.0
        %2726 = vmatprep.mubr.f32.mxu0 0.0
        %2727 = vmatmul.mubr.f32.gmra.mxu0 %v2654
        %v2728 = vpop.f32.mrf.mxu0
        %v2729 = vadd.f32 0.0, %v2728
        %v2730 = vpop.f32.mrf.mxu0
        %v2731 = vadd.f32 0.0, %v2730
        %2732 = vdwg.mxu0
        %2733 = vmatprep.subr.mxu0 0.0
        %2734 = vmatpush1.msra.mxu0 0.0
        %2735 = vmatprep.subr.mxu0 0.0
        %2736 = vmatpush1.msra.mxu0 0.0
        %2737 = vmatprep.subr.mxu0 0.0
        %2738 = vmatpush1.msra.mxu0 0.0
        %2739 = vmatprep.subr.mxu0 0.0
        %2740 = vmatpush1.msra.mxu0 0.0
        %2741 = vmatprep.subr.mxu0 0.0
        %2742 = vmatpush1.msra.mxu0 0.0
        %2743 = vmatprep.subr.mxu0 0.0
        %2744 = vmatpush1.msra.mxu0 0.0
        %2745 = vmatprep.subr.mxu0 0.0
        %2746 = vmatpush1.msra.mxu0 0.0
        %2747 = vmatprep.subr.mxu0 0.0
        %2748 = vmatpush1.msra.mxu0 0.0
        %2749 = vmatprep.subr.mxu0 0.0
        %2750 = vmatpush1.msra.mxu0 0.0
        %2751 = vmatprep.subr.mxu0 0.0
        %2752 = vmatpush1.msra.mxu0 0.0
        %2753 = vmatprep.subr.mxu0 0.0
        %2754 = vmatpush1.msra.mxu0 0.0
        %2755 = vmatprep.subr.mxu0 0.0
        %2756 = vmatpush1.msra.mxu0 0.0
        %2757 = vmatprep.subr.mxu0 0.0
        %2758 = vmatpush1.msra.mxu0 0.0
        %2759 = vmatprep.subr.mxu0 0.0
        %2760 = vmatpush1.msra.mxu0 0.0
        %2761 = vmatprep.subr.mxu0 0.0
        %2762 = vmatpush1.msra.mxu0 0.0
        %2763 = vmatprep.subr.mxu0 0.0
        %2764 = vmatpush1.msra.mxu0 %v2660
        %2765 = vmatprep.subr.mxu0 0.0
        %2766 = vmatpush2.msra.mxu0 0.0
        %2767 = vmatprep.subr.mxu0 0.0
        %2768 = vmatpush2.msra.mxu0 0.0
        %2769 = vmatprep.subr.mxu0 0.0
        %2770 = vmatpush2.msra.mxu0 0.0
        %2771 = vmatprep.subr.mxu0 0.0
        %2772 = vmatpush2.msra.mxu0 0.0
        %2773 = vmatprep.subr.mxu0 0.0
        %2774 = vmatpush2.msra.mxu0 0.0
        %2775 = vmatprep.subr.mxu0 0.0
        %2776 = vmatpush2.msra.mxu0 0.0
        %2777 = vmatprep.subr.mxu0 0.0
        %2778 = vmatpush2.msra.mxu0 0.0
        %2779 = vmatprep.subr.mxu0 0.0
        %2780 = vmatpush2.msra.mxu0 0.0
        %2781 = vmatprep.subr.mxu0 0.0
        %2782 = vmatpush2.msra.mxu0 0.0
        %2783 = vmatprep.subr.mxu0 0.0
        %2784 = vmatpush2.msra.mxu0 0.0
        %2785 = vmatprep.subr.mxu0 0.0
        %2786 = vmatpush2.msra.mxu0 0.0
        %2787 = vmatprep.subr.mxu0 0.0
        %2788 = vmatpush2.msra.mxu0 0.0
        %2789 = vmatprep.subr.mxu0 0.0
        %2790 = vmatpush2.msra.mxu0 0.0
        %2791 = vmatprep.subr.mxu0 0.0
        %2792 = vmatpush2.msra.mxu0 0.0
        %2793 = vmatprep.subr.mxu0 0.0
        %2794 = vmatpush2.msra.mxu0 0.0
        %2795 = vmatprep.subr.mxu0 0.0
        %2796 = vmatpush2.msra.mxu0 0.0
        %2797 = vmatprep.mubr.f32.mxu0 0.0
        %2798 = vmatmul.mubr.f32.gmra.mxu0 %v2654
        %v2799 = vpop.f32.mrf.mxu0
        %v2800 = vadd.f32 0.0, %v2799
        %v2801 = vpop.f32.mrf.mxu0
        %2802 = vdwg.mxu0
        %v2803 = vadd.f32 %v2634, %v2729
        %v2804 = vadd.f32 %v2635, %v2731
        %v2805 = vadd.f32 %v2636, %v2800
        %v2806 = vld [vmem:[#allocation2] sm:$0xff]
        %v2807 = vld [vmem:[#allocation2 + $0x8] sm:$0xf]
        %s2808 = scalar_lea.vmem %s404, 20
        %v2809 = vld [vmem:[%s2808] sm:$0xf]
        %v2812 = vcombine.high %v2806, %v2806
        %2813 = vrot.lane.b32.xlu0 %v2806, 108
        %v2814 = vpop.permute.xlu0 %2813
        %2815 = vrot.lane.b32.xlu0 %v2812, 108
        %v2816 = vpop.permute.xlu0 %2815
        %2817 = vrot.lane.b32.xlu0 %v2807, 108
        %v2818 = vpop.permute.xlu0 %2817
        %vm2819 = vcmask 883712
        %v2820 = vsel %vm2819, %v2814, %v2816
        %v2821 = vsel %vm2819, %v2816, %v2818
        %v2823 = vsel %vm1997, %v2809, 0
        %v2825 = vsel %vm2001, %v2820, 0
        %v2827 = vsel %vm2001, %v2821, 0
        %v2829 = vsel %vm2001, %v2818, 0
        %2831 = vmatprep.subr.mxu0 0.0
        %2832 = vmatpush1.msra.mxu0 0.0
        %2833 = vmatprep.subr.mxu0 0.0
        %2834 = vmatpush1.msra.mxu0 0.0
        %2835 = vmatprep.subr.mxu0 0.0
        %2836 = vmatpush1.msra.mxu0 0.0
        %2837 = vmatprep.subr.mxu0 0.0
        %2838 = vmatpush1.msra.mxu0 0.0
        %2839 = vmatprep.subr.mxu0 0.0
        %2840 = vmatpush1.msra.mxu0 0.0
        %2841 = vmatprep.subr.mxu0 0.0
        %2842 = vmatpush1.msra.mxu0 0.0
        %2843 = vmatprep.subr.mxu0 0.0
        %2844 = vmatpush1.msra.mxu0 0.0
        %2845 = vmatprep.subr.mxu0 0.0
        %2846 = vmatpush1.msra.mxu0 0.0
        %2847 = vmatprep.subr.mxu0 0.0
        %2848 = vmatpush1.msra.mxu0 0.0
        %2849 = vmatprep.subr.mxu0 0.0
        %2850 = vmatpush1.msra.mxu0 0.0
        %2851 = vmatprep.subr.mxu0 0.0
        %2852 = vmatpush1.msra.mxu0 0.0
        %2853 = vmatprep.subr.mxu0 0.0
        %2854 = vmatpush1.msra.mxu0 0.0
        %2855 = vmatprep.subr.mxu0 0.0
        %2856 = vmatpush1.msra.mxu0 0.0
        %2857 = vmatprep.subr.mxu0 0.0
        %2858 = vmatpush1.msra.mxu0 0.0
        %2859 = vmatprep.subr.mxu0 0.0
        %2860 = vmatpush1.msra.mxu0 0.0
        %2861 = vmatprep.subr.mxu0 %v2827
        %2862 = vmatpush1.msra.mxu0 %v2825
        %2863 = vmatprep.subr.mxu0 0.0
        %2864 = vmatpush2.msra.mxu0 0.0
        %2865 = vmatprep.subr.mxu0 0.0
        %2866 = vmatpush2.msra.mxu0 0.0
        %2867 = vmatprep.subr.mxu0 0.0
        %2868 = vmatpush2.msra.mxu0 0.0
        %2869 = vmatprep.subr.mxu0 0.0
        %2870 = vmatpush2.msra.mxu0 0.0
        %2871 = vmatprep.subr.mxu0 0.0
        %2872 = vmatpush2.msra.mxu0 0.0
        %2873 = vmatprep.subr.mxu0 0.0
        %2874 = vmatpush2.msra.mxu0 0.0
        %2875 = vmatprep.subr.mxu0 0.0
        %2876 = vmatpush2.msra.mxu0 0.0
        %2877 = vmatprep.subr.mxu0 0.0
        %2878 = vmatpush2.msra.mxu0 0.0
        %2879 = vmatprep.subr.mxu0 0.0
        %2880 = vmatpush2.msra.mxu0 0.0
        %2881 = vmatprep.subr.mxu0 0.0
        %2882 = vmatpush2.msra.mxu0 0.0
        %2883 = vmatprep.subr.mxu0 0.0
        %2884 = vmatpush2.msra.mxu0 0.0
        %2885 = vmatprep.subr.mxu0 0.0
        %2886 = vmatpush2.msra.mxu0 0.0
        %2887 = vmatprep.subr.mxu0 0.0
        %2888 = vmatpush2.msra.mxu0 0.0
        %2889 = vmatprep.subr.mxu0 0.0
        %2890 = vmatpush2.msra.mxu0 0.0
        %2891 = vmatprep.subr.mxu0 0.0
        %2892 = vmatpush2.msra.mxu0 0.0
        %2893 = vmatprep.subr.mxu0 0.0
        %2894 = vmatpush2.msra.mxu0 0.0
        %2895 = vmatprep.mubr.f32.mxu0 0.0
        %2896 = vmatmul.mubr.f32.gmra.mxu0 %v2823
        %v2897 = vpop.f32.mrf.mxu0
        %v2898 = vadd.f32 0.0, %v2897
        %v2899 = vpop.f32.mrf.mxu0
        %v2900 = vadd.f32 0.0, %v2899
        %2901 = vdwg.mxu0
        %2902 = vmatprep.subr.mxu0 0.0
        %2903 = vmatpush1.msra.mxu0 0.0
        %2904 = vmatprep.subr.mxu0 0.0
        %2905 = vmatpush1.msra.mxu0 0.0
        %2906 = vmatprep.subr.mxu0 0.0
        %2907 = vmatpush1.msra.mxu0 0.0
        %2908 = vmatprep.subr.mxu0 0.0
        %2909 = vmatpush1.msra.mxu0 0.0
        %2910 = vmatprep.subr.mxu0 0.0
        %2911 = vmatpush1.msra.mxu0 0.0
        %2912 = vmatprep.subr.mxu0 0.0
        %2913 = vmatpush1.msra.mxu0 0.0
        %2914 = vmatprep.subr.mxu0 0.0
        %2915 = vmatpush1.msra.mxu0 0.0
        %2916 = vmatprep.subr.mxu0 0.0
        %2917 = vmatpush1.msra.mxu0 0.0
        %2918 = vmatprep.subr.mxu0 0.0
        %2919 = vmatpush1.msra.mxu0 0.0
        %2920 = vmatprep.subr.mxu0 0.0
        %2921 = vmatpush1.msra.mxu0 0.0
        %2922 = vmatprep.subr.mxu0 0.0
        %2923 = vmatpush1.msra.mxu0 0.0
        %2924 = vmatprep.subr.mxu0 0.0
        %2925 = vmatpush1.msra.mxu0 0.0
        %2926 = vmatprep.subr.mxu0 0.0
        %2927 = vmatpush1.msra.mxu0 0.0
        %2928 = vmatprep.subr.mxu0 0.0
        %2929 = vmatpush1.msra.mxu0 0.0
        %2930 = vmatprep.subr.mxu0 0.0
        %2931 = vmatpush1.msra.mxu0 0.0
        %2932 = vmatprep.subr.mxu0 0.0
        %2933 = vmatpush1.msra.mxu0 %v2829
        %2934 = vmatprep.subr.mxu0 0.0
        %2935 = vmatpush2.msra.mxu0 0.0
        %2936 = vmatprep.subr.mxu0 0.0
        %2937 = vmatpush2.msra.mxu0 0.0
        %2938 = vmatprep.subr.mxu0 0.0
        %2939 = vmatpush2.msra.mxu0 0.0
        %2940 = vmatprep.subr.mxu0 0.0
        %2941 = vmatpush2.msra.mxu0 0.0
        %2942 = vmatprep.subr.mxu0 0.0
        %2943 = vmatpush2.msra.mxu0 0.0
        %2944 = vmatprep.subr.mxu0 0.0
        %2945 = vmatpush2.msra.mxu0 0.0
        %2946 = vmatprep.subr.mxu0 0.0
        %2947 = vmatpush2.msra.mxu0 0.0
        %2948 = vmatprep.subr.mxu0 0.0
        %2949 = vmatpush2.msra.mxu0 0.0
        %2950 = vmatprep.subr.mxu0 0.0
        %2951 = vmatpush2.msra.mxu0 0.0
        %2952 = vmatprep.subr.mxu0 0.0
        %2953 = vmatpush2.msra.mxu0 0.0
        %2954 = vmatprep.subr.mxu0 0.0
        %2955 = vmatpush2.msra.mxu0 0.0
        %2956 = vmatprep.subr.mxu0 0.0
        %2957 = vmatpush2.msra.mxu0 0.0
        %2958 = vmatprep.subr.mxu0 0.0
        %2959 = vmatpush2.msra.mxu0 0.0
        %2960 = vmatprep.subr.mxu0 0.0
        %2961 = vmatpush2.msra.mxu0 0.0
        %2962 = vmatprep.subr.mxu0 0.0
        %2963 = vmatpush2.msra.mxu0 0.0
        %2964 = vmatprep.subr.mxu0 0.0
        %2965 = vmatpush2.msra.mxu0 0.0
        %2966 = vmatprep.mubr.f32.mxu0 0.0
        %2967 = vmatmul.mubr.f32.gmra.mxu0 %v2823
        %v2968 = vpop.f32.mrf.mxu0
        %v2969 = vadd.f32 0.0, %v2968
        %v2970 = vpop.f32.mrf.mxu0
        %2971 = vdwg.mxu0
        %v2972 = vadd.f32 %v2803, %v2898
        %v2973 = vadd.f32 %v2804, %v2900
        %v2974 = vadd.f32 %v2805, %v2969
        %v2975 = vld [vmem:[#allocation2] sm:$0xff]
        %v2976 = vld [vmem:[#allocation2 + $0x8] sm:$0xf]
        %s2977 = scalar_lea.vmem %s404, 24
        %v2978 = vld [vmem:[%s2977] sm:$0xf]
        %v2981 = vcombine.high %v2975, %v2975
        %2982 = vrot.lane.b32.xlu0 %v2975, 92
        %v2983 = vpop.permute.xlu0 %2982
        %2984 = vrot.lane.b32.xlu0 %v2981, 92
        %v2985 = vpop.permute.xlu0 %2984
        %2986 = vrot.lane.b32.xlu0 %v2976, 92
        %v2987 = vpop.permute.xlu0 %2986
        %vm2988 = vcmask 752640
        %v2989 = vsel %vm2988, %v2983, %v2985
        %v2990 = vsel %vm2988, %v2985, %v2987
        %v2992 = vsel %vm1997, %v2978, 0
        %v2994 = vsel %vm2001, %v2989, 0
        %v2996 = vsel %vm2001, %v2990, 0
        %v2998 = vsel %vm2001, %v2987, 0
        %3000 = vmatprep.subr.mxu0 0.0
        %3001 = vmatpush1.msra.mxu0 0.0
        %3002 = vmatprep.subr.mxu0 0.0
        %3003 = vmatpush1.msra.mxu0 0.0
        %3004 = vmatprep.subr.mxu0 0.0
        %3005 = vmatpush1.msra.mxu0 0.0
        %3006 = vmatprep.subr.mxu0 0.0
        %3007 = vmatpush1.msra.mxu0 0.0
        %3008 = vmatprep.subr.mxu0 0.0
        %3009 = vmatpush1.msra.mxu0 0.0
        %3010 = vmatprep.subr.mxu0 0.0
        %3011 = vmatpush1.msra.mxu0 0.0
        %3012 = vmatprep.subr.mxu0 0.0
        %3013 = vmatpush1.msra.mxu0 0.0
        %3014 = vmatprep.subr.mxu0 0.0
        %3015 = vmatpush1.msra.mxu0 0.0
        %3016 = vmatprep.subr.mxu0 0.0
        %3017 = vmatpush1.msra.mxu0 0.0
        %3018 = vmatprep.subr.mxu0 0.0
        %3019 = vmatpush1.msra.mxu0 0.0
        %3020 = vmatprep.subr.mxu0 0.0
        %3021 = vmatpush1.msra.mxu0 0.0
        %3022 = vmatprep.subr.mxu0 0.0
        %3023 = vmatpush1.msra.mxu0 0.0
        %3024 = vmatprep.subr.mxu0 0.0
        %3025 = vmatpush1.msra.mxu0 0.0
        %3026 = vmatprep.subr.mxu0 0.0
        %3027 = vmatpush1.msra.mxu0 0.0
        %3028 = vmatprep.subr.mxu0 0.0
        %3029 = vmatpush1.msra.mxu0 0.0
        %3030 = vmatprep.subr.mxu0 %v2996
        %3031 = vmatpush1.msra.mxu0 %v2994
        %3032 = vmatprep.subr.mxu0 0.0
        %3033 = vmatpush2.msra.mxu0 0.0
        %3034 = vmatprep.subr.mxu0 0.0
        %3035 = vmatpush2.msra.mxu0 0.0
        %3036 = vmatprep.subr.mxu0 0.0
        %3037 = vmatpush2.msra.mxu0 0.0
        %3038 = vmatprep.subr.mxu0 0.0
        %3039 = vmatpush2.msra.mxu0 0.0
        %3040 = vmatprep.subr.mxu0 0.0
        %3041 = vmatpush2.msra.mxu0 0.0
        %3042 = vmatprep.subr.mxu0 0.0
        %3043 = vmatpush2.msra.mxu0 0.0
        %3044 = vmatprep.subr.mxu0 0.0
        %3045 = vmatpush2.msra.mxu0 0.0
        %3046 = vmatprep.subr.mxu0 0.0
        %3047 = vmatpush2.msra.mxu0 0.0
        %3048 = vmatprep.subr.mxu0 0.0
        %3049 = vmatpush2.msra.mxu0 0.0
        %3050 = vmatprep.subr.mxu0 0.0
        %3051 = vmatpush2.msra.mxu0 0.0
        %3052 = vmatprep.subr.mxu0 0.0
        %3053 = vmatpush2.msra.mxu0 0.0
        %3054 = vmatprep.subr.mxu0 0.0
        %3055 = vmatpush2.msra.mxu0 0.0
        %3056 = vmatprep.subr.mxu0 0.0
        %3057 = vmatpush2.msra.mxu0 0.0
        %3058 = vmatprep.subr.mxu0 0.0
        %3059 = vmatpush2.msra.mxu0 0.0
        %3060 = vmatprep.subr.mxu0 0.0
        %3061 = vmatpush2.msra.mxu0 0.0
        %3062 = vmatprep.subr.mxu0 0.0
        %3063 = vmatpush2.msra.mxu0 0.0
        %3064 = vmatprep.mubr.f32.mxu0 0.0
        %3065 = vmatmul.mubr.f32.gmra.mxu0 %v2992
        %v3066 = vpop.f32.mrf.mxu0
        %v3067 = vadd.f32 0.0, %v3066
        %v3068 = vpop.f32.mrf.mxu0
        %v3069 = vadd.f32 0.0, %v3068
        %3070 = vdwg.mxu0
        %3071 = vmatprep.subr.mxu0 0.0
        %3072 = vmatpush1.msra.mxu0 0.0
        %3073 = vmatprep.subr.mxu0 0.0
        %3074 = vmatpush1.msra.mxu0 0.0
        %3075 = vmatprep.subr.mxu0 0.0
        %3076 = vmatpush1.msra.mxu0 0.0
        %3077 = vmatprep.subr.mxu0 0.0
        %3078 = vmatpush1.msra.mxu0 0.0
        %3079 = vmatprep.subr.mxu0 0.0
        %3080 = vmatpush1.msra.mxu0 0.0
        %3081 = vmatprep.subr.mxu0 0.0
        %3082 = vmatpush1.msra.mxu0 0.0
        %3083 = vmatprep.subr.mxu0 0.0
        %3084 = vmatpush1.msra.mxu0 0.0
        %3085 = vmatprep.subr.mxu0 0.0
        %3086 = vmatpush1.msra.mxu0 0.0
        %3087 = vmatprep.subr.mxu0 0.0
        %3088 = vmatpush1.msra.mxu0 0.0
        %3089 = vmatprep.subr.mxu0 0.0
        %3090 = vmatpush1.msra.mxu0 0.0
        %3091 = vmatprep.subr.mxu0 0.0
        %3092 = vmatpush1.msra.mxu0 0.0
        %3093 = vmatprep.subr.mxu0 0.0
        %3094 = vmatpush1.msra.mxu0 0.0
        %3095 = vmatprep.subr.mxu0 0.0
        %3096 = vmatpush1.msra.mxu0 0.0
        %3097 = vmatprep.subr.mxu0 0.0
        %3098 = vmatpush1.msra.mxu0 0.0
        %3099 = vmatprep.subr.mxu0 0.0
        %3100 = vmatpush1.msra.mxu0 0.0
        %3101 = vmatprep.subr.mxu0 0.0
        %3102 = vmatpush1.msra.mxu0 %v2998
        %3103 = vmatprep.subr.mxu0 0.0
        %3104 = vmatpush2.msra.mxu0 0.0
        %3105 = vmatprep.subr.mxu0 0.0
        %3106 = vmatpush2.msra.mxu0 0.0
        %3107 = vmatprep.subr.mxu0 0.0
        %3108 = vmatpush2.msra.mxu0 0.0
        %3109 = vmatprep.subr.mxu0 0.0
        %3110 = vmatpush2.msra.mxu0 0.0
        %3111 = vmatprep.subr.mxu0 0.0
        %3112 = vmatpush2.msra.mxu0 0.0
        %3113 = vmatprep.subr.mxu0 0.0
        %3114 = vmatpush2.msra.mxu0 0.0
        %3115 = vmatprep.subr.mxu0 0.0
        %3116 = vmatpush2.msra.mxu0 0.0
        %3117 = vmatprep.subr.mxu0 0.0
        %3118 = vmatpush2.msra.mxu0 0.0
        %3119 = vmatprep.subr.mxu0 0.0
        %3120 = vmatpush2.msra.mxu0 0.0
        %3121 = vmatprep.subr.mxu0 0.0
        %3122 = vmatpush2.msra.mxu0 0.0
        %3123 = vmatprep.subr.mxu0 0.0
        %3124 = vmatpush2.msra.mxu0 0.0
        %3125 = vmatprep.subr.mxu0 0.0
        %3126 = vmatpush2.msra.mxu0 0.0
        %3127 = vmatprep.subr.mxu0 0.0
        %3128 = vmatpush2.msra.mxu0 0.0
        %3129 = vmatprep.subr.mxu0 0.0
        %3130 = vmatpush2.msra.mxu0 0.0
        %3131 = vmatprep.subr.mxu0 0.0
        %3132 = vmatpush2.msra.mxu0 0.0
        %3133 = vmatprep.subr.mxu0 0.0
        %3134 = vmatpush2.msra.mxu0 0.0
        %3135 = vmatprep.mubr.f32.mxu0 0.0
        %3136 = vmatmul.mubr.f32.gmra.mxu0 %v2992
        %v3137 = vpop.f32.mrf.mxu0
        %v3138 = vadd.f32 0.0, %v3137
        %v3139 = vpop.f32.mrf.mxu0
        %3140 = vdwg.mxu0
        %v3141 = vadd.f32 %v2972, %v3067
        %v3142 = vadd.f32 %v2973, %v3069
        %v3143 = vadd.f32 %v2974, %v3138
        %v3144 = vld [vmem:[#allocation2] sm:$0xff]
        %v3145 = vld [vmem:[#allocation2 + $0x8] sm:$0xf]
        %s3146 = scalar_lea.vmem %s404, 28
        %v3147 = vld [vmem:[%s3146] sm:$0xf]
        %v3150 = vcombine.high %v3144, %v3144
        %3151 = vrot.lane.b32.xlu0 %v3144, 91
        %v3152 = vpop.permute.xlu0 %3151
        %3153 = vrot.lane.b32.xlu0 %v3150, 91
        %v3154 = vpop.permute.xlu0 %3153
        %3155 = vrot.lane.b32.xlu0 %v3145, 91
        %v3156 = vpop.permute.xlu0 %3155
        %vm3157 = vcmask 744448
        %v3158 = vsel %vm3157, %v3152, %v3154
        %v3159 = vsel %vm3157, %v3154, %v3156
        %v3161 = vsel %vm1997, %v3147, 0
        %v3163 = vsel %vm2001, %v3158, 0
        %v3165 = vsel %vm2001, %v3159, 0
        %v3167 = vsel %vm2001, %v3156, 0
        %3169 = vmatprep.subr.mxu0 0.0
        %3170 = vmatpush1.msra.mxu0 0.0
        %3171 = vmatprep.subr.mxu0 0.0
        %3172 = vmatpush1.msra.mxu0 0.0
        %3173 = vmatprep.subr.mxu0 0.0
        %3174 = vmatpush1.msra.mxu0 0.0
        %3175 = vmatprep.subr.mxu0 0.0
        %3176 = vmatpush1.msra.mxu0 0.0
        %3177 = vmatprep.subr.mxu0 0.0
        %3178 = vmatpush1.msra.mxu0 0.0
        %3179 = vmatprep.subr.mxu0 0.0
        %3180 = vmatpush1.msra.mxu0 0.0
        %3181 = vmatprep.subr.mxu0 0.0
        %3182 = vmatpush1.msra.mxu0 0.0
        %3183 = vmatprep.subr.mxu0 0.0
        %3184 = vmatpush1.msra.mxu0 0.0
        %3185 = vmatprep.subr.mxu0 0.0
        %3186 = vmatpush1.msra.mxu0 0.0
        %3187 = vmatprep.subr.mxu0 0.0
        %3188 = vmatpush1.msra.mxu0 0.0
        %3189 = vmatprep.subr.mxu0 0.0
        %3190 = vmatpush1.msra.mxu0 0.0
        %3191 = vmatprep.subr.mxu0 0.0
        %3192 = vmatpush1.msra.mxu0 0.0
        %3193 = vmatprep.subr.mxu0 0.0
        %3194 = vmatpush1.msra.mxu0 0.0
        %3195 = vmatprep.subr.mxu0 0.0
        %3196 = vmatpush1.msra.mxu0 0.0
        %3197 = vmatprep.subr.mxu0 0.0
        %3198 = vmatpush1.msra.mxu0 0.0
        %3199 = vmatprep.subr.mxu0 %v3165
        %3200 = vmatpush1.msra.mxu0 %v3163
        %3201 = vmatprep.subr.mxu0 0.0
        %3202 = vmatpush2.msra.mxu0 0.0
        %3203 = vmatprep.subr.mxu0 0.0
        %3204 = vmatpush2.msra.mxu0 0.0
        %3205 = vmatprep.subr.mxu0 0.0
        %3206 = vmatpush2.msra.mxu0 0.0
        %3207 = vmatprep.subr.mxu0 0.0
        %3208 = vmatpush2.msra.mxu0 0.0
        %3209 = vmatprep.subr.mxu0 0.0
        %3210 = vmatpush2.msra.mxu0 0.0
        %3211 = vmatprep.subr.mxu0 0.0
        %3212 = vmatpush2.msra.mxu0 0.0
        %3213 = vmatprep.subr.mxu0 0.0
        %3214 = vmatpush2.msra.mxu0 0.0
        %3215 = vmatprep.subr.mxu0 0.0
        %3216 = vmatpush2.msra.mxu0 0.0
        %3217 = vmatprep.subr.mxu0 0.0
        %3218 = vmatpush2.msra.mxu0 0.0
        %3219 = vmatprep.subr.mxu0 0.0
        %3220 = vmatpush2.msra.mxu0 0.0
        %3221 = vmatprep.subr.mxu0 0.0
        %3222 = vmatpush2.msra.mxu0 0.0
        %3223 = vmatprep.subr.mxu0 0.0
        %3224 = vmatpush2.msra.mxu0 0.0
        %3225 = vmatprep.subr.mxu0 0.0
        %3226 = vmatpush2.msra.mxu0 0.0
        %3227 = vmatprep.subr.mxu0 0.0
        %3228 = vmatpush2.msra.mxu0 0.0
        %3229 = vmatprep.subr.mxu0 0.0
        %3230 = vmatpush2.msra.mxu0 0.0
        %3231 = vmatprep.subr.mxu0 0.0
        %3232 = vmatpush2.msra.mxu0 0.0
        %3233 = vmatprep.mubr.f32.mxu0 0.0
        %3234 = vmatmul.mubr.f32.gmra.mxu0 %v3161
        %v3235 = vpop.f32.mrf.mxu0
        %v3236 = vadd.f32 0.0, %v3235
        %v3237 = vpop.f32.mrf.mxu0
        %v3238 = vadd.f32 0.0, %v3237
        %3239 = vdwg.mxu0
        %3240 = vmatprep.subr.mxu0 0.0
        %3241 = vmatpush1.msra.mxu0 0.0
        %3242 = vmatprep.subr.mxu0 0.0
        %3243 = vmatpush1.msra.mxu0 0.0
        %3244 = vmatprep.subr.mxu0 0.0
        %3245 = vmatpush1.msra.mxu0 0.0
        %3246 = vmatprep.subr.mxu0 0.0
        %3247 = vmatpush1.msra.mxu0 0.0
        %3248 = vmatprep.subr.mxu0 0.0
        %3249 = vmatpush1.msra.mxu0 0.0
        %3250 = vmatprep.subr.mxu0 0.0
        %3251 = vmatpush1.msra.mxu0 0.0
        %3252 = vmatprep.subr.mxu0 0.0
        %3253 = vmatpush1.msra.mxu0 0.0
        %3254 = vmatprep.subr.mxu0 0.0
        %3255 = vmatpush1.msra.mxu0 0.0
        %3256 = vmatprep.subr.mxu0 0.0
        %3257 = vmatpush1.msra.mxu0 0.0
        %3258 = vmatprep.subr.mxu0 0.0
        %3259 = vmatpush1.msra.mxu0 0.0
        %3260 = vmatprep.subr.mxu0 0.0
        %3261 = vmatpush1.msra.mxu0 0.0
        %3262 = vmatprep.subr.mxu0 0.0
        %3263 = vmatpush1.msra.mxu0 0.0
        %3264 = vmatprep.subr.mxu0 0.0
        %3265 = vmatpush1.msra.mxu0 0.0
        %3266 = vmatprep.subr.mxu0 0.0
        %3267 = vmatpush1.msra.mxu0 0.0
        %3268 = vmatprep.subr.mxu0 0.0
        %3269 = vmatpush1.msra.mxu0 0.0
        %3270 = vmatprep.subr.mxu0 0.0
        %3271 = vmatpush1.msra.mxu0 %v3167
        %3272 = vmatprep.subr.mxu0 0.0
        %3273 = vmatpush2.msra.mxu0 0.0
        %3274 = vmatprep.subr.mxu0 0.0
        %3275 = vmatpush2.msra.mxu0 0.0
        %3276 = vmatprep.subr.mxu0 0.0
        %3277 = vmatpush2.msra.mxu0 0.0
        %3278 = vmatprep.subr.mxu0 0.0
        %3279 = vmatpush2.msra.mxu0 0.0
        %3280 = vmatprep.subr.mxu0 0.0
        %3281 = vmatpush2.msra.mxu0 0.0
        %3282 = vmatprep.subr.mxu0 0.0
        %3283 = vmatpush2.msra.mxu0 0.0
        %3284 = vmatprep.subr.mxu0 0.0
        %3285 = vmatpush2.msra.mxu0 0.0
        %3286 = vmatprep.subr.mxu0 0.0
        %3287 = vmatpush2.msra.mxu0 0.0
        %3288 = vmatprep.subr.mxu0 0.0
        %3289 = vmatpush2.msra.mxu0 0.0
        %3290 = vmatprep.subr.mxu0 0.0
        %3291 = vmatpush2.msra.mxu0 0.0
        %3292 = vmatprep.subr.mxu0 0.0
        %3293 = vmatpush2.msra.mxu0 0.0
        %3294 = vmatprep.subr.mxu0 0.0
        %3295 = vmatpush2.msra.mxu0 0.0
        %3296 = vmatprep.subr.mxu0 0.0
        %3297 = vmatpush2.msra.mxu0 0.0
        %3298 = vmatprep.subr.mxu0 0.0
        %3299 = vmatpush2.msra.mxu0 0.0
        %3300 = vmatprep.subr.mxu0 0.0
        %3301 = vmatpush2.msra.mxu0 0.0
        %3302 = vmatprep.subr.mxu0 0.0
        %3303 = vmatpush2.msra.mxu0 0.0
        %3304 = vmatprep.mubr.f32.mxu0 0.0
        %3305 = vmatmul.mubr.f32.gmra.mxu0 %v3161
        %v3306 = vpop.f32.mrf.mxu0
        %v3307 = vadd.f32 0.0, %v3306
        %v3308 = vpop.f32.mrf.mxu0
        %3309 = vdwg.mxu0
        %v3310 = vadd.f32 %v3141, %v3236
        %v3311 = vadd.f32 %v3142, %v3238
        %v3312 = vadd.f32 %v3143, %v3307
        %v3313 = vld [vmem:[#allocation2] sm:$0xff]
        %v3314 = vld [vmem:[#allocation2 + $0x8] sm:$0xf]
        %s3315 = scalar_lea.vmem %s404, 32
        %v3316 = vld [vmem:[%s3315] sm:$0xf]
        %v3319 = vcombine.high %v3313, %v3313
        %3320 = vrot.lane.b32.xlu0 %v3313, 90
        %v3321 = vpop.permute.xlu0 %3320
        %3322 = vrot.lane.b32.xlu0 %v3319, 90
        %v3323 = vpop.permute.xlu0 %3322
        %3324 = vrot.lane.b32.xlu0 %v3314, 90
        %v3325 = vpop.permute.xlu0 %3324
        %vm3326 = vcmask 736256
        %v3327 = vsel %vm3326, %v3321, %v3323
        %v3328 = vsel %vm3326, %v3323, %v3325
        %v3330 = vsel %vm1997, %v3316, 0
        %v3332 = vsel %vm2001, %v3327, 0
        %v3334 = vsel %vm2001, %v3328, 0
        %v3336 = vsel %vm2001, %v3325, 0
        %3338 = vmatprep.subr.mxu0 0.0
        %3339 = vmatpush1.msra.mxu0 0.0
        %3340 = vmatprep.subr.mxu0 0.0
        %3341 = vmatpush1.msra.mxu0 0.0
        %3342 = vmatprep.subr.mxu0 0.0
        %3343 = vmatpush1.msra.mxu0 0.0
        %3344 = vmatprep.subr.mxu0 0.0
        %3345 = vmatpush1.msra.mxu0 0.0
        %3346 = vmatprep.subr.mxu0 0.0
        %3347 = vmatpush1.msra.mxu0 0.0
        %3348 = vmatprep.subr.mxu0 0.0
        %3349 = vmatpush1.msra.mxu0 0.0
        %3350 = vmatprep.subr.mxu0 0.0
        %3351 = vmatpush1.msra.mxu0 0.0
        %3352 = vmatprep.subr.mxu0 0.0
        %3353 = vmatpush1.msra.mxu0 0.0
        %3354 = vmatprep.subr.mxu0 0.0
        %3355 = vmatpush1.msra.mxu0 0.0
        %3356 = vmatprep.subr.mxu0 0.0
        %3357 = vmatpush1.msra.mxu0 0.0
        %3358 = vmatprep.subr.mxu0 0.0
        %3359 = vmatpush1.msra.mxu0 0.0
        %3360 = vmatprep.subr.mxu0 0.0
        %3361 = vmatpush1.msra.mxu0 0.0
        %3362 = vmatprep.subr.mxu0 0.0
        %3363 = vmatpush1.msra.mxu0 0.0
        %3364 = vmatprep.subr.mxu0 0.0
        %3365 = vmatpush1.msra.mxu0 0.0
        %3366 = vmatprep.subr.mxu0 0.0
        %3367 = vmatpush1.msra.mxu0 0.0
        %3368 = vmatprep.subr.mxu0 %v3334
        %3369 = vmatpush1.msra.mxu0 %v3332
        %3370 = vmatprep.subr.mxu0 0.0
        %3371 = vmatpush2.msra.mxu0 0.0
        %3372 = vmatprep.subr.mxu0 0.0
        %3373 = vmatpush2.msra.mxu0 0.0
        %3374 = vmatprep.subr.mxu0 0.0
        %3375 = vmatpush2.msra.mxu0 0.0
        %3376 = vmatprep.subr.mxu0 0.0
        %3377 = vmatpush2.msra.mxu0 0.0
        %3378 = vmatprep.subr.mxu0 0.0
        %3379 = vmatpush2.msra.mxu0 0.0
        %3380 = vmatprep.subr.mxu0 0.0
        %3381 = vmatpush2.msra.mxu0 0.0
        %3382 = vmatprep.subr.mxu0 0.0
        %3383 = vmatpush2.msra.mxu0 0.0
        %3384 = vmatprep.subr.mxu0 0.0
        %3385 = vmatpush2.msra.mxu0 0.0
        %3386 = vmatprep.subr.mxu0 0.0
        %3387 = vmatpush2.msra.mxu0 0.0
        %3388 = vmatprep.subr.mxu0 0.0
        %3389 = vmatpush2.msra.mxu0 0.0
        %3390 = vmatprep.subr.mxu0 0.0
        %3391 = vmatpush2.msra.mxu0 0.0
        %3392 = vmatprep.subr.mxu0 0.0
        %3393 = vmatpush2.msra.mxu0 0.0
        %3394 = vmatprep.subr.mxu0 0.0
        %3395 = vmatpush2.msra.mxu0 0.0
        %3396 = vmatprep.subr.mxu0 0.0
        %3397 = vmatpush2.msra.mxu0 0.0
        %3398 = vmatprep.subr.mxu0 0.0
        %3399 = vmatpush2.msra.mxu0 0.0
        %3400 = vmatprep.subr.mxu0 0.0
        %3401 = vmatpush2.msra.mxu0 0.0
        %3402 = vmatprep.mubr.f32.mxu0 0.0
        %3403 = vmatmul.mubr.f32.gmra.mxu0 %v3330
        %v3404 = vpop.f32.mrf.mxu0
        %v3405 = vadd.f32 0.0, %v3404
        %v3406 = vpop.f32.mrf.mxu0
        %v3407 = vadd.f32 0.0, %v3406
        %3408 = vdwg.mxu0
        %3409 = vmatprep.subr.mxu0 0.0
        %3410 = vmatpush1.msra.mxu0 0.0
        %3411 = vmatprep.subr.mxu0 0.0
        %3412 = vmatpush1.msra.mxu0 0.0
        %3413 = vmatprep.subr.mxu0 0.0
        %3414 = vmatpush1.msra.mxu0 0.0
        %3415 = vmatprep.subr.mxu0 0.0
        %3416 = vmatpush1.msra.mxu0 0.0
        %3417 = vmatprep.subr.mxu0 0.0
        %3418 = vmatpush1.msra.mxu0 0.0
        %3419 = vmatprep.subr.mxu0 0.0
        %3420 = vmatpush1.msra.mxu0 0.0
        %3421 = vmatprep.subr.mxu0 0.0
        %3422 = vmatpush1.msra.mxu0 0.0
        %3423 = vmatprep.subr.mxu0 0.0
        %3424 = vmatpush1.msra.mxu0 0.0
        %3425 = vmatprep.subr.mxu0 0.0
        %3426 = vmatpush1.msra.mxu0 0.0
        %3427 = vmatprep.subr.mxu0 0.0
        %3428 = vmatpush1.msra.mxu0 0.0
        %3429 = vmatprep.subr.mxu0 0.0
        %3430 = vmatpush1.msra.mxu0 0.0
        %3431 = vmatprep.subr.mxu0 0.0
        %3432 = vmatpush1.msra.mxu0 0.0
        %3433 = vmatprep.subr.mxu0 0.0
        %3434 = vmatpush1.msra.mxu0 0.0
        %3435 = vmatprep.subr.mxu0 0.0
        %3436 = vmatpush1.msra.mxu0 0.0
        %3437 = vmatprep.subr.mxu0 0.0
        %3438 = vmatpush1.msra.mxu0 0.0
        %3439 = vmatprep.subr.mxu0 0.0
        %3440 = vmatpush1.msra.mxu0 %v3336
        %3441 = vmatprep.subr.mxu0 0.0
        %3442 = vmatpush2.msra.mxu0 0.0
        %3443 = vmatprep.subr.mxu0 0.0
        %3444 = vmatpush2.msra.mxu0 0.0
        %3445 = vmatprep.subr.mxu0 0.0
        %3446 = vmatpush2.msra.mxu0 0.0
        %3447 = vmatprep.subr.mxu0 0.0
        %3448 = vmatpush2.msra.mxu0 0.0
        %3449 = vmatprep.subr.mxu0 0.0
        %3450 = vmatpush2.msra.mxu0 0.0
        %3451 = vmatprep.subr.mxu0 0.0
        %3452 = vmatpush2.msra.mxu0 0.0
        %3453 = vmatprep.subr.mxu0 0.0
        %3454 = vmatpush2.msra.mxu0 0.0
        %3455 = vmatprep.subr.mxu0 0.0
        %3456 = vmatpush2.msra.mxu0 0.0
        %3457 = vmatprep.subr.mxu0 0.0
        %3458 = vmatpush2.msra.mxu0 0.0
        %3459 = vmatprep.subr.mxu0 0.0
        %3460 = vmatpush2.msra.mxu0 0.0
        %3461 = vmatprep.subr.mxu0 0.0
        %3462 = vmatpush2.msra.mxu0 0.0
        %3463 = vmatprep.subr.mxu0 0.0
        %3464 = vmatpush2.msra.mxu0 0.0
        %3465 = vmatprep.subr.mxu0 0.0
        %3466 = vmatpush2.msra.mxu0 0.0
        %3467 = vmatprep.subr.mxu0 0.0
        %3468 = vmatpush2.msra.mxu0 0.0
        %3469 = vmatprep.subr.mxu0 0.0
        %3470 = vmatpush2.msra.mxu0 0.0
        %3471 = vmatprep.subr.mxu0 0.0
        %3472 = vmatpush2.msra.mxu0 0.0
        %3473 = vmatprep.mubr.f32.mxu0 0.0
        %3474 = vmatmul.mubr.f32.gmra.mxu0 %v3330
        %v3475 = vpop.f32.mrf.mxu0
        %v3476 = vadd.f32 0.0, %v3475
        %v3477 = vpop.f32.mrf.mxu0
        %3478 = vdwg.mxu0
        %v3479 = vadd.f32 %v3310, %v3405
        %v3480 = vadd.f32 %v3311, %v3407
        %v3481 = vadd.f32 %v3312, %v3476
        %3483 = vset.pattern.permute.xlu0 0
        %3484 = vperm.xlu0 %3483, %v1979
        %v3485 = vpop.permute.xlu0 %3484
        %v3487 = vadd.f32 %v3479, %v3485
        %v3488 = vadd.f32 %v3480, %v3485
        %v3489 = vadd.f32 %v3481, %v3485
        %v3490 = vmax.f32 %v3487, 0.0
        %v3491 = vmax.f32 %v3488, 0.0
        %v3492 = vmax.f32 %v3489, 0.0
        %v3494 = vlaneseq
        %v3495 = vshrl.u32 %v3494, 7
        %v3496 = vsub.s32 0, %v3495
        %v3497 = vrot.slane %v410, %v3496
        %v3498 = vlaneseq
        %v3499 = vshrl.u32 %v3498, 7
        %v3500 = vsub.s32 1, %v3499
        %v3501 = vrot.slane %v410, %v3500
        %v3502 = vlaneseq
        %v3503 = vshrl.u32 %v3502, 7
        %v3504 = vsub.s32 2, %v3503
        %v3505 = vrot.slane %v410, %v3504
        %v3509 = vmul.f32 %v3490, %v3497
        %v3510 = vmul.f32 %v3491, %v3501
        %v3511 = vmul.f32 %v3492, %v3505
        %v3515 = vcombine.low %v3509, %v3510
        %3516 = vrot.lane.b32.xlu0 %v3515, 19
        %v3517 = vpop.permute.xlu0 %3516
        %3518 = vrot.lane.b32.xlu0 %v3511, 19
        %v3519 = vpop.permute.xlu0 %3518
        %v3520 = vrot.slane %v3517, 4
        %vm3521 = vcmask 154624
        %v3522 = vsel %vm3521, %v3520, %v3517
        %v3523 = vsel %vm3521, %v3520, %v3519
        %vm3526 = vcmask 1043608
        %vm3527 = vcmask 1047556
        %vm3528 = vmor %vm3527, %vm3526
        %3529 = vst.msk [vmem:[#allocation3] sm:$0xff] %vm3528, %v3522
        %vm3530 = vcmask 412672
        %3531 = vst.msk [vmem:[#allocation3 + $0x8] sm:$0xf] %vm3530, %v3523
        %s3532 = scalar_lea.vmem %s409, 4
        %v3533 = vld [vmem:[%s3532] sm:$0xf]
        %v3534 = vld [vmem:[#allocation3] sm:$0xff]
        %v3535 = vld [vmem:[#allocation3 + $0x8] sm:$0xf]
        %s3536 = scalar_lea.vmem %s404, 36
        %v3537 = vld [vmem:[%s3536] sm:$0xf]
        %s3538 = scalar_lea.vmem %s404, 40
        %v3539 = vld [vmem:[%s3538] sm:$0xf]
        %v3542 = vcombine.high %v3534, %v3534
        %3543 = vrot.lane.b32.xlu0 %v3534, 127
        %v3544 = vpop.permute.xlu0 %3543
        %3545 = vrot.lane.b32.xlu0 %v3542, 127
        %v3546 = vpop.permute.xlu0 %3545
        %3547 = vrot.lane.b32.xlu0 %v3535, 127
        %v3548 = vpop.permute.xlu0 %3547
        %v3549 = vsel %vm1994, %v3544, %v3546
        %v3550 = vsel %vm1994, %v3546, %v3548
        %v3552 = vsel %vm1997, %v3539, 0
        %v3554 = vsel %vm2001, %v3549, 0
        %v3556 = vsel %vm2001, %v3550, 0
        %v3558 = vsel %vm2001, %v3548, 0
        %3560 = vmatprep.subr.mxu0 0.0
        %3561 = vmatpush1.msra.mxu0 0.0
        %3562 = vmatprep.subr.mxu0 0.0
        %3563 = vmatpush1.msra.mxu0 0.0
        %3564 = vmatprep.subr.mxu0 0.0
        %3565 = vmatpush1.msra.mxu0 0.0
        %3566 = vmatprep.subr.mxu0 0.0
        %3567 = vmatpush1.msra.mxu0 0.0
        %3568 = vmatprep.subr.mxu0 0.0
        %3569 = vmatpush1.msra.mxu0 0.0
        %3570 = vmatprep.subr.mxu0 0.0
        %3571 = vmatpush1.msra.mxu0 0.0
        %3572 = vmatprep.subr.mxu0 0.0
        %3573 = vmatpush1.msra.mxu0 0.0
        %3574 = vmatprep.subr.mxu0 0.0
        %3575 = vmatpush1.msra.mxu0 0.0
        %3576 = vmatprep.subr.mxu0 0.0
        %3577 = vmatpush1.msra.mxu0 0.0
        %3578 = vmatprep.subr.mxu0 0.0
        %3579 = vmatpush1.msra.mxu0 0.0
        %3580 = vmatprep.subr.mxu0 0.0
        %3581 = vmatpush1.msra.mxu0 0.0
        %3582 = vmatprep.subr.mxu0 0.0
        %3583 = vmatpush1.msra.mxu0 0.0
        %3584 = vmatprep.subr.mxu0 0.0
        %3585 = vmatpush1.msra.mxu0 0.0
        %3586 = vmatprep.subr.mxu0 0.0
        %3587 = vmatpush1.msra.mxu0 0.0
        %3588 = vmatprep.subr.mxu0 0.0
        %3589 = vmatpush1.msra.mxu0 0.0
        %3590 = vmatprep.subr.mxu0 %v3556
        %3591 = vmatpush1.msra.mxu0 %v3554
        %3592 = vmatprep.subr.mxu0 0.0
        %3593 = vmatpush2.msra.mxu0 0.0
        %3594 = vmatprep.subr.mxu0 0.0
        %3595 = vmatpush2.msra.mxu0 0.0
        %3596 = vmatprep.subr.mxu0 0.0
        %3597 = vmatpush2.msra.mxu0 0.0
        %3598 = vmatprep.subr.mxu0 0.0
        %3599 = vmatpush2.msra.mxu0 0.0
        %3600 = vmatprep.subr.mxu0 0.0
        %3601 = vmatpush2.msra.mxu0 0.0
        %3602 = vmatprep.subr.mxu0 0.0
        %3603 = vmatpush2.msra.mxu0 0.0
        %3604 = vmatprep.subr.mxu0 0.0
        %3605 = vmatpush2.msra.mxu0 0.0
        %3606 = vmatprep.subr.mxu0 0.0
        %3607 = vmatpush2.msra.mxu0 0.0
        %3608 = vmatprep.subr.mxu0 0.0
        %3609 = vmatpush2.msra.mxu0 0.0
        %3610 = vmatprep.subr.mxu0 0.0
        %3611 = vmatpush2.msra.mxu0 0.0
        %3612 = vmatprep.subr.mxu0 0.0
        %3613 = vmatpush2.msra.mxu0 0.0
        %3614 = vmatprep.subr.mxu0 0.0
        %3615 = vmatpush2.msra.mxu0 0.0
        %3616 = vmatprep.subr.mxu0 0.0
        %3617 = vmatpush2.msra.mxu0 0.0
        %3618 = vmatprep.subr.mxu0 0.0
        %3619 = vmatpush2.msra.mxu0 0.0
        %3620 = vmatprep.subr.mxu0 0.0
        %3621 = vmatpush2.msra.mxu0 0.0
        %3622 = vmatprep.subr.mxu0 0.0
        %3623 = vmatpush2.msra.mxu0 0.0
        %3624 = vmatprep.mubr.f32.mxu0 0.0
        %3625 = vmatmul.mubr.f32.gmra.mxu0 %v3552
        %v3626 = vpop.f32.mrf.mxu0
        %v3627 = vadd.f32 0.0, %v3626
        %v3628 = vpop.f32.mrf.mxu0
        %v3629 = vadd.f32 0.0, %v3628
        %3630 = vdwg.mxu0
        %3631 = vmatprep.subr.mxu0 0.0
        %3632 = vmatpush1.msra.mxu0 0.0
        %3633 = vmatprep.subr.mxu0 0.0
        %3634 = vmatpush1.msra.mxu0 0.0
        %3635 = vmatprep.subr.mxu0 0.0
        %3636 = vmatpush1.msra.mxu0 0.0
        %3637 = vmatprep.subr.mxu0 0.0
        %3638 = vmatpush1.msra.mxu0 0.0
        %3639 = vmatprep.subr.mxu0 0.0
        %3640 = vmatpush1.msra.mxu0 0.0
        %3641 = vmatprep.subr.mxu0 0.0
        %3642 = vmatpush1.msra.mxu0 0.0
        %3643 = vmatprep.subr.mxu0 0.0
        %3644 = vmatpush1.msra.mxu0 0.0
        %3645 = vmatprep.subr.mxu0 0.0
        %3646 = vmatpush1.msra.mxu0 0.0
        %3647 = vmatprep.subr.mxu0 0.0
        %3648 = vmatpush1.msra.mxu0 0.0
        %3649 = vmatprep.subr.mxu0 0.0
        %3650 = vmatpush1.msra.mxu0 0.0
        %3651 = vmatprep.subr.mxu0 0.0
        %3652 = vmatpush1.msra.mxu0 0.0
        %3653 = vmatprep.subr.mxu0 0.0
        %3654 = vmatpush1.msra.mxu0 0.0
        %3655 = vmatprep.subr.mxu0 0.0
        %3656 = vmatpush1.msra.mxu0 0.0
        %3657 = vmatprep.subr.mxu0 0.0
        %3658 = vmatpush1.msra.mxu0 0.0
        %3659 = vmatprep.subr.mxu0 0.0
        %3660 = vmatpush1.msra.mxu0 0.0
        %3661 = vmatprep.subr.mxu0 0.0
        %3662 = vmatpush1.msra.mxu0 %v3558
        %3663 = vmatprep.subr.mxu0 0.0
        %3664 = vmatpush2.msra.mxu0 0.0
        %3665 = vmatprep.subr.mxu0 0.0
        %3666 = vmatpush2.msra.mxu0 0.0
        %3667 = vmatprep.subr.mxu0 0.0
        %3668 = vmatpush2.msra.mxu0 0.0
        %3669 = vmatprep.subr.mxu0 0.0
        %3670 = vmatpush2.msra.mxu0 0.0
        %3671 = vmatprep.subr.mxu0 0.0
        %3672 = vmatpush2.msra.mxu0 0.0
        %3673 = vmatprep.subr.mxu0 0.0
        %3674 = vmatpush2.msra.mxu0 0.0
        %3675 = vmatprep.subr.mxu0 0.0
        %3676 = vmatpush2.msra.mxu0 0.0
        %3677 = vmatprep.subr.mxu0 0.0
        %3678 = vmatpush2.msra.mxu0 0.0
        %3679 = vmatprep.subr.mxu0 0.0
        %3680 = vmatpush2.msra.mxu0 0.0
        %3681 = vmatprep.subr.mxu0 0.0
        %3682 = vmatpush2.msra.mxu0 0.0
        %3683 = vmatprep.subr.mxu0 0.0
        %3684 = vmatpush2.msra.mxu0 0.0
        %3685 = vmatprep.subr.mxu0 0.0
        %3686 = vmatpush2.msra.mxu0 0.0
        %3687 = vmatprep.subr.mxu0 0.0
        %3688 = vmatpush2.msra.mxu0 0.0
        %3689 = vmatprep.subr.mxu0 0.0
        %3690 = vmatpush2.msra.mxu0 0.0
        %3691 = vmatprep.subr.mxu0 0.0
        %3692 = vmatpush2.msra.mxu0 0.0
        %3693 = vmatprep.subr.mxu0 0.0
        %3694 = vmatpush2.msra.mxu0 0.0
        %3695 = vmatprep.mubr.f32.mxu0 0.0
        %3696 = vmatmul.mubr.f32.gmra.mxu0 %v3552
        %v3697 = vpop.f32.mrf.mxu0
        %v3698 = vadd.f32 0.0, %v3697
        %v3699 = vpop.f32.mrf.mxu0
        %3700 = vdwg.mxu0
        %v3702 = vsel %vm1997, %v3537, 0
        %v3704 = vsel %vm2001, %v3534, 0
        %v3706 = vsel %vm2001, %v3542, 0
        %v3708 = vsel %vm2001, %v3535, 0
        %3710 = vmatprep.subr.mxu0 0.0
        %3711 = vmatpush1.msra.mxu0 0.0
        %3712 = vmatprep.subr.mxu0 0.0
        %3713 = vmatpush1.msra.mxu0 0.0
        %3714 = vmatprep.subr.mxu0 0.0
        %3715 = vmatpush1.msra.mxu0 0.0
        %3716 = vmatprep.subr.mxu0 0.0
        %3717 = vmatpush1.msra.mxu0 0.0
        %3718 = vmatprep.subr.mxu0 0.0
        %3719 = vmatpush1.msra.mxu0 0.0
        %3720 = vmatprep.subr.mxu0 0.0
        %3721 = vmatpush1.msra.mxu0 0.0
        %3722 = vmatprep.subr.mxu0 0.0
        %3723 = vmatpush1.msra.mxu0 0.0
        %3724 = vmatprep.subr.mxu0 0.0
        %3725 = vmatpush1.msra.mxu0 0.0
        %3726 = vmatprep.subr.mxu0 0.0
        %3727 = vmatpush1.msra.mxu0 0.0
        %3728 = vmatprep.subr.mxu0 0.0
        %3729 = vmatpush1.msra.mxu0 0.0
        %3730 = vmatprep.subr.mxu0 0.0
        %3731 = vmatpush1.msra.mxu0 0.0
        %3732 = vmatprep.subr.mxu0 0.0
        %3733 = vmatpush1.msra.mxu0 0.0
        %3734 = vmatprep.subr.mxu0 0.0
        %3735 = vmatpush1.msra.mxu0 0.0
        %3736 = vmatprep.subr.mxu0 0.0
        %3737 = vmatpush1.msra.mxu0 0.0
        %3738 = vmatprep.subr.mxu0 0.0
        %3739 = vmatpush1.msra.mxu0 0.0
        %3740 = vmatprep.subr.mxu0 %v3706
        %3741 = vmatpush1.msra.mxu0 %v3704
        %3742 = vmatprep.subr.mxu0 0.0
        %3743 = vmatpush2.msra.mxu0 0.0
        %3744 = vmatprep.subr.mxu0 0.0
        %3745 = vmatpush2.msra.mxu0 0.0
        %3746 = vmatprep.subr.mxu0 0.0
        %3747 = vmatpush2.msra.mxu0 0.0
        %3748 = vmatprep.subr.mxu0 0.0
        %3749 = vmatpush2.msra.mxu0 0.0
        %3750 = vmatprep.subr.mxu0 0.0
        %3751 = vmatpush2.msra.mxu0 0.0
        %3752 = vmatprep.subr.mxu0 0.0
        %3753 = vmatpush2.msra.mxu0 0.0
        %3754 = vmatprep.subr.mxu0 0.0
        %3755 = vmatpush2.msra.mxu0 0.0
        %3756 = vmatprep.subr.mxu0 0.0
        %3757 = vmatpush2.msra.mxu0 0.0
        %3758 = vmatprep.subr.mxu0 0.0
        %3759 = vmatpush2.msra.mxu0 0.0
        %3760 = vmatprep.subr.mxu0 0.0
        %3761 = vmatpush2.msra.mxu0 0.0
        %3762 = vmatprep.subr.mxu0 0.0
        %3763 = vmatpush2.msra.mxu0 0.0
        %3764 = vmatprep.subr.mxu0 0.0
        %3765 = vmatpush2.msra.mxu0 0.0
        %3766 = vmatprep.subr.mxu0 0.0
        %3767 = vmatpush2.msra.mxu0 0.0
        %3768 = vmatprep.subr.mxu0 0.0
        %3769 = vmatpush2.msra.mxu0 0.0
        %3770 = vmatprep.subr.mxu0 0.0
        %3771 = vmatpush2.msra.mxu0 0.0
        %3772 = vmatprep.subr.mxu0 0.0
        %3773 = vmatpush2.msra.mxu0 0.0
        %3774 = vmatprep.mubr.f32.mxu0 0.0
        %3775 = vmatmul.mubr.f32.gmra.mxu0 %v3702
        %v3776 = vpop.f32.mrf.mxu0
        %v3777 = vadd.f32 %v3627, %v3776
        %v3778 = vpop.f32.mrf.mxu0
        %v3779 = vadd.f32 %v3629, %v3778
        %3780 = vdwg.mxu0
        %3781 = vmatprep.subr.mxu0 0.0
        %3782 = vmatpush1.msra.mxu0 0.0
        %3783 = vmatprep.subr.mxu0 0.0
        %3784 = vmatpush1.msra.mxu0 0.0
        %3785 = vmatprep.subr.mxu0 0.0
        %3786 = vmatpush1.msra.mxu0 0.0
        %3787 = vmatprep.subr.mxu0 0.0
        %3788 = vmatpush1.msra.mxu0 0.0
        %3789 = vmatprep.subr.mxu0 0.0
        %3790 = vmatpush1.msra.mxu0 0.0
        %3791 = vmatprep.subr.mxu0 0.0
        %3792 = vmatpush1.msra.mxu0 0.0
        %3793 = vmatprep.subr.mxu0 0.0
        %3794 = vmatpush1.msra.mxu0 0.0
        %3795 = vmatprep.subr.mxu0 0.0
        %3796 = vmatpush1.msra.mxu0 0.0
        %3797 = vmatprep.subr.mxu0 0.0
        %3798 = vmatpush1.msra.mxu0 0.0
        %3799 = vmatprep.subr.mxu0 0.0
        %3800 = vmatpush1.msra.mxu0 0.0
        %3801 = vmatprep.subr.mxu0 0.0
        %3802 = vmatpush1.msra.mxu0 0.0
        %3803 = vmatprep.subr.mxu0 0.0
        %3804 = vmatpush1.msra.mxu0 0.0
        %3805 = vmatprep.subr.mxu0 0.0
        %3806 = vmatpush1.msra.mxu0 0.0
        %3807 = vmatprep.subr.mxu0 0.0
        %3808 = vmatpush1.msra.mxu0 0.0
        %3809 = vmatprep.subr.mxu0 0.0
        %3810 = vmatpush1.msra.mxu0 0.0
        %3811 = vmatprep.subr.mxu0 0.0
        %3812 = vmatpush1.msra.mxu0 %v3708
        %3813 = vmatprep.subr.mxu0 0.0
        %3814 = vmatpush2.msra.mxu0 0.0
        %3815 = vmatprep.subr.mxu0 0.0
        %3816 = vmatpush2.msra.mxu0 0.0
        %3817 = vmatprep.subr.mxu0 0.0
        %3818 = vmatpush2.msra.mxu0 0.0
        %3819 = vmatprep.subr.mxu0 0.0
        %3820 = vmatpush2.msra.mxu0 0.0
        %3821 = vmatprep.subr.mxu0 0.0
        %3822 = vmatpush2.msra.mxu0 0.0
        %3823 = vmatprep.subr.mxu0 0.0
        %3824 = vmatpush2.msra.mxu0 0.0
        %3825 = vmatprep.subr.mxu0 0.0
        %3826 = vmatpush2.msra.mxu0 0.0
        %3827 = vmatprep.subr.mxu0 0.0
        %3828 = vmatpush2.msra.mxu0 0.0
        %3829 = vmatprep.subr.mxu0 0.0
        %3830 = vmatpush2.msra.mxu0 0.0
        %3831 = vmatprep.subr.mxu0 0.0
        %3832 = vmatpush2.msra.mxu0 0.0
        %3833 = vmatprep.subr.mxu0 0.0
        %3834 = vmatpush2.msra.mxu0 0.0
        %3835 = vmatprep.subr.mxu0 0.0
        %3836 = vmatpush2.msra.mxu0 0.0
        %3837 = vmatprep.subr.mxu0 0.0
        %3838 = vmatpush2.msra.mxu0 0.0
        %3839 = vmatprep.subr.mxu0 0.0
        %3840 = vmatpush2.msra.mxu0 0.0
        %3841 = vmatprep.subr.mxu0 0.0
        %3842 = vmatpush2.msra.mxu0 0.0
        %3843 = vmatprep.subr.mxu0 0.0
        %3844 = vmatpush2.msra.mxu0 0.0
        %3845 = vmatprep.mubr.f32.mxu0 0.0
        %3846 = vmatmul.mubr.f32.gmra.mxu0 %v3702
        %v3847 = vpop.f32.mrf.mxu0
        %v3848 = vadd.f32 %v3698, %v3847
        %v3849 = vpop.f32.mrf.mxu0
        %3850 = vdwg.mxu0
        %v3851 = vld [vmem:[#allocation3] sm:$0xff]
        %v3852 = vld [vmem:[#allocation3 + $0x8] sm:$0xf]
        %s3853 = scalar_lea.vmem %s404, 44
        %v3854 = vld [vmem:[%s3853] sm:$0xf]
        %v3857 = vcombine.high %v3851, %v3851
        %3858 = vrot.lane.b32.xlu0 %v3851, 126
        %v3859 = vpop.permute.xlu0 %3858
        %3860 = vrot.lane.b32.xlu0 %v3857, 126
        %v3861 = vpop.permute.xlu0 %3860
        %3862 = vrot.lane.b32.xlu0 %v3852, 126
        %v3863 = vpop.permute.xlu0 %3862
        %v3864 = vsel %vm2312, %v3859, %v3861
        %v3865 = vsel %vm2312, %v3861, %v3863
        %v3867 = vsel %vm1997, %v3854, 0
        %v3869 = vsel %vm2001, %v3864, 0
        %v3871 = vsel %vm2001, %v3865, 0
        %v3873 = vsel %vm2001, %v3863, 0
        %3875 = vmatprep.subr.mxu0 0.0
        %3876 = vmatpush1.msra.mxu0 0.0
        %3877 = vmatprep.subr.mxu0 0.0
        %3878 = vmatpush1.msra.mxu0 0.0
        %3879 = vmatprep.subr.mxu0 0.0
        %3880 = vmatpush1.msra.mxu0 0.0
        %3881 = vmatprep.subr.mxu0 0.0
        %3882 = vmatpush1.msra.mxu0 0.0
        %3883 = vmatprep.subr.mxu0 0.0
        %3884 = vmatpush1.msra.mxu0 0.0
        %3885 = vmatprep.subr.mxu0 0.0
        %3886 = vmatpush1.msra.mxu0 0.0
        %3887 = vmatprep.subr.mxu0 0.0
        %3888 = vmatpush1.msra.mxu0 0.0
        %3889 = vmatprep.subr.mxu0 0.0
        %3890 = vmatpush1.msra.mxu0 0.0
        %3891 = vmatprep.subr.mxu0 0.0
        %3892 = vmatpush1.msra.mxu0 0.0
        %3893 = vmatprep.subr.mxu0 0.0
        %3894 = vmatpush1.msra.mxu0 0.0
        %3895 = vmatprep.subr.mxu0 0.0
        %3896 = vmatpush1.msra.mxu0 0.0
        %3897 = vmatprep.subr.mxu0 0.0
        %3898 = vmatpush1.msra.mxu0 0.0
        %3899 = vmatprep.subr.mxu0 0.0
        %3900 = vmatpush1.msra.mxu0 0.0
        %3901 = vmatprep.subr.mxu0 0.0
        %3902 = vmatpush1.msra.mxu0 0.0
        %3903 = vmatprep.subr.mxu0 0.0
        %3904 = vmatpush1.msra.mxu0 0.0
        %3905 = vmatprep.subr.mxu0 %v3871
        %3906 = vmatpush1.msra.mxu0 %v3869
        %3907 = vmatprep.subr.mxu0 0.0
        %3908 = vmatpush2.msra.mxu0 0.0
        %3909 = vmatprep.subr.mxu0 0.0
        %3910 = vmatpush2.msra.mxu0 0.0
        %3911 = vmatprep.subr.mxu0 0.0
        %3912 = vmatpush2.msra.mxu0 0.0
        %3913 = vmatprep.subr.mxu0 0.0
        %3914 = vmatpush2.msra.mxu0 0.0
        %3915 = vmatprep.subr.mxu0 0.0
        %3916 = vmatpush2.msra.mxu0 0.0
        %3917 = vmatprep.subr.mxu0 0.0
        %3918 = vmatpush2.msra.mxu0 0.0
        %3919 = vmatprep.subr.mxu0 0.0
        %3920 = vmatpush2.msra.mxu0 0.0
        %3921 = vmatprep.subr.mxu0 0.0
        %3922 = vmatpush2.msra.mxu0 0.0
        %3923 = vmatprep.subr.mxu0 0.0
        %3924 = vmatpush2.msra.mxu0 0.0
        %3925 = vmatprep.subr.mxu0 0.0
        %3926 = vmatpush2.msra.mxu0 0.0
        %3927 = vmatprep.subr.mxu0 0.0
        %3928 = vmatpush2.msra.mxu0 0.0
        %3929 = vmatprep.subr.mxu0 0.0
        %3930 = vmatpush2.msra.mxu0 0.0
        %3931 = vmatprep.subr.mxu0 0.0
        %3932 = vmatpush2.msra.mxu0 0.0
        %3933 = vmatprep.subr.mxu0 0.0
        %3934 = vmatpush2.msra.mxu0 0.0
        %3935 = vmatprep.subr.mxu0 0.0
        %3936 = vmatpush2.msra.mxu0 0.0
        %3937 = vmatprep.subr.mxu0 0.0
        %3938 = vmatpush2.msra.mxu0 0.0
        %3939 = vmatprep.mubr.f32.mxu0 0.0
        %3940 = vmatmul.mubr.f32.gmra.mxu0 %v3867
        %v3941 = vpop.f32.mrf.mxu0
        %v3942 = vadd.f32 0.0, %v3941
        %v3943 = vpop.f32.mrf.mxu0
        %v3944 = vadd.f32 0.0, %v3943
        %3945 = vdwg.mxu0
        %3946 = vmatprep.subr.mxu0 0.0
        %3947 = vmatpush1.msra.mxu0 0.0
        %3948 = vmatprep.subr.mxu0 0.0
        %3949 = vmatpush1.msra.mxu0 0.0
        %3950 = vmatprep.subr.mxu0 0.0
        %3951 = vmatpush1.msra.mxu0 0.0
        %3952 = vmatprep.subr.mxu0 0.0
        %3953 = vmatpush1.msra.mxu0 0.0
        %3954 = vmatprep.subr.mxu0 0.0
        %3955 = vmatpush1.msra.mxu0 0.0
        %3956 = vmatprep.subr.mxu0 0.0
        %3957 = vmatpush1.msra.mxu0 0.0
        %3958 = vmatprep.subr.mxu0 0.0
        %3959 = vmatpush1.msra.mxu0 0.0
        %3960 = vmatprep.subr.mxu0 0.0
        %3961 = vmatpush1.msra.mxu0 0.0
        %3962 = vmatprep.subr.mxu0 0.0
        %3963 = vmatpush1.msra.mxu0 0.0
        %3964 = vmatprep.subr.mxu0 0.0
        %3965 = vmatpush1.msra.mxu0 0.0
        %3966 = vmatprep.subr.mxu0 0.0
        %3967 = vmatpush1.msra.mxu0 0.0
        %3968 = vmatprep.subr.mxu0 0.0
        %3969 = vmatpush1.msra.mxu0 0.0
        %3970 = vmatprep.subr.mxu0 0.0
        %3971 = vmatpush1.msra.mxu0 0.0
        %3972 = vmatprep.subr.mxu0 0.0
        %3973 = vmatpush1.msra.mxu0 0.0
        %3974 = vmatprep.subr.mxu0 0.0
        %3975 = vmatpush1.msra.mxu0 0.0
        %3976 = vmatprep.subr.mxu0 0.0
        %3977 = vmatpush1.msra.mxu0 %v3873
        %3978 = vmatprep.subr.mxu0 0.0
        %3979 = vmatpush2.msra.mxu0 0.0
        %3980 = vmatprep.subr.mxu0 0.0
        %3981 = vmatpush2.msra.mxu0 0.0
        %3982 = vmatprep.subr.mxu0 0.0
        %3983 = vmatpush2.msra.mxu0 0.0
        %3984 = vmatprep.subr.mxu0 0.0
        %3985 = vmatpush2.msra.mxu0 0.0
        %3986 = vmatprep.subr.mxu0 0.0
        %3987 = vmatpush2.msra.mxu0 0.0
        %3988 = vmatprep.subr.mxu0 0.0
        %3989 = vmatpush2.msra.mxu0 0.0
        %3990 = vmatprep.subr.mxu0 0.0
        %3991 = vmatpush2.msra.mxu0 0.0
        %3992 = vmatprep.subr.mxu0 0.0
        %3993 = vmatpush2.msra.mxu0 0.0
        %3994 = vmatprep.subr.mxu0 0.0
        %3995 = vmatpush2.msra.mxu0 0.0
        %3996 = vmatprep.subr.mxu0 0.0
        %3997 = vmatpush2.msra.mxu0 0.0
        %3998 = vmatprep.subr.mxu0 0.0
        %3999 = vmatpush2.msra.mxu0 0.0
        %4000 = vmatprep.subr.mxu0 0.0
        %4001 = vmatpush2.msra.mxu0 0.0
        %4002 = vmatprep.subr.mxu0 0.0
        %4003 = vmatpush2.msra.mxu0 0.0
        %4004 = vmatprep.subr.mxu0 0.0
        %4005 = vmatpush2.msra.mxu0 0.0
        %4006 = vmatprep.subr.mxu0 0.0
        %4007 = vmatpush2.msra.mxu0 0.0
        %4008 = vmatprep.subr.mxu0 0.0
        %4009 = vmatpush2.msra.mxu0 0.0
        %4010 = vmatprep.mubr.f32.mxu0 0.0
        %4011 = vmatmul.mubr.f32.gmra.mxu0 %v3867
        %v4012 = vpop.f32.mrf.mxu0
        %v4013 = vadd.f32 0.0, %v4012
        %v4014 = vpop.f32.mrf.mxu0
        %4015 = vdwg.mxu0
        %v4016 = vadd.f32 %v3777, %v3942
        %v4017 = vadd.f32 %v3779, %v3944
        %v4018 = vadd.f32 %v3848, %v4013
        %v4019 = vld [vmem:[#allocation3] sm:$0xff]
        %v4020 = vld [vmem:[#allocation3 + $0x8] sm:$0xf]
        %s4021 = scalar_lea.vmem %s404, 48
        %v4022 = vld [vmem:[%s4021] sm:$0xf]
        %v4025 = vcombine.high %v4019, %v4019
        %4026 = vrot.lane.b32.xlu0 %v4019, 110
        %v4027 = vpop.permute.xlu0 %4026
        %4028 = vrot.lane.b32.xlu0 %v4025, 110
        %v4029 = vpop.permute.xlu0 %4028
        %4030 = vrot.lane.b32.xlu0 %v4020, 110
        %v4031 = vpop.permute.xlu0 %4030
        %v4032 = vsel %vm2481, %v4027, %v4029
        %v4033 = vsel %vm2481, %v4029, %v4031
        %v4035 = vsel %vm1997, %v4022, 0
        %v4037 = vsel %vm2001, %v4032, 0
        %v4039 = vsel %vm2001, %v4033, 0
        %v4041 = vsel %vm2001, %v4031, 0
        %4043 = vmatprep.subr.mxu0 0.0
        %4044 = vmatpush1.msra.mxu0 0.0
        %4045 = vmatprep.subr.mxu0 0.0
        %4046 = vmatpush1.msra.mxu0 0.0
        %4047 = vmatprep.subr.mxu0 0.0
        %4048 = vmatpush1.msra.mxu0 0.0
        %4049 = vmatprep.subr.mxu0 0.0
        %4050 = vmatpush1.msra.mxu0 0.0
        %4051 = vmatprep.subr.mxu0 0.0
        %4052 = vmatpush1.msra.mxu0 0.0
        %4053 = vmatprep.subr.mxu0 0.0
        %4054 = vmatpush1.msra.mxu0 0.0
        %4055 = vmatprep.subr.mxu0 0.0
        %4056 = vmatpush1.msra.mxu0 0.0
        %4057 = vmatprep.subr.mxu0 0.0
        %4058 = vmatpush1.msra.mxu0 0.0
        %4059 = vmatprep.subr.mxu0 0.0
        %4060 = vmatpush1.msra.mxu0 0.0
        %4061 = vmatprep.subr.mxu0 0.0
        %4062 = vmatpush1.msra.mxu0 0.0
        %4063 = vmatprep.subr.mxu0 0.0
        %4064 = vmatpush1.msra.mxu0 0.0
        %4065 = vmatprep.subr.mxu0 0.0
        %4066 = vmatpush1.msra.mxu0 0.0
        %4067 = vmatprep.subr.mxu0 0.0
        %4068 = vmatpush1.msra.mxu0 0.0
        %4069 = vmatprep.subr.mxu0 0.0
        %4070 = vmatpush1.msra.mxu0 0.0
        %4071 = vmatprep.subr.mxu0 0.0
        %4072 = vmatpush1.msra.mxu0 0.0
        %4073 = vmatprep.subr.mxu0 %v4039
        %4074 = vmatpush1.msra.mxu0 %v4037
        %4075 = vmatprep.subr.mxu0 0.0
        %4076 = vmatpush2.msra.mxu0 0.0
        %4077 = vmatprep.subr.mxu0 0.0
        %4078 = vmatpush2.msra.mxu0 0.0
        %4079 = vmatprep.subr.mxu0 0.0
        %4080 = vmatpush2.msra.mxu0 0.0
        %4081 = vmatprep.subr.mxu0 0.0
        %4082 = vmatpush2.msra.mxu0 0.0
        %4083 = vmatprep.subr.mxu0 0.0
        %4084 = vmatpush2.msra.mxu0 0.0
        %4085 = vmatprep.subr.mxu0 0.0
        %4086 = vmatpush2.msra.mxu0 0.0
        %4087 = vmatprep.subr.mxu0 0.0
        %4088 = vmatpush2.msra.mxu0 0.0
        %4089 = vmatprep.subr.mxu0 0.0
        %4090 = vmatpush2.msra.mxu0 0.0
        %4091 = vmatprep.subr.mxu0 0.0
        %4092 = vmatpush2.msra.mxu0 0.0
        %4093 = vmatprep.subr.mxu0 0.0
        %4094 = vmatpush2.msra.mxu0 0.0
        %4095 = vmatprep.subr.mxu0 0.0
        %4096 = vmatpush2.msra.mxu0 0.0
        %4097 = vmatprep.subr.mxu0 0.0
        %4098 = vmatpush2.msra.mxu0 0.0
        %4099 = vmatprep.subr.mxu0 0.0
        %4100 = vmatpush2.msra.mxu0 0.0
        %4101 = vmatprep.subr.mxu0 0.0
        %4102 = vmatpush2.msra.mxu0 0.0
        %4103 = vmatprep.subr.mxu0 0.0
        %4104 = vmatpush2.msra.mxu0 0.0
        %4105 = vmatprep.subr.mxu0 0.0
        %4106 = vmatpush2.msra.mxu0 0.0
        %4107 = vmatprep.mubr.f32.mxu0 0.0
        %4108 = vmatmul.mubr.f32.gmra.mxu0 %v4035
        %v4109 = vpop.f32.mrf.mxu0
        %v4110 = vadd.f32 0.0, %v4109
        %v4111 = vpop.f32.mrf.mxu0
        %v4112 = vadd.f32 0.0, %v4111
        %4113 = vdwg.mxu0
        %4114 = vmatprep.subr.mxu0 0.0
        %4115 = vmatpush1.msra.mxu0 0.0
        %4116 = vmatprep.subr.mxu0 0.0
        %4117 = vmatpush1.msra.mxu0 0.0
        %4118 = vmatprep.subr.mxu0 0.0
        %4119 = vmatpush1.msra.mxu0 0.0
        %4120 = vmatprep.subr.mxu0 0.0
        %4121 = vmatpush1.msra.mxu0 0.0
        %4122 = vmatprep.subr.mxu0 0.0
        %4123 = vmatpush1.msra.mxu0 0.0
        %4124 = vmatprep.subr.mxu0 0.0
        %4125 = vmatpush1.msra.mxu0 0.0
        %4126 = vmatprep.subr.mxu0 0.0
        %4127 = vmatpush1.msra.mxu0 0.0
        %4128 = vmatprep.subr.mxu0 0.0
        %4129 = vmatpush1.msra.mxu0 0.0
        %4130 = vmatprep.subr.mxu0 0.0
        %4131 = vmatpush1.msra.mxu0 0.0
        %4132 = vmatprep.subr.mxu0 0.0
        %4133 = vmatpush1.msra.mxu0 0.0
        %4134 = vmatprep.subr.mxu0 0.0
        %4135 = vmatpush1.msra.mxu0 0.0
        %4136 = vmatprep.subr.mxu0 0.0
        %4137 = vmatpush1.msra.mxu0 0.0
        %4138 = vmatprep.subr.mxu0 0.0
        %4139 = vmatpush1.msra.mxu0 0.0
        %4140 = vmatprep.subr.mxu0 0.0
        %4141 = vmatpush1.msra.mxu0 0.0
        %4142 = vmatprep.subr.mxu0 0.0
        %4143 = vmatpush1.msra.mxu0 0.0
        %4144 = vmatprep.subr.mxu0 0.0
        %4145 = vmatpush1.msra.mxu0 %v4041
        %4146 = vmatprep.subr.mxu0 0.0
        %4147 = vmatpush2.msra.mxu0 0.0
        %4148 = vmatprep.subr.mxu0 0.0
        %4149 = vmatpush2.msra.mxu0 0.0
        %4150 = vmatprep.subr.mxu0 0.0
        %4151 = vmatpush2.msra.mxu0 0.0
        %4152 = vmatprep.subr.mxu0 0.0
        %4153 = vmatpush2.msra.mxu0 0.0
        %4154 = vmatprep.subr.mxu0 0.0
        %4155 = vmatpush2.msra.mxu0 0.0
        %4156 = vmatprep.subr.mxu0 0.0
        %4157 = vmatpush2.msra.mxu0 0.0
        %4158 = vmatprep.subr.mxu0 0.0
        %4159 = vmatpush2.msra.mxu0 0.0
        %4160 = vmatprep.subr.mxu0 0.0
        %4161 = vmatpush2.msra.mxu0 0.0
        %4162 = vmatprep.subr.mxu0 0.0
        %4163 = vmatpush2.msra.mxu0 0.0
        %4164 = vmatprep.subr.mxu0 0.0
        %4165 = vmatpush2.msra.mxu0 0.0
        %4166 = vmatprep.subr.mxu0 0.0
        %4167 = vmatpush2.msra.mxu0 0.0
        %4168 = vmatprep.subr.mxu0 0.0
        %4169 = vmatpush2.msra.mxu0 0.0
        %4170 = vmatprep.subr.mxu0 0.0
        %4171 = vmatpush2.msra.mxu0 0.0
        %4172 = vmatprep.subr.mxu0 0.0
        %4173 = vmatpush2.msra.mxu0 0.0
        %4174 = vmatprep.subr.mxu0 0.0
        %4175 = vmatpush2.msra.mxu0 0.0
        %4176 = vmatprep.subr.mxu0 0.0
        %4177 = vmatpush2.msra.mxu0 0.0
        %4178 = vmatprep.mubr.f32.mxu0 0.0
        %4179 = vmatmul.mubr.f32.gmra.mxu0 %v4035
        %v4180 = vpop.f32.mrf.mxu0
        %v4181 = vadd.f32 0.0, %v4180
        %v4182 = vpop.f32.mrf.mxu0
        %4183 = vdwg.mxu0
        %v4184 = vadd.f32 %v4016, %v4110
        %v4185 = vadd.f32 %v4017, %v4112
        %v4186 = vadd.f32 %v4018, %v4181
        %v4187 = vld [vmem:[#allocation3] sm:$0xff]
        %v4188 = vld [vmem:[#allocation3 + $0x8] sm:$0xf]
        %s4189 = scalar_lea.vmem %s404, 52
        %v4190 = vld [vmem:[%s4189] sm:$0xf]
        %v4193 = vcombine.high %v4187, %v4187
        %4194 = vrot.lane.b32.xlu0 %v4187, 109
        %v4195 = vpop.permute.xlu0 %4194
        %4196 = vrot.lane.b32.xlu0 %v4193, 109
        %v4197 = vpop.permute.xlu0 %4196
        %4198 = vrot.lane.b32.xlu0 %v4188, 109
        %v4199 = vpop.permute.xlu0 %4198
        %v4200 = vsel %vm2650, %v4195, %v4197
        %v4201 = vsel %vm2650, %v4197, %v4199
        %v4203 = vsel %vm1997, %v4190, 0
        %v4205 = vsel %vm2001, %v4200, 0
        %v4207 = vsel %vm2001, %v4201, 0
        %v4209 = vsel %vm2001, %v4199, 0
        %4211 = vmatprep.subr.mxu0 0.0
        %4212 = vmatpush1.msra.mxu0 0.0
        %4213 = vmatprep.subr.mxu0 0.0
        %4214 = vmatpush1.msra.mxu0 0.0
        %4215 = vmatprep.subr.mxu0 0.0
        %4216 = vmatpush1.msra.mxu0 0.0
        %4217 = vmatprep.subr.mxu0 0.0
        %4218 = vmatpush1.msra.mxu0 0.0
        %4219 = vmatprep.subr.mxu0 0.0
        %4220 = vmatpush1.msra.mxu0 0.0
        %4221 = vmatprep.subr.mxu0 0.0
        %4222 = vmatpush1.msra.mxu0 0.0
        %4223 = vmatprep.subr.mxu0 0.0
        %4224 = vmatpush1.msra.mxu0 0.0
        %4225 = vmatprep.subr.mxu0 0.0
        %4226 = vmatpush1.msra.mxu0 0.0
        %4227 = vmatprep.subr.mxu0 0.0
        %4228 = vmatpush1.msra.mxu0 0.0
        %4229 = vmatprep.subr.mxu0 0.0
        %4230 = vmatpush1.msra.mxu0 0.0
        %4231 = vmatprep.subr.mxu0 0.0
        %4232 = vmatpush1.msra.mxu0 0.0
        %4233 = vmatprep.subr.mxu0 0.0
        %4234 = vmatpush1.msra.mxu0 0.0
        %4235 = vmatprep.subr.mxu0 0.0
        %4236 = vmatpush1.msra.mxu0 0.0
        %4237 = vmatprep.subr.mxu0 0.0
        %4238 = vmatpush1.msra.mxu0 0.0
        %4239 = vmatprep.subr.mxu0 0.0
        %4240 = vmatpush1.msra.mxu0 0.0
        %4241 = vmatprep.subr.mxu0 %v4207
        %4242 = vmatpush1.msra.mxu0 %v4205
        %4243 = vmatprep.subr.mxu0 0.0
        %4244 = vmatpush2.msra.mxu0 0.0
        %4245 = vmatprep.subr.mxu0 0.0
        %4246 = vmatpush2.msra.mxu0 0.0
        %4247 = vmatprep.subr.mxu0 0.0
        %4248 = vmatpush2.msra.mxu0 0.0
        %4249 = vmatprep.subr.mxu0 0.0
        %4250 = vmatpush2.msra.mxu0 0.0
        %4251 = vmatprep.subr.mxu0 0.0
        %4252 = vmatpush2.msra.mxu0 0.0
        %4253 = vmatprep.subr.mxu0 0.0
        %4254 = vmatpush2.msra.mxu0 0.0
        %4255 = vmatprep.subr.mxu0 0.0
        %4256 = vmatpush2.msra.mxu0 0.0
        %4257 = vmatprep.subr.mxu0 0.0
        %4258 = vmatpush2.msra.mxu0 0.0
        %4259 = vmatprep.subr.mxu0 0.0
        %4260 = vmatpush2.msra.mxu0 0.0
        %4261 = vmatprep.subr.mxu0 0.0
        %4262 = vmatpush2.msra.mxu0 0.0
        %4263 = vmatprep.subr.mxu0 0.0
        %4264 = vmatpush2.msra.mxu0 0.0
        %4265 = vmatprep.subr.mxu0 0.0
        %4266 = vmatpush2.msra.mxu0 0.0
        %4267 = vmatprep.subr.mxu0 0.0
        %4268 = vmatpush2.msra.mxu0 0.0
        %4269 = vmatprep.subr.mxu0 0.0
        %4270 = vmatpush2.msra.mxu0 0.0
        %4271 = vmatprep.subr.mxu0 0.0
        %4272 = vmatpush2.msra.mxu0 0.0
        %4273 = vmatprep.subr.mxu0 0.0
        %4274 = vmatpush2.msra.mxu0 0.0
        %4275 = vmatprep.mubr.f32.mxu0 0.0
        %4276 = vmatmul.mubr.f32.gmra.mxu0 %v4203
        %v4277 = vpop.f32.mrf.mxu0
        %v4278 = vadd.f32 0.0, %v4277
        %v4279 = vpop.f32.mrf.mxu0
        %v4280 = vadd.f32 0.0, %v4279
        %4281 = vdwg.mxu0
        %4282 = vmatprep.subr.mxu0 0.0
        %4283 = vmatpush1.msra.mxu0 0.0
        %4284 = vmatprep.subr.mxu0 0.0
        %4285 = vmatpush1.msra.mxu0 0.0
        %4286 = vmatprep.subr.mxu0 0.0
        %4287 = vmatpush1.msra.mxu0 0.0
        %4288 = vmatprep.subr.mxu0 0.0
        %4289 = vmatpush1.msra.mxu0 0.0
        %4290 = vmatprep.subr.mxu0 0.0
        %4291 = vmatpush1.msra.mxu0 0.0
        %4292 = vmatprep.subr.mxu0 0.0
        %4293 = vmatpush1.msra.mxu0 0.0
        %4294 = vmatprep.subr.mxu0 0.0
        %4295 = vmatpush1.msra.mxu0 0.0
        %4296 = vmatprep.subr.mxu0 0.0
        %4297 = vmatpush1.msra.mxu0 0.0
        %4298 = vmatprep.subr.mxu0 0.0
        %4299 = vmatpush1.msra.mxu0 0.0
        %4300 = vmatprep.subr.mxu0 0.0
        %4301 = vmatpush1.msra.mxu0 0.0
        %4302 = vmatprep.subr.mxu0 0.0
        %4303 = vmatpush1.msra.mxu0 0.0
        %4304 = vmatprep.subr.mxu0 0.0
        %4305 = vmatpush1.msra.mxu0 0.0
        %4306 = vmatprep.subr.mxu0 0.0
        %4307 = vmatpush1.msra.mxu0 0.0
        %4308 = vmatprep.subr.mxu0 0.0
        %4309 = vmatpush1.msra.mxu0 0.0
        %4310 = vmatprep.subr.mxu0 0.0
        %4311 = vmatpush1.msra.mxu0 0.0
        %4312 = vmatprep.subr.mxu0 0.0
        %4313 = vmatpush1.msra.mxu0 %v4209
        %4314 = vmatprep.subr.mxu0 0.0
        %4315 = vmatpush2.msra.mxu0 0.0
        %4316 = vmatprep.subr.mxu0 0.0
        %4317 = vmatpush2.msra.mxu0 0.0
        %4318 = vmatprep.subr.mxu0 0.0
        %4319 = vmatpush2.msra.mxu0 0.0
        %4320 = vmatprep.subr.mxu0 0.0
        %4321 = vmatpush2.msra.mxu0 0.0
        %4322 = vmatprep.subr.mxu0 0.0
        %4323 = vmatpush2.msra.mxu0 0.0
        %4324 = vmatprep.subr.mxu0 0.0
        %4325 = vmatpush2.msra.mxu0 0.0
        %4326 = vmatprep.subr.mxu0 0.0
        %4327 = vmatpush2.msra.mxu0 0.0
        %4328 = vmatprep.subr.mxu0 0.0
        %4329 = vmatpush2.msra.mxu0 0.0
        %4330 = vmatprep.subr.mxu0 0.0
        %4331 = vmatpush2.msra.mxu0 0.0
        %4332 = vmatprep.subr.mxu0 0.0
        %4333 = vmatpush2.msra.mxu0 0.0
        %4334 = vmatprep.subr.mxu0 0.0
        %4335 = vmatpush2.msra.mxu0 0.0
        %4336 = vmatprep.subr.mxu0 0.0
        %4337 = vmatpush2.msra.mxu0 0.0
        %4338 = vmatprep.subr.mxu0 0.0
        %4339 = vmatpush2.msra.mxu0 0.0
        %4340 = vmatprep.subr.mxu0 0.0
        %4341 = vmatpush2.msra.mxu0 0.0
        %4342 = vmatprep.subr.mxu0 0.0
        %4343 = vmatpush2.msra.mxu0 0.0
        %4344 = vmatprep.subr.mxu0 0.0
        %4345 = vmatpush2.msra.mxu0 0.0
        %4346 = vmatprep.mubr.f32.mxu0 0.0
        %4347 = vmatmul.mubr.f32.gmra.mxu0 %v4203
        %v4348 = vpop.f32.mrf.mxu0
        %v4349 = vadd.f32 0.0, %v4348
        %v4350 = vpop.f32.mrf.mxu0
        %4351 = vdwg.mxu0
        %v4352 = vadd.f32 %v4184, %v4278
        %v4353 = vadd.f32 %v4185, %v4280
        %v4354 = vadd.f32 %v4186, %v4349
        %v4355 = vld [vmem:[#allocation3] sm:$0xff]
        %v4356 = vld [vmem:[#allocation3 + $0x8] sm:$0xf]
        %s4357 = scalar_lea.vmem %s404, 56
        %v4358 = vld [vmem:[%s4357] sm:$0xf]
        %v4361 = vcombine.high %v4355, %v4355
        %4362 = vrot.lane.b32.xlu0 %v4355, 108
        %v4363 = vpop.permute.xlu0 %4362
        %4364 = vrot.lane.b32.xlu0 %v4361, 108
        %v4365 = vpop.permute.xlu0 %4364
        %4366 = vrot.lane.b32.xlu0 %v4356, 108
        %v4367 = vpop.permute.xlu0 %4366
        %v4368 = vsel %vm2819, %v4363, %v4365
        %v4369 = vsel %vm2819, %v4365, %v4367
        %v4371 = vsel %vm1997, %v4358, 0
        %v4373 = vsel %vm2001, %v4368, 0
        %v4375 = vsel %vm2001, %v4369, 0
        %v4377 = vsel %vm2001, %v4367, 0
        %4379 = vmatprep.subr.mxu0 0.0
        %4380 = vmatpush1.msra.mxu0 0.0
        %4381 = vmatprep.subr.mxu0 0.0
        %4382 = vmatpush1.msra.mxu0 0.0
        %4383 = vmatprep.subr.mxu0 0.0
        %4384 = vmatpush1.msra.mxu0 0.0
        %4385 = vmatprep.subr.mxu0 0.0
        %4386 = vmatpush1.msra.mxu0 0.0
        %4387 = vmatprep.subr.mxu0 0.0
        %4388 = vmatpush1.msra.mxu0 0.0
        %4389 = vmatprep.subr.mxu0 0.0
        %4390 = vmatpush1.msra.mxu0 0.0
        %4391 = vmatprep.subr.mxu0 0.0
        %4392 = vmatpush1.msra.mxu0 0.0
        %4393 = vmatprep.subr.mxu0 0.0
        %4394 = vmatpush1.msra.mxu0 0.0
        %4395 = vmatprep.subr.mxu0 0.0
        %4396 = vmatpush1.msra.mxu0 0.0
        %4397 = vmatprep.subr.mxu0 0.0
        %4398 = vmatpush1.msra.mxu0 0.0
        %4399 = vmatprep.subr.mxu0 0.0
        %4400 = vmatpush1.msra.mxu0 0.0
        %4401 = vmatprep.subr.mxu0 0.0
        %4402 = vmatpush1.msra.mxu0 0.0
        %4403 = vmatprep.subr.mxu0 0.0
        %4404 = vmatpush1.msra.mxu0 0.0
        %4405 = vmatprep.subr.mxu0 0.0
        %4406 = vmatpush1.msra.mxu0 0.0
        %4407 = vmatprep.subr.mxu0 0.0
        %4408 = vmatpush1.msra.mxu0 0.0
        %4409 = vmatprep.subr.mxu0 %v4375
        %4410 = vmatpush1.msra.mxu0 %v4373
        %4411 = vmatprep.subr.mxu0 0.0
        %4412 = vmatpush2.msra.mxu0 0.0
        %4413 = vmatprep.subr.mxu0 0.0
        %4414 = vmatpush2.msra.mxu0 0.0
        %4415 = vmatprep.subr.mxu0 0.0
        %4416 = vmatpush2.msra.mxu0 0.0
        %4417 = vmatprep.subr.mxu0 0.0
        %4418 = vmatpush2.msra.mxu0 0.0
        %4419 = vmatprep.subr.mxu0 0.0
        %4420 = vmatpush2.msra.mxu0 0.0
        %4421 = vmatprep.subr.mxu0 0.0
        %4422 = vmatpush2.msra.mxu0 0.0
        %4423 = vmatprep.subr.mxu0 0.0
        %4424 = vmatpush2.msra.mxu0 0.0
        %4425 = vmatprep.subr.mxu0 0.0
        %4426 = vmatpush2.msra.mxu0 0.0
        %4427 = vmatprep.subr.mxu0 0.0
        %4428 = vmatpush2.msra.mxu0 0.0
        %4429 = vmatprep.subr.mxu0 0.0
        %4430 = vmatpush2.msra.mxu0 0.0
        %4431 = vmatprep.subr.mxu0 0.0
        %4432 = vmatpush2.msra.mxu0 0.0
        %4433 = vmatprep.subr.mxu0 0.0
        %4434 = vmatpush2.msra.mxu0 0.0
        %4435 = vmatprep.subr.mxu0 0.0
        %4436 = vmatpush2.msra.mxu0 0.0
        %4437 = vmatprep.subr.mxu0 0.0
        %4438 = vmatpush2.msra.mxu0 0.0
        %4439 = vmatprep.subr.mxu0 0.0
        %4440 = vmatpush2.msra.mxu0 0.0
        %4441 = vmatprep.subr.mxu0 0.0
        %4442 = vmatpush2.msra.mxu0 0.0
        %4443 = vmatprep.mubr.f32.mxu0 0.0
        %4444 = vmatmul.mubr.f32.gmra.mxu0 %v4371
        %v4445 = vpop.f32.mrf.mxu0
        %v4446 = vadd.f32 0.0, %v4445
        %v4447 = vpop.f32.mrf.mxu0
        %v4448 = vadd.f32 0.0, %v4447
        %4449 = vdwg.mxu0
        %4450 = vmatprep.subr.mxu0 0.0
        %4451 = vmatpush1.msra.mxu0 0.0
        %4452 = vmatprep.subr.mxu0 0.0
        %4453 = vmatpush1.msra.mxu0 0.0
        %4454 = vmatprep.subr.mxu0 0.0
        %4455 = vmatpush1.msra.mxu0 0.0
        %4456 = vmatprep.subr.mxu0 0.0
        %4457 = vmatpush1.msra.mxu0 0.0
        %4458 = vmatprep.subr.mxu0 0.0
        %4459 = vmatpush1.msra.mxu0 0.0
        %4460 = vmatprep.subr.mxu0 0.0
        %4461 = vmatpush1.msra.mxu0 0.0
        %4462 = vmatprep.subr.mxu0 0.0
        %4463 = vmatpush1.msra.mxu0 0.0
        %4464 = vmatprep.subr.mxu0 0.0
        %4465 = vmatpush1.msra.mxu0 0.0
        %4466 = vmatprep.subr.mxu0 0.0
        %4467 = vmatpush1.msra.mxu0 0.0
        %4468 = vmatprep.subr.mxu0 0.0
        %4469 = vmatpush1.msra.mxu0 0.0
        %4470 = vmatprep.subr.mxu0 0.0
        %4471 = vmatpush1.msra.mxu0 0.0
        %4472 = vmatprep.subr.mxu0 0.0
        %4473 = vmatpush1.msra.mxu0 0.0
        %4474 = vmatprep.subr.mxu0 0.0
        %4475 = vmatpush1.msra.mxu0 0.0
        %4476 = vmatprep.subr.mxu0 0.0
        %4477 = vmatpush1.msra.mxu0 0.0
        %4478 = vmatprep.subr.mxu0 0.0
        %4479 = vmatpush1.msra.mxu0 0.0
        %4480 = vmatprep.subr.mxu0 0.0
        %4481 = vmatpush1.msra.mxu0 %v4377
        %4482 = vmatprep.subr.mxu0 0.0
        %4483 = vmatpush2.msra.mxu0 0.0
        %4484 = vmatprep.subr.mxu0 0.0
        %4485 = vmatpush2.msra.mxu0 0.0
        %4486 = vmatprep.subr.mxu0 0.0
        %4487 = vmatpush2.msra.mxu0 0.0
        %4488 = vmatprep.subr.mxu0 0.0
        %4489 = vmatpush2.msra.mxu0 0.0
        %4490 = vmatprep.subr.mxu0 0.0
        %4491 = vmatpush2.msra.mxu0 0.0
        %4492 = vmatprep.subr.mxu0 0.0
        %4493 = vmatpush2.msra.mxu0 0.0
        %4494 = vmatprep.subr.mxu0 0.0
        %4495 = vmatpush2.msra.mxu0 0.0
        %4496 = vmatprep.subr.mxu0 0.0
        %4497 = vmatpush2.msra.mxu0 0.0
        %4498 = vmatprep.subr.mxu0 0.0
        %4499 = vmatpush2.msra.mxu0 0.0
        %4500 = vmatprep.subr.mxu0 0.0
        %4501 = vmatpush2.msra.mxu0 0.0
        %4502 = vmatprep.subr.mxu0 0.0
        %4503 = vmatpush2.msra.mxu0 0.0
        %4504 = vmatprep.subr.mxu0 0.0
        %4505 = vmatpush2.msra.mxu0 0.0
        %4506 = vmatprep.subr.mxu0 0.0
        %4507 = vmatpush2.msra.mxu0 0.0
        %4508 = vmatprep.subr.mxu0 0.0
        %4509 = vmatpush2.msra.mxu0 0.0
        %4510 = vmatprep.subr.mxu0 0.0
        %4511 = vmatpush2.msra.mxu0 0.0
        %4512 = vmatprep.subr.mxu0 0.0
        %4513 = vmatpush2.msra.mxu0 0.0
        %4514 = vmatprep.mubr.f32.mxu0 0.0
        %4515 = vmatmul.mubr.f32.gmra.mxu0 %v4371
        %v4516 = vpop.f32.mrf.mxu0
        %v4517 = vadd.f32 0.0, %v4516
        %v4518 = vpop.f32.mrf.mxu0
        %4519 = vdwg.mxu0
        %v4520 = vadd.f32 %v4352, %v4446
        %v4521 = vadd.f32 %v4353, %v4448
        %v4522 = vadd.f32 %v4354, %v4517
        %v4523 = vld [vmem:[#allocation3] sm:$0xff]
        %v4524 = vld [vmem:[#allocation3 + $0x8] sm:$0xf]
        %s4525 = scalar_lea.vmem %s404, 60
        %v4526 = vld [vmem:[%s4525] sm:$0xf]
        %v4529 = vcombine.high %v4523, %v4523
        %4530 = vrot.lane.b32.xlu0 %v4523, 92
        %v4531 = vpop.permute.xlu0 %4530
        %4532 = vrot.lane.b32.xlu0 %v4529, 92
        %v4533 = vpop.permute.xlu0 %4532
        %4534 = vrot.lane.b32.xlu0 %v4524, 92
        %v4535 = vpop.permute.xlu0 %4534
        %v4536 = vsel %vm2988, %v4531, %v4533
        %v4537 = vsel %vm2988, %v4533, %v4535
        %v4539 = vsel %vm1997, %v4526, 0
        %v4541 = vsel %vm2001, %v4536, 0
        %v4543 = vsel %vm2001, %v4537, 0
        %v4545 = vsel %vm2001, %v4535, 0
        %4547 = vmatprep.subr.mxu0 0.0
        %4548 = vmatpush1.msra.mxu0 0.0
        %4549 = vmatprep.subr.mxu0 0.0
        %4550 = vmatpush1.msra.mxu0 0.0
        %4551 = vmatprep.subr.mxu0 0.0
        %4552 = vmatpush1.msra.mxu0 0.0
        %4553 = vmatprep.subr.mxu0 0.0
        %4554 = vmatpush1.msra.mxu0 0.0
        %4555 = vmatprep.subr.mxu0 0.0
        %4556 = vmatpush1.msra.mxu0 0.0
        %4557 = vmatprep.subr.mxu0 0.0
        %4558 = vmatpush1.msra.mxu0 0.0
        %4559 = vmatprep.subr.mxu0 0.0
        %4560 = vmatpush1.msra.mxu0 0.0
        %4561 = vmatprep.subr.mxu0 0.0
        %4562 = vmatpush1.msra.mxu0 0.0
        %4563 = vmatprep.subr.mxu0 0.0
        %4564 = vmatpush1.msra.mxu0 0.0
        %4565 = vmatprep.subr.mxu0 0.0
        %4566 = vmatpush1.msra.mxu0 0.0
        %4567 = vmatprep.subr.mxu0 0.0
        %4568 = vmatpush1.msra.mxu0 0.0
        %4569 = vmatprep.subr.mxu0 0.0
        %4570 = vmatpush1.msra.mxu0 0.0
        %4571 = vmatprep.subr.mxu0 0.0
        %4572 = vmatpush1.msra.mxu0 0.0
        %4573 = vmatprep.subr.mxu0 0.0
        %4574 = vmatpush1.msra.mxu0 0.0
        %4575 = vmatprep.subr.mxu0 0.0
        %4576 = vmatpush1.msra.mxu0 0.0
        %4577 = vmatprep.subr.mxu0 %v4543
        %4578 = vmatpush1.msra.mxu0 %v4541
        %4579 = vmatprep.subr.mxu0 0.0
        %4580 = vmatpush2.msra.mxu0 0.0
        %4581 = vmatprep.subr.mxu0 0.0
        %4582 = vmatpush2.msra.mxu0 0.0
        %4583 = vmatprep.subr.mxu0 0.0
        %4584 = vmatpush2.msra.mxu0 0.0
        %4585 = vmatprep.subr.mxu0 0.0
        %4586 = vmatpush2.msra.mxu0 0.0
        %4587 = vmatprep.subr.mxu0 0.0
        %4588 = vmatpush2.msra.mxu0 0.0
        %4589 = vmatprep.subr.mxu0 0.0
        %4590 = vmatpush2.msra.mxu0 0.0
        %4591 = vmatprep.subr.mxu0 0.0
        %4592 = vmatpush2.msra.mxu0 0.0
        %4593 = vmatprep.subr.mxu0 0.0
        %4594 = vmatpush2.msra.mxu0 0.0
        %4595 = vmatprep.subr.mxu0 0.0
        %4596 = vmatpush2.msra.mxu0 0.0
        %4597 = vmatprep.subr.mxu0 0.0
        %4598 = vmatpush2.msra.mxu0 0.0
        %4599 = vmatprep.subr.mxu0 0.0
        %4600 = vmatpush2.msra.mxu0 0.0
        %4601 = vmatprep.subr.mxu0 0.0
        %4602 = vmatpush2.msra.mxu0 0.0
        %4603 = vmatprep.subr.mxu0 0.0
        %4604 = vmatpush2.msra.mxu0 0.0
        %4605 = vmatprep.subr.mxu0 0.0
        %4606 = vmatpush2.msra.mxu0 0.0
        %4607 = vmatprep.subr.mxu0 0.0
        %4608 = vmatpush2.msra.mxu0 0.0
        %4609 = vmatprep.subr.mxu0 0.0
        %4610 = vmatpush2.msra.mxu0 0.0
        %4611 = vmatprep.mubr.f32.mxu0 0.0
        %4612 = vmatmul.mubr.f32.gmra.mxu0 %v4539
        %v4613 = vpop.f32.mrf.mxu0
        %v4614 = vadd.f32 0.0, %v4613
        %v4615 = vpop.f32.mrf.mxu0
        %v4616 = vadd.f32 0.0, %v4615
        %4617 = vdwg.mxu0
        %4618 = vmatprep.subr.mxu0 0.0
        %4619 = vmatpush1.msra.mxu0 0.0
        %4620 = vmatprep.subr.mxu0 0.0
        %4621 = vmatpush1.msra.mxu0 0.0
        %4622 = vmatprep.subr.mxu0 0.0
        %4623 = vmatpush1.msra.mxu0 0.0
        %4624 = vmatprep.subr.mxu0 0.0
        %4625 = vmatpush1.msra.mxu0 0.0
        %4626 = vmatprep.subr.mxu0 0.0
        %4627 = vmatpush1.msra.mxu0 0.0
        %4628 = vmatprep.subr.mxu0 0.0
        %4629 = vmatpush1.msra.mxu0 0.0
        %4630 = vmatprep.subr.mxu0 0.0
        %4631 = vmatpush1.msra.mxu0 0.0
        %4632 = vmatprep.subr.mxu0 0.0
        %4633 = vmatpush1.msra.mxu0 0.0
        %4634 = vmatprep.subr.mxu0 0.0
        %4635 = vmatpush1.msra.mxu0 0.0
        %4636 = vmatprep.subr.mxu0 0.0
        %4637 = vmatpush1.msra.mxu0 0.0
        %4638 = vmatprep.subr.mxu0 0.0
        %4639 = vmatpush1.msra.mxu0 0.0
        %4640 = vmatprep.subr.mxu0 0.0
        %4641 = vmatpush1.msra.mxu0 0.0
        %4642 = vmatprep.subr.mxu0 0.0
        %4643 = vmatpush1.msra.mxu0 0.0
        %4644 = vmatprep.subr.mxu0 0.0
        %4645 = vmatpush1.msra.mxu0 0.0
        %4646 = vmatprep.subr.mxu0 0.0
        %4647 = vmatpush1.msra.mxu0 0.0
        %4648 = vmatprep.subr.mxu0 0.0
        %4649 = vmatpush1.msra.mxu0 %v4545
        %4650 = vmatprep.subr.mxu0 0.0
        %4651 = vmatpush2.msra.mxu0 0.0
        %4652 = vmatprep.subr.mxu0 0.0
        %4653 = vmatpush2.msra.mxu0 0.0
        %4654 = vmatprep.subr.mxu0 0.0
        %4655 = vmatpush2.msra.mxu0 0.0
        %4656 = vmatprep.subr.mxu0 0.0
        %4657 = vmatpush2.msra.mxu0 0.0
        %4658 = vmatprep.subr.mxu0 0.0
        %4659 = vmatpush2.msra.mxu0 0.0
        %4660 = vmatprep.subr.mxu0 0.0
        %4661 = vmatpush2.msra.mxu0 0.0
        %4662 = vmatprep.subr.mxu0 0.0
        %4663 = vmatpush2.msra.mxu0 0.0
        %4664 = vmatprep.subr.mxu0 0.0
        %4665 = vmatpush2.msra.mxu0 0.0
        %4666 = vmatprep.subr.mxu0 0.0
        %4667 = vmatpush2.msra.mxu0 0.0
        %4668 = vmatprep.subr.mxu0 0.0
        %4669 = vmatpush2.msra.mxu0 0.0
        %4670 = vmatprep.subr.mxu0 0.0
        %4671 = vmatpush2.msra.mxu0 0.0
        %4672 = vmatprep.subr.mxu0 0.0
        %4673 = vmatpush2.msra.mxu0 0.0
        %4674 = vmatprep.subr.mxu0 0.0
        %4675 = vmatpush2.msra.mxu0 0.0
        %4676 = vmatprep.subr.mxu0 0.0
        %4677 = vmatpush2.msra.mxu0 0.0
        %4678 = vmatprep.subr.mxu0 0.0
        %4679 = vmatpush2.msra.mxu0 0.0
        %4680 = vmatprep.subr.mxu0 0.0
        %4681 = vmatpush2.msra.mxu0 0.0
        %4682 = vmatprep.mubr.f32.mxu0 0.0
        %4683 = vmatmul.mubr.f32.gmra.mxu0 %v4539
        %v4684 = vpop.f32.mrf.mxu0
        %v4685 = vadd.f32 0.0, %v4684
        %v4686 = vpop.f32.mrf.mxu0
        %4687 = vdwg.mxu0
        %v4688 = vadd.f32 %v4520, %v4614
        %v4689 = vadd.f32 %v4521, %v4616
        %v4690 = vadd.f32 %v4522, %v4685
        %v4691 = vld [vmem:[#allocation3] sm:$0xff]
        %v4692 = vld [vmem:[#allocation3 + $0x8] sm:$0xf]
        %s4693 = scalar_lea.vmem %s404, 64
        %v4694 = vld [vmem:[%s4693] sm:$0xf]
        %v4697 = vcombine.high %v4691, %v4691
        %4698 = vrot.lane.b32.xlu0 %v4691, 91
        %v4699 = vpop.permute.xlu0 %4698
        %4700 = vrot.lane.b32.xlu0 %v4697, 91
        %v4701 = vpop.permute.xlu0 %4700
        %4702 = vrot.lane.b32.xlu0 %v4692, 91
        %v4703 = vpop.permute.xlu0 %4702
        %v4704 = vsel %vm3157, %v4699, %v4701
        %v4705 = vsel %vm3157, %v4701, %v4703
        %v4707 = vsel %vm1997, %v4694, 0
        %v4709 = vsel %vm2001, %v4704, 0
        %v4711 = vsel %vm2001, %v4705, 0
        %v4713 = vsel %vm2001, %v4703, 0
        %4715 = vmatprep.subr.mxu0 0.0
        %4716 = vmatpush1.msra.mxu0 0.0
        %4717 = vmatprep.subr.mxu0 0.0
        %4718 = vmatpush1.msra.mxu0 0.0
        %4719 = vmatprep.subr.mxu0 0.0
        %4720 = vmatpush1.msra.mxu0 0.0
        %4721 = vmatprep.subr.mxu0 0.0
        %4722 = vmatpush1.msra.mxu0 0.0
        %4723 = vmatprep.subr.mxu0 0.0
        %4724 = vmatpush1.msra.mxu0 0.0
        %4725 = vmatprep.subr.mxu0 0.0
        %4726 = vmatpush1.msra.mxu0 0.0
        %4727 = vmatprep.subr.mxu0 0.0
        %4728 = vmatpush1.msra.mxu0 0.0
        %4729 = vmatprep.subr.mxu0 0.0
        %4730 = vmatpush1.msra.mxu0 0.0
        %4731 = vmatprep.subr.mxu0 0.0
        %4732 = vmatpush1.msra.mxu0 0.0
        %4733 = vmatprep.subr.mxu0 0.0
        %4734 = vmatpush1.msra.mxu0 0.0
        %4735 = vmatprep.subr.mxu0 0.0
        %4736 = vmatpush1.msra.mxu0 0.0
        %4737 = vmatprep.subr.mxu0 0.0
        %4738 = vmatpush1.msra.mxu0 0.0
        %4739 = vmatprep.subr.mxu0 0.0
        %4740 = vmatpush1.msra.mxu0 0.0
        %4741 = vmatprep.subr.mxu0 0.0
        %4742 = vmatpush1.msra.mxu0 0.0
        %4743 = vmatprep.subr.mxu0 0.0
        %4744 = vmatpush1.msra.mxu0 0.0
        %4745 = vmatprep.subr.mxu0 %v4711
        %4746 = vmatpush1.msra.mxu0 %v4709
        %4747 = vmatprep.subr.mxu0 0.0
        %4748 = vmatpush2.msra.mxu0 0.0
        %4749 = vmatprep.subr.mxu0 0.0
        %4750 = vmatpush2.msra.mxu0 0.0
        %4751 = vmatprep.subr.mxu0 0.0
        %4752 = vmatpush2.msra.mxu0 0.0
        %4753 = vmatprep.subr.mxu0 0.0
        %4754 = vmatpush2.msra.mxu0 0.0
        %4755 = vmatprep.subr.mxu0 0.0
        %4756 = vmatpush2.msra.mxu0 0.0
        %4757 = vmatprep.subr.mxu0 0.0
        %4758 = vmatpush2.msra.mxu0 0.0
        %4759 = vmatprep.subr.mxu0 0.0
        %4760 = vmatpush2.msra.mxu0 0.0
        %4761 = vmatprep.subr.mxu0 0.0
        %4762 = vmatpush2.msra.mxu0 0.0
        %4763 = vmatprep.subr.mxu0 0.0
        %4764 = vmatpush2.msra.mxu0 0.0
        %4765 = vmatprep.subr.mxu0 0.0
        %4766 = vmatpush2.msra.mxu0 0.0
        %4767 = vmatprep.subr.mxu0 0.0
        %4768 = vmatpush2.msra.mxu0 0.0
        %4769 = vmatprep.subr.mxu0 0.0
        %4770 = vmatpush2.msra.mxu0 0.0
        %4771 = vmatprep.subr.mxu0 0.0
        %4772 = vmatpush2.msra.mxu0 0.0
        %4773 = vmatprep.subr.mxu0 0.0
        %4774 = vmatpush2.msra.mxu0 0.0
        %4775 = vmatprep.subr.mxu0 0.0
        %4776 = vmatpush2.msra.mxu0 0.0
        %4777 = vmatprep.subr.mxu0 0.0
        %4778 = vmatpush2.msra.mxu0 0.0
        %4779 = vmatprep.mubr.f32.mxu0 0.0
        %4780 = vmatmul.mubr.f32.gmra.mxu0 %v4707
        %v4781 = vpop.f32.mrf.mxu0
        %v4782 = vadd.f32 0.0, %v4781
        %v4783 = vpop.f32.mrf.mxu0
        %v4784 = vadd.f32 0.0, %v4783
        %4785 = vdwg.mxu0
        %4786 = vmatprep.subr.mxu0 0.0
        %4787 = vmatpush1.msra.mxu0 0.0
        %4788 = vmatprep.subr.mxu0 0.0
        %4789 = vmatpush1.msra.mxu0 0.0
        %4790 = vmatprep.subr.mxu0 0.0
        %4791 = vmatpush1.msra.mxu0 0.0
        %4792 = vmatprep.subr.mxu0 0.0
        %4793 = vmatpush1.msra.mxu0 0.0
        %4794 = vmatprep.subr.mxu0 0.0
        %4795 = vmatpush1.msra.mxu0 0.0
        %4796 = vmatprep.subr.mxu0 0.0
        %4797 = vmatpush1.msra.mxu0 0.0
        %4798 = vmatprep.subr.mxu0 0.0
        %4799 = vmatpush1.msra.mxu0 0.0
        %4800 = vmatprep.subr.mxu0 0.0
        %4801 = vmatpush1.msra.mxu0 0.0
        %4802 = vmatprep.subr.mxu0 0.0
        %4803 = vmatpush1.msra.mxu0 0.0
        %4804 = vmatprep.subr.mxu0 0.0
        %4805 = vmatpush1.msra.mxu0 0.0
        %4806 = vmatprep.subr.mxu0 0.0
        %4807 = vmatpush1.msra.mxu0 0.0
        %4808 = vmatprep.subr.mxu0 0.0
        %4809 = vmatpush1.msra.mxu0 0.0
        %4810 = vmatprep.subr.mxu0 0.0
        %4811 = vmatpush1.msra.mxu0 0.0
        %4812 = vmatprep.subr.mxu0 0.0
        %4813 = vmatpush1.msra.mxu0 0.0
        %4814 = vmatprep.subr.mxu0 0.0
        %4815 = vmatpush1.msra.mxu0 0.0
        %4816 = vmatprep.subr.mxu0 0.0
        %4817 = vmatpush1.msra.mxu0 %v4713
        %4818 = vmatprep.subr.mxu0 0.0
        %4819 = vmatpush2.msra.mxu0 0.0
        %4820 = vmatprep.subr.mxu0 0.0
        %4821 = vmatpush2.msra.mxu0 0.0
        %4822 = vmatprep.subr.mxu0 0.0
        %4823 = vmatpush2.msra.mxu0 0.0
        %4824 = vmatprep.subr.mxu0 0.0
        %4825 = vmatpush2.msra.mxu0 0.0
        %4826 = vmatprep.subr.mxu0 0.0
        %4827 = vmatpush2.msra.mxu0 0.0
        %4828 = vmatprep.subr.mxu0 0.0
        %4829 = vmatpush2.msra.mxu0 0.0
        %4830 = vmatprep.subr.mxu0 0.0
        %4831 = vmatpush2.msra.mxu0 0.0
        %4832 = vmatprep.subr.mxu0 0.0
        %4833 = vmatpush2.msra.mxu0 0.0
        %4834 = vmatprep.subr.mxu0 0.0
        %4835 = vmatpush2.msra.mxu0 0.0
        %4836 = vmatprep.subr.mxu0 0.0
        %4837 = vmatpush2.msra.mxu0 0.0
        %4838 = vmatprep.subr.mxu0 0.0
        %4839 = vmatpush2.msra.mxu0 0.0
        %4840 = vmatprep.subr.mxu0 0.0
        %4841 = vmatpush2.msra.mxu0 0.0
        %4842 = vmatprep.subr.mxu0 0.0
        %4843 = vmatpush2.msra.mxu0 0.0
        %4844 = vmatprep.subr.mxu0 0.0
        %4845 = vmatpush2.msra.mxu0 0.0
        %4846 = vmatprep.subr.mxu0 0.0
        %4847 = vmatpush2.msra.mxu0 0.0
        %4848 = vmatprep.subr.mxu0 0.0
        %4849 = vmatpush2.msra.mxu0 0.0
        %4850 = vmatprep.mubr.f32.mxu0 0.0
        %4851 = vmatmul.mubr.f32.gmra.mxu0 %v4707
        %v4852 = vpop.f32.mrf.mxu0
        %v4853 = vadd.f32 0.0, %v4852
        %v4854 = vpop.f32.mrf.mxu0
        %4855 = vdwg.mxu0
        %v4856 = vadd.f32 %v4688, %v4782
        %v4857 = vadd.f32 %v4689, %v4784
        %v4858 = vadd.f32 %v4690, %v4853
        %v4859 = vld [vmem:[#allocation3] sm:$0xff]
        %v4860 = vld [vmem:[#allocation3 + $0x8] sm:$0xf]
        %s4861 = scalar_lea.vmem %s404, 68
        %v4862 = vld [vmem:[%s4861] sm:$0xf]
        %v4865 = vcombine.high %v4859, %v4859
        %4866 = vrot.lane.b32.xlu0 %v4859, 90
        %v4867 = vpop.permute.xlu0 %4866
        %4868 = vrot.lane.b32.xlu0 %v4865, 90
        %v4869 = vpop.permute.xlu0 %4868
        %4870 = vrot.lane.b32.xlu0 %v4860, 90
        %v4871 = vpop.permute.xlu0 %4870
        %v4872 = vsel %vm3326, %v4867, %v4869
        %v4873 = vsel %vm3326, %v4869, %v4871
        %v4875 = vsel %vm1997, %v4862, 0
        %v4877 = vsel %vm2001, %v4872, 0
        %v4879 = vsel %vm2001, %v4873, 0
        %v4881 = vsel %vm2001, %v4871, 0
        %4883 = vmatprep.subr.mxu0 0.0
        %4884 = vmatpush1.msra.mxu0 0.0
        %4885 = vmatprep.subr.mxu0 0.0
        %4886 = vmatpush1.msra.mxu0 0.0
        %4887 = vmatprep.subr.mxu0 0.0
        %4888 = vmatpush1.msra.mxu0 0.0
        %4889 = vmatprep.subr.mxu0 0.0
        %4890 = vmatpush1.msra.mxu0 0.0
        %4891 = vmatprep.subr.mxu0 0.0
        %4892 = vmatpush1.msra.mxu0 0.0
        %4893 = vmatprep.subr.mxu0 0.0
        %4894 = vmatpush1.msra.mxu0 0.0
        %4895 = vmatprep.subr.mxu0 0.0
        %4896 = vmatpush1.msra.mxu0 0.0
        %4897 = vmatprep.subr.mxu0 0.0
        %4898 = vmatpush1.msra.mxu0 0.0
        %4899 = vmatprep.subr.mxu0 0.0
        %4900 = vmatpush1.msra.mxu0 0.0
        %4901 = vmatprep.subr.mxu0 0.0
        %4902 = vmatpush1.msra.mxu0 0.0
        %4903 = vmatprep.subr.mxu0 0.0
        %4904 = vmatpush1.msra.mxu0 0.0
        %4905 = vmatprep.subr.mxu0 0.0
        %4906 = vmatpush1.msra.mxu0 0.0
        %4907 = vmatprep.subr.mxu0 0.0
        %4908 = vmatpush1.msra.mxu0 0.0
        %4909 = vmatprep.subr.mxu0 0.0
        %4910 = vmatpush1.msra.mxu0 0.0
        %4911 = vmatprep.subr.mxu0 0.0
        %4912 = vmatpush1.msra.mxu0 0.0
        %4913 = vmatprep.subr.mxu0 %v4879
        %4914 = vmatpush1.msra.mxu0 %v4877
        %4915 = vmatprep.subr.mxu0 0.0
        %4916 = vmatpush2.msra.mxu0 0.0
        %4917 = vmatprep.subr.mxu0 0.0
        %4918 = vmatpush2.msra.mxu0 0.0
        %4919 = vmatprep.subr.mxu0 0.0
        %4920 = vmatpush2.msra.mxu0 0.0
        %4921 = vmatprep.subr.mxu0 0.0
        %4922 = vmatpush2.msra.mxu0 0.0
        %4923 = vmatprep.subr.mxu0 0.0
        %4924 = vmatpush2.msra.mxu0 0.0
        %4925 = vmatprep.subr.mxu0 0.0
        %4926 = vmatpush2.msra.mxu0 0.0
        %4927 = vmatprep.subr.mxu0 0.0
        %4928 = vmatpush2.msra.mxu0 0.0
        %4929 = vmatprep.subr.mxu0 0.0
        %4930 = vmatpush2.msra.mxu0 0.0
        %4931 = vmatprep.subr.mxu0 0.0
        %4932 = vmatpush2.msra.mxu0 0.0
        %4933 = vmatprep.subr.mxu0 0.0
        %4934 = vmatpush2.msra.mxu0 0.0
        %4935 = vmatprep.subr.mxu0 0.0
        %4936 = vmatpush2.msra.mxu0 0.0
        %4937 = vmatprep.subr.mxu0 0.0
        %4938 = vmatpush2.msra.mxu0 0.0
        %4939 = vmatprep.subr.mxu0 0.0
        %4940 = vmatpush2.msra.mxu0 0.0
        %4941 = vmatprep.subr.mxu0 0.0
        %4942 = vmatpush2.msra.mxu0 0.0
        %4943 = vmatprep.subr.mxu0 0.0
        %4944 = vmatpush2.msra.mxu0 0.0
        %4945 = vmatprep.subr.mxu0 0.0
        %4946 = vmatpush2.msra.mxu0 0.0
        %4947 = vmatprep.mubr.f32.mxu0 0.0
        %4948 = vmatmul.mubr.f32.gmra.mxu0 %v4875
        %v4949 = vpop.f32.mrf.mxu0
        %v4950 = vadd.f32 0.0, %v4949
        %v4951 = vpop.f32.mrf.mxu0
        %v4952 = vadd.f32 0.0, %v4951
        %4953 = vdwg.mxu0
        %4954 = vmatprep.subr.mxu0 0.0
        %4955 = vmatpush1.msra.mxu0 0.0
        %4956 = vmatprep.subr.mxu0 0.0
        %4957 = vmatpush1.msra.mxu0 0.0
        %4958 = vmatprep.subr.mxu0 0.0
        %4959 = vmatpush1.msra.mxu0 0.0
        %4960 = vmatprep.subr.mxu0 0.0
        %4961 = vmatpush1.msra.mxu0 0.0
        %4962 = vmatprep.subr.mxu0 0.0
        %4963 = vmatpush1.msra.mxu0 0.0
        %4964 = vmatprep.subr.mxu0 0.0
        %4965 = vmatpush1.msra.mxu0 0.0
        %4966 = vmatprep.subr.mxu0 0.0
        %4967 = vmatpush1.msra.mxu0 0.0
        %4968 = vmatprep.subr.mxu0 0.0
        %4969 = vmatpush1.msra.mxu0 0.0
        %4970 = vmatprep.subr.mxu0 0.0
        %4971 = vmatpush1.msra.mxu0 0.0
        %4972 = vmatprep.subr.mxu0 0.0
        %4973 = vmatpush1.msra.mxu0 0.0
        %4974 = vmatprep.subr.mxu0 0.0
        %4975 = vmatpush1.msra.mxu0 0.0
        %4976 = vmatprep.subr.mxu0 0.0
        %4977 = vmatpush1.msra.mxu0 0.0
        %4978 = vmatprep.subr.mxu0 0.0
        %4979 = vmatpush1.msra.mxu0 0.0
        %4980 = vmatprep.subr.mxu0 0.0
        %4981 = vmatpush1.msra.mxu0 0.0
        %4982 = vmatprep.subr.mxu0 0.0
        %4983 = vmatpush1.msra.mxu0 0.0
        %4984 = vmatprep.subr.mxu0 0.0
        %4985 = vmatpush1.msra.mxu0 %v4881
        %4986 = vmatprep.subr.mxu0 0.0
        %4987 = vmatpush2.msra.mxu0 0.0
        %4988 = vmatprep.subr.mxu0 0.0
        %4989 = vmatpush2.msra.mxu0 0.0
        %4990 = vmatprep.subr.mxu0 0.0
        %4991 = vmatpush2.msra.mxu0 0.0
        %4992 = vmatprep.subr.mxu0 0.0
        %4993 = vmatpush2.msra.mxu0 0.0
        %4994 = vmatprep.subr.mxu0 0.0
        %4995 = vmatpush2.msra.mxu0 0.0
        %4996 = vmatprep.subr.mxu0 0.0
        %4997 = vmatpush2.msra.mxu0 0.0
        %4998 = vmatprep.subr.mxu0 0.0
        %4999 = vmatpush2.msra.mxu0 0.0
        %5000 = vmatprep.subr.mxu0 0.0
        %5001 = vmatpush2.msra.mxu0 0.0
        %5002 = vmatprep.subr.mxu0 0.0
        %5003 = vmatpush2.msra.mxu0 0.0
        %5004 = vmatprep.subr.mxu0 0.0
        %5005 = vmatpush2.msra.mxu0 0.0
        %5006 = vmatprep.subr.mxu0 0.0
        %5007 = vmatpush2.msra.mxu0 0.0
        %5008 = vmatprep.subr.mxu0 0.0
        %5009 = vmatpush2.msra.mxu0 0.0
        %5010 = vmatprep.subr.mxu0 0.0
        %5011 = vmatpush2.msra.mxu0 0.0
        %5012 = vmatprep.subr.mxu0 0.0
        %5013 = vmatpush2.msra.mxu0 0.0
        %5014 = vmatprep.subr.mxu0 0.0
        %5015 = vmatpush2.msra.mxu0 0.0
        %5016 = vmatprep.subr.mxu0 0.0
        %5017 = vmatpush2.msra.mxu0 0.0
        %5018 = vmatprep.mubr.f32.mxu0 0.0
        %5019 = vmatmul.mubr.f32.gmra.mxu0 %v4875
        %v5020 = vpop.f32.mrf.mxu0
        %v5021 = vadd.f32 0.0, %v5020
        %v5022 = vpop.f32.mrf.mxu0
        %5023 = vdwg.mxu0
        %v5024 = vadd.f32 %v4856, %v4950
        %v5025 = vadd.f32 %v4857, %v4952
        %v5026 = vadd.f32 %v4858, %v5021
        %5028 = vset.pattern.permute.xlu0 0
        %5029 = vperm.xlu0 %5028, %v3533
        %v5030 = vpop.permute.xlu0 %5029
        %v5032 = vadd.f32 %v5024, %v5030
        %v5033 = vadd.f32 %v5025, %v5030
        %v5034 = vadd.f32 %v5026, %v5030
        %v5035 = vld [vmem:[#allocation2] sm:$0xff]
        %v5036 = vld [vmem:[#allocation2 + $0x8] sm:$0xf]
        %v5039 = vcombine.high %v5035, %v5035
        %5040 = vrot.lane.b32.xlu0 %v5035, 109
        %v5041 = vpop.permute.xlu0 %5040
        %5042 = vrot.lane.b32.xlu0 %v5039, 109
        %v5043 = vpop.permute.xlu0 %5042
        %5044 = vrot.lane.b32.xlu0 %v5036, 109
        %v5045 = vpop.permute.xlu0 %5044
        %v5046 = vsel %vm2650, %v5041, %v5043
        %v5047 = vsel %vm2650, %v5043, %v5045
        %v5051 = vadd.f32 %v5032, %v5046
        %v5052 = vadd.f32 %v5033, %v5047
        %v5053 = vadd.f32 %v5034, %v5045
        %v5054 = vmul.f32 %v5051, %v3497
        %v5055 = vmul.f32 %v5052, %v3501
        %v5056 = vmul.f32 %v5053, %v3505
        %v5060 = vcombine.low %v5054, %v5055
        %5061 = vrot.lane.b32.xlu0 %v5060, 19
        %v5062 = vpop.permute.xlu0 %5061
        %5063 = vrot.lane.b32.xlu0 %v5056, 19
        %v5064 = vpop.permute.xlu0 %5063
        %v5065 = vrot.slane %v5062, 4
        %v5066 = vsel %vm3521, %v5065, %v5062
        %v5067 = vsel %vm3521, %v5065, %v5064
        %5070 = vst.msk [vmem:[#allocation2] sm:$0xff] %vm3528, %v5066
        %5071 = vst.msk [vmem:[#allocation2 + $0x8] sm:$0xf] %vm3530, %v5067
        %p5072 = scmp.eq.s32.totalorder %s29, 7
        // Predicated region
        $region69: #{tpu_custom_call.1} parent=59 // pred_check
          %p5073 = pneg %p5072
        $region70: #{tpu_custom_call.1} parent=59 // pred_check_branch
          %5075 = sbr.rel (%p5073) target = $region72
        $region71: #{tpu_custom_call.1} parent=59 // pred_region
          %v5076 = vld [vmem:[%s7] sm:$0xf]
          %v5077 = vld [vmem:[#allocation2] sm:$0xff]
          %v5078 = vld [vmem:[#allocation2 + $0x8] sm:$0xf]
          %v5079 = vld [vmem:[%s6] sm:$0xf]
          %s5080 = scalar_lea.vmem %s6, 4
          %v5081 = vld [vmem:[%s5080] sm:$0xf]
          %v5084 = vcombine.high %v5077, %v5077
          %5085 = vrot.lane.b32.xlu0 %v5077, 127
          %v5086 = vpop.permute.xlu0 %5085
          %5087 = vrot.lane.b32.xlu0 %v5084, 127
          %v5088 = vpop.permute.xlu0 %5087
          %5089 = vrot.lane.b32.xlu0 %v5078, 127
          %v5090 = vpop.permute.xlu0 %5089
          %v5091 = vsel %vm1994, %v5086, %v5088
          %v5092 = vsel %vm1994, %v5088, %v5090
          %v5094 = vsel %vm1997, %v5081, 0
          %v5096 = vsel %vm2001, %v5091, 0
          %v5098 = vsel %vm2001, %v5092, 0
          %v5100 = vsel %vm2001, %v5090, 0
          %5102 = vmatprep.subr.mxu0 0.0
          %5103 = vmatpush1.msra.mxu0 0.0
          %5104 = vmatprep.subr.mxu0 0.0
          %5105 = vmatpush1.msra.mxu0 0.0
          %5106 = vmatprep.subr.mxu0 0.0
          %5107 = vmatpush1.msra.mxu0 0.0
          %5108 = vmatprep.subr.mxu0 0.0
          %5109 = vmatpush1.msra.mxu0 0.0
          %5110 = vmatprep.subr.mxu0 0.0
          %5111 = vmatpush1.msra.mxu0 0.0
          %5112 = vmatprep.subr.mxu0 0.0
          %5113 = vmatpush1.msra.mxu0 0.0
          %5114 = vmatprep.subr.mxu0 0.0
          %5115 = vmatpush1.msra.mxu0 0.0
          %5116 = vmatprep.subr.mxu0 0.0
          %5117 = vmatpush1.msra.mxu0 0.0
          %5118 = vmatprep.subr.mxu0 0.0
          %5119 = vmatpush1.msra.mxu0 0.0
          %5120 = vmatprep.subr.mxu0 0.0
          %5121 = vmatpush1.msra.mxu0 0.0
          %5122 = vmatprep.subr.mxu0 0.0
          %5123 = vmatpush1.msra.mxu0 0.0
          %5124 = vmatprep.subr.mxu0 0.0
          %5125 = vmatpush1.msra.mxu0 0.0
          %5126 = vmatprep.subr.mxu0 0.0
          %5127 = vmatpush1.msra.mxu0 0.0
          %5128 = vmatprep.subr.mxu0 0.0
          %5129 = vmatpush1.msra.mxu0 0.0
          %5130 = vmatprep.subr.mxu0 0.0
          %5131 = vmatpush1.msra.mxu0 0.0
          %5132 = vmatprep.subr.mxu0 %v5098
          %5133 = vmatpush1.msra.mxu0 %v5096
          %5134 = vmatprep.subr.mxu0 0.0
          %5135 = vmatpush2.msra.mxu0 0.0
          %5136 = vmatprep.subr.mxu0 0.0
          %5137 = vmatpush2.msra.mxu0 0.0
          %5138 = vmatprep.subr.mxu0 0.0
          %5139 = vmatpush2.msra.mxu0 0.0
          %5140 = vmatprep.subr.mxu0 0.0
          %5141 = vmatpush2.msra.mxu0 0.0
          %5142 = vmatprep.subr.mxu0 0.0
          %5143 = vmatpush2.msra.mxu0 0.0
          %5144 = vmatprep.subr.mxu0 0.0
          %5145 = vmatpush2.msra.mxu0 0.0
          %5146 = vmatprep.subr.mxu0 0.0
          %5147 = vmatpush2.msra.mxu0 0.0
          %5148 = vmatprep.subr.mxu0 0.0
          %5149 = vmatpush2.msra.mxu0 0.0
          %5150 = vmatprep.subr.mxu0 0.0
          %5151 = vmatpush2.msra.mxu0 0.0
          %5152 = vmatprep.subr.mxu0 0.0
          %5153 = vmatpush2.msra.mxu0 0.0
          %5154 = vmatprep.subr.mxu0 0.0
          %5155 = vmatpush2.msra.mxu0 0.0
          %5156 = vmatprep.subr.mxu0 0.0
          %5157 = vmatpush2.msra.mxu0 0.0
          %5158 = vmatprep.subr.mxu0 0.0
          %5159 = vmatpush2.msra.mxu0 0.0
          %5160 = vmatprep.subr.mxu0 0.0
          %5161 = vmatpush2.msra.mxu0 0.0
          %5162 = vmatprep.subr.mxu0 0.0
          %5163 = vmatpush2.msra.mxu0 0.0
          %5164 = vmatprep.subr.mxu0 0.0
          %5165 = vmatpush2.msra.mxu0 0.0
          %5166 = vmatprep.mubr.f32.mxu0 0.0
          %5167 = vmatmul.mubr.f32.gmra.mxu0 %v5094
          %v5168 = vpop.f32.mrf.mxu0
          %v5169 = vadd.f32 0.0, %v5168
          %v5170 = vpop.f32.mrf.mxu0
          %v5171 = vadd.f32 0.0, %v5170
          %5172 = vdwg.mxu0
          %5173 = vmatprep.subr.mxu0 0.0
          %5174 = vmatpush1.msra.mxu0 0.0
          %5175 = vmatprep.subr.mxu0 0.0
          %5176 = vmatpush1.msra.mxu0 0.0
          %5177 = vmatprep.subr.mxu0 0.0
          %5178 = vmatpush1.msra.mxu0 0.0
          %5179 = vmatprep.subr.mxu0 0.0
          %5180 = vmatpush1.msra.mxu0 0.0
          %5181 = vmatprep.subr.mxu0 0.0
          %5182 = vmatpush1.msra.mxu0 0.0
          %5183 = vmatprep.subr.mxu0 0.0
          %5184 = vmatpush1.msra.mxu0 0.0
          %5185 = vmatprep.subr.mxu0 0.0
          %5186 = vmatpush1.msra.mxu0 0.0
          %5187 = vmatprep.subr.mxu0 0.0
          %5188 = vmatpush1.msra.mxu0 0.0
          %5189 = vmatprep.subr.mxu0 0.0
          %5190 = vmatpush1.msra.mxu0 0.0
          %5191 = vmatprep.subr.mxu0 0.0
          %5192 = vmatpush1.msra.mxu0 0.0
          %5193 = vmatprep.subr.mxu0 0.0
          %5194 = vmatpush1.msra.mxu0 0.0
          %5195 = vmatprep.subr.mxu0 0.0
          %5196 = vmatpush1.msra.mxu0 0.0
          %5197 = vmatprep.subr.mxu0 0.0
          %5198 = vmatpush1.msra.mxu0 0.0
          %5199 = vmatprep.subr.mxu0 0.0
          %5200 = vmatpush1.msra.mxu0 0.0
          %5201 = vmatprep.subr.mxu0 0.0
          %5202 = vmatpush1.msra.mxu0 0.0
          %5203 = vmatprep.subr.mxu0 0.0
          %5204 = vmatpush1.msra.mxu0 %v5100
          %5205 = vmatprep.subr.mxu0 0.0
          %5206 = vmatpush2.msra.mxu0 0.0
          %5207 = vmatprep.subr.mxu0 0.0
          %5208 = vmatpush2.msra.mxu0 0.0
          %5209 = vmatprep.subr.mxu0 0.0
          %5210 = vmatpush2.msra.mxu0 0.0
          %5211 = vmatprep.subr.mxu0 0.0
          %5212 = vmatpush2.msra.mxu0 0.0
          %5213 = vmatprep.subr.mxu0 0.0
          %5214 = vmatpush2.msra.mxu0 0.0
          %5215 = vmatprep.subr.mxu0 0.0
          %5216 = vmatpush2.msra.mxu0 0.0
          %5217 = vmatprep.subr.mxu0 0.0
          %5218 = vmatpush2.msra.mxu0 0.0
          %5219 = vmatprep.subr.mxu0 0.0
          %5220 = vmatpush2.msra.mxu0 0.0
          %5221 = vmatprep.subr.mxu0 0.0
          %5222 = vmatpush2.msra.mxu0 0.0
          %5223 = vmatprep.subr.mxu0 0.0
          %5224 = vmatpush2.msra.mxu0 0.0
          %5225 = vmatprep.subr.mxu0 0.0
          %5226 = vmatpush2.msra.mxu0 0.0
          %5227 = vmatprep.subr.mxu0 0.0
          %5228 = vmatpush2.msra.mxu0 0.0
          %5229 = vmatprep.subr.mxu0 0.0
          %5230 = vmatpush2.msra.mxu0 0.0
          %5231 = vmatprep.subr.mxu0 0.0
          %5232 = vmatpush2.msra.mxu0 0.0
          %5233 = vmatprep.subr.mxu0 0.0
          %5234 = vmatpush2.msra.mxu0 0.0
          %5235 = vmatprep.subr.mxu0 0.0
          %5236 = vmatpush2.msra.mxu0 0.0
          %5237 = vmatprep.mubr.f32.mxu0 0.0
          %5238 = vmatmul.mubr.f32.gmra.mxu0 %v5094
          %v5239 = vpop.f32.mrf.mxu0
          %v5240 = vadd.f32 0.0, %v5239
          %v5241 = vpop.f32.mrf.mxu0
          %5242 = vdwg.mxu0
          %v5244 = vsel %vm1997, %v5079, 0
          %v5246 = vsel %vm2001, %v5077, 0
          %v5248 = vsel %vm2001, %v5084, 0
          %v5250 = vsel %vm2001, %v5078, 0
          %5252 = vmatprep.subr.mxu0 0.0
          %5253 = vmatpush1.msra.mxu0 0.0
          %5254 = vmatprep.subr.mxu0 0.0
          %5255 = vmatpush1.msra.mxu0 0.0
          %5256 = vmatprep.subr.mxu0 0.0
          %5257 = vmatpush1.msra.mxu0 0.0
          %5258 = vmatprep.subr.mxu0 0.0
          %5259 = vmatpush1.msra.mxu0 0.0
          %5260 = vmatprep.subr.mxu0 0.0
          %5261 = vmatpush1.msra.mxu0 0.0
          %5262 = vmatprep.subr.mxu0 0.0
          %5263 = vmatpush1.msra.mxu0 0.0
          %5264 = vmatprep.subr.mxu0 0.0
          %5265 = vmatpush1.msra.mxu0 0.0
          %5266 = vmatprep.subr.mxu0 0.0
          %5267 = vmatpush1.msra.mxu0 0.0
          %5268 = vmatprep.subr.mxu0 0.0
          %5269 = vmatpush1.msra.mxu0 0.0
          %5270 = vmatprep.subr.mxu0 0.0
          %5271 = vmatpush1.msra.mxu0 0.0
          %5272 = vmatprep.subr.mxu0 0.0
          %5273 = vmatpush1.msra.mxu0 0.0
          %5274 = vmatprep.subr.mxu0 0.0
          %5275 = vmatpush1.msra.mxu0 0.0
          %5276 = vmatprep.subr.mxu0 0.0
          %5277 = vmatpush1.msra.mxu0 0.0
          %5278 = vmatprep.subr.mxu0 0.0
          %5279 = vmatpush1.msra.mxu0 0.0
          %5280 = vmatprep.subr.mxu0 0.0
          %5281 = vmatpush1.msra.mxu0 0.0
          %5282 = vmatprep.subr.mxu0 %v5248
          %5283 = vmatpush1.msra.mxu0 %v5246
          %5284 = vmatprep.subr.mxu0 0.0
          %5285 = vmatpush2.msra.mxu0 0.0
          %5286 = vmatprep.subr.mxu0 0.0
          %5287 = vmatpush2.msra.mxu0 0.0
          %5288 = vmatprep.subr.mxu0 0.0
          %5289 = vmatpush2.msra.mxu0 0.0
          %5290 = vmatprep.subr.mxu0 0.0
          %5291 = vmatpush2.msra.mxu0 0.0
          %5292 = vmatprep.subr.mxu0 0.0
          %5293 = vmatpush2.msra.mxu0 0.0
          %5294 = vmatprep.subr.mxu0 0.0
          %5295 = vmatpush2.msra.mxu0 0.0
          %5296 = vmatprep.subr.mxu0 0.0
          %5297 = vmatpush2.msra.mxu0 0.0
          %5298 = vmatprep.subr.mxu0 0.0
          %5299 = vmatpush2.msra.mxu0 0.0
          %5300 = vmatprep.subr.mxu0 0.0
          %5301 = vmatpush2.msra.mxu0 0.0
          %5302 = vmatprep.subr.mxu0 0.0
          %5303 = vmatpush2.msra.mxu0 0.0
          %5304 = vmatprep.subr.mxu0 0.0
          %5305 = vmatpush2.msra.mxu0 0.0
          %5306 = vmatprep.subr.mxu0 0.0
          %5307 = vmatpush2.msra.mxu0 0.0
          %5308 = vmatprep.subr.mxu0 0.0
          %5309 = vmatpush2.msra.mxu0 0.0
          %5310 = vmatprep.subr.mxu0 0.0
          %5311 = vmatpush2.msra.mxu0 0.0
          %5312 = vmatprep.subr.mxu0 0.0
          %5313 = vmatpush2.msra.mxu0 0.0
          %5314 = vmatprep.subr.mxu0 0.0
          %5315 = vmatpush2.msra.mxu0 0.0
          %5316 = vmatprep.mubr.f32.mxu0 0.0
          %5317 = vmatmul.mubr.f32.gmra.mxu0 %v5244
          %v5318 = vpop.f32.mrf.mxu0
          %v5319 = vadd.f32 %v5169, %v5318
          %v5320 = vpop.f32.mrf.mxu0
          %v5321 = vadd.f32 %v5171, %v5320
          %5322 = vdwg.mxu0
          %5323 = vmatprep.subr.mxu0 0.0
          %5324 = vmatpush1.msra.mxu0 0.0
          %5325 = vmatprep.subr.mxu0 0.0
          %5326 = vmatpush1.msra.mxu0 0.0
          %5327 = vmatprep.subr.mxu0 0.0
          %5328 = vmatpush1.msra.mxu0 0.0
          %5329 = vmatprep.subr.mxu0 0.0
          %5330 = vmatpush1.msra.mxu0 0.0
          %5331 = vmatprep.subr.mxu0 0.0
          %5332 = vmatpush1.msra.mxu0 0.0
          %5333 = vmatprep.subr.mxu0 0.0
          %5334 = vmatpush1.msra.mxu0 0.0
          %5335 = vmatprep.subr.mxu0 0.0
          %5336 = vmatpush1.msra.mxu0 0.0
          %5337 = vmatprep.subr.mxu0 0.0
          %5338 = vmatpush1.msra.mxu0 0.0
          %5339 = vmatprep.subr.mxu0 0.0
          %5340 = vmatpush1.msra.mxu0 0.0
          %5341 = vmatprep.subr.mxu0 0.0
          %5342 = vmatpush1.msra.mxu0 0.0
          %5343 = vmatprep.subr.mxu0 0.0
          %5344 = vmatpush1.msra.mxu0 0.0
          %5345 = vmatprep.subr.mxu0 0.0
          %5346 = vmatpush1.msra.mxu0 0.0
          %5347 = vmatprep.subr.mxu0 0.0
          %5348 = vmatpush1.msra.mxu0 0.0
          %5349 = vmatprep.subr.mxu0 0.0
          %5350 = vmatpush1.msra.mxu0 0.0
          %5351 = vmatprep.subr.mxu0 0.0
          %5352 = vmatpush1.msra.mxu0 0.0
          %5353 = vmatprep.subr.mxu0 0.0
          %5354 = vmatpush1.msra.mxu0 %v5250
          %5355 = vmatprep.subr.mxu0 0.0
          %5356 = vmatpush2.msra.mxu0 0.0
          %5357 = vmatprep.subr.mxu0 0.0
          %5358 = vmatpush2.msra.mxu0 0.0
          %5359 = vmatprep.subr.mxu0 0.0
          %5360 = vmatpush2.msra.mxu0 0.0
          %5361 = vmatprep.subr.mxu0 0.0
          %5362 = vmatpush2.msra.mxu0 0.0
          %5363 = vmatprep.subr.mxu0 0.0
          %5364 = vmatpush2.msra.mxu0 0.0
          %5365 = vmatprep.subr.mxu0 0.0
          %5366 = vmatpush2.msra.mxu0 0.0
          %5367 = vmatprep.subr.mxu0 0.0
          %5368 = vmatpush2.msra.mxu0 0.0
          %5369 = vmatprep.subr.mxu0 0.0
          %5370 = vmatpush2.msra.mxu0 0.0
          %5371 = vmatprep.subr.mxu0 0.0
          %5372 = vmatpush2.msra.mxu0 0.0
          %5373 = vmatprep.subr.mxu0 0.0
          %5374 = vmatpush2.msra.mxu0 0.0
          %5375 = vmatprep.subr.mxu0 0.0
          %5376 = vmatpush2.msra.mxu0 0.0
          %5377 = vmatprep.subr.mxu0 0.0
          %5378 = vmatpush2.msra.mxu0 0.0
          %5379 = vmatprep.subr.mxu0 0.0
          %5380 = vmatpush2.msra.mxu0 0.0
          %5381 = vmatprep.subr.mxu0 0.0
          %5382 = vmatpush2.msra.mxu0 0.0
          %5383 = vmatprep.subr.mxu0 0.0
          %5384 = vmatpush2.msra.mxu0 0.0
          %5385 = vmatprep.subr.mxu0 0.0
          %5386 = vmatpush2.msra.mxu0 0.0
          %5387 = vmatprep.mubr.f32.mxu0 0.0
          %5388 = vmatmul.mubr.f32.gmra.mxu0 %v5244
          %v5389 = vpop.f32.mrf.mxu0
          %v5390 = vadd.f32 %v5240, %v5389
          %v5391 = vpop.f32.mrf.mxu0
          %5392 = vdwg.mxu0
          %v5393 = vld [vmem:[#allocation2] sm:$0xff]
          %v5394 = vld [vmem:[#allocation2 + $0x8] sm:$0xf]
          %s5395 = scalar_lea.vmem %s6, 8
          %v5396 = vld [vmem:[%s5395] sm:$0xf]
          %v5399 = vcombine.high %v5393, %v5393
          %5400 = vrot.lane.b32.xlu0 %v5393, 126
          %v5401 = vpop.permute.xlu0 %5400
          %5402 = vrot.lane.b32.xlu0 %v5399, 126
          %v5403 = vpop.permute.xlu0 %5402
          %5404 = vrot.lane.b32.xlu0 %v5394, 126
          %v5405 = vpop.permute.xlu0 %5404
          %v5406 = vsel %vm2312, %v5401, %v5403
          %v5407 = vsel %vm2312, %v5403, %v5405
          %v5409 = vsel %vm1997, %v5396, 0
          %v5411 = vsel %vm2001, %v5406, 0
          %v5413 = vsel %vm2001, %v5407, 0
          %v5415 = vsel %vm2001, %v5405, 0
          %5417 = vmatprep.subr.mxu0 0.0
          %5418 = vmatpush1.msra.mxu0 0.0
          %5419 = vmatprep.subr.mxu0 0.0
          %5420 = vmatpush1.msra.mxu0 0.0
          %5421 = vmatprep.subr.mxu0 0.0
          %5422 = vmatpush1.msra.mxu0 0.0
          %5423 = vmatprep.subr.mxu0 0.0
          %5424 = vmatpush1.msra.mxu0 0.0
          %5425 = vmatprep.subr.mxu0 0.0
          %5426 = vmatpush1.msra.mxu0 0.0
          %5427 = vmatprep.subr.mxu0 0.0
          %5428 = vmatpush1.msra.mxu0 0.0
          %5429 = vmatprep.subr.mxu0 0.0
          %5430 = vmatpush1.msra.mxu0 0.0
          %5431 = vmatprep.subr.mxu0 0.0
          %5432 = vmatpush1.msra.mxu0 0.0
          %5433 = vmatprep.subr.mxu0 0.0
          %5434 = vmatpush1.msra.mxu0 0.0
          %5435 = vmatprep.subr.mxu0 0.0
          %5436 = vmatpush1.msra.mxu0 0.0
          %5437 = vmatprep.subr.mxu0 0.0
          %5438 = vmatpush1.msra.mxu0 0.0
          %5439 = vmatprep.subr.mxu0 0.0
          %5440 = vmatpush1.msra.mxu0 0.0
          %5441 = vmatprep.subr.mxu0 0.0
          %5442 = vmatpush1.msra.mxu0 0.0
          %5443 = vmatprep.subr.mxu0 0.0
          %5444 = vmatpush1.msra.mxu0 0.0
          %5445 = vmatprep.subr.mxu0 0.0
          %5446 = vmatpush1.msra.mxu0 0.0
          %5447 = vmatprep.subr.mxu0 %v5413
          %5448 = vmatpush1.msra.mxu0 %v5411
          %5449 = vmatprep.subr.mxu0 0.0
          %5450 = vmatpush2.msra.mxu0 0.0
          %5451 = vmatprep.subr.mxu0 0.0
          %5452 = vmatpush2.msra.mxu0 0.0
          %5453 = vmatprep.subr.mxu0 0.0
          %5454 = vmatpush2.msra.mxu0 0.0
          %5455 = vmatprep.subr.mxu0 0.0
          %5456 = vmatpush2.msra.mxu0 0.0
          %5457 = vmatprep.subr.mxu0 0.0
          %5458 = vmatpush2.msra.mxu0 0.0
          %5459 = vmatprep.subr.mxu0 0.0
          %5460 = vmatpush2.msra.mxu0 0.0
          %5461 = vmatprep.subr.mxu0 0.0
          %5462 = vmatpush2.msra.mxu0 0.0
          %5463 = vmatprep.subr.mxu0 0.0
          %5464 = vmatpush2.msra.mxu0 0.0
          %5465 = vmatprep.subr.mxu0 0.0
          %5466 = vmatpush2.msra.mxu0 0.0
          %5467 = vmatprep.subr.mxu0 0.0
          %5468 = vmatpush2.msra.mxu0 0.0
          %5469 = vmatprep.subr.mxu0 0.0
          %5470 = vmatpush2.msra.mxu0 0.0
          %5471 = vmatprep.subr.mxu0 0.0
          %5472 = vmatpush2.msra.mxu0 0.0
          %5473 = vmatprep.subr.mxu0 0.0
          %5474 = vmatpush2.msra.mxu0 0.0
          %5475 = vmatprep.subr.mxu0 0.0
          %5476 = vmatpush2.msra.mxu0 0.0
          %5477 = vmatprep.subr.mxu0 0.0
          %5478 = vmatpush2.msra.mxu0 0.0
          %5479 = vmatprep.subr.mxu0 0.0
          %5480 = vmatpush2.msra.mxu0 0.0
          %5481 = vmatprep.mubr.f32.mxu0 0.0
          %5482 = vmatmul.mubr.f32.gmra.mxu0 %v5409
          %v5483 = vpop.f32.mrf.mxu0
          %v5484 = vadd.f32 0.0, %v5483
          %v5485 = vpop.f32.mrf.mxu0
          %v5486 = vadd.f32 0.0, %v5485
          %5487 = vdwg.mxu0
          %5488 = vmatprep.subr.mxu0 0.0
          %5489 = vmatpush1.msra.mxu0 0.0
          %5490 = vmatprep.subr.mxu0 0.0
          %5491 = vmatpush1.msra.mxu0 0.0
          %5492 = vmatprep.subr.mxu0 0.0
          %5493 = vmatpush1.msra.mxu0 0.0
          %5494 = vmatprep.subr.mxu0 0.0
          %5495 = vmatpush1.msra.mxu0 0.0
          %5496 = vmatprep.subr.mxu0 0.0
          %5497 = vmatpush1.msra.mxu0 0.0
          %5498 = vmatprep.subr.mxu0 0.0
          %5499 = vmatpush1.msra.mxu0 0.0
          %5500 = vmatprep.subr.mxu0 0.0
          %5501 = vmatpush1.msra.mxu0 0.0
          %5502 = vmatprep.subr.mxu0 0.0
          %5503 = vmatpush1.msra.mxu0 0.0
          %5504 = vmatprep.subr.mxu0 0.0
          %5505 = vmatpush1.msra.mxu0 0.0
          %5506 = vmatprep.subr.mxu0 0.0
          %5507 = vmatpush1.msra.mxu0 0.0
          %5508 = vmatprep.subr.mxu0 0.0
          %5509 = vmatpush1.msra.mxu0 0.0
          %5510 = vmatprep.subr.mxu0 0.0
          %5511 = vmatpush1.msra.mxu0 0.0
          %5512 = vmatprep.subr.mxu0 0.0
          %5513 = vmatpush1.msra.mxu0 0.0
          %5514 = vmatprep.subr.mxu0 0.0
          %5515 = vmatpush1.msra.mxu0 0.0
          %5516 = vmatprep.subr.mxu0 0.0
          %5517 = vmatpush1.msra.mxu0 0.0
          %5518 = vmatprep.subr.mxu0 0.0
          %5519 = vmatpush1.msra.mxu0 %v5415
          %5520 = vmatprep.subr.mxu0 0.0
          %5521 = vmatpush2.msra.mxu0 0.0
          %5522 = vmatprep.subr.mxu0 0.0
          %5523 = vmatpush2.msra.mxu0 0.0
          %5524 = vmatprep.subr.mxu0 0.0
          %5525 = vmatpush2.msra.mxu0 0.0
          %5526 = vmatprep.subr.mxu0 0.0
          %5527 = vmatpush2.msra.mxu0 0.0
          %5528 = vmatprep.subr.mxu0 0.0
          %5529 = vmatpush2.msra.mxu0 0.0
          %5530 = vmatprep.subr.mxu0 0.0
          %5531 = vmatpush2.msra.mxu0 0.0
          %5532 = vmatprep.subr.mxu0 0.0
          %5533 = vmatpush2.msra.mxu0 0.0
          %5534 = vmatprep.subr.mxu0 0.0
          %5535 = vmatpush2.msra.mxu0 0.0
          %5536 = vmatprep.subr.mxu0 0.0
          %5537 = vmatpush2.msra.mxu0 0.0
          %5538 = vmatprep.subr.mxu0 0.0
          %5539 = vmatpush2.msra.mxu0 0.0
          %5540 = vmatprep.subr.mxu0 0.0
          %5541 = vmatpush2.msra.mxu0 0.0
          %5542 = vmatprep.subr.mxu0 0.0
          %5543 = vmatpush2.msra.mxu0 0.0
          %5544 = vmatprep.subr.mxu0 0.0
          %5545 = vmatpush2.msra.mxu0 0.0
          %5546 = vmatprep.subr.mxu0 0.0
          %5547 = vmatpush2.msra.mxu0 0.0
          %5548 = vmatprep.subr.mxu0 0.0
          %5549 = vmatpush2.msra.mxu0 0.0
          %5550 = vmatprep.subr.mxu0 0.0
          %5551 = vmatpush2.msra.mxu0 0.0
          %5552 = vmatprep.mubr.f32.mxu0 0.0
          %5553 = vmatmul.mubr.f32.gmra.mxu0 %v5409
          %v5554 = vpop.f32.mrf.mxu0
          %v5555 = vadd.f32 0.0, %v5554
          %v5556 = vpop.f32.mrf.mxu0
          %5557 = vdwg.mxu0
          %v5558 = vadd.f32 %v5319, %v5484
          %v5559 = vadd.f32 %v5321, %v5486
          %v5560 = vadd.f32 %v5390, %v5555
          %v5561 = vld [vmem:[#allocation2] sm:$0xff]
          %v5562 = vld [vmem:[#allocation2 + $0x8] sm:$0xf]
          %s5563 = scalar_lea.vmem %s6, 12
          %v5564 = vld [vmem:[%s5563] sm:$0xf]
          %v5567 = vcombine.high %v5561, %v5561
          %5568 = vrot.lane.b32.xlu0 %v5561, 110
          %v5569 = vpop.permute.xlu0 %5568
          %5570 = vrot.lane.b32.xlu0 %v5567, 110
          %v5571 = vpop.permute.xlu0 %5570
          %5572 = vrot.lane.b32.xlu0 %v5562, 110
          %v5573 = vpop.permute.xlu0 %5572
          %v5574 = vsel %vm2481, %v5569, %v5571
          %v5575 = vsel %vm2481, %v5571, %v5573
          %v5577 = vsel %vm1997, %v5564, 0
          %v5579 = vsel %vm2001, %v5574, 0
          %v5581 = vsel %vm2001, %v5575, 0
          %v5583 = vsel %vm2001, %v5573, 0
          %5585 = vmatprep.subr.mxu0 0.0
          %5586 = vmatpush1.msra.mxu0 0.0
          %5587 = vmatprep.subr.mxu0 0.0
          %5588 = vmatpush1.msra.mxu0 0.0
          %5589 = vmatprep.subr.mxu0 0.0
          %5590 = vmatpush1.msra.mxu0 0.0
          %5591 = vmatprep.subr.mxu0 0.0
          %5592 = vmatpush1.msra.mxu0 0.0
          %5593 = vmatprep.subr.mxu0 0.0
          %5594 = vmatpush1.msra.mxu0 0.0
          %5595 = vmatprep.subr.mxu0 0.0
          %5596 = vmatpush1.msra.mxu0 0.0
          %5597 = vmatprep.subr.mxu0 0.0
          %5598 = vmatpush1.msra.mxu0 0.0
          %5599 = vmatprep.subr.mxu0 0.0
          %5600 = vmatpush1.msra.mxu0 0.0
          %5601 = vmatprep.subr.mxu0 0.0
          %5602 = vmatpush1.msra.mxu0 0.0
          %5603 = vmatprep.subr.mxu0 0.0
          %5604 = vmatpush1.msra.mxu0 0.0
          %5605 = vmatprep.subr.mxu0 0.0
          %5606 = vmatpush1.msra.mxu0 0.0
          %5607 = vmatprep.subr.mxu0 0.0
          %5608 = vmatpush1.msra.mxu0 0.0
          %5609 = vmatprep.subr.mxu0 0.0
          %5610 = vmatpush1.msra.mxu0 0.0
          %5611 = vmatprep.subr.mxu0 0.0
          %5612 = vmatpush1.msra.mxu0 0.0
          %5613 = vmatprep.subr.mxu0 0.0
          %5614 = vmatpush1.msra.mxu0 0.0
          %5615 = vmatprep.subr.mxu0 %v5581
          %5616 = vmatpush1.msra.mxu0 %v5579
          %5617 = vmatprep.subr.mxu0 0.0
          %5618 = vmatpush2.msra.mxu0 0.0
          %5619 = vmatprep.subr.mxu0 0.0
          %5620 = vmatpush2.msra.mxu0 0.0
          %5621 = vmatprep.subr.mxu0 0.0
          %5622 = vmatpush2.msra.mxu0 0.0
          %5623 = vmatprep.subr.mxu0 0.0
          %5624 = vmatpush2.msra.mxu0 0.0
          %5625 = vmatprep.subr.mxu0 0.0
          %5626 = vmatpush2.msra.mxu0 0.0
          %5627 = vmatprep.subr.mxu0 0.0
          %5628 = vmatpush2.msra.mxu0 0.0
          %5629 = vmatprep.subr.mxu0 0.0
          %5630 = vmatpush2.msra.mxu0 0.0
          %5631 = vmatprep.subr.mxu0 0.0
          %5632 = vmatpush2.msra.mxu0 0.0
          %5633 = vmatprep.subr.mxu0 0.0
          %5634 = vmatpush2.msra.mxu0 0.0
          %5635 = vmatprep.subr.mxu0 0.0
          %5636 = vmatpush2.msra.mxu0 0.0
          %5637 = vmatprep.subr.mxu0 0.0
          %5638 = vmatpush2.msra.mxu0 0.0
          %5639 = vmatprep.subr.mxu0 0.0
          %5640 = vmatpush2.msra.mxu0 0.0
          %5641 = vmatprep.subr.mxu0 0.0
          %5642 = vmatpush2.msra.mxu0 0.0
          %5643 = vmatprep.subr.mxu0 0.0
          %5644 = vmatpush2.msra.mxu0 0.0
          %5645 = vmatprep.subr.mxu0 0.0
          %5646 = vmatpush2.msra.mxu0 0.0
          %5647 = vmatprep.subr.mxu0 0.0
          %5648 = vmatpush2.msra.mxu0 0.0
          %5649 = vmatprep.mubr.f32.mxu0 0.0
          %5650 = vmatmul.mubr.f32.gmra.mxu0 %v5577
          %v5651 = vpop.f32.mrf.mxu0
          %v5652 = vadd.f32 0.0, %v5651
          %v5653 = vpop.f32.mrf.mxu0
          %v5654 = vadd.f32 0.0, %v5653
          %5655 = vdwg.mxu0
          %5656 = vmatprep.subr.mxu0 0.0
          %5657 = vmatpush1.msra.mxu0 0.0
          %5658 = vmatprep.subr.mxu0 0.0
          %5659 = vmatpush1.msra.mxu0 0.0
          %5660 = vmatprep.subr.mxu0 0.0
          %5661 = vmatpush1.msra.mxu0 0.0
          %5662 = vmatprep.subr.mxu0 0.0
          %5663 = vmatpush1.msra.mxu0 0.0
          %5664 = vmatprep.subr.mxu0 0.0
          %5665 = vmatpush1.msra.mxu0 0.0
          %5666 = vmatprep.subr.mxu0 0.0
          %5667 = vmatpush1.msra.mxu0 0.0
          %5668 = vmatprep.subr.mxu0 0.0
          %5669 = vmatpush1.msra.mxu0 0.0
          %5670 = vmatprep.subr.mxu0 0.0
          %5671 = vmatpush1.msra.mxu0 0.0
          %5672 = vmatprep.subr.mxu0 0.0
          %5673 = vmatpush1.msra.mxu0 0.0
          %5674 = vmatprep.subr.mxu0 0.0
          %5675 = vmatpush1.msra.mxu0 0.0
          %5676 = vmatprep.subr.mxu0 0.0
          %5677 = vmatpush1.msra.mxu0 0.0
          %5678 = vmatprep.subr.mxu0 0.0
          %5679 = vmatpush1.msra.mxu0 0.0
          %5680 = vmatprep.subr.mxu0 0.0
          %5681 = vmatpush1.msra.mxu0 0.0
          %5682 = vmatprep.subr.mxu0 0.0
          %5683 = vmatpush1.msra.mxu0 0.0
          %5684 = vmatprep.subr.mxu0 0.0
          %5685 = vmatpush1.msra.mxu0 0.0
          %5686 = vmatprep.subr.mxu0 0.0
          %5687 = vmatpush1.msra.mxu0 %v5583
          %5688 = vmatprep.subr.mxu0 0.0
          %5689 = vmatpush2.msra.mxu0 0.0
          %5690 = vmatprep.subr.mxu0 0.0
          %5691 = vmatpush2.msra.mxu0 0.0
          %5692 = vmatprep.subr.mxu0 0.0
          %5693 = vmatpush2.msra.mxu0 0.0
          %5694 = vmatprep.subr.mxu0 0.0
          %5695 = vmatpush2.msra.mxu0 0.0
          %5696 = vmatprep.subr.mxu0 0.0
          %5697 = vmatpush2.msra.mxu0 0.0
          %5698 = vmatprep.subr.mxu0 0.0
          %5699 = vmatpush2.msra.mxu0 0.0
          %5700 = vmatprep.subr.mxu0 0.0
          %5701 = vmatpush2.msra.mxu0 0.0
          %5702 = vmatprep.subr.mxu0 0.0
          %5703 = vmatpush2.msra.mxu0 0.0
          %5704 = vmatprep.subr.mxu0 0.0
          %5705 = vmatpush2.msra.mxu0 0.0
          %5706 = vmatprep.subr.mxu0 0.0
          %5707 = vmatpush2.msra.mxu0 0.0
          %5708 = vmatprep.subr.mxu0 0.0
          %5709 = vmatpush2.msra.mxu0 0.0
          %5710 = vmatprep.subr.mxu0 0.0
          %5711 = vmatpush2.msra.mxu0 0.0
          %5712 = vmatprep.subr.mxu0 0.0
          %5713 = vmatpush2.msra.mxu0 0.0
          %5714 = vmatprep.subr.mxu0 0.0
          %5715 = vmatpush2.msra.mxu0 0.0
          %5716 = vmatprep.subr.mxu0 0.0
          %5717 = vmatpush2.msra.mxu0 0.0
          %5718 = vmatprep.subr.mxu0 0.0
          %5719 = vmatpush2.msra.mxu0 0.0
          %5720 = vmatprep.mubr.f32.mxu0 0.0
          %5721 = vmatmul.mubr.f32.gmra.mxu0 %v5577
          %v5722 = vpop.f32.mrf.mxu0
          %v5723 = vadd.f32 0.0, %v5722
          %v5724 = vpop.f32.mrf.mxu0
          %5725 = vdwg.mxu0
          %v5726 = vadd.f32 %v5558, %v5652
          %v5727 = vadd.f32 %v5559, %v5654
          %v5728 = vadd.f32 %v5560, %v5723
          %v5729 = vld [vmem:[#allocation2] sm:$0xff]
          %v5730 = vld [vmem:[#allocation2 + $0x8] sm:$0xf]
          %s5731 = scalar_lea.vmem %s6, 16
          %v5732 = vld [vmem:[%s5731] sm:$0xf]
          %v5735 = vcombine.high %v5729, %v5729
          %5736 = vrot.lane.b32.xlu0 %v5729, 109
          %v5737 = vpop.permute.xlu0 %5736
          %5738 = vrot.lane.b32.xlu0 %v5735, 109
          %v5739 = vpop.permute.xlu0 %5738
          %5740 = vrot.lane.b32.xlu0 %v5730, 109
          %v5741 = vpop.permute.xlu0 %5740
          %v5742 = vsel %vm2650, %v5737, %v5739
          %v5743 = vsel %vm2650, %v5739, %v5741
          %v5745 = vsel %vm1997, %v5732, 0
          %v5747 = vsel %vm2001, %v5742, 0
          %v5749 = vsel %vm2001, %v5743, 0
          %v5751 = vsel %vm2001, %v5741, 0
          %5753 = vmatprep.subr.mxu0 0.0
          %5754 = vmatpush1.msra.mxu0 0.0
          %5755 = vmatprep.subr.mxu0 0.0
          %5756 = vmatpush1.msra.mxu0 0.0
          %5757 = vmatprep.subr.mxu0 0.0
          %5758 = vmatpush1.msra.mxu0 0.0
          %5759 = vmatprep.subr.mxu0 0.0
          %5760 = vmatpush1.msra.mxu0 0.0
          %5761 = vmatprep.subr.mxu0 0.0
          %5762 = vmatpush1.msra.mxu0 0.0
          %5763 = vmatprep.subr.mxu0 0.0
          %5764 = vmatpush1.msra.mxu0 0.0
          %5765 = vmatprep.subr.mxu0 0.0
          %5766 = vmatpush1.msra.mxu0 0.0
          %5767 = vmatprep.subr.mxu0 0.0
          %5768 = vmatpush1.msra.mxu0 0.0
          %5769 = vmatprep.subr.mxu0 0.0
          %5770 = vmatpush1.msra.mxu0 0.0
          %5771 = vmatprep.subr.mxu0 0.0
          %5772 = vmatpush1.msra.mxu0 0.0
          %5773 = vmatprep.subr.mxu0 0.0
          %5774 = vmatpush1.msra.mxu0 0.0
          %5775 = vmatprep.subr.mxu0 0.0
          %5776 = vmatpush1.msra.mxu0 0.0
          %5777 = vmatprep.subr.mxu0 0.0
          %5778 = vmatpush1.msra.mxu0 0.0
          %5779 = vmatprep.subr.mxu0 0.0
          %5780 = vmatpush1.msra.mxu0 0.0
          %5781 = vmatprep.subr.mxu0 0.0
          %5782 = vmatpush1.msra.mxu0 0.0
          %5783 = vmatprep.subr.mxu0 %v5749
          %5784 = vmatpush1.msra.mxu0 %v5747
          %5785 = vmatprep.subr.mxu0 0.0
          %5786 = vmatpush2.msra.mxu0 0.0
          %5787 = vmatprep.subr.mxu0 0.0
          %5788 = vmatpush2.msra.mxu0 0.0
          %5789 = vmatprep.subr.mxu0 0.0
          %5790 = vmatpush2.msra.mxu0 0.0
          %5791 = vmatprep.subr.mxu0 0.0
          %5792 = vmatpush2.msra.mxu0 0.0
          %5793 = vmatprep.subr.mxu0 0.0
          %5794 = vmatpush2.msra.mxu0 0.0
          %5795 = vmatprep.subr.mxu0 0.0
          %5796 = vmatpush2.msra.mxu0 0.0
          %5797 = vmatprep.subr.mxu0 0.0
          %5798 = vmatpush2.msra.mxu0 0.0
          %5799 = vmatprep.subr.mxu0 0.0
          %5800 = vmatpush2.msra.mxu0 0.0
          %5801 = vmatprep.subr.mxu0 0.0
          %5802 = vmatpush2.msra.mxu0 0.0
          %5803 = vmatprep.subr.mxu0 0.0
          %5804 = vmatpush2.msra.mxu0 0.0
          %5805 = vmatprep.subr.mxu0 0.0
          %5806 = vmatpush2.msra.mxu0 0.0
          %5807 = vmatprep.subr.mxu0 0.0
          %5808 = vmatpush2.msra.mxu0 0.0
          %5809 = vmatprep.subr.mxu0 0.0
          %5810 = vmatpush2.msra.mxu0 0.0
          %5811 = vmatprep.subr.mxu0 0.0
          %5812 = vmatpush2.msra.mxu0 0.0
          %5813 = vmatprep.subr.mxu0 0.0
          %5814 = vmatpush2.msra.mxu0 0.0
          %5815 = vmatprep.subr.mxu0 0.0
          %5816 = vmatpush2.msra.mxu0 0.0
          %5817 = vmatprep.mubr.f32.mxu0 0.0
          %5818 = vmatmul.mubr.f32.gmra.mxu0 %v5745
          %v5819 = vpop.f32.mrf.mxu0
          %v5820 = vadd.f32 0.0, %v5819
          %v5821 = vpop.f32.mrf.mxu0
          %v5822 = vadd.f32 0.0, %v5821
          %5823 = vdwg.mxu0
          %5824 = vmatprep.subr.mxu0 0.0
          %5825 = vmatpush1.msra.mxu0 0.0
          %5826 = vmatprep.subr.mxu0 0.0
          %5827 = vmatpush1.msra.mxu0 0.0
          %5828 = vmatprep.subr.mxu0 0.0
          %5829 = vmatpush1.msra.mxu0 0.0
          %5830 = vmatprep.subr.mxu0 0.0
          %5831 = vmatpush1.msra.mxu0 0.0
          %5832 = vmatprep.subr.mxu0 0.0
          %5833 = vmatpush1.msra.mxu0 0.0
          %5834 = vmatprep.subr.mxu0 0.0
          %5835 = vmatpush1.msra.mxu0 0.0
          %5836 = vmatprep.subr.mxu0 0.0
          %5837 = vmatpush1.msra.mxu0 0.0
          %5838 = vmatprep.subr.mxu0 0.0
          %5839 = vmatpush1.msra.mxu0 0.0
          %5840 = vmatprep.subr.mxu0 0.0
          %5841 = vmatpush1.msra.mxu0 0.0
          %5842 = vmatprep.subr.mxu0 0.0
          %5843 = vmatpush1.msra.mxu0 0.0
          %5844 = vmatprep.subr.mxu0 0.0
          %5845 = vmatpush1.msra.mxu0 0.0
          %5846 = vmatprep.subr.mxu0 0.0
          %5847 = vmatpush1.msra.mxu0 0.0
          %5848 = vmatprep.subr.mxu0 0.0
          %5849 = vmatpush1.msra.mxu0 0.0
          %5850 = vmatprep.subr.mxu0 0.0
          %5851 = vmatpush1.msra.mxu0 0.0
          %5852 = vmatprep.subr.mxu0 0.0
          %5853 = vmatpush1.msra.mxu0 0.0
          %5854 = vmatprep.subr.mxu0 0.0
          %5855 = vmatpush1.msra.mxu0 %v5751
          %5856 = vmatprep.subr.mxu0 0.0
          %5857 = vmatpush2.msra.mxu0 0.0
          %5858 = vmatprep.subr.mxu0 0.0
          %5859 = vmatpush2.msra.mxu0 0.0
          %5860 = vmatprep.subr.mxu0 0.0
          %5861 = vmatpush2.msra.mxu0 0.0
          %5862 = vmatprep.subr.mxu0 0.0
          %5863 = vmatpush2.msra.mxu0 0.0
          %5864 = vmatprep.subr.mxu0 0.0
          %5865 = vmatpush2.msra.mxu0 0.0
          %5866 = vmatprep.subr.mxu0 0.0
          %5867 = vmatpush2.msra.mxu0 0.0
          %5868 = vmatprep.subr.mxu0 0.0
          %5869 = vmatpush2.msra.mxu0 0.0
          %5870 = vmatprep.subr.mxu0 0.0
          %5871 = vmatpush2.msra.mxu0 0.0
          %5872 = vmatprep.subr.mxu0 0.0
          %5873 = vmatpush2.msra.mxu0 0.0
          %5874 = vmatprep.subr.mxu0 0.0
          %5875 = vmatpush2.msra.mxu0 0.0
          %5876 = vmatprep.subr.mxu0 0.0
          %5877 = vmatpush2.msra.mxu0 0.0
          %5878 = vmatprep.subr.mxu0 0.0
          %5879 = vmatpush2.msra.mxu0 0.0
          %5880 = vmatprep.subr.mxu0 0.0
          %5881 = vmatpush2.msra.mxu0 0.0
          %5882 = vmatprep.subr.mxu0 0.0
          %5883 = vmatpush2.msra.mxu0 0.0
          %5884 = vmatprep.subr.mxu0 0.0
          %5885 = vmatpush2.msra.mxu0 0.0
          %5886 = vmatprep.subr.mxu0 0.0
          %5887 = vmatpush2.msra.mxu0 0.0
          %5888 = vmatprep.mubr.f32.mxu0 0.0
          %5889 = vmatmul.mubr.f32.gmra.mxu0 %v5745
          %v5890 = vpop.f32.mrf.mxu0
          %v5891 = vadd.f32 0.0, %v5890
          %v5892 = vpop.f32.mrf.mxu0
          %5893 = vdwg.mxu0
          %v5894 = vadd.f32 %v5726, %v5820
          %v5895 = vadd.f32 %v5727, %v5822
          %v5896 = vadd.f32 %v5728, %v5891
          %v5897 = vld [vmem:[#allocation2] sm:$0xff]
          %v5898 = vld [vmem:[#allocation2 + $0x8] sm:$0xf]
          %s5899 = scalar_lea.vmem %s6, 20
          %v5900 = vld [vmem:[%s5899] sm:$0xf]
          %v5903 = vcombine.high %v5897, %v5897
          %5904 = vrot.lane.b32.xlu0 %v5897, 108
          %v5905 = vpop.permute.xlu0 %5904
          %5906 = vrot.lane.b32.xlu0 %v5903, 108
          %v5907 = vpop.permute.xlu0 %5906
          %5908 = vrot.lane.b32.xlu0 %v5898, 108
          %v5909 = vpop.permute.xlu0 %5908
          %v5910 = vsel %vm2819, %v5905, %v5907
          %v5911 = vsel %vm2819, %v5907, %v5909
          %v5913 = vsel %vm1997, %v5900, 0
          %v5915 = vsel %vm2001, %v5910, 0
          %v5917 = vsel %vm2001, %v5911, 0
          %v5919 = vsel %vm2001, %v5909, 0
          %5921 = vmatprep.subr.mxu0 0.0
          %5922 = vmatpush1.msra.mxu0 0.0
          %5923 = vmatprep.subr.mxu0 0.0
          %5924 = vmatpush1.msra.mxu0 0.0
          %5925 = vmatprep.subr.mxu0 0.0
          %5926 = vmatpush1.msra.mxu0 0.0
          %5927 = vmatprep.subr.mxu0 0.0
          %5928 = vmatpush1.msra.mxu0 0.0
          %5929 = vmatprep.subr.mxu0 0.0
          %5930 = vmatpush1.msra.mxu0 0.0
          %5931 = vmatprep.subr.mxu0 0.0
          %5932 = vmatpush1.msra.mxu0 0.0
          %5933 = vmatprep.subr.mxu0 0.0
          %5934 = vmatpush1.msra.mxu0 0.0
          %5935 = vmatprep.subr.mxu0 0.0
          %5936 = vmatpush1.msra.mxu0 0.0
          %5937 = vmatprep.subr.mxu0 0.0
          %5938 = vmatpush1.msra.mxu0 0.0
          %5939 = vmatprep.subr.mxu0 0.0
          %5940 = vmatpush1.msra.mxu0 0.0
          %5941 = vmatprep.subr.mxu0 0.0
          %5942 = vmatpush1.msra.mxu0 0.0
          %5943 = vmatprep.subr.mxu0 0.0
          %5944 = vmatpush1.msra.mxu0 0.0
          %5945 = vmatprep.subr.mxu0 0.0
          %5946 = vmatpush1.msra.mxu0 0.0
          %5947 = vmatprep.subr.mxu0 0.0
          %5948 = vmatpush1.msra.mxu0 0.0
          %5949 = vmatprep.subr.mxu0 0.0
          %5950 = vmatpush1.msra.mxu0 0.0
          %5951 = vmatprep.subr.mxu0 %v5917
          %5952 = vmatpush1.msra.mxu0 %v5915
          %5953 = vmatprep.subr.mxu0 0.0
          %5954 = vmatpush2.msra.mxu0 0.0
          %5955 = vmatprep.subr.mxu0 0.0
          %5956 = vmatpush2.msra.mxu0 0.0
          %5957 = vmatprep.subr.mxu0 0.0
          %5958 = vmatpush2.msra.mxu0 0.0
          %5959 = vmatprep.subr.mxu0 0.0
          %5960 = vmatpush2.msra.mxu0 0.0
          %5961 = vmatprep.subr.mxu0 0.0
          %5962 = vmatpush2.msra.mxu0 0.0
          %5963 = vmatprep.subr.mxu0 0.0
          %5964 = vmatpush2.msra.mxu0 0.0
          %5965 = vmatprep.subr.mxu0 0.0
          %5966 = vmatpush2.msra.mxu0 0.0
          %5967 = vmatprep.subr.mxu0 0.0
          %5968 = vmatpush2.msra.mxu0 0.0
          %5969 = vmatprep.subr.mxu0 0.0
          %5970 = vmatpush2.msra.mxu0 0.0
          %5971 = vmatprep.subr.mxu0 0.0
          %5972 = vmatpush2.msra.mxu0 0.0
          %5973 = vmatprep.subr.mxu0 0.0
          %5974 = vmatpush2.msra.mxu0 0.0
          %5975 = vmatprep.subr.mxu0 0.0
          %5976 = vmatpush2.msra.mxu0 0.0
          %5977 = vmatprep.subr.mxu0 0.0
          %5978 = vmatpush2.msra.mxu0 0.0
          %5979 = vmatprep.subr.mxu0 0.0
          %5980 = vmatpush2.msra.mxu0 0.0
          %5981 = vmatprep.subr.mxu0 0.0
          %5982 = vmatpush2.msra.mxu0 0.0
          %5983 = vmatprep.subr.mxu0 0.0
          %5984 = vmatpush2.msra.mxu0 0.0
          %5985 = vmatprep.mubr.f32.mxu0 0.0
          %5986 = vmatmul.mubr.f32.gmra.mxu0 %v5913
          %v5987 = vpop.f32.mrf.mxu0
          %v5988 = vadd.f32 0.0, %v5987
          %v5989 = vpop.f32.mrf.mxu0
          %v5990 = vadd.f32 0.0, %v5989
          %5991 = vdwg.mxu0
          %5992 = vmatprep.subr.mxu0 0.0
          %5993 = vmatpush1.msra.mxu0 0.0
          %5994 = vmatprep.subr.mxu0 0.0
          %5995 = vmatpush1.msra.mxu0 0.0
          %5996 = vmatprep.subr.mxu0 0.0
          %5997 = vmatpush1.msra.mxu0 0.0
          %5998 = vmatprep.subr.mxu0 0.0
          %5999 = vmatpush1.msra.mxu0 0.0
          %6000 = vmatprep.subr.mxu0 0.0
          %6001 = vmatpush1.msra.mxu0 0.0
          %6002 = vmatprep.subr.mxu0 0.0
          %6003 = vmatpush1.msra.mxu0 0.0
          %6004 = vmatprep.subr.mxu0 0.0
          %6005 = vmatpush1.msra.mxu0 0.0
          %6006 = vmatprep.subr.mxu0 0.0
          %6007 = vmatpush1.msra.mxu0 0.0
          %6008 = vmatprep.subr.mxu0 0.0
          %6009 = vmatpush1.msra.mxu0 0.0
          %6010 = vmatprep.subr.mxu0 0.0
          %6011 = vmatpush1.msra.mxu0 0.0
          %6012 = vmatprep.subr.mxu0 0.0
          %6013 = vmatpush1.msra.mxu0 0.0
          %6014 = vmatprep.subr.mxu0 0.0
          %6015 = vmatpush1.msra.mxu0 0.0
          %6016 = vmatprep.subr.mxu0 0.0
          %6017 = vmatpush1.msra.mxu0 0.0
          %6018 = vmatprep.subr.mxu0 0.0
          %6019 = vmatpush1.msra.mxu0 0.0
          %6020 = vmatprep.subr.mxu0 0.0
          %6021 = vmatpush1.msra.mxu0 0.0
          %6022 = vmatprep.subr.mxu0 0.0
          %6023 = vmatpush1.msra.mxu0 %v5919
          %6024 = vmatprep.subr.mxu0 0.0
          %6025 = vmatpush2.msra.mxu0 0.0
          %6026 = vmatprep.subr.mxu0 0.0
          %6027 = vmatpush2.msra.mxu0 0.0
          %6028 = vmatprep.subr.mxu0 0.0
          %6029 = vmatpush2.msra.mxu0 0.0
          %6030 = vmatprep.subr.mxu0 0.0
          %6031 = vmatpush2.msra.mxu0 0.0
          %6032 = vmatprep.subr.mxu0 0.0
          %6033 = vmatpush2.msra.mxu0 0.0
          %6034 = vmatprep.subr.mxu0 0.0
          %6035 = vmatpush2.msra.mxu0 0.0
          %6036 = vmatprep.subr.mxu0 0.0
          %6037 = vmatpush2.msra.mxu0 0.0
          %6038 = vmatprep.subr.mxu0 0.0
          %6039 = vmatpush2.msra.mxu0 0.0
          %6040 = vmatprep.subr.mxu0 0.0
          %6041 = vmatpush2.msra.mxu0 0.0
          %6042 = vmatprep.subr.mxu0 0.0
          %6043 = vmatpush2.msra.mxu0 0.0
          %6044 = vmatprep.subr.mxu0 0.0
          %6045 = vmatpush2.msra.mxu0 0.0
          %6046 = vmatprep.subr.mxu0 0.0
          %6047 = vmatpush2.msra.mxu0 0.0
          %6048 = vmatprep.subr.mxu0 0.0
          %6049 = vmatpush2.msra.mxu0 0.0
          %6050 = vmatprep.subr.mxu0 0.0
          %6051 = vmatpush2.msra.mxu0 0.0
          %6052 = vmatprep.subr.mxu0 0.0
          %6053 = vmatpush2.msra.mxu0 0.0
          %6054 = vmatprep.subr.mxu0 0.0
          %6055 = vmatpush2.msra.mxu0 0.0
          %6056 = vmatprep.mubr.f32.mxu0 0.0
          %6057 = vmatmul.mubr.f32.gmra.mxu0 %v5913
          %v6058 = vpop.f32.mrf.mxu0
          %v6059 = vadd.f32 0.0, %v6058
          %v6060 = vpop.f32.mrf.mxu0
          %6061 = vdwg.mxu0
          %v6062 = vadd.f32 %v5894, %v5988
          %v6063 = vadd.f32 %v5895, %v5990
          %v6064 = vadd.f32 %v5896, %v6059
          %v6065 = vld [vmem:[#allocation2] sm:$0xff]
          %v6066 = vld [vmem:[#allocation2 + $0x8] sm:$0xf]
          %s6067 = scalar_lea.vmem %s6, 24
          %v6068 = vld [vmem:[%s6067] sm:$0xf]
          %v6071 = vcombine.high %v6065, %v6065
          %6072 = vrot.lane.b32.xlu0 %v6065, 92
          %v6073 = vpop.permute.xlu0 %6072
          %6074 = vrot.lane.b32.xlu0 %v6071, 92
          %v6075 = vpop.permute.xlu0 %6074
          %6076 = vrot.lane.b32.xlu0 %v6066, 92
          %v6077 = vpop.permute.xlu0 %6076
          %v6078 = vsel %vm2988, %v6073, %v6075
          %v6079 = vsel %vm2988, %v6075, %v6077
          %v6081 = vsel %vm1997, %v6068, 0
          %v6083 = vsel %vm2001, %v6078, 0
          %v6085 = vsel %vm2001, %v6079, 0
          %v6087 = vsel %vm2001, %v6077, 0
          %6089 = vmatprep.subr.mxu0 0.0
          %6090 = vmatpush1.msra.mxu0 0.0
          %6091 = vmatprep.subr.mxu0 0.0
          %6092 = vmatpush1.msra.mxu0 0.0
          %6093 = vmatprep.subr.mxu0 0.0
          %6094 = vmatpush1.msra.mxu0 0.0
          %6095 = vmatprep.subr.mxu0 0.0
          %6096 = vmatpush1.msra.mxu0 0.0
          %6097 = vmatprep.subr.mxu0 0.0
          %6098 = vmatpush1.msra.mxu0 0.0
          %6099 = vmatprep.subr.mxu0 0.0
          %6100 = vmatpush1.msra.mxu0 0.0
          %6101 = vmatprep.subr.mxu0 0.0
          %6102 = vmatpush1.msra.mxu0 0.0
          %6103 = vmatprep.subr.mxu0 0.0
          %6104 = vmatpush1.msra.mxu0 0.0
          %6105 = vmatprep.subr.mxu0 0.0
          %6106 = vmatpush1.msra.mxu0 0.0
          %6107 = vmatprep.subr.mxu0 0.0
          %6108 = vmatpush1.msra.mxu0 0.0
          %6109 = vmatprep.subr.mxu0 0.0
          %6110 = vmatpush1.msra.mxu0 0.0
          %6111 = vmatprep.subr.mxu0 0.0
          %6112 = vmatpush1.msra.mxu0 0.0
          %6113 = vmatprep.subr.mxu0 0.0
          %6114 = vmatpush1.msra.mxu0 0.0
          %6115 = vmatprep.subr.mxu0 0.0
          %6116 = vmatpush1.msra.mxu0 0.0
          %6117 = vmatprep.subr.mxu0 0.0
          %6118 = vmatpush1.msra.mxu0 0.0
          %6119 = vmatprep.subr.mxu0 %v6085
          %6120 = vmatpush1.msra.mxu0 %v6083
          %6121 = vmatprep.subr.mxu0 0.0
          %6122 = vmatpush2.msra.mxu0 0.0
          %6123 = vmatprep.subr.mxu0 0.0
          %6124 = vmatpush2.msra.mxu0 0.0
          %6125 = vmatprep.subr.mxu0 0.0
          %6126 = vmatpush2.msra.mxu0 0.0
          %6127 = vmatprep.subr.mxu0 0.0
          %6128 = vmatpush2.msra.mxu0 0.0
          %6129 = vmatprep.subr.mxu0 0.0
          %6130 = vmatpush2.msra.mxu0 0.0
          %6131 = vmatprep.subr.mxu0 0.0
          %6132 = vmatpush2.msra.mxu0 0.0
          %6133 = vmatprep.subr.mxu0 0.0
          %6134 = vmatpush2.msra.mxu0 0.0
          %6135 = vmatprep.subr.mxu0 0.0
          %6136 = vmatpush2.msra.mxu0 0.0
          %6137 = vmatprep.subr.mxu0 0.0
          %6138 = vmatpush2.msra.mxu0 0.0
          %6139 = vmatprep.subr.mxu0 0.0
          %6140 = vmatpush2.msra.mxu0 0.0
          %6141 = vmatprep.subr.mxu0 0.0
          %6142 = vmatpush2.msra.mxu0 0.0
          %6143 = vmatprep.subr.mxu0 0.0
          %6144 = vmatpush2.msra.mxu0 0.0
          %6145 = vmatprep.subr.mxu0 0.0
          %6146 = vmatpush2.msra.mxu0 0.0
          %6147 = vmatprep.subr.mxu0 0.0
          %6148 = vmatpush2.msra.mxu0 0.0
          %6149 = vmatprep.subr.mxu0 0.0
          %6150 = vmatpush2.msra.mxu0 0.0
          %6151 = vmatprep.subr.mxu0 0.0
          %6152 = vmatpush2.msra.mxu0 0.0
          %6153 = vmatprep.mubr.f32.mxu0 0.0
          %6154 = vmatmul.mubr.f32.gmra.mxu0 %v6081
          %v6155 = vpop.f32.mrf.mxu0
          %v6156 = vadd.f32 0.0, %v6155
          %v6157 = vpop.f32.mrf.mxu0
          %v6158 = vadd.f32 0.0, %v6157
          %6159 = vdwg.mxu0
          %6160 = vmatprep.subr.mxu0 0.0
          %6161 = vmatpush1.msra.mxu0 0.0
          %6162 = vmatprep.subr.mxu0 0.0
          %6163 = vmatpush1.msra.mxu0 0.0
          %6164 = vmatprep.subr.mxu0 0.0
          %6165 = vmatpush1.msra.mxu0 0.0
          %6166 = vmatprep.subr.mxu0 0.0
          %6167 = vmatpush1.msra.mxu0 0.0
          %6168 = vmatprep.subr.mxu0 0.0
          %6169 = vmatpush1.msra.mxu0 0.0
          %6170 = vmatprep.subr.mxu0 0.0
          %6171 = vmatpush1.msra.mxu0 0.0
          %6172 = vmatprep.subr.mxu0 0.0
          %6173 = vmatpush1.msra.mxu0 0.0
          %6174 = vmatprep.subr.mxu0 0.0
          %6175 = vmatpush1.msra.mxu0 0.0
          %6176 = vmatprep.subr.mxu0 0.0
          %6177 = vmatpush1.msra.mxu0 0.0
          %6178 = vmatprep.subr.mxu0 0.0
          %6179 = vmatpush1.msra.mxu0 0.0
          %6180 = vmatprep.subr.mxu0 0.0
          %6181 = vmatpush1.msra.mxu0 0.0
          %6182 = vmatprep.subr.mxu0 0.0
          %6183 = vmatpush1.msra.mxu0 0.0
          %6184 = vmatprep.subr.mxu0 0.0
          %6185 = vmatpush1.msra.mxu0 0.0
          %6186 = vmatprep.subr.mxu0 0.0
          %6187 = vmatpush1.msra.mxu0 0.0
          %6188 = vmatprep.subr.mxu0 0.0
          %6189 = vmatpush1.msra.mxu0 0.0
          %6190 = vmatprep.subr.mxu0 0.0
          %6191 = vmatpush1.msra.mxu0 %v6087
          %6192 = vmatprep.subr.mxu0 0.0
          %6193 = vmatpush2.msra.mxu0 0.0
          %6194 = vmatprep.subr.mxu0 0.0
          %6195 = vmatpush2.msra.mxu0 0.0
          %6196 = vmatprep.subr.mxu0 0.0
          %6197 = vmatpush2.msra.mxu0 0.0
          %6198 = vmatprep.subr.mxu0 0.0
          %6199 = vmatpush2.msra.mxu0 0.0
          %6200 = vmatprep.subr.mxu0 0.0
          %6201 = vmatpush2.msra.mxu0 0.0
          %6202 = vmatprep.subr.mxu0 0.0
          %6203 = vmatpush2.msra.mxu0 0.0
          %6204 = vmatprep.subr.mxu0 0.0
          %6205 = vmatpush2.msra.mxu0 0.0
          %6206 = vmatprep.subr.mxu0 0.0
          %6207 = vmatpush2.msra.mxu0 0.0
          %6208 = vmatprep.subr.mxu0 0.0
          %6209 = vmatpush2.msra.mxu0 0.0
          %6210 = vmatprep.subr.mxu0 0.0
          %6211 = vmatpush2.msra.mxu0 0.0
          %6212 = vmatprep.subr.mxu0 0.0
          %6213 = vmatpush2.msra.mxu0 0.0
          %6214 = vmatprep.subr.mxu0 0.0
          %6215 = vmatpush2.msra.mxu0 0.0
          %6216 = vmatprep.subr.mxu0 0.0
          %6217 = vmatpush2.msra.mxu0 0.0
          %6218 = vmatprep.subr.mxu0 0.0
          %6219 = vmatpush2.msra.mxu0 0.0
          %6220 = vmatprep.subr.mxu0 0.0
          %6221 = vmatpush2.msra.mxu0 0.0
          %6222 = vmatprep.subr.mxu0 0.0
          %6223 = vmatpush2.msra.mxu0 0.0
          %6224 = vmatprep.mubr.f32.mxu0 0.0
          %6225 = vmatmul.mubr.f32.gmra.mxu0 %v6081
          %v6226 = vpop.f32.mrf.mxu0
          %v6227 = vadd.f32 0.0, %v6226
          %v6228 = vpop.f32.mrf.mxu0
          %6229 = vdwg.mxu0
          %v6230 = vadd.f32 %v6062, %v6156
          %v6231 = vadd.f32 %v6063, %v6158
          %v6232 = vadd.f32 %v6064, %v6227
          %v6233 = vld [vmem:[#allocation2] sm:$0xff]
          %v6234 = vld [vmem:[#allocation2 + $0x8] sm:$0xf]
          %s6235 = scalar_lea.vmem %s6, 28
          %v6236 = vld [vmem:[%s6235] sm:$0xf]
          %v6239 = vcombine.high %v6233, %v6233
          %6240 = vrot.lane.b32.xlu0 %v6233, 91
          %v6241 = vpop.permute.xlu0 %6240
          %6242 = vrot.lane.b32.xlu0 %v6239, 91
          %v6243 = vpop.permute.xlu0 %6242
          %6244 = vrot.lane.b32.xlu0 %v6234, 91
          %v6245 = vpop.permute.xlu0 %6244
          %v6246 = vsel %vm3157, %v6241, %v6243
          %v6247 = vsel %vm3157, %v6243, %v6245
          %v6249 = vsel %vm1997, %v6236, 0
          %v6251 = vsel %vm2001, %v6246, 0
          %v6253 = vsel %vm2001, %v6247, 0
          %v6255 = vsel %vm2001, %v6245, 0
          %6257 = vmatprep.subr.mxu0 0.0
          %6258 = vmatpush1.msra.mxu0 0.0
          %6259 = vmatprep.subr.mxu0 0.0
          %6260 = vmatpush1.msra.mxu0 0.0
          %6261 = vmatprep.subr.mxu0 0.0
          %6262 = vmatpush1.msra.mxu0 0.0
          %6263 = vmatprep.subr.mxu0 0.0
          %6264 = vmatpush1.msra.mxu0 0.0
          %6265 = vmatprep.subr.mxu0 0.0
          %6266 = vmatpush1.msra.mxu0 0.0
          %6267 = vmatprep.subr.mxu0 0.0
          %6268 = vmatpush1.msra.mxu0 0.0
          %6269 = vmatprep.subr.mxu0 0.0
          %6270 = vmatpush1.msra.mxu0 0.0
          %6271 = vmatprep.subr.mxu0 0.0
          %6272 = vmatpush1.msra.mxu0 0.0
          %6273 = vmatprep.subr.mxu0 0.0
          %6274 = vmatpush1.msra.mxu0 0.0
          %6275 = vmatprep.subr.mxu0 0.0
          %6276 = vmatpush1.msra.mxu0 0.0
          %6277 = vmatprep.subr.mxu0 0.0
          %6278 = vmatpush1.msra.mxu0 0.0
          %6279 = vmatprep.subr.mxu0 0.0
          %6280 = vmatpush1.msra.mxu0 0.0
          %6281 = vmatprep.subr.mxu0 0.0
          %6282 = vmatpush1.msra.mxu0 0.0
          %6283 = vmatprep.subr.mxu0 0.0
          %6284 = vmatpush1.msra.mxu0 0.0
          %6285 = vmatprep.subr.mxu0 0.0
          %6286 = vmatpush1.msra.mxu0 0.0
          %6287 = vmatprep.subr.mxu0 %v6253
          %6288 = vmatpush1.msra.mxu0 %v6251
          %6289 = vmatprep.subr.mxu0 0.0
          %6290 = vmatpush2.msra.mxu0 0.0
          %6291 = vmatprep.subr.mxu0 0.0
          %6292 = vmatpush2.msra.mxu0 0.0
          %6293 = vmatprep.subr.mxu0 0.0
          %6294 = vmatpush2.msra.mxu0 0.0
          %6295 = vmatprep.subr.mxu0 0.0
          %6296 = vmatpush2.msra.mxu0 0.0
          %6297 = vmatprep.subr.mxu0 0.0
          %6298 = vmatpush2.msra.mxu0 0.0
          %6299 = vmatprep.subr.mxu0 0.0
          %6300 = vmatpush2.msra.mxu0 0.0
          %6301 = vmatprep.subr.mxu0 0.0
          %6302 = vmatpush2.msra.mxu0 0.0
          %6303 = vmatprep.subr.mxu0 0.0
          %6304 = vmatpush2.msra.mxu0 0.0
          %6305 = vmatprep.subr.mxu0 0.0
          %6306 = vmatpush2.msra.mxu0 0.0
          %6307 = vmatprep.subr.mxu0 0.0
          %6308 = vmatpush2.msra.mxu0 0.0
          %6309 = vmatprep.subr.mxu0 0.0
          %6310 = vmatpush2.msra.mxu0 0.0
          %6311 = vmatprep.subr.mxu0 0.0
          %6312 = vmatpush2.msra.mxu0 0.0
          %6313 = vmatprep.subr.mxu0 0.0
          %6314 = vmatpush2.msra.mxu0 0.0
          %6315 = vmatprep.subr.mxu0 0.0
          %6316 = vmatpush2.msra.mxu0 0.0
          %6317 = vmatprep.subr.mxu0 0.0
          %6318 = vmatpush2.msra.mxu0 0.0
          %6319 = vmatprep.subr.mxu0 0.0
          %6320 = vmatpush2.msra.mxu0 0.0
          %6321 = vmatprep.mubr.f32.mxu0 0.0
          %6322 = vmatmul.mubr.f32.gmra.mxu0 %v6249
          %v6323 = vpop.f32.mrf.mxu0
          %v6324 = vadd.f32 0.0, %v6323
          %v6325 = vpop.f32.mrf.mxu0
          %v6326 = vadd.f32 0.0, %v6325
          %6327 = vdwg.mxu0
          %6328 = vmatprep.subr.mxu0 0.0
          %6329 = vmatpush1.msra.mxu0 0.0
          %6330 = vmatprep.subr.mxu0 0.0
          %6331 = vmatpush1.msra.mxu0 0.0
          %6332 = vmatprep.subr.mxu0 0.0
          %6333 = vmatpush1.msra.mxu0 0.0
          %6334 = vmatprep.subr.mxu0 0.0
          %6335 = vmatpush1.msra.mxu0 0.0
          %6336 = vmatprep.subr.mxu0 0.0
          %6337 = vmatpush1.msra.mxu0 0.0
          %6338 = vmatprep.subr.mxu0 0.0
          %6339 = vmatpush1.msra.mxu0 0.0
          %6340 = vmatprep.subr.mxu0 0.0
          %6341 = vmatpush1.msra.mxu0 0.0
          %6342 = vmatprep.subr.mxu0 0.0
          %6343 = vmatpush1.msra.mxu0 0.0
          %6344 = vmatprep.subr.mxu0 0.0
          %6345 = vmatpush1.msra.mxu0 0.0
          %6346 = vmatprep.subr.mxu0 0.0
          %6347 = vmatpush1.msra.mxu0 0.0
          %6348 = vmatprep.subr.mxu0 0.0
          %6349 = vmatpush1.msra.mxu0 0.0
          %6350 = vmatprep.subr.mxu0 0.0
          %6351 = vmatpush1.msra.mxu0 0.0
          %6352 = vmatprep.subr.mxu0 0.0
          %6353 = vmatpush1.msra.mxu0 0.0
          %6354 = vmatprep.subr.mxu0 0.0
          %6355 = vmatpush1.msra.mxu0 0.0
          %6356 = vmatprep.subr.mxu0 0.0
          %6357 = vmatpush1.msra.mxu0 0.0
          %6358 = vmatprep.subr.mxu0 0.0
          %6359 = vmatpush1.msra.mxu0 %v6255
          %6360 = vmatprep.subr.mxu0 0.0
          %6361 = vmatpush2.msra.mxu0 0.0
          %6362 = vmatprep.subr.mxu0 0.0
          %6363 = vmatpush2.msra.mxu0 0.0
          %6364 = vmatprep.subr.mxu0 0.0
          %6365 = vmatpush2.msra.mxu0 0.0
          %6366 = vmatprep.subr.mxu0 0.0
          %6367 = vmatpush2.msra.mxu0 0.0
          %6368 = vmatprep.subr.mxu0 0.0
          %6369 = vmatpush2.msra.mxu0 0.0
          %6370 = vmatprep.subr.mxu0 0.0
          %6371 = vmatpush2.msra.mxu0 0.0
          %6372 = vmatprep.subr.mxu0 0.0
          %6373 = vmatpush2.msra.mxu0 0.0
          %6374 = vmatprep.subr.mxu0 0.0
          %6375 = vmatpush2.msra.mxu0 0.0
          %6376 = vmatprep.subr.mxu0 0.0
          %6377 = vmatpush2.msra.mxu0 0.0
          %6378 = vmatprep.subr.mxu0 0.0
          %6379 = vmatpush2.msra.mxu0 0.0
          %6380 = vmatprep.subr.mxu0 0.0
          %6381 = vmatpush2.msra.mxu0 0.0
          %6382 = vmatprep.subr.mxu0 0.0
          %6383 = vmatpush2.msra.mxu0 0.0
          %6384 = vmatprep.subr.mxu0 0.0
          %6385 = vmatpush2.msra.mxu0 0.0
          %6386 = vmatprep.subr.mxu0 0.0
          %6387 = vmatpush2.msra.mxu0 0.0
          %6388 = vmatprep.subr.mxu0 0.0
          %6389 = vmatpush2.msra.mxu0 0.0
          %6390 = vmatprep.subr.mxu0 0.0
          %6391 = vmatpush2.msra.mxu0 0.0
          %6392 = vmatprep.mubr.f32.mxu0 0.0
          %6393 = vmatmul.mubr.f32.gmra.mxu0 %v6249
          %v6394 = vpop.f32.mrf.mxu0
          %v6395 = vadd.f32 0.0, %v6394
          %v6396 = vpop.f32.mrf.mxu0
          %6397 = vdwg.mxu0
          %v6398 = vadd.f32 %v6230, %v6324
          %v6399 = vadd.f32 %v6231, %v6326
          %v6400 = vadd.f32 %v6232, %v6395
          %v6401 = vld [vmem:[#allocation2] sm:$0xff]
          %v6402 = vld [vmem:[#allocation2 + $0x8] sm:$0xf]
          %s6403 = scalar_lea.vmem %s6, 32
          %v6404 = vld [vmem:[%s6403] sm:$0xf]
          %v6407 = vcombine.high %v6401, %v6401
          %6408 = vrot.lane.b32.xlu0 %v6401, 90
          %v6409 = vpop.permute.xlu0 %6408
          %6410 = vrot.lane.b32.xlu0 %v6407, 90
          %v6411 = vpop.permute.xlu0 %6410
          %6412 = vrot.lane.b32.xlu0 %v6402, 90
          %v6413 = vpop.permute.xlu0 %6412
          %v6414 = vsel %vm3326, %v6409, %v6411
          %v6415 = vsel %vm3326, %v6411, %v6413
          %v6417 = vsel %vm1997, %v6404, 0
          %v6419 = vsel %vm2001, %v6414, 0
          %v6421 = vsel %vm2001, %v6415, 0
          %v6423 = vsel %vm2001, %v6413, 0
          %6425 = vmatprep.subr.mxu0 0.0
          %6426 = vmatpush1.msra.mxu0 0.0
          %6427 = vmatprep.subr.mxu0 0.0
          %6428 = vmatpush1.msra.mxu0 0.0
          %6429 = vmatprep.subr.mxu0 0.0
          %6430 = vmatpush1.msra.mxu0 0.0
          %6431 = vmatprep.subr.mxu0 0.0
          %6432 = vmatpush1.msra.mxu0 0.0
          %6433 = vmatprep.subr.mxu0 0.0
          %6434 = vmatpush1.msra.mxu0 0.0
          %6435 = vmatprep.subr.mxu0 0.0
          %6436 = vmatpush1.msra.mxu0 0.0
          %6437 = vmatprep.subr.mxu0 0.0
          %6438 = vmatpush1.msra.mxu0 0.0
          %6439 = vmatprep.subr.mxu0 0.0
          %6440 = vmatpush1.msra.mxu0 0.0
          %6441 = vmatprep.subr.mxu0 0.0
          %6442 = vmatpush1.msra.mxu0 0.0
          %6443 = vmatprep.subr.mxu0 0.0
          %6444 = vmatpush1.msra.mxu0 0.0
          %6445 = vmatprep.subr.mxu0 0.0
          %6446 = vmatpush1.msra.mxu0 0.0
          %6447 = vmatprep.subr.mxu0 0.0
          %6448 = vmatpush1.msra.mxu0 0.0
          %6449 = vmatprep.subr.mxu0 0.0
          %6450 = vmatpush1.msra.mxu0 0.0
          %6451 = vmatprep.subr.mxu0 0.0
          %6452 = vmatpush1.msra.mxu0 0.0
          %6453 = vmatprep.subr.mxu0 0.0
          %6454 = vmatpush1.msra.mxu0 0.0
          %6455 = vmatprep.subr.mxu0 %v6421
          %6456 = vmatpush1.msra.mxu0 %v6419
          %6457 = vmatprep.subr.mxu0 0.0
          %6458 = vmatpush2.msra.mxu0 0.0
          %6459 = vmatprep.subr.mxu0 0.0
          %6460 = vmatpush2.msra.mxu0 0.0
          %6461 = vmatprep.subr.mxu0 0.0
          %6462 = vmatpush2.msra.mxu0 0.0
          %6463 = vmatprep.subr.mxu0 0.0
          %6464 = vmatpush2.msra.mxu0 0.0
          %6465 = vmatprep.subr.mxu0 0.0
          %6466 = vmatpush2.msra.mxu0 0.0
          %6467 = vmatprep.subr.mxu0 0.0
          %6468 = vmatpush2.msra.mxu0 0.0
          %6469 = vmatprep.subr.mxu0 0.0
          %6470 = vmatpush2.msra.mxu0 0.0
          %6471 = vmatprep.subr.mxu0 0.0
          %6472 = vmatpush2.msra.mxu0 0.0
          %6473 = vmatprep.subr.mxu0 0.0
          %6474 = vmatpush2.msra.mxu0 0.0
          %6475 = vmatprep.subr.mxu0 0.0
          %6476 = vmatpush2.msra.mxu0 0.0
          %6477 = vmatprep.subr.mxu0 0.0
          %6478 = vmatpush2.msra.mxu0 0.0
          %6479 = vmatprep.subr.mxu0 0.0
          %6480 = vmatpush2.msra.mxu0 0.0
          %6481 = vmatprep.subr.mxu0 0.0
          %6482 = vmatpush2.msra.mxu0 0.0
          %6483 = vmatprep.subr.mxu0 0.0
          %6484 = vmatpush2.msra.mxu0 0.0
          %6485 = vmatprep.subr.mxu0 0.0
          %6486 = vmatpush2.msra.mxu0 0.0
          %6487 = vmatprep.subr.mxu0 0.0
          %6488 = vmatpush2.msra.mxu0 0.0
          %6489 = vmatprep.mubr.f32.mxu0 0.0
          %6490 = vmatmul.mubr.f32.gmra.mxu0 %v6417
          %v6491 = vpop.f32.mrf.mxu0
          %v6492 = vadd.f32 0.0, %v6491
          %v6493 = vpop.f32.mrf.mxu0
          %v6494 = vadd.f32 0.0, %v6493
          %6495 = vdwg.mxu0
          %6496 = vmatprep.subr.mxu0 0.0
          %6497 = vmatpush1.msra.mxu0 0.0
          %6498 = vmatprep.subr.mxu0 0.0
          %6499 = vmatpush1.msra.mxu0 0.0
          %6500 = vmatprep.subr.mxu0 0.0
          %6501 = vmatpush1.msra.mxu0 0.0
          %6502 = vmatprep.subr.mxu0 0.0
          %6503 = vmatpush1.msra.mxu0 0.0
          %6504 = vmatprep.subr.mxu0 0.0
          %6505 = vmatpush1.msra.mxu0 0.0
          %6506 = vmatprep.subr.mxu0 0.0
          %6507 = vmatpush1.msra.mxu0 0.0
          %6508 = vmatprep.subr.mxu0 0.0
          %6509 = vmatpush1.msra.mxu0 0.0
          %6510 = vmatprep.subr.mxu0 0.0
          %6511 = vmatpush1.msra.mxu0 0.0
          %6512 = vmatprep.subr.mxu0 0.0
          %6513 = vmatpush1.msra.mxu0 0.0
          %6514 = vmatprep.subr.mxu0 0.0
          %6515 = vmatpush1.msra.mxu0 0.0
          %6516 = vmatprep.subr.mxu0 0.0
          %6517 = vmatpush1.msra.mxu0 0.0
          %6518 = vmatprep.subr.mxu0 0.0
          %6519 = vmatpush1.msra.mxu0 0.0
          %6520 = vmatprep.subr.mxu0 0.0
          %6521 = vmatpush1.msra.mxu0 0.0
          %6522 = vmatprep.subr.mxu0 0.0
          %6523 = vmatpush1.msra.mxu0 0.0
          %6524 = vmatprep.subr.mxu0 0.0
          %6525 = vmatpush1.msra.mxu0 0.0
          %6526 = vmatprep.subr.mxu0 0.0
          %6527 = vmatpush1.msra.mxu0 %v6423
          %6528 = vmatprep.subr.mxu0 0.0
          %6529 = vmatpush2.msra.mxu0 0.0
          %6530 = vmatprep.subr.mxu0 0.0
          %6531 = vmatpush2.msra.mxu0 0.0
          %6532 = vmatprep.subr.mxu0 0.0
          %6533 = vmatpush2.msra.mxu0 0.0
          %6534 = vmatprep.subr.mxu0 0.0
          %6535 = vmatpush2.msra.mxu0 0.0
          %6536 = vmatprep.subr.mxu0 0.0
          %6537 = vmatpush2.msra.mxu0 0.0
          %6538 = vmatprep.subr.mxu0 0.0
          %6539 = vmatpush2.msra.mxu0 0.0
          %6540 = vmatprep.subr.mxu0 0.0
          %6541 = vmatpush2.msra.mxu0 0.0
          %6542 = vmatprep.subr.mxu0 0.0
          %6543 = vmatpush2.msra.mxu0 0.0
          %6544 = vmatprep.subr.mxu0 0.0
          %6545 = vmatpush2.msra.mxu0 0.0
          %6546 = vmatprep.subr.mxu0 0.0
          %6547 = vmatpush2.msra.mxu0 0.0
          %6548 = vmatprep.subr.mxu0 0.0
          %6549 = vmatpush2.msra.mxu0 0.0
          %6550 = vmatprep.subr.mxu0 0.0
          %6551 = vmatpush2.msra.mxu0 0.0
          %6552 = vmatprep.subr.mxu0 0.0
          %6553 = vmatpush2.msra.mxu0 0.0
          %6554 = vmatprep.subr.mxu0 0.0
          %6555 = vmatpush2.msra.mxu0 0.0
          %6556 = vmatprep.subr.mxu0 0.0
          %6557 = vmatpush2.msra.mxu0 0.0
          %6558 = vmatprep.subr.mxu0 0.0
          %6559 = vmatpush2.msra.mxu0 0.0
          %6560 = vmatprep.mubr.f32.mxu0 0.0
          %6561 = vmatmul.mubr.f32.gmra.mxu0 %v6417
          %v6562 = vpop.f32.mrf.mxu0
          %v6563 = vadd.f32 0.0, %v6562
          %v6564 = vpop.f32.mrf.mxu0
          %6565 = vdwg.mxu0
          %v6566 = vadd.f32 %v6398, %v6492
          %v6567 = vadd.f32 %v6399, %v6494
          %v6568 = vadd.f32 %v6400, %v6563
          %6570 = vset.pattern.permute.xlu0 0
          %6571 = vperm.xlu0 %6570, %v5076
          %v6572 = vpop.permute.xlu0 %6571
          %v6574 = vadd.f32 %v6566, %v6572
          %v6575 = vadd.f32 %v6567, %v6572
          %v6576 = vadd.f32 %v6568, %v6572
          %v6577 = vld [vmem:[#allocation4] sm:$0xff]
          %v6578 = vld [vmem:[#allocation4 + $0x8] sm:$0xf]
          %v6580 = vcombine.high %v6577, %v6577
          %v6582 = vadd.f32 %v6574, %v6577
          %v6583 = vadd.f32 %v6575, %v6580
          %v6584 = vadd.f32 %v6576, %v6578
          %v6585 = vmul.f32 %v6582, %v3497
          %v6586 = vmul.f32 %v6583, %v3501
          %v6587 = vmul.f32 %v6584, %v3505
          %v6591 = vcombine.low %v6585, %v6586
          %6592 = vrot.lane.b32.xlu0 %v6591, 19
          %v6593 = vpop.permute.xlu0 %6592
          %6594 = vrot.lane.b32.xlu0 %v6587, 19
          %v6595 = vpop.permute.xlu0 %6594
          %v6596 = vrot.slane %v6593, 4
          %v6597 = vsel %vm3521, %v6596, %v6593
          %v6598 = vsel %vm3521, %v6596, %v6595
          %6601 = vst.msk [vmem:[#allocation3] sm:$0xff] %vm3528, %v6597
          %6602 = vst.msk [vmem:[#allocation3 + $0x8] sm:$0xf] %vm3530, %v6598
          %v6603 = vld [vmem:[%s9] sm:$0xff]
          %v6604 = vld [vmem:[%s9 + $0x8] sm:$0xff]
          %v6605 = vld [vmem:[#allocation3] sm:$0xff]
          %v6606 = vld [vmem:[#allocation3 + $0x8] sm:$0xf]
          %v6607 = vld [vmem:[%s8] sm:$0xff]
          %v6608 = vld [vmem:[%s8 + $0x8] sm:$0xff]
          %s6609 = scalar_lea.vmem %s8, 16
          %v6610 = vld [vmem:[%s6609] sm:$0xff]
          %v6611 = vld [vmem:[%s6609 + $0x8] sm:$0xff]
          %v6614 = vcombine.high %v6605, %v6605
          %6615 = vrot.lane.b32.xlu0 %v6605, 127
          %v6616 = vpop.permute.xlu0 %6615
          %6617 = vrot.lane.b32.xlu0 %v6614, 127
          %v6618 = vpop.permute.xlu0 %6617
          %6619 = vrot.lane.b32.xlu0 %v6606, 127
          %v6620 = vpop.permute.xlu0 %6619
          %v6621 = vsel %vm1994, %v6616, %v6618
          %v6622 = vsel %vm1994, %v6618, %v6620
          %v6624 = vsel %vm1997, %v6610, 0
          %v6627 = vsel %vm1997, %v6611, 0
          %v6629 = vsel %vm2001, %v6621, 0
          %v6631 = vsel %vm2001, %v6622, 0
          %v6633 = vsel %vm2001, %v6620, 0
          %6635 = vmatprep.subr.mxu0 0.0
          %6636 = vmatpush1.msra.mxu0 0.0
          %6637 = vmatprep.subr.mxu0 0.0
          %6638 = vmatpush1.msra.mxu0 0.0
          %6639 = vmatprep.subr.mxu0 0.0
          %6640 = vmatpush1.msra.mxu0 0.0
          %6641 = vmatprep.subr.mxu0 0.0
          %6642 = vmatpush1.msra.mxu0 0.0
          %6643 = vmatprep.subr.mxu0 0.0
          %6644 = vmatpush1.msra.mxu0 0.0
          %6645 = vmatprep.subr.mxu0 0.0
          %6646 = vmatpush1.msra.mxu0 0.0
          %6647 = vmatprep.subr.mxu0 0.0
          %6648 = vmatpush1.msra.mxu0 0.0
          %6649 = vmatprep.subr.mxu0 0.0
          %6650 = vmatpush1.msra.mxu0 0.0
          %6651 = vmatprep.subr.mxu0 0.0
          %6652 = vmatpush1.msra.mxu0 0.0
          %6653 = vmatprep.subr.mxu0 0.0
          %6654 = vmatpush1.msra.mxu0 0.0
          %6655 = vmatprep.subr.mxu0 0.0
          %6656 = vmatpush1.msra.mxu0 0.0
          %6657 = vmatprep.subr.mxu0 0.0
          %6658 = vmatpush1.msra.mxu0 0.0
          %6659 = vmatprep.subr.mxu0 0.0
          %6660 = vmatpush1.msra.mxu0 0.0
          %6661 = vmatprep.subr.mxu0 0.0
          %6662 = vmatpush1.msra.mxu0 0.0
          %6663 = vmatprep.subr.mxu0 0.0
          %6664 = vmatpush1.msra.mxu0 0.0
          %6665 = vmatprep.subr.mxu0 %v6631
          %6666 = vmatpush1.msra.mxu0 %v6629
          %6667 = vmatprep.subr.mxu0 0.0
          %6668 = vmatpush2.msra.mxu0 0.0
          %6669 = vmatprep.subr.mxu0 0.0
          %6670 = vmatpush2.msra.mxu0 0.0
          %6671 = vmatprep.subr.mxu0 0.0
          %6672 = vmatpush2.msra.mxu0 0.0
          %6673 = vmatprep.subr.mxu0 0.0
          %6674 = vmatpush2.msra.mxu0 0.0
          %6675 = vmatprep.subr.mxu0 0.0
          %6676 = vmatpush2.msra.mxu0 0.0
          %6677 = vmatprep.subr.mxu0 0.0
          %6678 = vmatpush2.msra.mxu0 0.0
          %6679 = vmatprep.subr.mxu0 0.0
          %6680 = vmatpush2.msra.mxu0 0.0
          %6681 = vmatprep.subr.mxu0 0.0
          %6682 = vmatpush2.msra.mxu0 0.0
          %6683 = vmatprep.subr.mxu0 0.0
          %6684 = vmatpush2.msra.mxu0 0.0
          %6685 = vmatprep.subr.mxu0 0.0
          %6686 = vmatpush2.msra.mxu0 0.0
          %6687 = vmatprep.subr.mxu0 0.0
          %6688 = vmatpush2.msra.mxu0 0.0
          %6689 = vmatprep.subr.mxu0 0.0
          %6690 = vmatpush2.msra.mxu0 0.0
          %6691 = vmatprep.subr.mxu0 0.0
          %6692 = vmatpush2.msra.mxu0 0.0
          %6693 = vmatprep.subr.mxu0 0.0
          %6694 = vmatpush2.msra.mxu0 0.0
          %6695 = vmatprep.subr.mxu0 0.0
          %6696 = vmatpush2.msra.mxu0 0.0
          %6697 = vmatprep.subr.mxu0 0.0
          %6698 = vmatpush2.msra.mxu0 0.0
          %6699 = vmatprep.mubr.f32.mxu0 0.0
          %6700 = vmatmul.mubr.f32.gmra.mxu0 %v6624
          %v6701 = vpop.f32.mrf.mxu0
          %v6702 = vadd.f32 0.0, %v6701
          %v6703 = vpop.f32.mrf.mxu0
          %v6704 = vadd.f32 0.0, %v6703
          %6705 = vmatprep.mubr.f32.mxu0 0.0
          %6706 = vmatmul.mubr.f32.gmra.mxu0 %v6627
          %v6707 = vpop.f32.mrf.mxu0
          %v6708 = vadd.f32 0.0, %v6707
          %v6709 = vpop.f32.mrf.mxu0
          %v6710 = vadd.f32 0.0, %v6709
          %6711 = vdwg.mxu0
          %6712 = vmatprep.subr.mxu0 0.0
          %6713 = vmatpush1.msra.mxu0 0.0
          %6714 = vmatprep.subr.mxu0 0.0
          %6715 = vmatpush1.msra.mxu0 0.0
          %6716 = vmatprep.subr.mxu0 0.0
          %6717 = vmatpush1.msra.mxu0 0.0
          %6718 = vmatprep.subr.mxu0 0.0
          %6719 = vmatpush1.msra.mxu0 0.0
          %6720 = vmatprep.subr.mxu0 0.0
          %6721 = vmatpush1.msra.mxu0 0.0
          %6722 = vmatprep.subr.mxu0 0.0
          %6723 = vmatpush1.msra.mxu0 0.0
          %6724 = vmatprep.subr.mxu0 0.0
          %6725 = vmatpush1.msra.mxu0 0.0
          %6726 = vmatprep.subr.mxu0 0.0
          %6727 = vmatpush1.msra.mxu0 0.0
          %6728 = vmatprep.subr.mxu0 0.0
          %6729 = vmatpush1.msra.mxu0 0.0
          %6730 = vmatprep.subr.mxu0 0.0
          %6731 = vmatpush1.msra.mxu0 0.0
          %6732 = vmatprep.subr.mxu0 0.0
          %6733 = vmatpush1.msra.mxu0 0.0
          %6734 = vmatprep.subr.mxu0 0.0
          %6735 = vmatpush1.msra.mxu0 0.0
          %6736 = vmatprep.subr.mxu0 0.0
          %6737 = vmatpush1.msra.mxu0 0.0
          %6738 = vmatprep.subr.mxu0 0.0
          %6739 = vmatpush1.msra.mxu0 0.0
          %6740 = vmatprep.subr.mxu0 0.0
          %6741 = vmatpush1.msra.mxu0 0.0
          %6742 = vmatprep.subr.mxu0 0.0
          %6743 = vmatpush1.msra.mxu0 %v6633
          %6744 = vmatprep.subr.mxu0 0.0
          %6745 = vmatpush2.msra.mxu0 0.0
          %6746 = vmatprep.subr.mxu0 0.0
          %6747 = vmatpush2.msra.mxu0 0.0
          %6748 = vmatprep.subr.mxu0 0.0
          %6749 = vmatpush2.msra.mxu0 0.0
          %6750 = vmatprep.subr.mxu0 0.0
          %6751 = vmatpush2.msra.mxu0 0.0
          %6752 = vmatprep.subr.mxu0 0.0
          %6753 = vmatpush2.msra.mxu0 0.0
          %6754 = vmatprep.subr.mxu0 0.0
          %6755 = vmatpush2.msra.mxu0 0.0
          %6756 = vmatprep.subr.mxu0 0.0
          %6757 = vmatpush2.msra.mxu0 0.0
          %6758 = vmatprep.subr.mxu0 0.0
          %6759 = vmatpush2.msra.mxu0 0.0
          %6760 = vmatprep.subr.mxu0 0.0
          %6761 = vmatpush2.msra.mxu0 0.0
          %6762 = vmatprep.subr.mxu0 0.0
          %6763 = vmatpush2.msra.mxu0 0.0
          %6764 = vmatprep.subr.mxu0 0.0
          %6765 = vmatpush2.msra.mxu0 0.0
          %6766 = vmatprep.subr.mxu0 0.0
          %6767 = vmatpush2.msra.mxu0 0.0
          %6768 = vmatprep.subr.mxu0 0.0
          %6769 = vmatpush2.msra.mxu0 0.0
          %6770 = vmatprep.subr.mxu0 0.0
          %6771 = vmatpush2.msra.mxu0 0.0
          %6772 = vmatprep.subr.mxu0 0.0
          %6773 = vmatpush2.msra.mxu0 0.0
          %6774 = vmatprep.subr.mxu0 0.0
          %6775 = vmatpush2.msra.mxu0 0.0
          %6776 = vmatprep.mubr.f32.mxu0 0.0
          %6777 = vmatmul.mubr.f32.gmra.mxu0 %v6624
          %v6778 = vpop.f32.mrf.mxu0
          %v6779 = vadd.f32 0.0, %v6778
          %v6780 = vpop.f32.mrf.mxu0
          %6781 = vmatprep.mubr.f32.mxu0 0.0
          %6782 = vmatmul.mubr.f32.gmra.mxu0 %v6627
          %v6783 = vpop.f32.mrf.mxu0
          %v6784 = vadd.f32 0.0, %v6783
          %v6785 = vpop.f32.mrf.mxu0
          %6786 = vdwg.mxu0
          %v6788 = vsel %vm1997, %v6607, 0
          %v6791 = vsel %vm1997, %v6608, 0
          %v6793 = vsel %vm2001, %v6605, 0
          %v6795 = vsel %vm2001, %v6614, 0
          %v6797 = vsel %vm2001, %v6606, 0
          %6799 = vmatprep.subr.mxu0 0.0
          %6800 = vmatpush1.msra.mxu0 0.0
          %6801 = vmatprep.subr.mxu0 0.0
          %6802 = vmatpush1.msra.mxu0 0.0
          %6803 = vmatprep.subr.mxu0 0.0
          %6804 = vmatpush1.msra.mxu0 0.0
          %6805 = vmatprep.subr.mxu0 0.0
          %6806 = vmatpush1.msra.mxu0 0.0
          %6807 = vmatprep.subr.mxu0 0.0
          %6808 = vmatpush1.msra.mxu0 0.0
          %6809 = vmatprep.subr.mxu0 0.0
          %6810 = vmatpush1.msra.mxu0 0.0
          %6811 = vmatprep.subr.mxu0 0.0
          %6812 = vmatpush1.msra.mxu0 0.0
          %6813 = vmatprep.subr.mxu0 0.0
          %6814 = vmatpush1.msra.mxu0 0.0
          %6815 = vmatprep.subr.mxu0 0.0
          %6816 = vmatpush1.msra.mxu0 0.0
          %6817 = vmatprep.subr.mxu0 0.0
          %6818 = vmatpush1.msra.mxu0 0.0
          %6819 = vmatprep.subr.mxu0 0.0
          %6820 = vmatpush1.msra.mxu0 0.0
          %6821 = vmatprep.subr.mxu0 0.0
          %6822 = vmatpush1.msra.mxu0 0.0
          %6823 = vmatprep.subr.mxu0 0.0
          %6824 = vmatpush1.msra.mxu0 0.0
          %6825 = vmatprep.subr.mxu0 0.0
          %6826 = vmatpush1.msra.mxu0 0.0
          %6827 = vmatprep.subr.mxu0 0.0
          %6828 = vmatpush1.msra.mxu0 0.0
          %6829 = vmatprep.subr.mxu0 %v6795
          %6830 = vmatpush1.msra.mxu0 %v6793
          %6831 = vmatprep.subr.mxu0 0.0
          %6832 = vmatpush2.msra.mxu0 0.0
          %6833 = vmatprep.subr.mxu0 0.0
          %6834 = vmatpush2.msra.mxu0 0.0
          %6835 = vmatprep.subr.mxu0 0.0
          %6836 = vmatpush2.msra.mxu0 0.0
          %6837 = vmatprep.subr.mxu0 0.0
          %6838 = vmatpush2.msra.mxu0 0.0
          %6839 = vmatprep.subr.mxu0 0.0
          %6840 = vmatpush2.msra.mxu0 0.0
          %6841 = vmatprep.subr.mxu0 0.0
          %6842 = vmatpush2.msra.mxu0 0.0
          %6843 = vmatprep.subr.mxu0 0.0
          %6844 = vmatpush2.msra.mxu0 0.0
          %6845 = vmatprep.subr.mxu0 0.0
          %6846 = vmatpush2.msra.mxu0 0.0
          %6847 = vmatprep.subr.mxu0 0.0
          %6848 = vmatpush2.msra.mxu0 0.0
          %6849 = vmatprep.subr.mxu0 0.0
          %6850 = vmatpush2.msra.mxu0 0.0
          %6851 = vmatprep.subr.mxu0 0.0
          %6852 = vmatpush2.msra.mxu0 0.0
          %6853 = vmatprep.subr.mxu0 0.0
          %6854 = vmatpush2.msra.mxu0 0.0
          %6855 = vmatprep.subr.mxu0 0.0
          %6856 = vmatpush2.msra.mxu0 0.0
          %6857 = vmatprep.subr.mxu0 0.0
          %6858 = vmatpush2.msra.mxu0 0.0
          %6859 = vmatprep.subr.mxu0 0.0
          %6860 = vmatpush2.msra.mxu0 0.0
          %6861 = vmatprep.subr.mxu0 0.0
          %6862 = vmatpush2.msra.mxu0 0.0
          %6863 = vmatprep.mubr.f32.mxu0 0.0
          %6864 = vmatmul.mubr.f32.gmra.mxu0 %v6788
          %v6865 = vpop.f32.mrf.mxu0
          %v6866 = vadd.f32 %v6702, %v6865
          %v6867 = vpop.f32.mrf.mxu0
          %v6868 = vadd.f32 %v6704, %v6867
          %6869 = vmatprep.mubr.f32.mxu0 0.0
          %6870 = vmatmul.mubr.f32.gmra.mxu0 %v6791
          %v6871 = vpop.f32.mrf.mxu0
          %v6872 = vadd.f32 %v6708, %v6871
          %v6873 = vpop.f32.mrf.mxu0
          %v6874 = vadd.f32 %v6710, %v6873
          %6875 = vdwg.mxu0
          %6876 = vmatprep.subr.mxu0 0.0
          %6877 = vmatpush1.msra.mxu0 0.0
          %6878 = vmatprep.subr.mxu0 0.0
          %6879 = vmatpush1.msra.mxu0 0.0
          %6880 = vmatprep.subr.mxu0 0.0
          %6881 = vmatpush1.msra.mxu0 0.0
          %6882 = vmatprep.subr.mxu0 0.0
          %6883 = vmatpush1.msra.mxu0 0.0
          %6884 = vmatprep.subr.mxu0 0.0
          %6885 = vmatpush1.msra.mxu0 0.0
          %6886 = vmatprep.subr.mxu0 0.0
          %6887 = vmatpush1.msra.mxu0 0.0
          %6888 = vmatprep.subr.mxu0 0.0
          %6889 = vmatpush1.msra.mxu0 0.0
          %6890 = vmatprep.subr.mxu0 0.0
          %6891 = vmatpush1.msra.mxu0 0.0
          %6892 = vmatprep.subr.mxu0 0.0
          %6893 = vmatpush1.msra.mxu0 0.0
          %6894 = vmatprep.subr.mxu0 0.0
          %6895 = vmatpush1.msra.mxu0 0.0
          %6896 = vmatprep.subr.mxu0 0.0
          %6897 = vmatpush1.msra.mxu0 0.0
          %6898 = vmatprep.subr.mxu0 0.0
          %6899 = vmatpush1.msra.mxu0 0.0
          %6900 = vmatprep.subr.mxu0 0.0
          %6901 = vmatpush1.msra.mxu0 0.0
          %6902 = vmatprep.subr.mxu0 0.0
          %6903 = vmatpush1.msra.mxu0 0.0
          %6904 = vmatprep.subr.mxu0 0.0
          %6905 = vmatpush1.msra.mxu0 0.0
          %6906 = vmatprep.subr.mxu0 0.0
          %6907 = vmatpush1.msra.mxu0 %v6797
          %6908 = vmatprep.subr.mxu0 0.0
          %6909 = vmatpush2.msra.mxu0 0.0
          %6910 = vmatprep.subr.mxu0 0.0
          %6911 = vmatpush2.msra.mxu0 0.0
          %6912 = vmatprep.subr.mxu0 0.0
          %6913 = vmatpush2.msra.mxu0 0.0
          %6914 = vmatprep.subr.mxu0 0.0
          %6915 = vmatpush2.msra.mxu0 0.0
          %6916 = vmatprep.subr.mxu0 0.0
          %6917 = vmatpush2.msra.mxu0 0.0
          %6918 = vmatprep.subr.mxu0 0.0
          %6919 = vmatpush2.msra.mxu0 0.0
          %6920 = vmatprep.subr.mxu0 0.0
          %6921 = vmatpush2.msra.mxu0 0.0
          %6922 = vmatprep.subr.mxu0 0.0
          %6923 = vmatpush2.msra.mxu0 0.0
          %6924 = vmatprep.subr.mxu0 0.0
          %6925 = vmatpush2.msra.mxu0 0.0
          %6926 = vmatprep.subr.mxu0 0.0
          %6927 = vmatpush2.msra.mxu0 0.0
          %6928 = vmatprep.subr.mxu0 0.0
          %6929 = vmatpush2.msra.mxu0 0.0
          %6930 = vmatprep.subr.mxu0 0.0
          %6931 = vmatpush2.msra.mxu0 0.0
          %6932 = vmatprep.subr.mxu0 0.0
          %6933 = vmatpush2.msra.mxu0 0.0
          %6934 = vmatprep.subr.mxu0 0.0
          %6935 = vmatpush2.msra.mxu0 0.0
          %6936 = vmatprep.subr.mxu0 0.0
          %6937 = vmatpush2.msra.mxu0 0.0
          %6938 = vmatprep.subr.mxu0 0.0
          %6939 = vmatpush2.msra.mxu0 0.0
          %6940 = vmatprep.mubr.f32.mxu0 0.0
          %6941 = vmatmul.mubr.f32.gmra.mxu0 %v6788
          %v6942 = vpop.f32.mrf.mxu0
          %v6943 = vadd.f32 %v6779, %v6942
          %v6944 = vpop.f32.mrf.mxu0
          %6945 = vmatprep.mubr.f32.mxu0 0.0
          %6946 = vmatmul.mubr.f32.gmra.mxu0 %v6791
          %v6947 = vpop.f32.mrf.mxu0
          %v6948 = vadd.f32 %v6784, %v6947
          %v6949 = vpop.f32.mrf.mxu0
          %6950 = vdwg.mxu0
          %v6951 = vld [vmem:[#allocation3] sm:$0xff]
          %v6952 = vld [vmem:[#allocation3 + $0x8] sm:$0xf]
          %s6953 = scalar_lea.vmem %s8, 32
          %v6954 = vld [vmem:[%s6953] sm:$0xff]
          %v6955 = vld [vmem:[%s6953 + $0x8] sm:$0xff]
          %v6958 = vcombine.high %v6951, %v6951
          %6959 = vrot.lane.b32.xlu0 %v6951, 126
          %v6960 = vpop.permute.xlu0 %6959
          %6961 = vrot.lane.b32.xlu0 %v6958, 126
          %v6962 = vpop.permute.xlu0 %6961
          %6963 = vrot.lane.b32.xlu0 %v6952, 126
          %v6964 = vpop.permute.xlu0 %6963
          %v6965 = vsel %vm2312, %v6960, %v6962
          %v6966 = vsel %vm2312, %v6962, %v6964
          %v6968 = vsel %vm1997, %v6954, 0
          %v6971 = vsel %vm1997, %v6955, 0
          %v6973 = vsel %vm2001, %v6965, 0
          %v6975 = vsel %vm2001, %v6966, 0
          %v6977 = vsel %vm2001, %v6964, 0
          %6979 = vmatprep.subr.mxu0 0.0
          %6980 = vmatpush1.msra.mxu0 0.0
          %6981 = vmatprep.subr.mxu0 0.0
          %6982 = vmatpush1.msra.mxu0 0.0
          %6983 = vmatprep.subr.mxu0 0.0
          %6984 = vmatpush1.msra.mxu0 0.0
          %6985 = vmatprep.subr.mxu0 0.0
          %6986 = vmatpush1.msra.mxu0 0.0
          %6987 = vmatprep.subr.mxu0 0.0
          %6988 = vmatpush1.msra.mxu0 0.0
          %6989 = vmatprep.subr.mxu0 0.0
          %6990 = vmatpush1.msra.mxu0 0.0
          %6991 = vmatprep.subr.mxu0 0.0
          %6992 = vmatpush1.msra.mxu0 0.0
          %6993 = vmatprep.subr.mxu0 0.0
          %6994 = vmatpush1.msra.mxu0 0.0
          %6995 = vmatprep.subr.mxu0 0.0
          %6996 = vmatpush1.msra.mxu0 0.0
          %6997 = vmatprep.subr.mxu0 0.0
          %6998 = vmatpush1.msra.mxu0 0.0
          %6999 = vmatprep.subr.mxu0 0.0
          %7000 = vmatpush1.msra.mxu0 0.0
          %7001 = vmatprep.subr.mxu0 0.0
          %7002 = vmatpush1.msra.mxu0 0.0
          %7003 = vmatprep.subr.mxu0 0.0
          %7004 = vmatpush1.msra.mxu0 0.0
          %7005 = vmatprep.subr.mxu0 0.0
          %7006 = vmatpush1.msra.mxu0 0.0
          %7007 = vmatprep.subr.mxu0 0.0
          %7008 = vmatpush1.msra.mxu0 0.0
          %7009 = vmatprep.subr.mxu0 %v6975
          %7010 = vmatpush1.msra.mxu0 %v6973
          %7011 = vmatprep.subr.mxu0 0.0
          %7012 = vmatpush2.msra.mxu0 0.0
          %7013 = vmatprep.subr.mxu0 0.0
          %7014 = vmatpush2.msra.mxu0 0.0
          %7015 = vmatprep.subr.mxu0 0.0
          %7016 = vmatpush2.msra.mxu0 0.0
          %7017 = vmatprep.subr.mxu0 0.0
          %7018 = vmatpush2.msra.mxu0 0.0
          %7019 = vmatprep.subr.mxu0 0.0
          %7020 = vmatpush2.msra.mxu0 0.0
          %7021 = vmatprep.subr.mxu0 0.0
          %7022 = vmatpush2.msra.mxu0 0.0
          %7023 = vmatprep.subr.mxu0 0.0
          %7024 = vmatpush2.msra.mxu0 0.0
          %7025 = vmatprep.subr.mxu0 0.0
          %7026 = vmatpush2.msra.mxu0 0.0
          %7027 = vmatprep.subr.mxu0 0.0
          %7028 = vmatpush2.msra.mxu0 0.0
          %7029 = vmatprep.subr.mxu0 0.0
          %7030 = vmatpush2.msra.mxu0 0.0
          %7031 = vmatprep.subr.mxu0 0.0
          %7032 = vmatpush2.msra.mxu0 0.0
          %7033 = vmatprep.subr.mxu0 0.0
          %7034 = vmatpush2.msra.mxu0 0.0
          %7035 = vmatprep.subr.mxu0 0.0
          %7036 = vmatpush2.msra.mxu0 0.0
          %7037 = vmatprep.subr.mxu0 0.0
          %7038 = vmatpush2.msra.mxu0 0.0
          %7039 = vmatprep.subr.mxu0 0.0
          %7040 = vmatpush2.msra.mxu0 0.0
          %7041 = vmatprep.subr.mxu0 0.0
          %7042 = vmatpush2.msra.mxu0 0.0
          %7043 = vmatprep.mubr.f32.mxu0 0.0
          %7044 = vmatmul.mubr.f32.gmra.mxu0 %v6968
          %v7045 = vpop.f32.mrf.mxu0
          %v7046 = vadd.f32 0.0, %v7045
          %v7047 = vpop.f32.mrf.mxu0
          %v7048 = vadd.f32 0.0, %v7047
          %7049 = vmatprep.mubr.f32.mxu0 0.0
          %7050 = vmatmul.mubr.f32.gmra.mxu0 %v6971
          %v7051 = vpop.f32.mrf.mxu0
          %v7052 = vadd.f32 0.0, %v7051
          %v7053 = vpop.f32.mrf.mxu0
          %v7054 = vadd.f32 0.0, %v7053
          %7055 = vdwg.mxu0
          %7056 = vmatprep.subr.mxu0 0.0
          %7057 = vmatpush1.msra.mxu0 0.0
          %7058 = vmatprep.subr.mxu0 0.0
          %7059 = vmatpush1.msra.mxu0 0.0
          %7060 = vmatprep.subr.mxu0 0.0
          %7061 = vmatpush1.msra.mxu0 0.0
          %7062 = vmatprep.subr.mxu0 0.0
          %7063 = vmatpush1.msra.mxu0 0.0
          %7064 = vmatprep.subr.mxu0 0.0
          %7065 = vmatpush1.msra.mxu0 0.0
          %7066 = vmatprep.subr.mxu0 0.0
          %7067 = vmatpush1.msra.mxu0 0.0
          %7068 = vmatprep.subr.mxu0 0.0
          %7069 = vmatpush1.msra.mxu0 0.0
          %7070 = vmatprep.subr.mxu0 0.0
          %7071 = vmatpush1.msra.mxu0 0.0
          %7072 = vmatprep.subr.mxu0 0.0
          %7073 = vmatpush1.msra.mxu0 0.0
          %7074 = vmatprep.subr.mxu0 0.0
          %7075 = vmatpush1.msra.mxu0 0.0
          %7076 = vmatprep.subr.mxu0 0.0
          %7077 = vmatpush1.msra.mxu0 0.0
          %7078 = vmatprep.subr.mxu0 0.0
          %7079 = vmatpush1.msra.mxu0 0.0
          %7080 = vmatprep.subr.mxu0 0.0
          %7081 = vmatpush1.msra.mxu0 0.0
          %7082 = vmatprep.subr.mxu0 0.0
          %7083 = vmatpush1.msra.mxu0 0.0
          %7084 = vmatprep.subr.mxu0 0.0
          %7085 = vmatpush1.msra.mxu0 0.0
          %7086 = vmatprep.subr.mxu0 0.0
          %7087 = vmatpush1.msra.mxu0 %v6977
          %7088 = vmatprep.subr.mxu0 0.0
          %7089 = vmatpush2.msra.mxu0 0.0
          %7090 = vmatprep.subr.mxu0 0.0
          %7091 = vmatpush2.msra.mxu0 0.0
          %7092 = vmatprep.subr.mxu0 0.0
          %7093 = vmatpush2.msra.mxu0 0.0
          %7094 = vmatprep.subr.mxu0 0.0
          %7095 = vmatpush2.msra.mxu0 0.0
          %7096 = vmatprep.subr.mxu0 0.0
          %7097 = vmatpush2.msra.mxu0 0.0
          %7098 = vmatprep.subr.mxu0 0.0
          %7099 = vmatpush2.msra.mxu0 0.0
          %7100 = vmatprep.subr.mxu0 0.0
          %7101 = vmatpush2.msra.mxu0 0.0
          %7102 = vmatprep.subr.mxu0 0.0
          %7103 = vmatpush2.msra.mxu0 0.0
          %7104 = vmatprep.subr.mxu0 0.0
          %7105 = vmatpush2.msra.mxu0 0.0
          %7106 = vmatprep.subr.mxu0 0.0
          %7107 = vmatpush2.msra.mxu0 0.0
          %7108 = vmatprep.subr.mxu0 0.0
          %7109 = vmatpush2.msra.mxu0 0.0
          %7110 = vmatprep.subr.mxu0 0.0
          %7111 = vmatpush2.msra.mxu0 0.0
          %7112 = vmatprep.subr.mxu0 0.0
          %7113 = vmatpush2.msra.mxu0 0.0
          %7114 = vmatprep.subr.mxu0 0.0
          %7115 = vmatpush2.msra.mxu0 0.0
          %7116 = vmatprep.subr.mxu0 0.0
          %7117 = vmatpush2.msra.mxu0 0.0
          %7118 = vmatprep.subr.mxu0 0.0
          %7119 = vmatpush2.msra.mxu0 0.0
          %7120 = vmatprep.mubr.f32.mxu0 0.0
          %7121 = vmatmul.mubr.f32.gmra.mxu0 %v6968
          %v7122 = vpop.f32.mrf.mxu0
          %v7123 = vadd.f32 0.0, %v7122
          %v7124 = vpop.f32.mrf.mxu0
          %7125 = vmatprep.mubr.f32.mxu0 0.0
          %7126 = vmatmul.mubr.f32.gmra.mxu0 %v6971
          %v7127 = vpop.f32.mrf.mxu0
          %v7128 = vadd.f32 0.0, %v7127
          %v7129 = vpop.f32.mrf.mxu0
          %7130 = vdwg.mxu0
          %v7131 = vadd.f32 %v6866, %v7046
          %v7132 = vadd.f32 %v6868, %v7048
          %v7133 = vadd.f32 %v6943, %v7123
          %v7134 = vadd.f32 %v6872, %v7052
          %v7135 = vadd.f32 %v6874, %v7054
          %v7136 = vadd.f32 %v6948, %v7128
          %v7137 = vld [vmem:[#allocation3] sm:$0xff]
          %v7138 = vld [vmem:[#allocation3 + $0x8] sm:$0xf]
          %s7139 = scalar_lea.vmem %s8, 48
          %v7140 = vld [vmem:[%s7139] sm:$0xff]
          %v7141 = vld [vmem:[%s7139 + $0x8] sm:$0xff]
          %v7144 = vcombine.high %v7137, %v7137
          %7145 = vrot.lane.b32.xlu0 %v7137, 110
          %v7146 = vpop.permute.xlu0 %7145
          %7147 = vrot.lane.b32.xlu0 %v7144, 110
          %v7148 = vpop.permute.xlu0 %7147
          %7149 = vrot.lane.b32.xlu0 %v7138, 110
          %v7150 = vpop.permute.xlu0 %7149
          %v7151 = vsel %vm2481, %v7146, %v7148
          %v7152 = vsel %vm2481, %v7148, %v7150
          %v7154 = vsel %vm1997, %v7140, 0
          %v7157 = vsel %vm1997, %v7141, 0
          %v7159 = vsel %vm2001, %v7151, 0
          %v7161 = vsel %vm2001, %v7152, 0
          %v7163 = vsel %vm2001, %v7150, 0
          %7165 = vmatprep.subr.mxu0 0.0
          %7166 = vmatpush1.msra.mxu0 0.0
          %7167 = vmatprep.subr.mxu0 0.0
          %7168 = vmatpush1.msra.mxu0 0.0
          %7169 = vmatprep.subr.mxu0 0.0
          %7170 = vmatpush1.msra.mxu0 0.0
          %7171 = vmatprep.subr.mxu0 0.0
          %7172 = vmatpush1.msra.mxu0 0.0
          %7173 = vmatprep.subr.mxu0 0.0
          %7174 = vmatpush1.msra.mxu0 0.0
          %7175 = vmatprep.subr.mxu0 0.0
          %7176 = vmatpush1.msra.mxu0 0.0
          %7177 = vmatprep.subr.mxu0 0.0
          %7178 = vmatpush1.msra.mxu0 0.0
          %7179 = vmatprep.subr.mxu0 0.0
          %7180 = vmatpush1.msra.mxu0 0.0
          %7181 = vmatprep.subr.mxu0 0.0
          %7182 = vmatpush1.msra.mxu0 0.0
          %7183 = vmatprep.subr.mxu0 0.0
          %7184 = vmatpush1.msra.mxu0 0.0
          %7185 = vmatprep.subr.mxu0 0.0
          %7186 = vmatpush1.msra.mxu0 0.0
          %7187 = vmatprep.subr.mxu0 0.0
          %7188 = vmatpush1.msra.mxu0 0.0
          %7189 = vmatprep.subr.mxu0 0.0
          %7190 = vmatpush1.msra.mxu0 0.0
          %7191 = vmatprep.subr.mxu0 0.0
          %7192 = vmatpush1.msra.mxu0 0.0
          %7193 = vmatprep.subr.mxu0 0.0
          %7194 = vmatpush1.msra.mxu0 0.0
          %7195 = vmatprep.subr.mxu0 %v7161
          %7196 = vmatpush1.msra.mxu0 %v7159
          %7197 = vmatprep.subr.mxu0 0.0
          %7198 = vmatpush2.msra.mxu0 0.0
          %7199 = vmatprep.subr.mxu0 0.0
          %7200 = vmatpush2.msra.mxu0 0.0
          %7201 = vmatprep.subr.mxu0 0.0
          %7202 = vmatpush2.msra.mxu0 0.0
          %7203 = vmatprep.subr.mxu0 0.0
          %7204 = vmatpush2.msra.mxu0 0.0
          %7205 = vmatprep.subr.mxu0 0.0
          %7206 = vmatpush2.msra.mxu0 0.0
          %7207 = vmatprep.subr.mxu0 0.0
          %7208 = vmatpush2.msra.mxu0 0.0
          %7209 = vmatprep.subr.mxu0 0.0
          %7210 = vmatpush2.msra.mxu0 0.0
          %7211 = vmatprep.subr.mxu0 0.0
          %7212 = vmatpush2.msra.mxu0 0.0
          %7213 = vmatprep.subr.mxu0 0.0
          %7214 = vmatpush2.msra.mxu0 0.0
          %7215 = vmatprep.subr.mxu0 0.0
          %7216 = vmatpush2.msra.mxu0 0.0
          %7217 = vmatprep.subr.mxu0 0.0
          %7218 = vmatpush2.msra.mxu0 0.0
          %7219 = vmatprep.subr.mxu0 0.0
          %7220 = vmatpush2.msra.mxu0 0.0
          %7221 = vmatprep.subr.mxu0 0.0
          %7222 = vmatpush2.msra.mxu0 0.0
          %7223 = vmatprep.subr.mxu0 0.0
          %7224 = vmatpush2.msra.mxu0 0.0
          %7225 = vmatprep.subr.mxu0 0.0
          %7226 = vmatpush2.msra.mxu0 0.0
          %7227 = vmatprep.subr.mxu0 0.0
          %7228 = vmatpush2.msra.mxu0 0.0
          %7229 = vmatprep.mubr.f32.mxu0 0.0
          %7230 = vmatmul.mubr.f32.gmra.mxu0 %v7154
          %v7231 = vpop.f32.mrf.mxu0
          %v7232 = vadd.f32 0.0, %v7231
          %v7233 = vpop.f32.mrf.mxu0
          %v7234 = vadd.f32 0.0, %v7233
          %7235 = vmatprep.mubr.f32.mxu0 0.0
          %7236 = vmatmul.mubr.f32.gmra.mxu0 %v7157
          %v7237 = vpop.f32.mrf.mxu0
          %v7238 = vadd.f32 0.0, %v7237
          %v7239 = vpop.f32.mrf.mxu0
          %v7240 = vadd.f32 0.0, %v7239
          %7241 = vdwg.mxu0
          %7242 = vmatprep.subr.mxu0 0.0
          %7243 = vmatpush1.msra.mxu0 0.0
          %7244 = vmatprep.subr.mxu0 0.0
          %7245 = vmatpush1.msra.mxu0 0.0
          %7246 = vmatprep.subr.mxu0 0.0
          %7247 = vmatpush1.msra.mxu0 0.0
          %7248 = vmatprep.subr.mxu0 0.0
          %7249 = vmatpush1.msra.mxu0 0.0
          %7250 = vmatprep.subr.mxu0 0.0
          %7251 = vmatpush1.msra.mxu0 0.0
          %7252 = vmatprep.subr.mxu0 0.0
          %7253 = vmatpush1.msra.mxu0 0.0
          %7254 = vmatprep.subr.mxu0 0.0
          %7255 = vmatpush1.msra.mxu0 0.0
          %7256 = vmatprep.subr.mxu0 0.0
          %7257 = vmatpush1.msra.mxu0 0.0
          %7258 = vmatprep.subr.mxu0 0.0
          %7259 = vmatpush1.msra.mxu0 0.0
          %7260 = vmatprep.subr.mxu0 0.0
          %7261 = vmatpush1.msra.mxu0 0.0
          %7262 = vmatprep.subr.mxu0 0.0
          %7263 = vmatpush1.msra.mxu0 0.0
          %7264 = vmatprep.subr.mxu0 0.0
          %7265 = vmatpush1.msra.mxu0 0.0
          %7266 = vmatprep.subr.mxu0 0.0
          %7267 = vmatpush1.msra.mxu0 0.0
          %7268 = vmatprep.subr.mxu0 0.0
          %7269 = vmatpush1.msra.mxu0 0.0
          %7270 = vmatprep.subr.mxu0 0.0
          %7271 = vmatpush1.msra.mxu0 0.0
          %7272 = vmatprep.subr.mxu0 0.0
          %7273 = vmatpush1.msra.mxu0 %v7163
          %7274 = vmatprep.subr.mxu0 0.0
          %7275 = vmatpush2.msra.mxu0 0.0
          %7276 = vmatprep.subr.mxu0 0.0
          %7277 = vmatpush2.msra.mxu0 0.0
          %7278 = vmatprep.subr.mxu0 0.0
          %7279 = vmatpush2.msra.mxu0 0.0
          %7280 = vmatprep.subr.mxu0 0.0
          %7281 = vmatpush2.msra.mxu0 0.0
          %7282 = vmatprep.subr.mxu0 0.0
          %7283 = vmatpush2.msra.mxu0 0.0
          %7284 = vmatprep.subr.mxu0 0.0
          %7285 = vmatpush2.msra.mxu0 0.0
          %7286 = vmatprep.subr.mxu0 0.0
          %7287 = vmatpush2.msra.mxu0 0.0
          %7288 = vmatprep.subr.mxu0 0.0
          %7289 = vmatpush2.msra.mxu0 0.0
          %7290 = vmatprep.subr.mxu0 0.0
          %7291 = vmatpush2.msra.mxu0 0.0
          %7292 = vmatprep.subr.mxu0 0.0
          %7293 = vmatpush2.msra.mxu0 0.0
          %7294 = vmatprep.subr.mxu0 0.0
          %7295 = vmatpush2.msra.mxu0 0.0
          %7296 = vmatprep.subr.mxu0 0.0
          %7297 = vmatpush2.msra.mxu0 0.0
          %7298 = vmatprep.subr.mxu0 0.0
          %7299 = vmatpush2.msra.mxu0 0.0
          %7300 = vmatprep.subr.mxu0 0.0
          %7301 = vmatpush2.msra.mxu0 0.0
          %7302 = vmatprep.subr.mxu0 0.0
          %7303 = vmatpush2.msra.mxu0 0.0
          %7304 = vmatprep.subr.mxu0 0.0
          %7305 = vmatpush2.msra.mxu0 0.0
          %7306 = vmatprep.mubr.f32.mxu0 0.0
          %7307 = vmatmul.mubr.f32.gmra.mxu0 %v7154
          %v7308 = vpop.f32.mrf.mxu0
          %v7309 = vadd.f32 0.0, %v7308
          %v7310 = vpop.f32.mrf.mxu0
          %7311 = vmatprep.mubr.f32.mxu0 0.0
          %7312 = vmatmul.mubr.f32.gmra.mxu0 %v7157
          %v7313 = vpop.f32.mrf.mxu0
          %v7314 = vadd.f32 0.0, %v7313
          %v7315 = vpop.f32.mrf.mxu0
          %7316 = vdwg.mxu0
          %v7317 = vadd.f32 %v7131, %v7232
          %v7318 = vadd.f32 %v7132, %v7234
          %v7319 = vadd.f32 %v7133, %v7309
          %v7320 = vadd.f32 %v7134, %v7238
          %v7321 = vadd.f32 %v7135, %v7240
          %v7322 = vadd.f32 %v7136, %v7314
          %v7323 = vld [vmem:[#allocation3] sm:$0xff]
          %v7324 = vld [vmem:[#allocation3 + $0x8] sm:$0xf]
          %s7325 = scalar_lea.vmem %s8, 64
          %v7326 = vld [vmem:[%s7325] sm:$0xff]
          %v7327 = vld [vmem:[%s7325 + $0x8] sm:$0xff]
          %v7330 = vcombine.high %v7323, %v7323
          %7331 = vrot.lane.b32.xlu0 %v7323, 109
          %v7332 = vpop.permute.xlu0 %7331
          %7333 = vrot.lane.b32.xlu0 %v7330, 109
          %v7334 = vpop.permute.xlu0 %7333
          %7335 = vrot.lane.b32.xlu0 %v7324, 109
          %v7336 = vpop.permute.xlu0 %7335
          %v7337 = vsel %vm2650, %v7332, %v7334
          %v7338 = vsel %vm2650, %v7334, %v7336
          %v7340 = vsel %vm1997, %v7326, 0
          %v7343 = vsel %vm1997, %v7327, 0
          %v7345 = vsel %vm2001, %v7337, 0
          %v7347 = vsel %vm2001, %v7338, 0
          %v7349 = vsel %vm2001, %v7336, 0
          %7351 = vmatprep.subr.mxu0 0.0
          %7352 = vmatpush1.msra.mxu0 0.0
          %7353 = vmatprep.subr.mxu0 0.0
          %7354 = vmatpush1.msra.mxu0 0.0
          %7355 = vmatprep.subr.mxu0 0.0
          %7356 = vmatpush1.msra.mxu0 0.0
          %7357 = vmatprep.subr.mxu0 0.0
          %7358 = vmatpush1.msra.mxu0 0.0
          %7359 = vmatprep.subr.mxu0 0.0
          %7360 = vmatpush1.msra.mxu0 0.0
          %7361 = vmatprep.subr.mxu0 0.0
          %7362 = vmatpush1.msra.mxu0 0.0
          %7363 = vmatprep.subr.mxu0 0.0
          %7364 = vmatpush1.msra.mxu0 0.0
          %7365 = vmatprep.subr.mxu0 0.0
          %7366 = vmatpush1.msra.mxu0 0.0
          %7367 = vmatprep.subr.mxu0 0.0
          %7368 = vmatpush1.msra.mxu0 0.0
          %7369 = vmatprep.subr.mxu0 0.0
          %7370 = vmatpush1.msra.mxu0 0.0
          %7371 = vmatprep.subr.mxu0 0.0
          %7372 = vmatpush1.msra.mxu0 0.0
          %7373 = vmatprep.subr.mxu0 0.0
          %7374 = vmatpush1.msra.mxu0 0.0
          %7375 = vmatprep.subr.mxu0 0.0
          %7376 = vmatpush1.msra.mxu0 0.0
          %7377 = vmatprep.subr.mxu0 0.0
          %7378 = vmatpush1.msra.mxu0 0.0
          %7379 = vmatprep.subr.mxu0 0.0
          %7380 = vmatpush1.msra.mxu0 0.0
          %7381 = vmatprep.subr.mxu0 %v7347
          %7382 = vmatpush1.msra.mxu0 %v7345
          %7383 = vmatprep.subr.mxu0 0.0
          %7384 = vmatpush2.msra.mxu0 0.0
          %7385 = vmatprep.subr.mxu0 0.0
          %7386 = vmatpush2.msra.mxu0 0.0
          %7387 = vmatprep.subr.mxu0 0.0
          %7388 = vmatpush2.msra.mxu0 0.0
          %7389 = vmatprep.subr.mxu0 0.0
          %7390 = vmatpush2.msra.mxu0 0.0
          %7391 = vmatprep.subr.mxu0 0.0
          %7392 = vmatpush2.msra.mxu0 0.0
          %7393 = vmatprep.subr.mxu0 0.0
          %7394 = vmatpush2.msra.mxu0 0.0
          %7395 = vmatprep.subr.mxu0 0.0
          %7396 = vmatpush2.msra.mxu0 0.0
          %7397 = vmatprep.subr.mxu0 0.0
          %7398 = vmatpush2.msra.mxu0 0.0
          %7399 = vmatprep.subr.mxu0 0.0
          %7400 = vmatpush2.msra.mxu0 0.0
          %7401 = vmatprep.subr.mxu0 0.0
          %7402 = vmatpush2.msra.mxu0 0.0
          %7403 = vmatprep.subr.mxu0 0.0
          %7404 = vmatpush2.msra.mxu0 0.0
          %7405 = vmatprep.subr.mxu0 0.0
          %7406 = vmatpush2.msra.mxu0 0.0
          %7407 = vmatprep.subr.mxu0 0.0
          %7408 = vmatpush2.msra.mxu0 0.0
          %7409 = vmatprep.subr.mxu0 0.0
          %7410 = vmatpush2.msra.mxu0 0.0
          %7411 = vmatprep.subr.mxu0 0.0
          %7412 = vmatpush2.msra.mxu0 0.0
          %7413 = vmatprep.subr.mxu0 0.0
          %7414 = vmatpush2.msra.mxu0 0.0
          %7415 = vmatprep.mubr.f32.mxu0 0.0
          %7416 = vmatmul.mubr.f32.gmra.mxu0 %v7340
          %v7417 = vpop.f32.mrf.mxu0
          %v7418 = vadd.f32 0.0, %v7417
          %v7419 = vpop.f32.mrf.mxu0
          %v7420 = vadd.f32 0.0, %v7419
          %7421 = vmatprep.mubr.f32.mxu0 0.0
          %7422 = vmatmul.mubr.f32.gmra.mxu0 %v7343
          %v7423 = vpop.f32.mrf.mxu0
          %v7424 = vadd.f32 0.0, %v7423
          %v7425 = vpop.f32.mrf.mxu0
          %v7426 = vadd.f32 0.0, %v7425
          %7427 = vdwg.mxu0
          %7428 = vmatprep.subr.mxu0 0.0
          %7429 = vmatpush1.msra.mxu0 0.0
          %7430 = vmatprep.subr.mxu0 0.0
          %7431 = vmatpush1.msra.mxu0 0.0
          %7432 = vmatprep.subr.mxu0 0.0
          %7433 = vmatpush1.msra.mxu0 0.0
          %7434 = vmatprep.subr.mxu0 0.0
          %7435 = vmatpush1.msra.mxu0 0.0
          %7436 = vmatprep.subr.mxu0 0.0
          %7437 = vmatpush1.msra.mxu0 0.0
          %7438 = vmatprep.subr.mxu0 0.0
          %7439 = vmatpush1.msra.mxu0 0.0
          %7440 = vmatprep.subr.mxu0 0.0
          %7441 = vmatpush1.msra.mxu0 0.0
          %7442 = vmatprep.subr.mxu0 0.0
          %7443 = vmatpush1.msra.mxu0 0.0
          %7444 = vmatprep.subr.mxu0 0.0
          %7445 = vmatpush1.msra.mxu0 0.0
          %7446 = vmatprep.subr.mxu0 0.0
          %7447 = vmatpush1.msra.mxu0 0.0
          %7448 = vmatprep.subr.mxu0 0.0
          %7449 = vmatpush1.msra.mxu0 0.0
          %7450 = vmatprep.subr.mxu0 0.0
          %7451 = vmatpush1.msra.mxu0 0.0
          %7452 = vmatprep.subr.mxu0 0.0
          %7453 = vmatpush1.msra.mxu0 0.0
          %7454 = vmatprep.subr.mxu0 0.0
          %7455 = vmatpush1.msra.mxu0 0.0
          %7456 = vmatprep.subr.mxu0 0.0
          %7457 = vmatpush1.msra.mxu0 0.0
          %7458 = vmatprep.subr.mxu0 0.0
          %7459 = vmatpush1.msra.mxu0 %v7349
          %7460 = vmatprep.subr.mxu0 0.0
          %7461 = vmatpush2.msra.mxu0 0.0
          %7462 = vmatprep.subr.mxu0 0.0
          %7463 = vmatpush2.msra.mxu0 0.0
          %7464 = vmatprep.subr.mxu0 0.0
          %7465 = vmatpush2.msra.mxu0 0.0
          %7466 = vmatprep.subr.mxu0 0.0
          %7467 = vmatpush2.msra.mxu0 0.0
          %7468 = vmatprep.subr.mxu0 0.0
          %7469 = vmatpush2.msra.mxu0 0.0
          %7470 = vmatprep.subr.mxu0 0.0
          %7471 = vmatpush2.msra.mxu0 0.0
          %7472 = vmatprep.subr.mxu0 0.0
          %7473 = vmatpush2.msra.mxu0 0.0
          %7474 = vmatprep.subr.mxu0 0.0
          %7475 = vmatpush2.msra.mxu0 0.0
          %7476 = vmatprep.subr.mxu0 0.0
          %7477 = vmatpush2.msra.mxu0 0.0
          %7478 = vmatprep.subr.mxu0 0.0
          %7479 = vmatpush2.msra.mxu0 0.0
          %7480 = vmatprep.subr.mxu0 0.0
          %7481 = vmatpush2.msra.mxu0 0.0
          %7482 = vmatprep.subr.mxu0 0.0
          %7483 = vmatpush2.msra.mxu0 0.0
          %7484 = vmatprep.subr.mxu0 0.0
          %7485 = vmatpush2.msra.mxu0 0.0
          %7486 = vmatprep.subr.mxu0 0.0
          %7487 = vmatpush2.msra.mxu0 0.0
          %7488 = vmatprep.subr.mxu0 0.0
          %7489 = vmatpush2.msra.mxu0 0.0
          %7490 = vmatprep.subr.mxu0 0.0
          %7491 = vmatpush2.msra.mxu0 0.0
          %7492 = vmatprep.mubr.f32.mxu0 0.0
          %7493 = vmatmul.mubr.f32.gmra.mxu0 %v7340
          %v7494 = vpop.f32.mrf.mxu0
          %v7495 = vadd.f32 0.0, %v7494
          %v7496 = vpop.f32.mrf.mxu0
          %7497 = vmatprep.mubr.f32.mxu0 0.0
          %7498 = vmatmul.mubr.f32.gmra.mxu0 %v7343
          %v7499 = vpop.f32.mrf.mxu0
          %v7500 = vadd.f32 0.0, %v7499
          %v7501 = vpop.f32.mrf.mxu0
          %7502 = vdwg.mxu0
          %v7503 = vadd.f32 %v7317, %v7418
          %v7504 = vadd.f32 %v7318, %v7420
          %v7505 = vadd.f32 %v7319, %v7495
          %v7506 = vadd.f32 %v7320, %v7424
          %v7507 = vadd.f32 %v7321, %v7426
          %v7508 = vadd.f32 %v7322, %v7500
          %v7509 = vld [vmem:[#allocation3] sm:$0xff]
          %v7510 = vld [vmem:[#allocation3 + $0x8] sm:$0xf]
          %s7511 = scalar_lea.vmem %s8, 80
          %v7512 = vld [vmem:[%s7511] sm:$0xff]
          %v7513 = vld [vmem:[%s7511 + $0x8] sm:$0xff]
          %v7516 = vcombine.high %v7509, %v7509
          %7517 = vrot.lane.b32.xlu0 %v7509, 108
          %v7518 = vpop.permute.xlu0 %7517
          %7519 = vrot.lane.b32.xlu0 %v7516, 108
          %v7520 = vpop.permute.xlu0 %7519
          %7521 = vrot.lane.b32.xlu0 %v7510, 108
          %v7522 = vpop.permute.xlu0 %7521
          %v7523 = vsel %vm2819, %v7518, %v7520
          %v7524 = vsel %vm2819, %v7520, %v7522
          %v7526 = vsel %vm1997, %v7512, 0
          %v7529 = vsel %vm1997, %v7513, 0
          %v7531 = vsel %vm2001, %v7523, 0
          %v7533 = vsel %vm2001, %v7524, 0
          %v7535 = vsel %vm2001, %v7522, 0
          %7537 = vmatprep.subr.mxu0 0.0
          %7538 = vmatpush1.msra.mxu0 0.0
          %7539 = vmatprep.subr.mxu0 0.0
          %7540 = vmatpush1.msra.mxu0 0.0
          %7541 = vmatprep.subr.mxu0 0.0
          %7542 = vmatpush1.msra.mxu0 0.0
          %7543 = vmatprep.subr.mxu0 0.0
          %7544 = vmatpush1.msra.mxu0 0.0
          %7545 = vmatprep.subr.mxu0 0.0
          %7546 = vmatpush1.msra.mxu0 0.0
          %7547 = vmatprep.subr.mxu0 0.0
          %7548 = vmatpush1.msra.mxu0 0.0
          %7549 = vmatprep.subr.mxu0 0.0
          %7550 = vmatpush1.msra.mxu0 0.0
          %7551 = vmatprep.subr.mxu0 0.0
          %7552 = vmatpush1.msra.mxu0 0.0
          %7553 = vmatprep.subr.mxu0 0.0
          %7554 = vmatpush1.msra.mxu0 0.0
          %7555 = vmatprep.subr.mxu0 0.0
          %7556 = vmatpush1.msra.mxu0 0.0
          %7557 = vmatprep.subr.mxu0 0.0
          %7558 = vmatpush1.msra.mxu0 0.0
          %7559 = vmatprep.subr.mxu0 0.0
          %7560 = vmatpush1.msra.mxu0 0.0
          %7561 = vmatprep.subr.mxu0 0.0
          %7562 = vmatpush1.msra.mxu0 0.0
          %7563 = vmatprep.subr.mxu0 0.0
          %7564 = vmatpush1.msra.mxu0 0.0
          %7565 = vmatprep.subr.mxu0 0.0
          %7566 = vmatpush1.msra.mxu0 0.0
          %7567 = vmatprep.subr.mxu0 %v7533
          %7568 = vmatpush1.msra.mxu0 %v7531
          %7569 = vmatprep.subr.mxu0 0.0
          %7570 = vmatpush2.msra.mxu0 0.0
          %7571 = vmatprep.subr.mxu0 0.0
          %7572 = vmatpush2.msra.mxu0 0.0
          %7573 = vmatprep.subr.mxu0 0.0
          %7574 = vmatpush2.msra.mxu0 0.0
          %7575 = vmatprep.subr.mxu0 0.0
          %7576 = vmatpush2.msra.mxu0 0.0
          %7577 = vmatprep.subr.mxu0 0.0
          %7578 = vmatpush2.msra.mxu0 0.0
          %7579 = vmatprep.subr.mxu0 0.0
          %7580 = vmatpush2.msra.mxu0 0.0
          %7581 = vmatprep.subr.mxu0 0.0
          %7582 = vmatpush2.msra.mxu0 0.0
          %7583 = vmatprep.subr.mxu0 0.0
          %7584 = vmatpush2.msra.mxu0 0.0
          %7585 = vmatprep.subr.mxu0 0.0
          %7586 = vmatpush2.msra.mxu0 0.0
          %7587 = vmatprep.subr.mxu0 0.0
          %7588 = vmatpush2.msra.mxu0 0.0
          %7589 = vmatprep.subr.mxu0 0.0
          %7590 = vmatpush2.msra.mxu0 0.0
          %7591 = vmatprep.subr.mxu0 0.0
          %7592 = vmatpush2.msra.mxu0 0.0
          %7593 = vmatprep.subr.mxu0 0.0
          %7594 = vmatpush2.msra.mxu0 0.0
          %7595 = vmatprep.subr.mxu0 0.0
          %7596 = vmatpush2.msra.mxu0 0.0
          %7597 = vmatprep.subr.mxu0 0.0
          %7598 = vmatpush2.msra.mxu0 0.0
          %7599 = vmatprep.subr.mxu0 0.0
          %7600 = vmatpush2.msra.mxu0 0.0
          %7601 = vmatprep.mubr.f32.mxu0 0.0
          %7602 = vmatmul.mubr.f32.gmra.mxu0 %v7526
          %v7603 = vpop.f32.mrf.mxu0
          %v7604 = vadd.f32 0.0, %v7603
          %v7605 = vpop.f32.mrf.mxu0
          %v7606 = vadd.f32 0.0, %v7605
          %7607 = vmatprep.mubr.f32.mxu0 0.0
          %7608 = vmatmul.mubr.f32.gmra.mxu0 %v7529
          %v7609 = vpop.f32.mrf.mxu0
          %v7610 = vadd.f32 0.0, %v7609
          %v7611 = vpop.f32.mrf.mxu0
          %v7612 = vadd.f32 0.0, %v7611
          %7613 = vdwg.mxu0
          %7614 = vmatprep.subr.mxu0 0.0
          %7615 = vmatpush1.msra.mxu0 0.0
          %7616 = vmatprep.subr.mxu0 0.0
          %7617 = vmatpush1.msra.mxu0 0.0
          %7618 = vmatprep.subr.mxu0 0.0
          %7619 = vmatpush1.msra.mxu0 0.0
          %7620 = vmatprep.subr.mxu0 0.0
          %7621 = vmatpush1.msra.mxu0 0.0
          %7622 = vmatprep.subr.mxu0 0.0
          %7623 = vmatpush1.msra.mxu0 0.0
          %7624 = vmatprep.subr.mxu0 0.0
          %7625 = vmatpush1.msra.mxu0 0.0
          %7626 = vmatprep.subr.mxu0 0.0
          %7627 = vmatpush1.msra.mxu0 0.0
          %7628 = vmatprep.subr.mxu0 0.0
          %7629 = vmatpush1.msra.mxu0 0.0
          %7630 = vmatprep.subr.mxu0 0.0
          %7631 = vmatpush1.msra.mxu0 0.0
          %7632 = vmatprep.subr.mxu0 0.0
          %7633 = vmatpush1.msra.mxu0 0.0
          %7634 = vmatprep.subr.mxu0 0.0
          %7635 = vmatpush1.msra.mxu0 0.0
          %7636 = vmatprep.subr.mxu0 0.0
          %7637 = vmatpush1.msra.mxu0 0.0
          %7638 = vmatprep.subr.mxu0 0.0
          %7639 = vmatpush1.msra.mxu0 0.0
          %7640 = vmatprep.subr.mxu0 0.0
          %7641 = vmatpush1.msra.mxu0 0.0
          %7642 = vmatprep.subr.mxu0 0.0
          %7643 = vmatpush1.msra.mxu0 0.0
          %7644 = vmatprep.subr.mxu0 0.0
          %7645 = vmatpush1.msra.mxu0 %v7535
          %7646 = vmatprep.subr.mxu0 0.0
          %7647 = vmatpush2.msra.mxu0 0.0
          %7648 = vmatprep.subr.mxu0 0.0
          %7649 = vmatpush2.msra.mxu0 0.0
          %7650 = vmatprep.subr.mxu0 0.0
          %7651 = vmatpush2.msra.mxu0 0.0
          %7652 = vmatprep.subr.mxu0 0.0
          %7653 = vmatpush2.msra.mxu0 0.0
          %7654 = vmatprep.subr.mxu0 0.0
          %7655 = vmatpush2.msra.mxu0 0.0
          %7656 = vmatprep.subr.mxu0 0.0
          %7657 = vmatpush2.msra.mxu0 0.0
          %7658 = vmatprep.subr.mxu0 0.0
          %7659 = vmatpush2.msra.mxu0 0.0
          %7660 = vmatprep.subr.mxu0 0.0
          %7661 = vmatpush2.msra.mxu0 0.0
          %7662 = vmatprep.subr.mxu0 0.0
          %7663 = vmatpush2.msra.mxu0 0.0
          %7664 = vmatprep.subr.mxu0 0.0
          %7665 = vmatpush2.msra.mxu0 0.0
          %7666 = vmatprep.subr.mxu0 0.0
          %7667 = vmatpush2.msra.mxu0 0.0
          %7668 = vmatprep.subr.mxu0 0.0
          %7669 = vmatpush2.msra.mxu0 0.0
          %7670 = vmatprep.subr.mxu0 0.0
          %7671 = vmatpush2.msra.mxu0 0.0
          %7672 = vmatprep.subr.mxu0 0.0
          %7673 = vmatpush2.msra.mxu0 0.0
          %7674 = vmatprep.subr.mxu0 0.0
          %7675 = vmatpush2.msra.mxu0 0.0
          %7676 = vmatprep.subr.mxu0 0.0
          %7677 = vmatpush2.msra.mxu0 0.0
          %7678 = vmatprep.mubr.f32.mxu0 0.0
          %7679 = vmatmul.mubr.f32.gmra.mxu0 %v7526
          %v7680 = vpop.f32.mrf.mxu0
          %v7681 = vadd.f32 0.0, %v7680
          %v7682 = vpop.f32.mrf.mxu0
          %7683 = vmatprep.mubr.f32.mxu0 0.0
          %7684 = vmatmul.mubr.f32.gmra.mxu0 %v7529
          %v7685 = vpop.f32.mrf.mxu0
          %v7686 = vadd.f32 0.0, %v7685
          %v7687 = vpop.f32.mrf.mxu0
          %7688 = vdwg.mxu0
          %v7689 = vadd.f32 %v7503, %v7604
          %v7690 = vadd.f32 %v7504, %v7606
          %v7691 = vadd.f32 %v7505, %v7681
          %v7692 = vadd.f32 %v7506, %v7610
          %v7693 = vadd.f32 %v7507, %v7612
          %v7694 = vadd.f32 %v7508, %v7686
          %v7695 = vld [vmem:[#allocation3] sm:$0xff]
          %v7696 = vld [vmem:[#allocation3 + $0x8] sm:$0xf]
          %s7697 = scalar_lea.vmem %s8, 96
          %v7698 = vld [vmem:[%s7697] sm:$0xff]
          %v7699 = vld [vmem:[%s7697 + $0x8] sm:$0xff]
          %v7702 = vcombine.high %v7695, %v7695
          %7703 = vrot.lane.b32.xlu0 %v7695, 92
          %v7704 = vpop.permute.xlu0 %7703
          %7705 = vrot.lane.b32.xlu0 %v7702, 92
          %v7706 = vpop.permute.xlu0 %7705
          %7707 = vrot.lane.b32.xlu0 %v7696, 92
          %v7708 = vpop.permute.xlu0 %7707
          %v7709 = vsel %vm2988, %v7704, %v7706
          %v7710 = vsel %vm2988, %v7706, %v7708
          %v7712 = vsel %vm1997, %v7698, 0
          %v7715 = vsel %vm1997, %v7699, 0
          %v7717 = vsel %vm2001, %v7709, 0
          %v7719 = vsel %vm2001, %v7710, 0
          %v7721 = vsel %vm2001, %v7708, 0
          %7723 = vmatprep.subr.mxu0 0.0
          %7724 = vmatpush1.msra.mxu0 0.0
          %7725 = vmatprep.subr.mxu0 0.0
          %7726 = vmatpush1.msra.mxu0 0.0
          %7727 = vmatprep.subr.mxu0 0.0
          %7728 = vmatpush1.msra.mxu0 0.0
          %7729 = vmatprep.subr.mxu0 0.0
          %7730 = vmatpush1.msra.mxu0 0.0
          %7731 = vmatprep.subr.mxu0 0.0
          %7732 = vmatpush1.msra.mxu0 0.0
          %7733 = vmatprep.subr.mxu0 0.0
          %7734 = vmatpush1.msra.mxu0 0.0
          %7735 = vmatprep.subr.mxu0 0.0
          %7736 = vmatpush1.msra.mxu0 0.0
          %7737 = vmatprep.subr.mxu0 0.0
          %7738 = vmatpush1.msra.mxu0 0.0
          %7739 = vmatprep.subr.mxu0 0.0
          %7740 = vmatpush1.msra.mxu0 0.0
          %7741 = vmatprep.subr.mxu0 0.0
          %7742 = vmatpush1.msra.mxu0 0.0
          %7743 = vmatprep.subr.mxu0 0.0
          %7744 = vmatpush1.msra.mxu0 0.0
          %7745 = vmatprep.subr.mxu0 0.0
          %7746 = vmatpush1.msra.mxu0 0.0
          %7747 = vmatprep.subr.mxu0 0.0
          %7748 = vmatpush1.msra.mxu0 0.0
          %7749 = vmatprep.subr.mxu0 0.0
          %7750 = vmatpush1.msra.mxu0 0.0
          %7751 = vmatprep.subr.mxu0 0.0
          %7752 = vmatpush1.msra.mxu0 0.0
          %7753 = vmatprep.subr.mxu0 %v7719
          %7754 = vmatpush1.msra.mxu0 %v7717
          %7755 = vmatprep.subr.mxu0 0.0
          %7756 = vmatpush2.msra.mxu0 0.0
          %7757 = vmatprep.subr.mxu0 0.0
          %7758 = vmatpush2.msra.mxu0 0.0
          %7759 = vmatprep.subr.mxu0 0.0
          %7760 = vmatpush2.msra.mxu0 0.0
          %7761 = vmatprep.subr.mxu0 0.0
          %7762 = vmatpush2.msra.mxu0 0.0
          %7763 = vmatprep.subr.mxu0 0.0
          %7764 = vmatpush2.msra.mxu0 0.0
          %7765 = vmatprep.subr.mxu0 0.0
          %7766 = vmatpush2.msra.mxu0 0.0
          %7767 = vmatprep.subr.mxu0 0.0
          %7768 = vmatpush2.msra.mxu0 0.0
          %7769 = vmatprep.subr.mxu0 0.0
          %7770 = vmatpush2.msra.mxu0 0.0
          %7771 = vmatprep.subr.mxu0 0.0
          %7772 = vmatpush2.msra.mxu0 0.0
          %7773 = vmatprep.subr.mxu0 0.0
          %7774 = vmatpush2.msra.mxu0 0.0
          %7775 = vmatprep.subr.mxu0 0.0
          %7776 = vmatpush2.msra.mxu0 0.0
          %7777 = vmatprep.subr.mxu0 0.0
          %7778 = vmatpush2.msra.mxu0 0.0
          %7779 = vmatprep.subr.mxu0 0.0
          %7780 = vmatpush2.msra.mxu0 0.0
          %7781 = vmatprep.subr.mxu0 0.0
          %7782 = vmatpush2.msra.mxu0 0.0
          %7783 = vmatprep.subr.mxu0 0.0
          %7784 = vmatpush2.msra.mxu0 0.0
          %7785 = vmatprep.subr.mxu0 0.0
          %7786 = vmatpush2.msra.mxu0 0.0
          %7787 = vmatprep.mubr.f32.mxu0 0.0
          %7788 = vmatmul.mubr.f32.gmra.mxu0 %v7712
          %v7789 = vpop.f32.mrf.mxu0
          %v7790 = vadd.f32 0.0, %v7789
          %v7791 = vpop.f32.mrf.mxu0
          %v7792 = vadd.f32 0.0, %v7791
          %7793 = vmatprep.mubr.f32.mxu0 0.0
          %7794 = vmatmul.mubr.f32.gmra.mxu0 %v7715
          %v7795 = vpop.f32.mrf.mxu0
          %v7796 = vadd.f32 0.0, %v7795
          %v7797 = vpop.f32.mrf.mxu0
          %v7798 = vadd.f32 0.0, %v7797
          %7799 = vdwg.mxu0
          %7800 = vmatprep.subr.mxu0 0.0
          %7801 = vmatpush1.msra.mxu0 0.0
          %7802 = vmatprep.subr.mxu0 0.0
          %7803 = vmatpush1.msra.mxu0 0.0
          %7804 = vmatprep.subr.mxu0 0.0
          %7805 = vmatpush1.msra.mxu0 0.0
          %7806 = vmatprep.subr.mxu0 0.0
          %7807 = vmatpush1.msra.mxu0 0.0
          %7808 = vmatprep.subr.mxu0 0.0
          %7809 = vmatpush1.msra.mxu0 0.0
          %7810 = vmatprep.subr.mxu0 0.0
          %7811 = vmatpush1.msra.mxu0 0.0
          %7812 = vmatprep.subr.mxu0 0.0
          %7813 = vmatpush1.msra.mxu0 0.0
          %7814 = vmatprep.subr.mxu0 0.0
          %7815 = vmatpush1.msra.mxu0 0.0
          %7816 = vmatprep.subr.mxu0 0.0
          %7817 = vmatpush1.msra.mxu0 0.0
          %7818 = vmatprep.subr.mxu0 0.0
          %7819 = vmatpush1.msra.mxu0 0.0
          %7820 = vmatprep.subr.mxu0 0.0
          %7821 = vmatpush1.msra.mxu0 0.0
          %7822 = vmatprep.subr.mxu0 0.0
          %7823 = vmatpush1.msra.mxu0 0.0
          %7824 = vmatprep.subr.mxu0 0.0
          %7825 = vmatpush1.msra.mxu0 0.0
          %7826 = vmatprep.subr.mxu0 0.0
          %7827 = vmatpush1.msra.mxu0 0.0
          %7828 = vmatprep.subr.mxu0 0.0
          %7829 = vmatpush1.msra.mxu0 0.0
          %7830 = vmatprep.subr.mxu0 0.0
          %7831 = vmatpush1.msra.mxu0 %v7721
          %7832 = vmatprep.subr.mxu0 0.0
          %7833 = vmatpush2.msra.mxu0 0.0
          %7834 = vmatprep.subr.mxu0 0.0
          %7835 = vmatpush2.msra.mxu0 0.0
          %7836 = vmatprep.subr.mxu0 0.0
          %7837 = vmatpush2.msra.mxu0 0.0
          %7838 = vmatprep.subr.mxu0 0.0
          %7839 = vmatpush2.msra.mxu0 0.0
          %7840 = vmatprep.subr.mxu0 0.0
          %7841 = vmatpush2.msra.mxu0 0.0
          %7842 = vmatprep.subr.mxu0 0.0
          %7843 = vmatpush2.msra.mxu0 0.0
          %7844 = vmatprep.subr.mxu0 0.0
          %7845 = vmatpush2.msra.mxu0 0.0
          %7846 = vmatprep.subr.mxu0 0.0
          %7847 = vmatpush2.msra.mxu0 0.0
          %7848 = vmatprep.subr.mxu0 0.0
          %7849 = vmatpush2.msra.mxu0 0.0
          %7850 = vmatprep.subr.mxu0 0.0
          %7851 = vmatpush2.msra.mxu0 0.0
          %7852 = vmatprep.subr.mxu0 0.0
          %7853 = vmatpush2.msra.mxu0 0.0
          %7854 = vmatprep.subr.mxu0 0.0
          %7855 = vmatpush2.msra.mxu0 0.0
          %7856 = vmatprep.subr.mxu0 0.0
          %7857 = vmatpush2.msra.mxu0 0.0
          %7858 = vmatprep.subr.mxu0 0.0
          %7859 = vmatpush2.msra.mxu0 0.0
          %7860 = vmatprep.subr.mxu0 0.0
          %7861 = vmatpush2.msra.mxu0 0.0
          %7862 = vmatprep.subr.mxu0 0.0
          %7863 = vmatpush2.msra.mxu0 0.0
          %7864 = vmatprep.mubr.f32.mxu0 0.0
          %7865 = vmatmul.mubr.f32.gmra.mxu0 %v7712
          %v7866 = vpop.f32.mrf.mxu0
          %v7867 = vadd.f32 0.0, %v7866
          %v7868 = vpop.f32.mrf.mxu0
          %7869 = vmatprep.mubr.f32.mxu0 0.0
          %7870 = vmatmul.mubr.f32.gmra.mxu0 %v7715
          %v7871 = vpop.f32.mrf.mxu0
          %v7872 = vadd.f32 0.0, %v7871
          %v7873 = vpop.f32.mrf.mxu0
          %7874 = vdwg.mxu0
          %v7875 = vadd.f32 %v7689, %v7790
          %v7876 = vadd.f32 %v7690, %v7792
          %v7877 = vadd.f32 %v7691, %v7867
          %v7878 = vadd.f32 %v7692, %v7796
          %v7879 = vadd.f32 %v7693, %v7798
          %v7880 = vadd.f32 %v7694, %v7872
          %v7881 = vld [vmem:[#allocation3] sm:$0xff]
          %v7882 = vld [vmem:[#allocation3 + $0x8] sm:$0xf]
          %s7883 = scalar_lea.vmem %s8, 112
          %v7884 = vld [vmem:[%s7883] sm:$0xff]
          %v7885 = vld [vmem:[%s7883 + $0x8] sm:$0xff]
          %v7888 = vcombine.high %v7881, %v7881
          %7889 = vrot.lane.b32.xlu0 %v7881, 91
          %v7890 = vpop.permute.xlu0 %7889
          %7891 = vrot.lane.b32.xlu0 %v7888, 91
          %v7892 = vpop.permute.xlu0 %7891
          %7893 = vrot.lane.b32.xlu0 %v7882, 91
          %v7894 = vpop.permute.xlu0 %7893
          %v7895 = vsel %vm3157, %v7890, %v7892
          %v7896 = vsel %vm3157, %v7892, %v7894
          %v7898 = vsel %vm1997, %v7884, 0
          %v7901 = vsel %vm1997, %v7885, 0
          %v7903 = vsel %vm2001, %v7895, 0
          %v7905 = vsel %vm2001, %v7896, 0
          %v7907 = vsel %vm2001, %v7894, 0
          %7909 = vmatprep.subr.mxu0 0.0
          %7910 = vmatpush1.msra.mxu0 0.0
          %7911 = vmatprep.subr.mxu0 0.0
          %7912 = vmatpush1.msra.mxu0 0.0
          %7913 = vmatprep.subr.mxu0 0.0
          %7914 = vmatpush1.msra.mxu0 0.0
          %7915 = vmatprep.subr.mxu0 0.0
          %7916 = vmatpush1.msra.mxu0 0.0
          %7917 = vmatprep.subr.mxu0 0.0
          %7918 = vmatpush1.msra.mxu0 0.0
          %7919 = vmatprep.subr.mxu0 0.0
          %7920 = vmatpush1.msra.mxu0 0.0
          %7921 = vmatprep.subr.mxu0 0.0
          %7922 = vmatpush1.msra.mxu0 0.0
          %7923 = vmatprep.subr.mxu0 0.0
          %7924 = vmatpush1.msra.mxu0 0.0
          %7925 = vmatprep.subr.mxu0 0.0
          %7926 = vmatpush1.msra.mxu0 0.0
          %7927 = vmatprep.subr.mxu0 0.0
          %7928 = vmatpush1.msra.mxu0 0.0
          %7929 = vmatprep.subr.mxu0 0.0
          %7930 = vmatpush1.msra.mxu0 0.0
          %7931 = vmatprep.subr.mxu0 0.0
          %7932 = vmatpush1.msra.mxu0 0.0
          %7933 = vmatprep.subr.mxu0 0.0
          %7934 = vmatpush1.msra.mxu0 0.0
          %7935 = vmatprep.subr.mxu0 0.0
          %7936 = vmatpush1.msra.mxu0 0.0
          %7937 = vmatprep.subr.mxu0 0.0
          %7938 = vmatpush1.msra.mxu0 0.0
          %7939 = vmatprep.subr.mxu0 %v7905
          %7940 = vmatpush1.msra.mxu0 %v7903
          %7941 = vmatprep.subr.mxu0 0.0
          %7942 = vmatpush2.msra.mxu0 0.0
          %7943 = vmatprep.subr.mxu0 0.0
          %7944 = vmatpush2.msra.mxu0 0.0
          %7945 = vmatprep.subr.mxu0 0.0
          %7946 = vmatpush2.msra.mxu0 0.0
          %7947 = vmatprep.subr.mxu0 0.0
          %7948 = vmatpush2.msra.mxu0 0.0
          %7949 = vmatprep.subr.mxu0 0.0
          %7950 = vmatpush2.msra.mxu0 0.0
          %7951 = vmatprep.subr.mxu0 0.0
          %7952 = vmatpush2.msra.mxu0 0.0
          %7953 = vmatprep.subr.mxu0 0.0
          %7954 = vmatpush2.msra.mxu0 0.0
          %7955 = vmatprep.subr.mxu0 0.0
          %7956 = vmatpush2.msra.mxu0 0.0
          %7957 = vmatprep.subr.mxu0 0.0
          %7958 = vmatpush2.msra.mxu0 0.0
          %7959 = vmatprep.subr.mxu0 0.0
          %7960 = vmatpush2.msra.mxu0 0.0
          %7961 = vmatprep.subr.mxu0 0.0
          %7962 = vmatpush2.msra.mxu0 0.0
          %7963 = vmatprep.subr.mxu0 0.0
          %7964 = vmatpush2.msra.mxu0 0.0
          %7965 = vmatprep.subr.mxu0 0.0
          %7966 = vmatpush2.msra.mxu0 0.0
          %7967 = vmatprep.subr.mxu0 0.0
          %7968 = vmatpush2.msra.mxu0 0.0
          %7969 = vmatprep.subr.mxu0 0.0
          %7970 = vmatpush2.msra.mxu0 0.0
          %7971 = vmatprep.subr.mxu0 0.0
          %7972 = vmatpush2.msra.mxu0 0.0
          %7973 = vmatprep.mubr.f32.mxu0 0.0
          %7974 = vmatmul.mubr.f32.gmra.mxu0 %v7898
          %v7975 = vpop.f32.mrf.mxu0
          %v7976 = vadd.f32 0.0, %v7975
          %v7977 = vpop.f32.mrf.mxu0
          %v7978 = vadd.f32 0.0, %v7977
          %7979 = vmatprep.mubr.f32.mxu0 0.0
          %7980 = vmatmul.mubr.f32.gmra.mxu0 %v7901
          %v7981 = vpop.f32.mrf.mxu0
          %v7982 = vadd.f32 0.0, %v7981
          %v7983 = vpop.f32.mrf.mxu0
          %v7984 = vadd.f32 0.0, %v7983
          %7985 = vdwg.mxu0
          %7986 = vmatprep.subr.mxu0 0.0
          %7987 = vmatpush1.msra.mxu0 0.0
          %7988 = vmatprep.subr.mxu0 0.0
          %7989 = vmatpush1.msra.mxu0 0.0
          %7990 = vmatprep.subr.mxu0 0.0
          %7991 = vmatpush1.msra.mxu0 0.0
          %7992 = vmatprep.subr.mxu0 0.0
          %7993 = vmatpush1.msra.mxu0 0.0
          %7994 = vmatprep.subr.mxu0 0.0
          %7995 = vmatpush1.msra.mxu0 0.0
          %7996 = vmatprep.subr.mxu0 0.0
          %7997 = vmatpush1.msra.mxu0 0.0
          %7998 = vmatprep.subr.mxu0 0.0
          %7999 = vmatpush1.msra.mxu0 0.0
          %8000 = vmatprep.subr.mxu0 0.0
          %8001 = vmatpush1.msra.mxu0 0.0
          %8002 = vmatprep.subr.mxu0 0.0
          %8003 = vmatpush1.msra.mxu0 0.0
          %8004 = vmatprep.subr.mxu0 0.0
          %8005 = vmatpush1.msra.mxu0 0.0
          %8006 = vmatprep.subr.mxu0 0.0
          %8007 = vmatpush1.msra.mxu0 0.0
          %8008 = vmatprep.subr.mxu0 0.0
          %8009 = vmatpush1.msra.mxu0 0.0
          %8010 = vmatprep.subr.mxu0 0.0
          %8011 = vmatpush1.msra.mxu0 0.0
          %8012 = vmatprep.subr.mxu0 0.0
          %8013 = vmatpush1.msra.mxu0 0.0
          %8014 = vmatprep.subr.mxu0 0.0
          %8015 = vmatpush1.msra.mxu0 0.0
          %8016 = vmatprep.subr.mxu0 0.0
          %8017 = vmatpush1.msra.mxu0 %v7907
          %8018 = vmatprep.subr.mxu0 0.0
          %8019 = vmatpush2.msra.mxu0 0.0
          %8020 = vmatprep.subr.mxu0 0.0
          %8021 = vmatpush2.msra.mxu0 0.0
          %8022 = vmatprep.subr.mxu0 0.0
          %8023 = vmatpush2.msra.mxu0 0.0
          %8024 = vmatprep.subr.mxu0 0.0
          %8025 = vmatpush2.msra.mxu0 0.0
          %8026 = vmatprep.subr.mxu0 0.0
          %8027 = vmatpush2.msra.mxu0 0.0
          %8028 = vmatprep.subr.mxu0 0.0
          %8029 = vmatpush2.msra.mxu0 0.0
          %8030 = vmatprep.subr.mxu0 0.0
          %8031 = vmatpush2.msra.mxu0 0.0
          %8032 = vmatprep.subr.mxu0 0.0
          %8033 = vmatpush2.msra.mxu0 0.0
          %8034 = vmatprep.subr.mxu0 0.0
          %8035 = vmatpush2.msra.mxu0 0.0
          %8036 = vmatprep.subr.mxu0 0.0
          %8037 = vmatpush2.msra.mxu0 0.0
          %8038 = vmatprep.subr.mxu0 0.0
          %8039 = vmatpush2.msra.mxu0 0.0
          %8040 = vmatprep.subr.mxu0 0.0
          %8041 = vmatpush2.msra.mxu0 0.0
          %8042 = vmatprep.subr.mxu0 0.0
          %8043 = vmatpush2.msra.mxu0 0.0
          %8044 = vmatprep.subr.mxu0 0.0
          %8045 = vmatpush2.msra.mxu0 0.0
          %8046 = vmatprep.subr.mxu0 0.0
          %8047 = vmatpush2.msra.mxu0 0.0
          %8048 = vmatprep.subr.mxu0 0.0
          %8049 = vmatpush2.msra.mxu0 0.0
          %8050 = vmatprep.mubr.f32.mxu0 0.0
          %8051 = vmatmul.mubr.f32.gmra.mxu0 %v7898
          %v8052 = vpop.f32.mrf.mxu0
          %v8053 = vadd.f32 0.0, %v8052
          %v8054 = vpop.f32.mrf.mxu0
          %8055 = vmatprep.mubr.f32.mxu0 0.0
          %8056 = vmatmul.mubr.f32.gmra.mxu0 %v7901
          %v8057 = vpop.f32.mrf.mxu0
          %v8058 = vadd.f32 0.0, %v8057
          %v8059 = vpop.f32.mrf.mxu0
          %8060 = vdwg.mxu0
          %v8061 = vadd.f32 %v7875, %v7976
          %v8062 = vadd.f32 %v7876, %v7978
          %v8063 = vadd.f32 %v7877, %v8053
          %v8064 = vadd.f32 %v7878, %v7982
          %v8065 = vadd.f32 %v7879, %v7984
          %v8066 = vadd.f32 %v7880, %v8058
          %v8067 = vld [vmem:[#allocation3] sm:$0xff]
          %v8068 = vld [vmem:[#allocation3 + $0x8] sm:$0xf]
          %s8069 = scalar_lea.vmem %s8, 128
          %v8070 = vld [vmem:[%s8069] sm:$0xff]
          %v8071 = vld [vmem:[%s8069 + $0x8] sm:$0xff]
          %v8074 = vcombine.high %v8067, %v8067
          %8075 = vrot.lane.b32.xlu0 %v8067, 90
          %v8076 = vpop.permute.xlu0 %8075
          %8077 = vrot.lane.b32.xlu0 %v8074, 90
          %v8078 = vpop.permute.xlu0 %8077
          %8079 = vrot.lane.b32.xlu0 %v8068, 90
          %v8080 = vpop.permute.xlu0 %8079
          %v8081 = vsel %vm3326, %v8076, %v8078
          %v8082 = vsel %vm3326, %v8078, %v8080
          %v8084 = vsel %vm1997, %v8070, 0
          %v8087 = vsel %vm1997, %v8071, 0
          %v8089 = vsel %vm2001, %v8081, 0
          %v8091 = vsel %vm2001, %v8082, 0
          %v8093 = vsel %vm2001, %v8080, 0
          %8095 = vmatprep.subr.mxu0 0.0
          %8096 = vmatpush1.msra.mxu0 0.0
          %8097 = vmatprep.subr.mxu0 0.0
          %8098 = vmatpush1.msra.mxu0 0.0
          %8099 = vmatprep.subr.mxu0 0.0
          %8100 = vmatpush1.msra.mxu0 0.0
          %8101 = vmatprep.subr.mxu0 0.0
          %8102 = vmatpush1.msra.mxu0 0.0
          %8103 = vmatprep.subr.mxu0 0.0
          %8104 = vmatpush1.msra.mxu0 0.0
          %8105 = vmatprep.subr.mxu0 0.0
          %8106 = vmatpush1.msra.mxu0 0.0
          %8107 = vmatprep.subr.mxu0 0.0
          %8108 = vmatpush1.msra.mxu0 0.0
          %8109 = vmatprep.subr.mxu0 0.0
          %8110 = vmatpush1.msra.mxu0 0.0
          %8111 = vmatprep.subr.mxu0 0.0
          %8112 = vmatpush1.msra.mxu0 0.0
          %8113 = vmatprep.subr.mxu0 0.0
          %8114 = vmatpush1.msra.mxu0 0.0
          %8115 = vmatprep.subr.mxu0 0.0
          %8116 = vmatpush1.msra.mxu0 0.0
          %8117 = vmatprep.subr.mxu0 0.0
          %8118 = vmatpush1.msra.mxu0 0.0
          %8119 = vmatprep.subr.mxu0 0.0
          %8120 = vmatpush1.msra.mxu0 0.0
          %8121 = vmatprep.subr.mxu0 0.0
          %8122 = vmatpush1.msra.mxu0 0.0
          %8123 = vmatprep.subr.mxu0 0.0
          %8124 = vmatpush1.msra.mxu0 0.0
          %8125 = vmatprep.subr.mxu0 %v8091
          %8126 = vmatpush1.msra.mxu0 %v8089
          %8127 = vmatprep.subr.mxu0 0.0
          %8128 = vmatpush2.msra.mxu0 0.0
          %8129 = vmatprep.subr.mxu0 0.0
          %8130 = vmatpush2.msra.mxu0 0.0
          %8131 = vmatprep.subr.mxu0 0.0
          %8132 = vmatpush2.msra.mxu0 0.0
          %8133 = vmatprep.subr.mxu0 0.0
          %8134 = vmatpush2.msra.mxu0 0.0
          %8135 = vmatprep.subr.mxu0 0.0
          %8136 = vmatpush2.msra.mxu0 0.0
          %8137 = vmatprep.subr.mxu0 0.0
          %8138 = vmatpush2.msra.mxu0 0.0
          %8139 = vmatprep.subr.mxu0 0.0
          %8140 = vmatpush2.msra.mxu0 0.0
          %8141 = vmatprep.subr.mxu0 0.0
          %8142 = vmatpush2.msra.mxu0 0.0
          %8143 = vmatprep.subr.mxu0 0.0
          %8144 = vmatpush2.msra.mxu0 0.0
          %8145 = vmatprep.subr.mxu0 0.0
          %8146 = vmatpush2.msra.mxu0 0.0
          %8147 = vmatprep.subr.mxu0 0.0
          %8148 = vmatpush2.msra.mxu0 0.0
          %8149 = vmatprep.subr.mxu0 0.0
          %8150 = vmatpush2.msra.mxu0 0.0
          %8151 = vmatprep.subr.mxu0 0.0
          %8152 = vmatpush2.msra.mxu0 0.0
          %8153 = vmatprep.subr.mxu0 0.0
          %8154 = vmatpush2.msra.mxu0 0.0
          %8155 = vmatprep.subr.mxu0 0.0
          %8156 = vmatpush2.msra.mxu0 0.0
          %8157 = vmatprep.subr.mxu0 0.0
          %8158 = vmatpush2.msra.mxu0 0.0
          %8159 = vmatprep.mubr.f32.mxu0 0.0
          %8160 = vmatmul.mubr.f32.gmra.mxu0 %v8084
          %v8161 = vpop.f32.mrf.mxu0
          %v8162 = vadd.f32 0.0, %v8161
          %v8163 = vpop.f32.mrf.mxu0
          %v8164 = vadd.f32 0.0, %v8163
          %8165 = vmatprep.mubr.f32.mxu0 0.0
          %8166 = vmatmul.mubr.f32.gmra.mxu0 %v8087
          %v8167 = vpop.f32.mrf.mxu0
          %v8168 = vadd.f32 0.0, %v8167
          %v8169 = vpop.f32.mrf.mxu0
          %v8170 = vadd.f32 0.0, %v8169
          %8171 = vdwg.mxu0
          %8172 = vmatprep.subr.mxu0 0.0
          %8173 = vmatpush1.msra.mxu0 0.0
          %8174 = vmatprep.subr.mxu0 0.0
          %8175 = vmatpush1.msra.mxu0 0.0
          %8176 = vmatprep.subr.mxu0 0.0
          %8177 = vmatpush1.msra.mxu0 0.0
          %8178 = vmatprep.subr.mxu0 0.0
          %8179 = vmatpush1.msra.mxu0 0.0
          %8180 = vmatprep.subr.mxu0 0.0
          %8181 = vmatpush1.msra.mxu0 0.0
          %8182 = vmatprep.subr.mxu0 0.0
          %8183 = vmatpush1.msra.mxu0 0.0
          %8184 = vmatprep.subr.mxu0 0.0
          %8185 = vmatpush1.msra.mxu0 0.0
          %8186 = vmatprep.subr.mxu0 0.0
          %8187 = vmatpush1.msra.mxu0 0.0
          %8188 = vmatprep.subr.mxu0 0.0
          %8189 = vmatpush1.msra.mxu0 0.0
          %8190 = vmatprep.subr.mxu0 0.0
          %8191 = vmatpush1.msra.mxu0 0.0
          %8192 = vmatprep.subr.mxu0 0.0
          %8193 = vmatpush1.msra.mxu0 0.0
          %8194 = vmatprep.subr.mxu0 0.0
          %8195 = vmatpush1.msra.mxu0 0.0
          %8196 = vmatprep.subr.mxu0 0.0
          %8197 = vmatpush1.msra.mxu0 0.0
          %8198 = vmatprep.subr.mxu0 0.0
          %8199 = vmatpush1.msra.mxu0 0.0
          %8200 = vmatprep.subr.mxu0 0.0
          %8201 = vmatpush1.msra.mxu0 0.0
          %8202 = vmatprep.subr.mxu0 0.0
          %8203 = vmatpush1.msra.mxu0 %v8093
          %8204 = vmatprep.subr.mxu0 0.0
          %8205 = vmatpush2.msra.mxu0 0.0
          %8206 = vmatprep.subr.mxu0 0.0
          %8207 = vmatpush2.msra.mxu0 0.0
          %8208 = vmatprep.subr.mxu0 0.0
          %8209 = vmatpush2.msra.mxu0 0.0
          %8210 = vmatprep.subr.mxu0 0.0
          %8211 = vmatpush2.msra.mxu0 0.0
          %8212 = vmatprep.subr.mxu0 0.0
          %8213 = vmatpush2.msra.mxu0 0.0
          %8214 = vmatprep.subr.mxu0 0.0
          %8215 = vmatpush2.msra.mxu0 0.0
          %8216 = vmatprep.subr.mxu0 0.0
          %8217 = vmatpush2.msra.mxu0 0.0
          %8218 = vmatprep.subr.mxu0 0.0
          %8219 = vmatpush2.msra.mxu0 0.0
          %8220 = vmatprep.subr.mxu0 0.0
          %8221 = vmatpush2.msra.mxu0 0.0
          %8222 = vmatprep.subr.mxu0 0.0
          %8223 = vmatpush2.msra.mxu0 0.0
          %8224 = vmatprep.subr.mxu0 0.0
          %8225 = vmatpush2.msra.mxu0 0.0
          %8226 = vmatprep.subr.mxu0 0.0
          %8227 = vmatpush2.msra.mxu0 0.0
          %8228 = vmatprep.subr.mxu0 0.0
          %8229 = vmatpush2.msra.mxu0 0.0
          %8230 = vmatprep.subr.mxu0 0.0
          %8231 = vmatpush2.msra.mxu0 0.0
          %8232 = vmatprep.subr.mxu0 0.0
          %8233 = vmatpush2.msra.mxu0 0.0
          %8234 = vmatprep.subr.mxu0 0.0
          %8235 = vmatpush2.msra.mxu0 0.0
          %8236 = vmatprep.mubr.f32.mxu0 0.0
          %8237 = vmatmul.mubr.f32.gmra.mxu0 %v8084
          %v8238 = vpop.f32.mrf.mxu0
          %v8239 = vadd.f32 0.0, %v8238
          %v8240 = vpop.f32.mrf.mxu0
          %8241 = vmatprep.mubr.f32.mxu0 0.0
          %8242 = vmatmul.mubr.f32.gmra.mxu0 %v8087
          %v8243 = vpop.f32.mrf.mxu0
          %v8244 = vadd.f32 0.0, %v8243
          %v8245 = vpop.f32.mrf.mxu0
          %8246 = vdwg.mxu0
          %v8247 = vadd.f32 %v8061, %v8162
          %v8248 = vadd.f32 %v8062, %v8164
          %v8249 = vadd.f32 %v8063, %v8239
          %v8250 = vadd.f32 %v8064, %v8168
          %v8251 = vadd.f32 %v8065, %v8170
          %v8252 = vadd.f32 %v8066, %v8244
          %8254 = vset.pattern.permute.xlu0 0
          %8255 = vperm.xlu0 %8254, %v6603
          %v8256 = vpop.permute.xlu0 %8255
          %8259 = vset.pattern.permute.xlu0 0
          %8260 = vperm.xlu0 %8259, %v6604
          %v8261 = vpop.permute.xlu0 %8260
          %v8263 = vadd.f32 %v8247, %v8256
          %v8264 = vadd.f32 %v8248, %v8256
          %v8265 = vadd.f32 %v8249, %v8256
          %v8266 = vadd.f32 %v8250, %v8261
          %v8267 = vadd.f32 %v8251, %v8261
          %v8268 = vadd.f32 %v8252, %v8261
          %8269 = vst [vmem:[%s394] sm:$0xff] %v8263
          %8270 = vst [vmem:[%s394 + $0x8] sm:$0xff] %v8264
          %vm8271 = vcmask 261120
          %8272 = vst.msk [vmem:[%s394 + $0x10] sm:$0xff] %vm8271, %v8265
          %8273 = vst [vmem:[%s394 + $0x18] sm:$0xff] %v8266
          %8274 = vst [vmem:[%s394 + $0x20] sm:$0xff] %v8267
          %8275 = vst.msk [vmem:[%s394 + $0x28] sm:$0xff] %vm8271, %v8268
        $region72: #{tpu_custom_call.1} parent=59 // pred_fallthru
          _
        %s8276 = sand.u32 %s269, 1
        %s8277 = scalar_lea.sflag [#allocation6], %s8276
        %s8278 = sand.u32 %s269, 1
        %s8279 = smul.addr %s8278, 48
        %s8280 = scalar_lea.vmem [#allocation5], %s8279
        // Predicated region
        $region73: #{tpu_custom_call.1} parent=59 // pred_check
          %p8281 = pneg %p279
        $region74: #{tpu_custom_call.1} parent=59 // pred_check_branch
          %8283 = sbr.rel (%p8281) target = $region76
        $region75: #{tpu_custom_call.1} parent=59 // pred_region
          %s8285 = ssub.s32 768, 768
          %8286 = vsyncadd %s8277, %s8285
          %s8287 = smul.addr %s28, 6
          %s8288 = smul.addr %s8287, 128
          %s8289 = scalar_lea.hbm %s10, %s8288
          %s8290 = sshll.u32 %s8280, 4
          %s8291 = int_to_ptr.vmem [resolvable:$true] %s8290
          %8296 = dma.vmem_to_hbm [thread:$0]  %s8291, 768, %s8289, %s8277, 384, 384, 24
        $region76: #{tpu_custom_call.1} parent=59 // pred_fallthru
          _
      $region60: #{tpu_custom_call.1} parent=5 // pred_fallthru
        _
      %p8297 = scmp.le.s32.totalorder 2, %s19
      // Predicated region
      $region77: #{tpu_custom_call.1} parent=5 // pred_check
        %p8298 = pneg %p8297
      $region78: #{tpu_custom_call.1} parent=5 // pred_check_branch
        %8300 = sbr.rel (%p8298) target = $region80
      $region79: #{tpu_custom_call.1} parent=5 // pred_region
        %s8301 = ssub.s32 %s19, 2
        // Predicated region
        $region81: #{tpu_custom_call.1} parent=79 // pred_check
          %p8302 = pneg %p285
        $region82: #{tpu_custom_call.1} parent=79 // pred_check_branch
          %8304 = sbr.rel (%p8302) target = $region84
        $region83: #{tpu_custom_call.1} parent=79 // pred_region
          %s8305 = sand.u32 %s270, 1
          %s8306 = scalar_lea.sflag [#allocation6], %s8305
          %s8307 = sand.u32 %s270, 1
          %s8308 = smul.addr %s8307, 48
          %s8309 = scalar_lea.vmem [#allocation5], %s8308
          %8310 = dma.done %s8306, 768
        $region84: #{tpu_custom_call.1} parent=79 // pred_fallthru
          _
      $region80: #{tpu_custom_call.1} parent=5 // pred_fallthru
        _
    $region6: #{tpu_custom_call.1} parent=1 // loop_footer
      %s23 = sadd.s32 1, %s19
    $region7: #{tpu_custom_call.1} parent=1 // loop_footer_branch
      %18 = sbr.rel target = $region3
    $region8: #{tpu_custom_call.1} parent=1 // loop_exit
      _
    %8311 = vsyncpa [#allocation6], 1
    %s8312 = scalar_lea.sflag [#allocation6], 1
    %8313 = vsyncpa %s8312, 1

</llo_original>
